<compile_context>
chip_gen: v7x
topology: tpu7x:2x2x1
jax: 0.10.0
libtpu: 0.0.40
codegen_flags: <defaults>
</compile_context>

<pallas_src>
import functools
import math

import jax
import jax.numpy as jnp
from jax import lax
from jax.experimental import pallas as pl
from jax.experimental.pallas import tpu as pltpu

# ---- original module constants (house.py) ----------------------------------
DATA_SIZE = 30
PRED_HIDDEN = 400
E_SHAPE = DATA_SIZE * PRED_HIDDEN + PRED_HIDDEN * PRED_HIDDEN + 3 * PRED_HIDDEN + 1
EMBED_DIM = 32
LATENT_DIM = 128
RK_STEP = 30

# Set to jnp.bfloat16 to halve HBM traffic on the E_shape-sized layers
# (all hot layers are bandwidth bound at M<=8); accumulation stays f32.
WEIGHT_DTYPE = jnp.float32

TK_CAP = 1024              # reduction-tile cap
TN_CAP = 2048              # output-tile cap  -> 8 MiB f32 weight tiles
VMEM_LIMIT = 48 * 1024 * 1024


def _round_up(x, m):
    return ((x + m - 1) // m) * m


def _tile_kn(K, N):
    """Tile sizes + padded dims for a (K, N) weight.  Deterministic so the
    pre-padded weights (made at init) and the per-call wrapper always agree."""
    tk = min(_round_up(K, 128), TK_CAP)
    Np128 = _round_up(N, 128)
    tn = min(Np128, TN_CAP)
    # Expose >=2 output blocks where N is mid-sized so the v7x megacore can
    # split the "parallel" j axis (negligible cost on single-TC chips).
    if Np128 // tn < 2 and N >= 512:
        tn = _round_up(Np128 // 2, 128)
    Kp = _round_up(K, tk)
    Np = _round_up(N, tn)
    return tk, tn, Kp, Np


# ---- Pallas kernel: O = act(X @ W + b), accumulated directly into o_ref -----
def _linear_kernel(x_ref, w_ref, b_ref, o_ref, *, act, k_axis):
    k = pl.program_id(k_axis)

    @pl.when(k == 0)
    def _():
        # Fold the bias into the accumulator init (saves a separate add pass).
        o_ref[...] = jnp.broadcast_to(
            b_ref[...].astype(jnp.float32), o_ref.shape)

    o_ref[...] += jnp.dot(x_ref[...], w_ref[...],
                          preferred_element_type=jnp.float32)

    if act != "none":
        @pl.when(k == pl.num_programs(k_axis) - 1)
        def _():
            y = o_ref[...]
            if act == "relu":
                y = jnp.maximum(y, 0.0)
            else:  # tanh
                y = jnp.tanh(y)
            o_ref[...] = y


def _call_linear_2d(xp, wp, bp, *, act, tm, tk, tn):
    Mp, Kp = xp.shape
    _, Np = wp.shape
    return pl.pallas_call(
        functools.partial(_linear_kernel, act=act, k_axis=2),
        out_shape=jax.ShapeDtypeStruct((Mp, Np), jnp.float32),
        grid_spec=pltpu.PrefetchScalarGridSpec(
            num_scalar_prefetch=0,
            grid=(Mp // tm, Np // tn, Kp // tk),
            in_specs=[
                pl.BlockSpec((tm, tk), lambda i, j, k: (i, k)),
                pl.BlockSpec((tk, tn), lambda i, j, k: (k, j)),
                pl.BlockSpec((1, tn), lambda i, j, k: (0, j)),
            ],
            out_specs=pl.BlockSpec((tm, tn), lambda i, j, k: (i, j)),
        ),
        compiler_params=pltpu.CompilerParams(
            dimension_semantics=("parallel", "parallel", "arbitrary"),
            vmem_limit_bytes=VMEM_LIMIT,
        ),
    )(xp, wp, bp)


def _call_linear_batched(xp, wp, bp, *, act, tm, tk, tn):
    D, Mp, Kp = xp.shape
    _, _, Np = wp.shape
    return pl.pallas_call(
        functools.partial(_linear_kernel, act=act, k_axis=3),
        out_shape=jax.ShapeDtypeStruct((D, Mp, Np), jnp.float32),
        grid_spec=pltpu.PrefetchScalarGridSpec(
            num_scalar_prefetch=0,
            grid=(D, Mp // tm, Np // tn, Kp // tk),
            in_specs=[
                pl.BlockSpec((None, tm, tk), lambda d, i, j, k: (d, i, k)),
                pl.BlockSpec((None, tk, tn), lambda d, i, j, k: (d, k, j)),
                pl.BlockSpec((None, 1, tn), lambda d, i, j, k: (d, 0, j)),
            ],
            out_specs=pl.BlockSpec((None, tm, tn), lambda d, i, j, k: (d, i, j)),
        ),
        compiler_params=pltpu.CompilerParams(
            dimension_semantics=("parallel", "parallel", "parallel", "arbitrary"),
            vmem_limit_bytes=VMEM_LIMIT,
        ),
    )(xp, wp, bp)


# ---- layer packing (done ONCE for static weights) ---------------------------
def prep_2d(w_t, b, dtype=None):
    """w_t: (K, N) already (in, out); returns (padded weight, unpadded bias)."""
    dtype = WEIGHT_DTYPE if dtype is None else dtype
    K, N = w_t.shape
    tk, tn, Kp, Np = _tile_kn(K, N)
    wp = jnp.pad(w_t.astype(dtype), ((0, Kp - K), (0, Np - N)))
    return wp, b.astype(jnp.float32)


def prep_batched(w_t, b, dtype=None):
    """w_t: (D, K, N) already (in, out); returns (padded weight, unpadded bias)."""
    dtype = WEIGHT_DTYPE if dtype is None else dtype
    D, K, N = w_t.shape
    tk, tn, Kp, Np = _tile_kn(K, N)
    wp = jnp.pad(w_t.astype(dtype), ((0, 0), (0, Kp - K), (0, Np - N)))
    return wp, b.astype(jnp.float32)


def apply_linear(layer, x, act="none"):
    wp, b = layer
    M, K = x.shape
    N = b.shape[-1]
    tk, tn, Kp, Np = _tile_kn(K, N)
    assert wp.shape == (Kp, Np), (wp.shape, (Kp, Np))
    tm = min(_round_up(M, 8), 128)
    Mp = _round_up(M, tm)
    xp = jnp.pad(x.astype(wp.dtype), ((0, Mp - M), (0, Kp - K)))
    bp = jnp.pad(b.reshape(1, N).astype(jnp.float32), ((0, 0), (0, Np - N)))
    out = _call_linear_2d(xp, wp, bp, act=act, tm=tm, tk=tk, tn=tn)
    return out[:M, :N]


def apply_linear_batched(layer, x, act="none"):
    wp, b = layer
    D, M, K = x.shape
    N = b.shape[-1]
    tk, tn, Kp, Np = _tile_kn(K, N)
    assert wp.shape == (D, Kp, Np), (wp.shape, (D, Kp, Np))
    tm = min(_round_up(M, 8), 128)
    Mp = _round_up(M, tm)
    xp = jnp.pad(x.astype(wp.dtype), ((0, 0), (0, Mp - M), (0, Kp - K)))
    bp = jnp.pad(b.reshape(D, 1, N).astype(jnp.float32),
                 ((0, 0), (0, 0), (0, Np - N)))
    out = _call_linear_batched(xp, wp, bp, act=act, tm=tm, tk=tk, tn=tn)
    return out[:, :M, :N]


# ---- parameter init (deterministic, PyTorch-Linear-style uniform) -----------
def _init_linear(key, out_dim, in_dim):
    kw, kb = jax.random.split(key)
    bound = 1.0 / math.sqrt(in_dim)
    w = jax.random.uniform(kw, (out_dim, in_dim), jnp.float32, -bound, bound)
    b = jax.random.uniform(kb, (out_dim,), jnp.float32, -bound, bound)
    return w, b


def init_rnn1_params(key, n_time, *, data_size=DATA_SIZE, pred_hidden=PRED_HIDDEN,
                     enc_widths=(1024, 512, 128), embed_dim=EMBED_DIM,
                     latent_dim=LATENT_DIM):
    e_shape = data_size * pred_hidden + pred_hidden * pred_hidden + 3 * pred_hidden + 1
    k_pred, k_enc, k_dec, k_ode = jax.random.split(key, 4)

    # Per-time-point pred models: Linear(ds,H) ReLU Linear(H,H) ReLU Linear(H,1)
    W1, B1, W2, B2, W3, B3, flat = [], [], [], [], [], [], []
    for i in range(n_time):
        k1, k2, k3 = jax.random.split(jax.random.fold_in(k_pred, i), 3)
        w1, b1 = _init_linear(k1, pred_hidden, data_size)
        w2, b2 = _init_linear(k2, pred_hidden, pred_hidden)
        w3, b3 = _init_linear(k3, 1, pred_hidden)
        W1.append(w1); B1.append(b1); W2.append(w2); B2.append(b2)
        W3.append(w3); B3.append(b3)
        # torch.cat([p.flatten() for p in model.parameters()]) order: w1,b1,w2,b2,w3,b3
        flat.append(jnp.concatenate([w1.reshape(-1), b1, w2.reshape(-1), b2,
                                     w3.reshape(-1), b3]))
    pred_param_flat = jnp.stack(flat)                        # (n_time, e_shape)
    assert pred_param_flat.shape[-1] == e_shape

    pred1 = prep_batched(jnp.swapaxes(jnp.stack(W1), 1, 2), jnp.stack(B1))
    pred2 = prep_batched(jnp.swapaxes(jnp.stack(W2), 1, 2), jnp.stack(B2))
    pred3 = prep_batched(jnp.swapaxes(jnp.stack(W3), 1, 2), jnp.stack(B3))

    enc_out = list(enc_widths) + [embed_dim]
    enc_in = [e_shape] + list(enc_widths)
    encoder = []
    for i, (o, n) in enumerate(zip(enc_out, enc_in)):
        w, b = _init_linear(jax.random.fold_in(k_enc, i), o, n)
        encoder.append(prep_2d(w.T, b))          # transpose + pad ONCE

    dec_out = list(reversed(enc_widths)) + [e_shape]
    dec_in = [embed_dim] + list(reversed(enc_widths))
    decoder = []
    for i, (o, n) in enumerate(zip(dec_out, dec_in)):
        w, b = _init_linear(jax.random.fold_in(k_dec, i), o, n)
        decoder.append(prep_2d(w.T, b))          # transpose + pad ONCE

    # TODO(synk): `ode_func` is an external constructor argument in house.py;
    # a deterministic Linear(embed->latent) -> tanh -> Linear(latent->embed)
    # latent ODE function is used here.
    wo1, bo1 = _init_linear(jax.random.fold_in(k_ode, 0), latent_dim, embed_dim)
    wo2, bo2 = _init_linear(jax.random.fold_in(k_ode, 1), embed_dim, latent_dim)
    ode = ((wo1.T, bo1), (wo2.T, bo2))

    return {
        "pred1": pred1, "pred2": pred2, "pred3": pred3,
        "pred_param_flat": pred_param_flat,
        "encoder": encoder, "decoder": decoder, "ode": ode,
    }


# ---- forward-pass pieces -----------------------------------------------------
def mlp_apply(layers, x):
    """Sequential(Linear, ReLU, ..., Linear): ReLU after all but the last."""
    h = x
    for li, layer in enumerate(layers):
        act = "relu" if li < len(layers) - 1 else "none"
        h = apply_linear(layer, h, act=act)
    return h


def init_model(params, X):
    # TODO(synk): the `s` (start offset) argument of the original forward is
    # assumed 0 (all n_time pred models are used, in order).
    h = apply_linear_batched(params["pred1"], X, act="relu")
    h = apply_linear_batched(params["pred2"], h, act="relu")
    pred = apply_linear_batched(params["pred3"], h, act="none")   # (D, M, 1)
    D, M, _ = pred.shape
    init_pred = pred.reshape(D * M, 1)
    # Flattened pred-model parameters are static per forward; precomputed at init.
    return params["pred_param_flat"], init_pred


def _decode_pred_weights(E, ds, H):
    D = E.shape[0]
    o1 = ds * H
    o2 = o1 + H
    o3 = o2 + H * H
    o4 = o3 + H
    o5 = o4 + H
    m1 = jnp.swapaxes(E[:, :o1].reshape(D, H, ds), 1, 2)       # (D, ds, H)
    b1 = E[:, o1:o2]
    m2 = jnp.swapaxes(E[:, o2:o3].reshape(D, H, H), 1, 2)      # (D, H, H)
    b2 = E[:, o3:o4]
    m3 = jnp.swapaxes(E[:, o4:o5].reshape(D, 1, H), 1, 2)      # (D, H, 1)
    b3 = E[:, o5:o5 + 1]
    return (m1, b1), (m2, b2), (m3, b3)


def get_pred(params, X, E):
    ds = X.shape[-1]
    H = params["pred1"][1].shape[-1]          # pred hidden width (static)
    (m1, b1), (m2, b2), (m3, b3) = _decode_pred_weights(E, ds, H)
    h = apply_linear_batched(prep_batched(m1, b1), X, act="relu")
    h = apply_linear_batched(prep_batched(m2, b2), h, act="relu")
    y = apply_linear_batched(prep_batched(m3, b3), h, act="none")  # (D, M, 1)
    return y.reshape(E.shape[0] * y.shape[1], 1)


def ode_func_apply(ode_params, t, y):
    (w1t, b1), (w2t, b2) = ode_params
    h = jnp.tanh(y @ w1t + b1)
    return h @ w2t + b2


def odeint_rk4(func, y0, t):
    # TODO(synk): torchdiffeq's fixed-grid 'rk4' with options={'step_size': rk_step}
    # steps on a step_size grid and linearly interpolates requested times; since
    # rk_step (30) >= every interval of `continous_time` here, one RK4 step per
    # interval is taken instead (fully jittable, no host sync).
    ys = [y0]
    y = y0
    n = t.shape[0]
    for i in range(n - 1):
        h = t[i + 1] - t[i]
        t0 = t[i]
        k1 = func(t0, y)
        k2 = func(t0 + h / 2, y + (h / 2) * k1)
        k3 = func(t0 + h / 2, y + (h / 2) * k2)
        k4 = func(t0 + h, y + h * k3)
        y = y + (h / 6.0) * (k1 + 2.0 * k2 + 2.0 * k3 + k4)
        ys.append(y)
    return jnp.stack(ys)


def rnn1_forward(params, X, continous_time):
    init_param, init_pred = init_model(params, X)
    init_embed = mlp_apply(params["encoder"], init_param)
    E_embed = odeint_rk4(
        lambda t, y: ode_func_apply(params["ode"], t, y),
        init_embed[0], continous_time)
    # Fused decoder: decode E_embed and init_embed in a single pass so the big
    # last-layer weight streams from HBM once.
    n_t = E_embed.shape[0]
    dec_out = mlp_apply(params["decoder"],
                        jnp.concatenate([E_embed, init_embed], axis=0))
    E = dec_out[:n_t]
    init_debed = dec_out[n_t:]
    pred = get_pred(params, X, E)
    return E, pred, init_param, init_pred, init_embed, E_embed, init_debed


# ---- pure-jnp reference (uses the same zero-padded weights) ------------------
_HI = lax.Precision.HIGHEST


def _ref_linear(layer, x, act="none"):
    wp, b = layer
    K = x.shape[-1]
    N = b.shape[-1]
    w = wp[..., :K, :N].astype(jnp.float32)
    y = jnp.einsum("...mk,...kn->...mn", x.astype(jnp.float32), w,
                   precision=_HI) + b[..., None, :]
    if act == "relu":
        y = jnp.maximum(y, 0.0)
    elif act == "tanh":
        y = jnp.tanh(y)
    return y


def _ref_forward(params, X, continous_time):
    h = _ref_linear(params["pred1"], X, "relu")
    h = _ref_linear(params["pred2"], h, "relu")
    pred = _ref_linear(params["pred3"], h, "none")
    D, M, _ = pred.shape
    init_pred = pred.reshape(D * M, 1)
    init_param = params["pred_param_flat"]

    h = init_param
    for li, layer in enumerate(params["encoder"]):
        act = "relu" if li < len(params["encoder"]) - 1 else "none"
        h = _ref_linear(layer, h[None] if h.ndim == 1 else h, act)
    init_embed = h
    E_embed = odeint_rk4(
        lambda t, y: ode_func_apply(params["ode"], t, y),
        init_embed[0], continous_time)
    n_t = E_embed.shape[0]
    h = jnp.concatenate([E_embed, init_embed], axis=0)
    for li, layer in enumerate(params["decoder"]):
        act = "relu" if li < len(params["decoder"]) - 1 else "none"
        h = _ref_linear(layer, h, act)
    E = h[:n_t]
    init_debed = h[n_t:]

    ds = X.shape[-1]
    H = params["pred1"][1].shape[-1]
    (m1, b1), (m2, b2), (m3, b3) = _decode_pred_weights(E, ds, H)
    hh = jnp.maximum(jnp.einsum("dmk,dkn->dmn", X, m1, precision=_HI)
                     + b1[:, None, :], 0.0)
    hh = jnp.maximum(jnp.einsum("dmk,dkn->dmn", hh, m2, precision=_HI)
                     + b2[:, None, :], 0.0)
    yy = jnp.einsum("dmk,dkn->dmn", hh, m3, precision=_HI) + b3[:, None, :]
    pred_out = yy.reshape(E.shape[0] * yy.shape[1], 1)
    return E, pred_out, init_param, init_pred, init_embed, E_embed, init_debed


# ---- demo --------------------------------------------------------------------
if __name__ == "__main__":
    key = jax.random.PRNGKey(0)

    # SMALL demo shapes (same structure as house.py, reduced widths so the demo
    # runs quickly; kernel code is size-generic and handles full house.py shapes).
    n_time = 3
    batch = 4
    data_size = DATA_SIZE            # 30
    pred_hidden = 64                 # house.py uses 400 (E_shape = 173201)
    enc_widths = (256, 128, 64)      # house.py uses (1024, 512, 128)
    embed_dim = EMBED_DIM            # 32
    latent_dim = LATENT_DIM          # 128
    e_shape = data_size * pred_hidden + pred_hidden * pred_hidden + 3 * pred_hidden + 1

    params = init_rnn1_params(key, n_time, data_size=data_size,
                              pred_hidden=pred_hidden, enc_widths=enc_widths,
                              embed_dim=embed_dim, latent_dim=latent_dim)
    X = jax.random.normal(jax.random.fold_in(key, 777),
                          (n_time, batch, data_size), jnp.float32)
    continous_time = jnp.arange(n_time, dtype=jnp.float32)

    fwd = jax.jit(rnn1_forward)
    outs = jax.block_until_ready(fwd(params, X, continous_time))
    E, pred, init_param, init_pred, init_embed, E_embed, init_debed = outs

    assert E.shape == (n_time, e_shape)
    assert pred.shape == (n_time * batch, 1)
    assert init_param.shape == (n_time, e_shape)
    assert init_pred.shape == (n_time * batch, 1)
    assert init_embed.shape == (n_time, embed_dim)
    assert E_embed.shape == (n_time, embed_dim)
    assert init_debed.shape == (n_time, e_shape)
    assert all(bool(jnp.all(jnp.isfinite(o))) for o in outs)

    # Cross-check against the pure-jnp reference (same weights).
    refs = jax.block_until_ready(jax.jit(_ref_forward)(params, X, continous_time))
    for o, r in zip(outs, refs):
        assert o.shape == r.shape, (o.shape, r.shape)
        assert bool(jnp.allclose(o, r, rtol=3e-2, atol=3e-2)), float(
            jnp.max(jnp.abs(o - r)))

    print("KERNEL_OK")
</pallas_src>

<mosaic_0001>
module attributes {stable_mosaic.version = 11 : i64} {
  func.func @_linear_kernel(%arg0: i32, %arg1: i32, %arg2: i32, %arg3: memref<8x1024xf32, #tpu.memory_space<vmem>>, %arg4: memref<1024x256xf32, #tpu.memory_space<vmem>>, %arg5: memref<1x256xf32, #tpu.memory_space<vmem>>, %arg6: memref<8x256xf32, #tpu.memory_space<vmem>>) attributes {dimension_semantics = [#tpu.dimension_semantics<parallel>, #tpu.dimension_semantics<parallel>, #tpu.dimension_semantics<arbitrary>], iteration_bounds = array<i64: 1, 1, 7>, scalar_prefetch = 0 : i64, scratch_operands = 0 : i64, tpu.core_type = #tpu.core_type<tc>, window_params = [{transform_indices = @transform_0, window_bounds = array<i64: 8, 1024>}, {transform_indices = @transform_1, window_bounds = array<i64: 1024, 256>}, {transform_indices = @transform_2, window_bounds = array<i64: 1, 256>}, {transform_indices = @transform_3, window_bounds = array<i64: 8, 256>}]} {
    %c0_i32 = arith.constant 0 : i32
    %0 = arith.cmpi eq, %arg2, %c0_i32 : i32
    %1 = arith.extui %0 : i1 to i32
    %c0_i32_0 = arith.constant 0 : i32
    %2 = arith.cmpi ne, %1, %c0_i32_0 : i32
    scf.if %2 {
      %c0_9 = arith.constant 0 : index
      %c0_10 = arith.constant 0 : index
      %12 = vector.load %arg5[%c0_9, %c0_10] : memref<1x256xf32, #tpu.memory_space<vmem>>, vector<1x256xf32>
      %13 = vector.shape_cast %12 : vector<1x256xf32> to vector<1x256xf32>
      %14 = vector.broadcast %13 : vector<1x256xf32> to vector<8x256xf32>
      %c0_11 = arith.constant 0 : index
      %c0_12 = arith.constant 0 : index
      %15 = vector.load %arg6[%c0_11, %c0_12] : memref<8x256xf32, #tpu.memory_space<vmem>>, vector<8x256xf32>
      tpu.vector_store %arg6[%c0_11, %c0_12], %14 {strides = array<i32>} : memref<8x256xf32, #tpu.memory_space<vmem>>, vector<8x256xf32>,
    } else {
    }
    %c0 = arith.constant 0 : index
    %c0_1 = arith.constant 0 : index
    %3 = vector.load %arg6[%c0, %c0_1] : memref<8x256xf32, #tpu.memory_space<vmem>>, vector<8x256xf32>
    %c0_2 = arith.constant 0 : index
    %c0_3 = arith.constant 0 : index
    %4 = vector.load %arg3[%c0_2, %c0_3] : memref<8x1024xf32, #tpu.memory_space<vmem>>, vector<8x1024xf32>
    %c0_4 = arith.constant 0 : index
    %c0_5 = arith.constant 0 : index
    %5 = vector.load %arg4[%c0_4, %c0_5] : memref<1024x256xf32, #tpu.memory_space<vmem>>, vector<1024x256xf32>
    %cst = arith.constant dense<0.000000e+00> : vector<8x256xf32>
    %6 = tpu.matmul %4, %5, %cst {dimension_numbers = #tpu.dot_dimension_numbers<[1], [0], [0], [1], [0, 0, 1, 1], [], []>} : vector<8x1024xf32>, vector<1024x256xf32>, vector<8x256xf32> -> vector<8x256xf32>
    %7 = arith.addf %3, %6 : vector<8x256xf32>
    %c0_6 = arith.constant 0 : index
    %c0_7 = arith.constant 0 : index
    %8 = vector.load %arg6[%c0_6, %c0_7] : memref<8x256xf32, #tpu.memory_space<vmem>>, vector<8x256xf32>
    tpu.vector_store %arg6[%c0_6, %c0_7], %7 {strides = array<i32>} : memref<8x256xf32, #tpu.memory_space<vmem>>, vector<8x256xf32>,
    %c6_i32 = arith.constant 6 : i32
    %9 = arith.cmpi eq, %arg2, %c6_i32 : i32
    %10 = arith.extui %9 : i1 to i32
    %c0_i32_8 = arith.constant 0 : i32
    %11 = arith.cmpi ne, %10, %c0_i32_8 : i32
    scf.if %11 {
      %c0_9 = arith.constant 0 : index
      %c0_10 = arith.constant 0 : index
      %12 = vector.load %arg6[%c0_9, %c0_10] : memref<8x256xf32, #tpu.memory_space<vmem>>, vector<8x256xf32>
      %cst_11 = arith.constant 0.000000e+00 : f32
      %13 = vector.broadcast %cst_11 : f32 to vector<8x256xf32>
      %14 = arith.maximumf %12, %13 : vector<8x256xf32>
      %c0_12 = arith.constant 0 : index
      %c0_13 = arith.constant 0 : index
      %15 = vector.load %arg6[%c0_12, %c0_13] : memref<8x256xf32, #tpu.memory_space<vmem>>, vector<8x256xf32>
      tpu.vector_store %arg6[%c0_12, %c0_13], %14 {strides = array<i32>} : memref<8x256xf32, #tpu.memory_space<vmem>>, vector<8x256xf32>,
    } else {
    }
    return
  }
  func.func @transform_0(%arg0: i32, %arg1: i32, %arg2: i32) -> (i32, i32) {
    %c0_i32 = arith.constant 0 : i32
    return %arg0, %arg2 : i32, i32
  }
  func.func @transform_1(%arg0: i32, %arg1: i32, %arg2: i32) -> (i32, i32) {
    %c0_i32 = arith.constant 0 : i32
    return %arg2, %arg1 : i32, i32
  }
  func.func @transform_2(%arg0: i32, %arg1: i32, %arg2: i32) -> (i32, i32) {
    %c0_i32 = arith.constant 0 : i32
    %c0_i32_0 = arith.constant 0 : i32
    return %c0_i32, %arg1 : i32, i32
  }
  func.func @transform_3(%arg0: i32, %arg1: i32, %arg2: i32) -> (i32, i32) {
    %c0_i32 = arith.constant 0 : i32
    return %arg0, %arg1 : i32, i32
  }
}

module attributes {stable_mosaic.version = 11 : i64} {
  func.func @_linear_kernel(%arg0: i32, %arg1: i32, %arg2: i32, %arg3: memref<8x256xf32, #tpu.memory_space<vmem>>, %arg4: memref<256x128xf32, #tpu.memory_space<vmem>>, %arg5: memref<1x128xf32, #tpu.memory_space<vmem>>, %arg6: memref<8x128xf32, #tpu.memory_space<vmem>>) attributes {dimension_semantics = [#tpu.dimension_semantics<parallel>, #tpu.dimension_semantics<parallel>, #tpu.dimension_semantics<arbitrary>], iteration_bounds = array<i64: 1, 1, 1>, scalar_prefetch = 0 : i64, scratch_operands = 0 : i64, tpu.core_type = #tpu.core_type<tc>, window_params = [{transform_indices = @transform_0, window_bounds = array<i64: 8, 256>}, {transform_indices = @transform_1, window_bounds = array<i64: 256, 128>}, {transform_indices = @transform_2, window_bounds = array<i64: 1, 128>}, {transform_indices = @transform_3, window_bounds = array<i64: 8, 128>}]} {
    %c0_i32 = arith.constant 0 : i32
    %0 = arith.cmpi eq, %arg2, %c0_i32 : i32
    %1 = arith.extui %0 : i1 to i32
    %c0_i32_0 = arith.constant 0 : i32
    %2 = arith.cmpi ne, %1, %c0_i32_0 : i32
    scf.if %2 {
      %c0_10 = arith.constant 0 : index
      %c0_11 = arith.constant 0 : index
      %12 = vector.load %arg5[%c0_10, %c0_11] : memref<1x128xf32, #tpu.memory_space<vmem>>, vector<1x128xf32>
      %13 = vector.shape_cast %12 : vector<1x128xf32> to vector<1x128xf32>
      %14 = vector.broadcast %13 : vector<1x128xf32> to vector<8x128xf32>
      %c0_12 = arith.constant 0 : index
      %c0_13 = arith.constant 0 : index
      %15 = vector.load %arg6[%c0_12, %c0_13] : memref<8x128xf32, #tpu.memory_space<vmem>>, vector<8x128xf32>
      tpu.vector_store %arg6[%c0_12, %c0_13], %14 {strides = array<i32>} : memref<8x128xf32, #tpu.memory_space<vmem>>, vector<8x128xf32>,
    } else {
    }
    %c0 = arith.constant 0 : index
    %c0_1 = arith.constant 0 : index
    %3 = vector.load %arg6[%c0, %c0_1] : memref<8x128xf32, #tpu.memory_space<vmem>>, vector<8x128xf32>
    %c0_2 = arith.constant 0 : index
    %c0_3 = arith.constant 0 : index
    %4 = vector.load %arg3[%c0_2, %c0_3] : memref<8x256xf32, #tpu.memory_space<vmem>>, vector<8x256xf32>
    %c0_4 = arith.constant 0 : index
    %c0_5 = arith.constant 0 : index
    %5 = vector.load %arg4[%c0_4, %c0_5] : memref<256x128xf32, #tpu.memory_space<vmem>>, vector<256x128xf32>
    %cst = arith.constant dense<0.000000e+00> : vector<8x128xf32>
    %6 = tpu.matmul %4, %5, %cst {dimension_numbers = #tpu.dot_dimension_numbers<[1], [0], [0], [1], [0, 0, 1, 1], [], []>} : vector<8x256xf32>, vector<256x128xf32>, vector<8x128xf32> -> vector<8x128xf32>
    %7 = arith.addf %3, %6 : vector<8x128xf32>
    %c0_6 = arith.constant 0 : index
    %c0_7 = arith.constant 0 : index
    %8 = vector.load %arg6[%c0_6, %c0_7] : memref<8x128xf32, #tpu.memory_space<vmem>>, vector<8x128xf32>
    tpu.vector_store %arg6[%c0_6, %c0_7], %7 {strides = array<i32>} : memref<8x128xf32, #tpu.memory_space<vmem>>, vector<8x128xf32>,
    %c0_i32_8 = arith.constant 0 : i32
    %9 = arith.cmpi eq, %arg2, %c0_i32_8 : i32
    %10 = arith.extui %9 : i1 to i32
    %c0_i32_9 = arith.constant 0 : i32
    %11 = arith.cmpi ne, %10, %c0_i32_9 : i32
    scf.if %11 {
      %c0_10 = arith.constant 0 : index
      %c0_11 = arith.constant 0 : index
      %12 = vector.load %arg6[%c0_10, %c0_11] : memref<8x128xf32, #tpu.memory_space<vmem>>, vector<8x128xf32>
      %cst_12 = arith.constant 0.000000e+00 : f32
      %13 = vector.broadcast %cst_12 : f32 to vector<8x128xf32>
      %14 = arith.maximumf %12, %13 : vector<8x128xf32>
      %c0_13 = arith.constant 0 : index
      %c0_14 = arith.constant 0 : index
      %15 = vector.load %arg6[%c0_13, %c0_14] : memref<8x128xf32, #tpu.memory_space<vmem>>, vector<8x128xf32>
      tpu.vector_store %arg6[%c0_13, %c0_14], %14 {strides = array<i32>} : memref<8x128xf32, #tpu.memory_space<vmem>>, vector<8x128xf32>,
    } else {
    }
    return
  }
  func.func @transform_0(%arg0: i32, %arg1: i32, %arg2: i32) -> (i32, i32) {
    %c0_i32 = arith.constant 0 : i32
    return %arg0, %arg2 : i32, i32
  }
  func.func @transform_1(%arg0: i32, %arg1: i32, %arg2: i32) -> (i32, i32) {
    %c0_i32 = arith.constant 0 : i32
    return %arg2, %arg1 : i32, i32
  }
  func.func @transform_2(%arg0: i32, %arg1: i32, %arg2: i32) -> (i32, i32) {
    %c0_i32 = arith.constant 0 : i32
    %c0_i32_0 = arith.constant 0 : i32
    return %c0_i32, %arg1 : i32, i32
  }
  func.func @transform_3(%arg0: i32, %arg1: i32, %arg2: i32) -> (i32, i32) {
    %c0_i32 = arith.constant 0 : i32
    return %arg0, %arg1 : i32, i32
  }
}

module attributes {stable_mosaic.version = 11 : i64} {
  func.func @_linear_kernel(%arg0: i32, %arg1: i32, %arg2: i32, %arg3: memref<8x128xf32, #tpu.memory_space<vmem>>, %arg4: memref<128x128xf32, #tpu.memory_space<vmem>>, %arg5: memref<1x128xf32, #tpu.memory_space<vmem>>, %arg6: memref<8x128xf32, #tpu.memory_space<vmem>>) attributes {dimension_semantics = [#tpu.dimension_semantics<parallel>, #tpu.dimension_semantics<parallel>, #tpu.dimension_semantics<arbitrary>], iteration_bounds = array<i64: 1, 1, 1>, scalar_prefetch = 0 : i64, scratch_operands = 0 : i64, tpu.core_type = #tpu.core_type<tc>, window_params = [{transform_indices = @transform_0, window_bounds = array<i64: 8, 128>}, {transform_indices = @transform_1, window_bounds = array<i64: 128, 128>}, {transform_indices = @transform_2, window_bounds = array<i64: 1, 128>}, {transform_indices = @transform_3, window_bounds = array<i64: 8, 128>}]} {
    %c0_i32 = arith.constant 0 : i32
    %0 = arith.cmpi eq, %arg2, %c0_i32 : i32
    %1 = arith.extui %0 : i1 to i32
    %c0_i32_0 = arith.constant 0 : i32
    %2 = arith.cmpi ne, %1, %c0_i32_0 : i32
    scf.if %2 {
      %c0_10 = arith.constant 0 : index
      %c0_11 = arith.constant 0 : index
      %12 = vector.load %arg5[%c0_10, %c0_11] : memref<1x128xf32, #tpu.memory_space<vmem>>, vector<1x128xf32>
      %13 = vector.shape_cast %12 : vector<1x128xf32> to vector<1x128xf32>
      %14 = vector.broadcast %13 : vector<1x128xf32> to vector<8x128xf32>
      %c0_12 = arith.constant 0 : index
      %c0_13 = arith.constant 0 : index
      %15 = vector.load %arg6[%c0_12, %c0_13] : memref<8x128xf32, #tpu.memory_space<vmem>>, vector<8x128xf32>
      tpu.vector_store %arg6[%c0_12, %c0_13], %14 {strides = array<i32>} : memref<8x128xf32, #tpu.memory_space<vmem>>, vector<8x128xf32>,
    } else {
    }
    %c0 = arith.constant 0 : index
    %c0_1 = arith.constant 0 : index
    %3 = vector.load %arg6[%c0, %c0_1] : memref<8x128xf32, #tpu.memory_space<vmem>>, vector<8x128xf32>
    %c0_2 = arith.constant 0 : index
    %c0_3 = arith.constant 0 : index
    %4 = vector.load %arg3[%c0_2, %c0_3] : memref<8x128xf32, #tpu.memory_space<vmem>>, vector<8x128xf32>
    %c0_4 = arith.constant 0 : index
    %c0_5 = arith.constant 0 : index
    %5 = vector.load %arg4[%c0_4, %c0_5] : memref<128x128xf32, #tpu.memory_space<vmem>>, vector<128x128xf32>
    %cst = arith.constant dense<0.000000e+00> : vector<8x128xf32>
    %6 = tpu.matmul %4, %5, %cst {dimension_numbers = #tpu.dot_dimension_numbers<[1], [0], [0], [1], [0, 0, 1, 1], [], []>} : vector<8x128xf32>, vector<128x128xf32>, vector<8x128xf32> -> vector<8x128xf32>
    %7 = arith.addf %3, %6 : vector<8x128xf32>
    %c0_6 = arith.constant 0 : index
    %c0_7 = arith.constant 0 : index
    %8 = vector.load %arg6[%c0_6, %c0_7] : memref<8x128xf32, #tpu.memory_space<vmem>>, vector<8x128xf32>
    tpu.vector_store %arg6[%c0_6, %c0_7], %7 {strides = array<i32>} : memref<8x128xf32, #tpu.memory_space<vmem>>, vector<8x128xf32>,
    %c0_i32_8 = arith.constant 0 : i32
    %9 = arith.cmpi eq, %arg2, %c0_i32_8 : i32
    %10 = arith.extui %9 : i1 to i32
    %c0_i32_9 = arith.constant 0 : i32
    %11 = arith.cmpi ne, %10, %c0_i32_9 : i32
    scf.if %11 {
      %c0_10 = arith.constant 0 : index
      %c0_11 = arith.constant 0 : index
      %12 = vector.load %arg6[%c0_10, %c0_11] : memref<8x128xf32, #tpu.memory_space<vmem>>, vector<8x128xf32>
      %cst_12 = arith.constant 0.000000e+00 : f32
      %13 = vector.broadcast %cst_12 : f32 to vector<8x128xf32>
      %14 = arith.maximumf %12, %13 : vector<8x128xf32>
      %c0_13 = arith.constant 0 : index
      %c0_14 = arith.constant 0 : index
      %15 = vector.load %arg6[%c0_13, %c0_14] : memref<8x128xf32, #tpu.memory_space<vmem>>, vector<8x128xf32>
      tpu.vector_store %arg6[%c0_13, %c0_14], %14 {strides = array<i32>} : memref<8x128xf32, #tpu.memory_space<vmem>>, vector<8x128xf32>,
    } else {
    }
    return
  }
  func.func @transform_0(%arg0: i32, %arg1: i32, %arg2: i32) -> (i32, i32) {
    %c0_i32 = arith.constant 0 : i32
    return %arg0, %arg2 : i32, i32
  }
  func.func @transform_1(%arg0: i32, %arg1: i32, %arg2: i32) -> (i32, i32) {
    %c0_i32 = arith.constant 0 : i32
    return %arg2, %arg1 : i32, i32
  }
  func.func @transform_2(%arg0: i32, %arg1: i32, %arg2: i32) -> (i32, i32) {
    %c0_i32 = arith.constant 0 : i32
    %c0_i32_0 = arith.constant 0 : i32
    return %c0_i32, %arg1 : i32, i32
  }
  func.func @transform_3(%arg0: i32, %arg1: i32, %arg2: i32) -> (i32, i32) {
    %c0_i32 = arith.constant 0 : i32
    return %arg0, %arg1 : i32, i32
  }
}

module attributes {stable_mosaic.version = 11 : i64} {
  func.func @_linear_kernel(%arg0: i32, %arg1: i32, %arg2: i32, %arg3: memref<8x128xf32, #tpu.memory_space<vmem>>, %arg4: memref<128x128xf32, #tpu.memory_space<vmem>>, %arg5: memref<1x128xf32, #tpu.memory_space<vmem>>, %arg6: memref<8x128xf32, #tpu.memory_space<vmem>>) attributes {dimension_semantics = [#tpu.dimension_semantics<parallel>, #tpu.dimension_semantics<parallel>, #tpu.dimension_semantics<arbitrary>], iteration_bounds = array<i64: 1, 1, 1>, scalar_prefetch = 0 : i64, scratch_operands = 0 : i64, tpu.core_type = #tpu.core_type<tc>, window_params = [{transform_indices = @transform_0, window_bounds = array<i64: 8, 128>}, {transform_indices = @transform_1, window_bounds = array<i64: 128, 128>}, {transform_indices = @transform_2, window_bounds = array<i64: 1, 128>}, {transform_indices = @transform_3, window_bounds = array<i64: 8, 128>}]} {
    %c0_i32 = arith.constant 0 : i32
    %0 = arith.cmpi eq, %arg2, %c0_i32 : i32
    %1 = arith.extui %0 : i1 to i32
    %c0_i32_0 = arith.constant 0 : i32
    %2 = arith.cmpi ne, %1, %c0_i32_0 : i32
    scf.if %2 {
      %c0_8 = arith.constant 0 : index
      %c0_9 = arith.constant 0 : index
      %9 = vector.load %arg5[%c0_8, %c0_9] : memref<1x128xf32, #tpu.memory_space<vmem>>, vector<1x128xf32>
      %10 = vector.shape_cast %9 : vector<1x128xf32> to vector<1x128xf32>
      %11 = vector.broadcast %10 : vector<1x128xf32> to vector<8x128xf32>
      %c0_10 = arith.constant 0 : index
      %c0_11 = arith.constant 0 : index
      %12 = vector.load %arg6[%c0_10, %c0_11] : memref<8x128xf32, #tpu.memory_space<vmem>>, vector<8x128xf32>
      tpu.vector_store %arg6[%c0_10, %c0_11], %11 {strides = array<i32>} : memref<8x128xf32, #tpu.memory_space<vmem>>, vector<8x128xf32>,
    } else {
    }
    %c0 = arith.constant 0 : index
    %c0_1 = arith.constant 0 : index
    %3 = vector.load %arg6[%c0, %c0_1] : memref<8x128xf32, #tpu.memory_space<vmem>>, vector<8x128xf32>
    %c0_2 = arith.constant 0 : index
    %c0_3 = arith.constant 0 : index
    %4 = vector.load %arg3[%c0_2, %c0_3] : memref<8x128xf32, #tpu.memory_space<vmem>>, vector<8x128xf32>
    %c0_4 = arith.constant 0 : index
    %c0_5 = arith.constant 0 : index
    %5 = vector.load %arg4[%c0_4, %c0_5] : memref<128x128xf32, #tpu.memory_space<vmem>>, vector<128x128xf32>
    %cst = arith.constant dense<0.000000e+00> : vector<8x128xf32>
    %6 = tpu.matmul %4, %5, %cst {dimension_numbers = #tpu.dot_dimension_numbers<[1], [0], [0], [1], [0, 0, 1, 1], [], []>} : vector<8x128xf32>, vector<128x128xf32>, vector<8x128xf32> -> vector<8x128xf32>
    %7 = arith.addf %3, %6 : vector<8x128xf32>
    %c0_6 = arith.constant 0 : index
    %c0_7 = arith.constant 0 : index
    %8 = vector.load %arg6[%c0_6, %c0_7] : memref<8x128xf32, #tpu.memory_space<vmem>>, vector<8x128xf32>
    tpu.vector_store %arg6[%c0_6, %c0_7], %7 {strides = array<i32>} : memref<8x128xf32, #tpu.memory_space<vmem>>, vector<8x128xf32>,
    return
  }
  func.func @transform_0(%arg0: i32, %arg1: i32, %arg2: i32) -> (i32, i32) {
    %c0_i32 = arith.constant 0 : i32
    return %arg0, %arg2 : i32, i32
  }
  func.func @transform_1(%arg0: i32, %arg1: i32, %arg2: i32) -> (i32, i32) {
    %c0_i32 = arith.constant 0 : i32
    return %arg2, %arg1 : i32, i32
  }
  func.func @transform_2(%arg0: i32, %arg1: i32, %arg2: i32) -> (i32, i32) {
    %c0_i32 = arith.constant 0 : i32
    %c0_i32_0 = arith.constant 0 : i32
    return %c0_i32, %arg1 : i32, i32
  }
  func.func @transform_3(%arg0: i32, %arg1: i32, %arg2: i32) -> (i32, i32) {
    %c0_i32 = arith.constant 0 : i32
    return %arg0, %arg1 : i32, i32
  }
}

module attributes {stable_mosaic.version = 11 : i64} {
  func.func @_linear_kernel(%arg0: i32, %arg1: i32, %arg2: i32, %arg3: memref<8x128xf32, #tpu.memory_space<vmem>>, %arg4: memref<128x128xf32, #tpu.memory_space<vmem>>, %arg5: memref<1x128xf32, #tpu.memory_space<vmem>>, %arg6: memref<8x128xf32, #tpu.memory_space<vmem>>) attributes {dimension_semantics = [#tpu.dimension_semantics<parallel>, #tpu.dimension_semantics<parallel>, #tpu.dimension_semantics<arbitrary>], iteration_bounds = array<i64: 1, 1, 1>, scalar_prefetch = 0 : i64, scratch_operands = 0 : i64, tpu.core_type = #tpu.core_type<tc>, window_params = [{transform_indices = @transform_0, window_bounds = array<i64: 8, 128>}, {transform_indices = @transform_1, window_bounds = array<i64: 128, 128>}, {transform_indices = @transform_2, window_bounds = array<i64: 1, 128>}, {transform_indices = @transform_3, window_bounds = array<i64: 8, 128>}]} {
    %c0_i32 = arith.constant 0 : i32
    %0 = arith.cmpi eq, %arg2, %c0_i32 : i32
    %1 = arith.extui %0 : i1 to i32
    %c0_i32_0 = arith.constant 0 : i32
    %2 = arith.cmpi ne, %1, %c0_i32_0 : i32
    scf.if %2 {
      %c0_10 = arith.constant 0 : index
      %c0_11 = arith.constant 0 : index
      %12 = vector.load %arg5[%c0_10, %c0_11] : memref<1x128xf32, #tpu.memory_space<vmem>>, vector<1x128xf32>
      %13 = vector.shape_cast %12 : vector<1x128xf32> to vector<1x128xf32>
      %14 = vector.broadcast %13 : vector<1x128xf32> to vector<8x128xf32>
      %c0_12 = arith.constant 0 : index
      %c0_13 = arith.constant 0 : index
      %15 = vector.load %arg6[%c0_12, %c0_13] : memref<8x128xf32, #tpu.memory_space<vmem>>, vector<8x128xf32>
      tpu.vector_store %arg6[%c0_12, %c0_13], %14 {strides = array<i32>} : memref<8x128xf32, #tpu.memory_space<vmem>>, vector<8x128xf32>,
    } else {
    }
    %c0 = arith.constant 0 : index
    %c0_1 = arith.constant 0 : index
    %3 = vector.load %arg6[%c0, %c0_1] : memref<8x128xf32, #tpu.memory_space<vmem>>, vector<8x128xf32>
    %c0_2 = arith.constant 0 : index
    %c0_3 = arith.constant 0 : index
    %4 = vector.load %arg3[%c0_2, %c0_3] : memref<8x128xf32, #tpu.memory_space<vmem>>, vector<8x128xf32>
    %c0_4 = arith.constant 0 : index
    %c0_5 = arith.constant 0 : index
    %5 = vector.load %arg4[%c0_4, %c0_5] : memref<128x128xf32, #tpu.memory_space<vmem>>, vector<128x128xf32>
    %cst = arith.constant dense<0.000000e+00> : vector<8x128xf32>
    %6 = tpu.matmul %4, %5, %cst {dimension_numbers = #tpu.dot_dimension_numbers<[1], [0], [0], [1], [0, 0, 1, 1], [], []>} : vector<8x128xf32>, vector<128x128xf32>, vector<8x128xf32> -> vector<8x128xf32>
    %7 = arith.addf %3, %6 : vector<8x128xf32>
    %c0_6 = arith.constant 0 : index
    %c0_7 = arith.constant 0 : index
    %8 = vector.load %arg6[%c0_6, %c0_7] : memref<8x128xf32, #tpu.memory_space<vmem>>, vector<8x128xf32>
    tpu.vector_store %arg6[%c0_6, %c0_7], %7 {strides = array<i32>} : memref<8x128xf32, #tpu.memory_space<vmem>>, vector<8x128xf32>,
    %c0_i32_8 = arith.constant 0 : i32
    %9 = arith.cmpi eq, %arg2, %c0_i32_8 : i32
    %10 = arith.extui %9 : i1 to i32
    %c0_i32_9 = arith.constant 0 : i32
    %11 = arith.cmpi ne, %10, %c0_i32_9 : i32
    scf.if %11 {
      %c0_10 = arith.constant 0 : index
      %c0_11 = arith.constant 0 : index
      %12 = vector.load %arg6[%c0_10, %c0_11] : memref<8x128xf32, #tpu.memory_space<vmem>>, vector<8x128xf32>
      %cst_12 = arith.constant 0.000000e+00 : f32
      %13 = vector.broadcast %cst_12 : f32 to vector<8x128xf32>
      %14 = arith.maximumf %12, %13 : vector<8x128xf32>
      %c0_13 = arith.constant 0 : index
      %c0_14 = arith.constant 0 : index
      %15 = vector.load %arg6[%c0_13, %c0_14] : memref<8x128xf32, #tpu.memory_space<vmem>>, vector<8x128xf32>
      tpu.vector_store %arg6[%c0_13, %c0_14], %14 {strides = array<i32>} : memref<8x128xf32, #tpu.memory_space<vmem>>, vector<8x128xf32>,
    } else {
    }
    return
  }
  func.func @transform_0(%arg0: i32, %arg1: i32, %arg2: i32) -> (i32, i32) {
    %c0_i32 = arith.constant 0 : i32
    return %arg0, %arg2 : i32, i32
  }
  func.func @transform_1(%arg0: i32, %arg1: i32, %arg2: i32) -> (i32, i32) {
    %c0_i32 = arith.constant 0 : i32
    return %arg2, %arg1 : i32, i32
  }
  func.func @transform_2(%arg0: i32, %arg1: i32, %arg2: i32) -> (i32, i32) {
    %c0_i32 = arith.constant 0 : i32
    %c0_i32_0 = arith.constant 0 : i32
    return %c0_i32, %arg1 : i32, i32
  }
  func.func @transform_3(%arg0: i32, %arg1: i32, %arg2: i32) -> (i32, i32) {
    %c0_i32 = arith.constant 0 : i32
    return %arg0, %arg1 : i32, i32
  }
}

module attributes {stable_mosaic.version = 11 : i64} {
  func.func @_linear_kernel(%arg0: i32, %arg1: i32, %arg2: i32, %arg3: memref<8x128xf32, #tpu.memory_space<vmem>>, %arg4: memref<128x256xf32, #tpu.memory_space<vmem>>, %arg5: memref<1x256xf32, #tpu.memory_space<vmem>>, %arg6: memref<8x256xf32, #tpu.memory_space<vmem>>) attributes {dimension_semantics = [#tpu.dimension_semantics<parallel>, #tpu.dimension_semantics<parallel>, #tpu.dimension_semantics<arbitrary>], iteration_bounds = array<i64: 1, 1, 1>, scalar_prefetch = 0 : i64, scratch_operands = 0 : i64, tpu.core_type = #tpu.core_type<tc>, window_params = [{transform_indices = @transform_0, window_bounds = array<i64: 8, 128>}, {transform_indices = @transform_1, window_bounds = array<i64: 128, 256>}, {transform_indices = @transform_2, window_bounds = array<i64: 1, 256>}, {transform_indices = @transform_3, window_bounds = array<i64: 8, 256>}]} {
    %c0_i32 = arith.constant 0 : i32
    %0 = arith.cmpi eq, %arg2, %c0_i32 : i32
    %1 = arith.extui %0 : i1 to i32
    %c0_i32_0 = arith.constant 0 : i32
    %2 = arith.cmpi ne, %1, %c0_i32_0 : i32
    scf.if %2 {
      %c0_10 = arith.constant 0 : index
      %c0_11 = arith.constant 0 : index
      %12 = vector.load %arg5[%c0_10, %c0_11] : memref<1x256xf32, #tpu.memory_space<vmem>>, vector<1x256xf32>
      %13 = vector.shape_cast %12 : vector<1x256xf32> to vector<1x256xf32>
      %14 = vector.broadcast %13 : vector<1x256xf32> to vector<8x256xf32>
      %c0_12 = arith.constant 0 : index
      %c0_13 = arith.constant 0 : index
      %15 = vector.load %arg6[%c0_12, %c0_13] : memref<8x256xf32, #tpu.memory_space<vmem>>, vector<8x256xf32>
      tpu.vector_store %arg6[%c0_12, %c0_13], %14 {strides = array<i32>} : memref<8x256xf32, #tpu.memory_space<vmem>>, vector<8x256xf32>,
    } else {
    }
    %c0 = arith.constant 0 : index
    %c0_1 = arith.constant 0 : index
    %3 = vector.load %arg6[%c0, %c0_1] : memref<8x256xf32, #tpu.memory_space<vmem>>, vector<8x256xf32>
    %c0_2 = arith.constant 0 : index
    %c0_3 = arith.constant 0 : index
    %4 = vector.load %arg3[%c0_2, %c0_3] : memref<8x128xf32, #tpu.memory_space<vmem>>, vector<8x128xf32>
    %c0_4 = arith.constant 0 : index
    %c0_5 = arith.constant 0 : index
    %5 = vector.load %arg4[%c0_4, %c0_5] : memref<128x256xf32, #tpu.memory_space<vmem>>, vector<128x256xf32>
    %cst = arith.constant dense<0.000000e+00> : vector<8x256xf32>
    %6 = tpu.matmul %4, %5, %cst {dimension_numbers = #tpu.dot_dimension_numbers<[1], [0], [0], [1], [0, 0, 1, 1], [], []>} : vector<8x128xf32>, vector<128x256xf32>, vector<8x256xf32> -> vector<8x256xf32>
    %7 = arith.addf %3, %6 : vector<8x256xf32>
    %c0_6 = arith.constant 0 : index
    %c0_7 = arith.constant 0 : index
    %8 = vector.load %arg6[%c0_6, %c0_7] : memref<8x256xf32, #tpu.memory_space<vmem>>, vector<8x256xf32>
    tpu.vector_store %arg6[%c0_6, %c0_7], %7 {strides = array<i32>} : memref<8x256xf32, #tpu.memory_space<vmem>>, vector<8x256xf32>,
    %c0_i32_8 = arith.constant 0 : i32
    %9 = arith.cmpi eq, %arg2, %c0_i32_8 : i32
    %10 = arith.extui %9 : i1 to i32
    %c0_i32_9 = arith.constant 0 : i32
    %11 = arith.cmpi ne, %10, %c0_i32_9 : i32
    scf.if %11 {
      %c0_10 = arith.constant 0 : index
      %c0_11 = arith.constant 0 : index
      %12 = vector.load %arg6[%c0_10, %c0_11] : memref<8x256xf32, #tpu.memory_space<vmem>>, vector<8x256xf32>
      %cst_12 = arith.constant 0.000000e+00 : f32
      %13 = vector.broadcast %cst_12 : f32 to vector<8x256xf32>
      %14 = arith.maximumf %12, %13 : vector<8x256xf32>
      %c0_13 = arith.constant 0 : index
      %c0_14 = arith.constant 0 : index
      %15 = vector.load %arg6[%c0_13, %c0_14] : memref<8x256xf32, #tpu.memory_space<vmem>>, vector<8x256xf32>
      tpu.vector_store %arg6[%c0_13, %c0_14], %14 {strides = array<i32>} : memref<8x256xf32, #tpu.memory_space<vmem>>, vector<8x256xf32>,
    } else {
    }
    return
  }
  func.func @transform_0(%arg0: i32, %arg1: i32, %arg2: i32) -> (i32, i32) {
    %c0_i32 = arith.constant 0 : i32
    return %arg0, %arg2 : i32, i32
  }
  func.func @transform_1(%arg0: i32, %arg1: i32, %arg2: i32) -> (i32, i32) {
    %c0_i32 = arith.constant 0 : i32
    return %arg2, %arg1 : i32, i32
  }
  func.func @transform_2(%arg0: i32, %arg1: i32, %arg2: i32) -> (i32, i32) {
    %c0_i32 = arith.constant 0 : i32
    %c0_i32_0 = arith.constant 0 : i32
    return %c0_i32, %arg1 : i32, i32
  }
  func.func @transform_3(%arg0: i32, %arg1: i32, %arg2: i32) -> (i32, i32) {
    %c0_i32 = arith.constant 0 : i32
    return %arg0, %arg1 : i32, i32
  }
}

module attributes {stable_mosaic.version = 11 : i64} {
  func.func @_linear_kernel(%arg0: i32, %arg1: i32, %arg2: i32, %arg3: memref<8x256xf32, #tpu.memory_space<vmem>>, %arg4: memref<256x2048xf32, #tpu.memory_space<vmem>>, %arg5: memref<1x2048xf32, #tpu.memory_space<vmem>>, %arg6: memref<8x2048xf32, #tpu.memory_space<vmem>>) attributes {dimension_semantics = [#tpu.dimension_semantics<parallel>, #tpu.dimension_semantics<parallel>, #tpu.dimension_semantics<arbitrary>], iteration_bounds = array<i64: 1, 4, 1>, scalar_prefetch = 0 : i64, scratch_operands = 0 : i64, tpu.core_type = #tpu.core_type<tc>, window_params = [{transform_indices = @transform_0, window_bounds = array<i64: 8, 256>}, {transform_indices = @transform_1, window_bounds = array<i64: 256, 2048>}, {transform_indices = @transform_2, window_bounds = array<i64: 1, 2048>}, {transform_indices = @transform_3, window_bounds = array<i64: 8, 2048>}]} {
    %c0_i32 = arith.constant 0 : i32
    %0 = arith.cmpi eq, %arg2, %c0_i32 : i32
    %1 = arith.extui %0 : i1 to i32
    %c0_i32_0 = arith.constant 0 : i32
    %2 = arith.cmpi ne, %1, %c0_i32_0 : i32
    scf.if %2 {
      %c0_8 = arith.constant 0 : index
      %c0_9 = arith.constant 0 : index
      %9 = vector.load %arg5[%c0_8, %c0_9] : memref<1x2048xf32, #tpu.memory_space<vmem>>, vector<1x2048xf32>
      %10 = vector.shape_cast %9 : vector<1x2048xf32> to vector<1x2048xf32>
      %11 = vector.broadcast %10 : vector<1x2048xf32> to vector<8x2048xf32>
      %c0_10 = arith.constant 0 : index
      %c0_11 = arith.constant 0 : index
      %12 = vector.load %arg6[%c0_10, %c0_11] : memref<8x2048xf32, #tpu.memory_space<vmem>>, vector<8x2048xf32>
      tpu.vector_store %arg6[%c0_10, %c0_11], %11 {strides = array<i32>} : memref<8x2048xf32, #tpu.memory_space<vmem>>, vector<8x2048xf32>,
    } else {
    }
    %c0 = arith.constant 0 : index
    %c0_1 = arith.constant 0 : index
    %3 = vector.load %arg6[%c0, %c0_1] : memref<8x2048xf32, #tpu.memory_space<vmem>>, vector<8x2048xf32>
    %c0_2 = arith.constant 0 : index
    %c0_3 = arith.constant 0 : index
    %4 = vector.load %arg3[%c0_2, %c0_3] : memref<8x256xf32, #tpu.memory_space<vmem>>, vector<8x256xf32>
    %c0_4 = arith.constant 0 : index
    %c0_5 = arith.constant 0 : index
    %5 = vector.load %arg4[%c0_4, %c0_5] : memref<256x2048xf32, #tpu.memory_space<vmem>>, vector<256x2048xf32>
    %cst = arith.constant dense<0.000000e+00> : vector<8x2048xf32>
    %6 = tpu.matmul %4, %5, %cst {dimension_numbers = #tpu.dot_dimension_numbers<[1], [0], [0], [1], [0, 0, 1, 1], [], []>} : vector<8x256xf32>, vector<256x2048xf32>, vector<8x2048xf32> -> vector<8x2048xf32>
    %7 = arith.addf %3, %6 : vector<8x2048xf32>
    %c0_6 = arith.constant 0 : index
    %c0_7 = arith.constant 0 : index
    %8 = vector.load %arg6[%c0_6, %c0_7] : memref<8x2048xf32, #tpu.memory_space<vmem>>, vector<8x2048xf32>
    tpu.vector_store %arg6[%c0_6, %c0_7], %7 {strides = array<i32>} : memref<8x2048xf32, #tpu.memory_space<vmem>>, vector<8x2048xf32>,
    return
  }
  func.func @transform_0(%arg0: i32, %arg1: i32, %arg2: i32) -> (i32, i32) {
    %c0_i32 = arith.constant 0 : i32
    return %arg0, %arg2 : i32, i32
  }
  func.func @transform_1(%arg0: i32, %arg1: i32, %arg2: i32) -> (i32, i32) {
    %c0_i32 = arith.constant 0 : i32
    return %arg2, %arg1 : i32, i32
  }
  func.func @transform_2(%arg0: i32, %arg1: i32, %arg2: i32) -> (i32, i32) {
    %c0_i32 = arith.constant 0 : i32
    %c0_i32_0 = arith.constant 0 : i32
    return %c0_i32, %arg1 : i32, i32
  }
  func.func @transform_3(%arg0: i32, %arg1: i32, %arg2: i32) -> (i32, i32) {
    %c0_i32 = arith.constant 0 : i32
    return %arg0, %arg1 : i32, i32
  }
}

module attributes {stable_mosaic.version = 11 : i64} {
  func.func @_linear_kernel(%arg0: i32, %arg1: i32, %arg2: i32, %arg3: i32, %arg4: memref<1x8x128xf32, #tpu.memory_space<vmem>>, %arg5: memref<1x128x128xf32, #tpu.memory_space<vmem>>, %arg6: memref<1x1x128xf32, #tpu.memory_space<vmem>>, %arg7: memref<1x8x128xf32, #tpu.memory_space<vmem>>) attributes {dimension_semantics = [#tpu.dimension_semantics<parallel>, #tpu.dimension_semantics<parallel>, #tpu.dimension_semantics<parallel>, #tpu.dimension_semantics<arbitrary>], iteration_bounds = array<i64: 3, 1, 1, 1>, scalar_prefetch = 0 : i64, scratch_operands = 0 : i64, tpu.core_type = #tpu.core_type<tc>, window_params = [{transform_indices = @transform_0, window_bounds = array<i64: 1, 8, 128>}, {transform_indices = @transform_1, window_bounds = array<i64: 1, 128, 128>}, {transform_indices = @transform_2, window_bounds = array<i64: 1, 1, 128>}, {transform_indices = @transform_3, window_bounds = array<i64: 1, 8, 128>}]} {
    %c0_i32 = arith.constant 0 : i32
    %0 = arith.cmpi eq, %arg3, %c0_i32 : i32
    %1 = arith.extui %0 : i1 to i32
    %c0_i32_0 = arith.constant 0 : i32
    %2 = arith.cmpi ne, %1, %c0_i32_0 : i32
    scf.if %2 {
      %c0_14 = arith.constant 0 : index
      %c0_15 = arith.constant 0 : index
      %c0_16 = arith.constant 0 : index
      %17 = vector.load %arg6[%c0_14, %c0_15, %c0_16] : memref<1x1x128xf32, #tpu.memory_space<vmem>>, vector<1x1x128xf32>
      %18 = vector.shape_cast %17 : vector<1x1x128xf32> to vector<1x128xf32>
      %19 = vector.shape_cast %18 : vector<1x128xf32> to vector<1x128xf32>
      %20 = vector.broadcast %19 : vector<1x128xf32> to vector<8x128xf32>
      %c0_17 = arith.constant 0 : index
      %c0_18 = arith.constant 0 : index
      %c0_19 = arith.constant 0 : index
      %21 = vector.load %arg7[%c0_17, %c0_18, %c0_19] : memref<1x8x128xf32, #tpu.memory_space<vmem>>, vector<1x8x128xf32>
      %22 = vector.shape_cast %21 : vector<1x8x128xf32> to vector<8x128xf32>
      %23 = vector.shape_cast %20 : vector<8x128xf32> to vector<1x8x128xf32>
      tpu.vector_store %arg7[%c0_17, %c0_18, %c0_19], %23 {strides = array<i32>} : memref<1x8x128xf32, #tpu.memory_space<vmem>>, vector<1x8x128xf32>,
    } else {
    }
    %c0 = arith.constant 0 : index
    %c0_1 = arith.constant 0 : index
    %c0_2 = arith.constant 0 : index
    %3 = vector.load %arg7[%c0, %c0_1, %c0_2] : memref<1x8x128xf32, #tpu.memory_space<vmem>>, vector<1x8x128xf32>
    %4 = vector.shape_cast %3 : vector<1x8x128xf32> to vector<8x128xf32>
    %c0_3 = arith.constant 0 : index
    %c0_4 = arith.constant 0 : index
    %c0_5 = arith.constant 0 : index
    %5 = vector.load %arg4[%c0_3, %c0_4, %c0_5] : memref<1x8x128xf32, #tpu.memory_space<vmem>>, vector<1x8x128xf32>
    %6 = vector.shape_cast %5 : vector<1x8x128xf32> to vector<8x128xf32>
    %c0_6 = arith.constant 0 : index
    %c0_7 = arith.constant 0 : index
    %c0_8 = arith.constant 0 : index
    %7 = vector.load %arg5[%c0_6, %c0_7, %c0_8] : memref<1x128x128xf32, #tpu.memory_space<vmem>>, vector<1x128x128xf32>
    %8 = vector.shape_cast %7 : vector<1x128x128xf32> to vector<128x128xf32>
    %cst = arith.constant dense<0.000000e+00> : vector<8x128xf32>
    %9 = tpu.matmul %6, %8, %cst {dimension_numbers = #tpu.dot_dimension_numbers<[1], [0], [0], [1], [0, 0, 1, 1], [], []>} : vector<8x128xf32>, vector<128x128xf32>, vector<8x128xf32> -> vector<8x128xf32>
    %10 = arith.addf %4, %9 : vector<8x128xf32>
    %c0_9 = arith.constant 0 : index
    %c0_10 = arith.constant 0 : index
    %c0_11 = arith.constant 0 : index
    %11 = vector.load %arg7[%c0_9, %c0_10, %c0_11] : memref<1x8x128xf32, #tpu.memory_space<vmem>>, vector<1x8x128xf32>
    %12 = vector.shape_cast %11 : vector<1x8x128xf32> to vector<8x128xf32>
    %13 = vector.shape_cast %10 : vector<8x128xf32> to vector<1x8x128xf32>
    tpu.vector_store %arg7[%c0_9, %c0_10, %c0_11], %13 {strides = array<i32>} : memref<1x8x128xf32, #tpu.memory_space<vmem>>, vector<1x8x128xf32>,
    %c0_i32_12 = arith.constant 0 : i32
    %14 = arith.cmpi eq, %arg3, %c0_i32_12 : i32
    %15 = arith.extui %14 : i1 to i32
    %c0_i32_13 = arith.constant 0 : i32
    %16 = arith.cmpi ne, %15, %c0_i32_13 : i32
    scf.if %16 {
      %c0_14 = arith.constant 0 : index
      %c0_15 = arith.constant 0 : index
      %c0_16 = arith.constant 0 : index
      %17 = vector.load %arg7[%c0_14, %c0_15, %c0_16] : memref<1x8x128xf32, #tpu.memory_space<vmem>>, vector<1x8x128xf32>
      %18 = vector.shape_cast %17 : vector<1x8x128xf32> to vector<8x128xf32>
      %cst_17 = arith.constant 0.000000e+00 : f32
      %19 = vector.broadcast %cst_17 : f32 to vector<8x128xf32>
      %20 = arith.maximumf %18, %19 : vector<8x128xf32>
      %c0_18 = arith.constant 0 : index
      %c0_19 = arith.constant 0 : index
      %c0_20 = arith.constant 0 : index
      %21 = vector.load %arg7[%c0_18, %c0_19, %c0_20] : memref<1x8x128xf32, #tpu.memory_space<vmem>>, vector<1x8x128xf32>
      %22 = vector.shape_cast %21 : vector<1x8x128xf32> to vector<8x128xf32>
      %23 = vector.shape_cast %20 : vector<8x128xf32> to vector<1x8x128xf32>
      tpu.vector_store %arg7[%c0_18, %c0_19, %c0_20], %23 {strides = array<i32>} : memref<1x8x128xf32, #tpu.memory_space<vmem>>, vector<1x8x128xf32>,
    } else {
    }
    return
  }
  func.func @transform_0(%arg0: i32, %arg1: i32, %arg2: i32, %arg3: i32) -> (i32, i32, i32) {
    %c0_i32 = arith.constant 0 : i32
    return %arg0, %arg1, %arg3 : i32, i32, i32
  }
  func.func @transform_1(%arg0: i32, %arg1: i32, %arg2: i32, %arg3: i32) -> (i32, i32, i32) {
    %c0_i32 = arith.constant 0 : i32
    return %arg0, %arg3, %arg2 : i32, i32, i32
  }
  func.func @transform_2(%arg0: i32, %arg1: i32, %arg2: i32, %arg3: i32) -> (i32, i32, i32) {
    %c0_i32 = arith.constant 0 : i32
    %c0_i32_0 = arith.constant 0 : i32
    return %arg0, %c0_i32, %arg2 : i32, i32, i32
  }
  func.func @transform_3(%arg0: i32, %arg1: i32, %arg2: i32, %arg3: i32) -> (i32, i32, i32) {
    %c0_i32 = arith.constant 0 : i32
    return %arg0, %arg1, %arg2 : i32, i32, i32
  }
}

module attributes {stable_mosaic.version = 11 : i64} {
  func.func @_linear_kernel(%arg0: i32, %arg1: i32, %arg2: i32, %arg3: i32, %arg4: memref<1x8x128xf32, #tpu.memory_space<vmem>>, %arg5: memref<1x128x128xf32, #tpu.memory_space<vmem>>, %arg6: memref<1x1x128xf32, #tpu.memory_space<vmem>>, %arg7: memref<1x8x128xf32, #tpu.memory_space<vmem>>) attributes {dimension_semantics = [#tpu.dimension_semantics<parallel>, #tpu.dimension_semantics<parallel>, #tpu.dimension_semantics<parallel>, #tpu.dimension_semantics<arbitrary>], iteration_bounds = array<i64: 3, 1, 1, 1>, scalar_prefetch = 0 : i64, scratch_operands = 0 : i64, tpu.core_type = #tpu.core_type<tc>, window_params = [{transform_indices = @transform_0, window_bounds = array<i64: 1, 8, 128>}, {transform_indices = @transform_1, window_bounds = array<i64: 1, 128, 128>}, {transform_indices = @transform_2, window_bounds = array<i64: 1, 1, 128>}, {transform_indices = @transform_3, window_bounds = array<i64: 1, 8, 128>}]} {
    %c0_i32 = arith.constant 0 : i32
    %0 = arith.cmpi eq, %arg3, %c0_i32 : i32
    %1 = arith.extui %0 : i1 to i32
    %c0_i32_0 = arith.constant 0 : i32
    %2 = arith.cmpi ne, %1, %c0_i32_0 : i32
    scf.if %2 {
      %c0_12 = arith.constant 0 : index
      %c0_13 = arith.constant 0 : index
      %c0_14 = arith.constant 0 : index
      %14 = vector.load %arg6[%c0_12, %c0_13, %c0_14] : memref<1x1x128xf32, #tpu.memory_space<vmem>>, vector<1x1x128xf32>
      %15 = vector.shape_cast %14 : vector<1x1x128xf32> to vector<1x128xf32>
      %16 = vector.shape_cast %15 : vector<1x128xf32> to vector<1x128xf32>
      %17 = vector.broadcast %16 : vector<1x128xf32> to vector<8x128xf32>
      %c0_15 = arith.constant 0 : index
      %c0_16 = arith.constant 0 : index
      %c0_17 = arith.constant 0 : index
      %18 = vector.load %arg7[%c0_15, %c0_16, %c0_17] : memref<1x8x128xf32, #tpu.memory_space<vmem>>, vector<1x8x128xf32>
      %19 = vector.shape_cast %18 : vector<1x8x128xf32> to vector<8x128xf32>
      %20 = vector.shape_cast %17 : vector<8x128xf32> to vector<1x8x128xf32>
      tpu.vector_store %arg7[%c0_15, %c0_16, %c0_17], %20 {strides = array<i32>} : memref<1x8x128xf32, #tpu.memory_space<vmem>>, vector<1x8x128xf32>,
    } else {
    }
    %c0 = arith.constant 0 : index
    %c0_1 = arith.constant 0 : index
    %c0_2 = arith.constant 0 : index
    %3 = vector.load %arg7[%c0, %c0_1, %c0_2] : memref<1x8x128xf32, #tpu.memory_space<vmem>>, vector<1x8x128xf32>
    %4 = vector.shape_cast %3 : vector<1x8x128xf32> to vector<8x128xf32>
    %c0_3 = arith.constant 0 : index
    %c0_4 = arith.constant 0 : index
    %c0_5 = arith.constant 0 : index
    %5 = vector.load %arg4[%c0_3, %c0_4, %c0_5] : memref<1x8x128xf32, #tpu.memory_space<vmem>>, vector<1x8x128xf32>
    %6 = vector.shape_cast %5 : vector<1x8x128xf32> to vector<8x128xf32>
    %c0_6 = arith.constant 0 : index
    %c0_7 = arith.constant 0 : index
    %c0_8 = arith.constant 0 : index
    %7 = vector.load %arg5[%c0_6, %c0_7, %c0_8] : memref<1x128x128xf32, #tpu.memory_space<vmem>>, vector<1x128x128xf32>
    %8 = vector.shape_cast %7 : vector<1x128x128xf32> to vector<128x128xf32>
    %cst = arith.constant dense<0.000000e+00> : vector<8x128xf32>
    %9 = tpu.matmul %6, %8, %cst {dimension_numbers = #tpu.dot_dimension_numbers<[1], [0], [0], [1], [0, 0, 1, 1], [], []>} : vector<8x128xf32>, vector<128x128xf32>, vector<8x128xf32> -> vector<8x128xf32>
    %10 = arith.addf %4, %9 : vector<8x128xf32>
    %c0_9 = arith.constant 0 : index
    %c0_10 = arith.constant 0 : index
    %c0_11 = arith.constant 0 : index
    %11 = vector.load %arg7[%c0_9, %c0_10, %c0_11] : memref<1x8x128xf32, #tpu.memory_space<vmem>>, vector<1x8x128xf32>
    %12 = vector.shape_cast %11 : vector<1x8x128xf32> to vector<8x128xf32>
    %13 = vector.shape_cast %10 : vector<8x128xf32> to vector<1x8x128xf32>
    tpu.vector_store %arg7[%c0_9, %c0_10, %c0_11], %13 {strides = array<i32>} : memref<1x8x128xf32, #tpu.memory_space<vmem>>, vector<1x8x128xf32>,
    return
  }
  func.func @transform_0(%arg0: i32, %arg1: i32, %arg2: i32, %arg3: i32) -> (i32, i32, i32) {
    %c0_i32 = arith.constant 0 : i32
    return %arg0, %arg1, %arg3 : i32, i32, i32
  }
  func.func @transform_1(%arg0: i32, %arg1: i32, %arg2: i32, %arg3: i32) -> (i32, i32, i32) {
    %c0_i32 = arith.constant 0 : i32
    return %arg0, %arg3, %arg2 : i32, i32, i32
  }
  func.func @transform_2(%arg0: i32, %arg1: i32, %arg2: i32, %arg3: i32) -> (i32, i32, i32) {
    %c0_i32 = arith.constant 0 : i32
    %c0_i32_0 = arith.constant 0 : i32
    return %arg0, %c0_i32, %arg2 : i32, i32, i32
  }
  func.func @transform_3(%arg0: i32, %arg1: i32, %arg2: i32, %arg3: i32) -> (i32, i32, i32) {
    %c0_i32 = arith.constant 0 : i32
    return %arg0, %arg1, %arg2 : i32, i32, i32
  }
}

</mosaic_0001>

<llo_original>
// kernel: rnn1_forward.18
$region0: #{rnn1_forward.18}
  #allocation0 [shape = 'u32[]', space=smem, size = 0x4, offset = 0x4, fixed_abs, tag = 'smem constant byte address 0x4 - core index']
  #allocation1 [shape = 'u32[144,128]{1,0:T(1,128)}', space=vmem, size = 0x12000, scoped, tag = 'internal scratch']
  %s0 = inlined_call_operand.vmem [shape: f32[8,256], index: 0, kind: input, shape index: {}]
  %s1 = inlined_call_operand.hbm [shape: f32[256,128], index: 1, kind: input, shape index: {}]
  %s2 = inlined_call_operand.hbm [shape: f32[1,128], index: 2, kind: input, shape index: {}]
  %s3 = inlined_call_operand.vmem [shape: f32[8,128], index: 3, kind: output, shape index: {}]
  %s4 = sld [smem:[#allocation0]]
  $region38: #{rnn1_forward.18} parent=0
    _
  %s6 = ssub.s32 1, %s4
  %s7 = scalar_select 0, %s6, %s4
  $region1: #{rnn1_forward.18} parent=0
    #allocation2 [shape = 'u8[131072]{0}', space=vmem, size = 0x20000, scoped, tag = 'input window, operand 1, single buffered']
    #allocation3 [shape = 's32[1]{0}', space=sflag, size = 0x4, scoped, tag = 'scoped memory for rnn1_forward.18']
    #allocation4 [shape = 'u8[512]{0}', space=vmem, size = 0x400, scoped, tag = 'input window, operand 2, single buffered']
    #allocation5 [shape = 's32[1]{0}', space=sflag, size = 0x4, scoped, tag = 'scoped memory for rnn1_forward.18']
    %8 = vsyncpa [#allocation3], 0
    %9 = vsyncpa [#allocation5], 0
    // Predicated region
    $region2: #{rnn1_forward.18} parent=1 // pred_check
      _
    $region3: #{rnn1_forward.18} parent=1 // pred_check_branch
      %11 = sbr.rel (0) target = $region5
    $region4: #{rnn1_forward.18} parent=1 // pred_region
      _
    $region5: #{rnn1_forward.18} parent=1 // pred_fallthru
      _
    // Predicated region
    $region6: #{rnn1_forward.18} parent=1 // pred_check
      _
    $region7: #{rnn1_forward.18} parent=1 // pred_check_branch
      %13 = sbr.rel (0) target = $region9
    $region8: #{rnn1_forward.18} parent=1 // pred_region
      %s15 = ssub.s32 4096, 4096
      %16 = vsyncadd [#allocation3], %s15
      %s17 = sshll.u32 [#allocation2], 4
      %s18 = int_to_ptr.vmem [resolvable:$true] %s17
      %23 = dma.hbm_to_vmem [thread:$0]  %s1, 4096, %s18, [#allocation3], 128, 128, 8
    $region9: #{rnn1_forward.18} parent=1 // pred_fallthru
      _
    // Predicated region
    $region10: #{rnn1_forward.18} parent=1 // pred_check
      _
    $region11: #{rnn1_forward.18} parent=1 // pred_check_branch
      %25 = sbr.rel (0) target = $region13
    $region12: #{rnn1_forward.18} parent=1 // pred_region
      %s27 = ssub.s32 16, 16
      %28 = vsyncadd [#allocation5], %s27
      %s30 = sshll.u32 [#allocation4], 4
      %s31 = int_to_ptr.vmem [resolvable:$true] %s30
      %33 = dma.hbm_to_vmem [thread:$0]  %s2, 16, %s31, [#allocation5]
    $region13: #{rnn1_forward.18} parent=1 // pred_fallthru
      _
    // Predicated region
    $region14: #{rnn1_forward.18} parent=1 // pred_check
      _
    $region15: #{rnn1_forward.18} parent=1 // pred_check_branch
      %35 = sbr.rel (0) target = $region17
    $region16: #{rnn1_forward.18} parent=1 // pred_region
      %36 = dma.done [#allocation3], 4096
    $region17: #{rnn1_forward.18} parent=1 // pred_fallthru
      _
    // Predicated region
    $region18: #{rnn1_forward.18} parent=1 // pred_check
      _
    $region19: #{rnn1_forward.18} parent=1 // pred_check_branch
      %38 = sbr.rel (0) target = $region21
    $region20: #{rnn1_forward.18} parent=1 // pred_region
      %39 = dma.done [#allocation5], 16
    $region21: #{rnn1_forward.18} parent=1 // pred_fallthru
      _
    %p40 = scmp.eq.s32.totalorder 0, 0
    // Predicated region
    $region22: #{rnn1_forward.18} parent=1 // pred_check
      %p41 = pneg %p40
    $region23: #{rnn1_forward.18} parent=1 // pred_check_branch
      %43 = sbr.rel (%p41) target = $region25
    $region24: #{rnn1_forward.18} parent=1 // pred_region
      %v44 = vld [vmem:[#allocation4] sm:$0x1]
      %v46 = vlaneseq
      %v47 = vshrl.u32 %v46, 7
      %v48 = vsub.s32 0, %v47
      %v49 = vrot.slane %v44, %v48
      %51 = vst [vmem:[%s3] sm:$0xff] %v49
    $region25: #{rnn1_forward.18} parent=1 // pred_fallthru
      _
    %v52 = vld [vmem:[%s3] sm:$0xff]
    %v53 = vld [vmem:[%s0] sm:$0xff]
    %v54 = vld [vmem:[%s0 + $0x8] sm:$0xff]
    %v55 = vld [vmem:[#allocation2] sm:$0xff]
    %v56 = vld [vmem:[#allocation2 + $0x8] sm:$0xff]
    %v57 = vld [vmem:[#allocation2 + $0x10] sm:$0xff]
    %v58 = vld [vmem:[#allocation2 + $0x18] sm:$0xff]
    %v59 = vld [vmem:[#allocation2 + $0x20] sm:$0xff]
    %v60 = vld [vmem:[#allocation2 + $0x28] sm:$0xff]
    %v61 = vld [vmem:[#allocation2 + $0x30] sm:$0xff]
    %v62 = vld [vmem:[#allocation2 + $0x38] sm:$0xff]
    %v63 = vld [vmem:[#allocation2 + $0x40] sm:$0xff]
    %v64 = vld [vmem:[#allocation2 + $0x48] sm:$0xff]
    %v65 = vld [vmem:[#allocation2 + $0x50] sm:$0xff]
    %v66 = vld [vmem:[#allocation2 + $0x58] sm:$0xff]
    %v67 = vld [vmem:[#allocation2 + $0x60] sm:$0xff]
    %v68 = vld [vmem:[#allocation2 + $0x68] sm:$0xff]
    %v69 = vld [vmem:[#allocation2 + $0x70] sm:$0xff]
    %v70 = vld [vmem:[#allocation2 + $0x78] sm:$0xff]
    %v71 = vld [vmem:[#allocation2 + $0x80] sm:$0xff]
    %v72 = vld [vmem:[#allocation2 + $0x88] sm:$0xff]
    %v73 = vld [vmem:[#allocation2 + $0x90] sm:$0xff]
    %v74 = vld [vmem:[#allocation2 + $0x98] sm:$0xff]
    %v75 = vld [vmem:[#allocation2 + $0xa0] sm:$0xff]
    %v76 = vld [vmem:[#allocation2 + $0xa8] sm:$0xff]
    %v77 = vld [vmem:[#allocation2 + $0xb0] sm:$0xff]
    %v78 = vld [vmem:[#allocation2 + $0xb8] sm:$0xff]
    %v79 = vld [vmem:[#allocation2 + $0xc0] sm:$0xff]
    %v80 = vld [vmem:[#allocation2 + $0xc8] sm:$0xff]
    %v81 = vld [vmem:[#allocation2 + $0xd0] sm:$0xff]
    %v82 = vld [vmem:[#allocation2 + $0xd8] sm:$0xff]
    %v83 = vld [vmem:[#allocation2 + $0xe0] sm:$0xff]
    %v84 = vld [vmem:[#allocation2 + $0xe8] sm:$0xff]
    %v85 = vld [vmem:[#allocation2 + $0xf0] sm:$0xff]
    %v86 = vld [vmem:[#allocation2 + $0xf8] sm:$0xff]
    %87 = vmatprep.subr.mxu0 0.0
    %88 = vmatpush1.msra.mxu0 %v55
    %89 = vmatprep.subr.mxu0 0.0
    %90 = vmatpush1.msra.mxu0 %v56
    %91 = vmatprep.subr.mxu0 0.0
    %92 = vmatpush1.msra.mxu0 %v57
    %93 = vmatprep.subr.mxu0 0.0
    %94 = vmatpush1.msra.mxu0 %v58
    %95 = vmatprep.subr.mxu0 0.0
    %96 = vmatpush1.msra.mxu0 %v59
    %97 = vmatprep.subr.mxu0 0.0
    %98 = vmatpush1.msra.mxu0 %v60
    %99 = vmatprep.subr.mxu0 0.0
    %100 = vmatpush1.msra.mxu0 %v61
    %101 = vmatprep.subr.mxu0 0.0
    %102 = vmatpush1.msra.mxu0 %v62
    %103 = vmatprep.subr.mxu0 0.0
    %104 = vmatpush1.msra.mxu0 %v63
    %105 = vmatprep.subr.mxu0 0.0
    %106 = vmatpush1.msra.mxu0 %v64
    %107 = vmatprep.subr.mxu0 0.0
    %108 = vmatpush1.msra.mxu0 %v65
    %109 = vmatprep.subr.mxu0 0.0
    %110 = vmatpush1.msra.mxu0 %v66
    %111 = vmatprep.subr.mxu0 0.0
    %112 = vmatpush1.msra.mxu0 %v67
    %113 = vmatprep.subr.mxu0 0.0
    %114 = vmatpush1.msra.mxu0 %v68
    %115 = vmatprep.subr.mxu0 0.0
    %116 = vmatpush1.msra.mxu0 %v69
    %117 = vmatprep.subr.mxu0 0.0
    %118 = vmatpush1.msra.mxu0 %v70
    %119 = vmatprep.subr.mxu0 0.0
    %120 = vmatpush1.msra.mxu0 %v71
    %121 = vmatprep.subr.mxu0 0.0
    %122 = vmatpush1.msra.mxu0 %v72
    %123 = vmatprep.subr.mxu0 0.0
    %124 = vmatpush1.msra.mxu0 %v73
    %125 = vmatprep.subr.mxu0 0.0
    %126 = vmatpush1.msra.mxu0 %v74
    %127 = vmatprep.subr.mxu0 0.0
    %128 = vmatpush1.msra.mxu0 %v75
    %129 = vmatprep.subr.mxu0 0.0
    %130 = vmatpush1.msra.mxu0 %v76
    %131 = vmatprep.subr.mxu0 0.0
    %132 = vmatpush1.msra.mxu0 %v77
    %133 = vmatprep.subr.mxu0 0.0
    %134 = vmatpush1.msra.mxu0 %v78
    %135 = vmatprep.subr.mxu0 0.0
    %136 = vmatpush1.msra.mxu0 %v79
    %137 = vmatprep.subr.mxu0 0.0
    %138 = vmatpush1.msra.mxu0 %v80
    %139 = vmatprep.subr.mxu0 0.0
    %140 = vmatpush1.msra.mxu0 %v81
    %141 = vmatprep.subr.mxu0 0.0
    %142 = vmatpush1.msra.mxu0 %v82
    %143 = vmatprep.subr.mxu0 0.0
    %144 = vmatpush1.msra.mxu0 %v83
    %145 = vmatprep.subr.mxu0 0.0
    %146 = vmatpush1.msra.mxu0 %v84
    %147 = vmatprep.subr.mxu0 0.0
    %148 = vmatpush1.msra.mxu0 %v85
    %149 = vmatprep.subr.mxu0 0.0
    %150 = vmatpush1.msra.mxu0 %v86
    %151 = vmatprep.mubr.f32.mxu0 %v54
    %152 = vmatmul.mubr.f32.gmra.mrb[0].mxu0 %v53
    %v153 = vpop.f32.mrb[0].mxu0
    %v154 = vadd.f32 0.0, %v153
    %v155 = vpop.f32.mrb[0].mxu0
    %156 = vdwg.mxu0
    %v157 = vadd.f32 %v52, %v154
    %158 = vst [vmem:[%s3] sm:$0xff] %v157
    // Predicated region
    $region26: #{rnn1_forward.18} parent=1 // pred_check
      %p159 = pneg %p40
    $region27: #{rnn1_forward.18} parent=1 // pred_check_branch
      %161 = sbr.rel (%p159) target = $region29
    $region28: #{rnn1_forward.18} parent=1 // pred_region
      %v162 = vld [vmem:[%s3] sm:$0xff]
      %v163 = vmax.f32 %v162, 0.0
      %164 = vst [vmem:[%s3] sm:$0xff] %v163
    $region29: #{rnn1_forward.18} parent=1 // pred_fallthru
      _
    // Predicated region
    $region30: #{rnn1_forward.18} parent=1 // pred_check
      _
    $region31: #{rnn1_forward.18} parent=1 // pred_check_branch
      %166 = sbr.rel (0) target = $region33
    $region32: #{rnn1_forward.18} parent=1 // pred_region
      _
    $region33: #{rnn1_forward.18} parent=1 // pred_fallthru
      _
    // Predicated region
    $region34: #{rnn1_forward.18} parent=1 // pred_check
      _
    $region35: #{rnn1_forward.18} parent=1 // pred_check_branch
      %168 = sbr.rel (0) target = $region37
    $region36: #{rnn1_forward.18} parent=1 // pred_region
      _
    $region37: #{rnn1_forward.18} parent=1 // pred_fallthru
      _
    %169 = vsyncpa [#allocation3], 1
    %170 = vsyncpa [#allocation5], 1

// kernel: rnn1_forward.19
$region0: #{rnn1_forward.19}
  #allocation0 [shape = 'u32[]', space=smem, size = 0x4, offset = 0x4, fixed_abs, tag = 'smem constant byte address 0x4 - core index']
  #allocation1 [shape = 'u32[144,128]{1,0:T(1,128)}', space=vmem, size = 0x12000, scoped, tag = 'internal scratch']
  %s0 = inlined_call_operand.vmem [shape: f32[8,128], index: 0, kind: input, shape index: {}]
  %s1 = inlined_call_operand.hbm [shape: f32[128,128], index: 1, kind: input, shape index: {}]
  %s2 = inlined_call_operand.vmem [shape: f32[1,128], index: 2, kind: input, shape index: {}]
  %s3 = inlined_call_operand.vmem [shape: f32[8,128], index: 3, kind: output, shape index: {}]
  %s4 = sld [smem:[#allocation0]]
  $region34: #{rnn1_forward.19} parent=0
    _
  %s6 = ssub.s32 1, %s4
  %s7 = scalar_select 0, %s6, %s4
  $region1: #{rnn1_forward.19} parent=0
    #allocation2 [shape = 'u8[65536]{0}', space=vmem, size = 0x10000, scoped, tag = 'input window, operand 1, single buffered']
    #allocation3 [shape = 's32[1]{0}', space=sflag, size = 0x4, scoped, tag = 'scoped memory for rnn1_forward.19']
    %8 = vsyncpa [#allocation3], 0
    // Predicated region
    $region2: #{rnn1_forward.19} parent=1 // pred_check
      _
    $region3: #{rnn1_forward.19} parent=1 // pred_check_branch
      %10 = sbr.rel (0) target = $region5
    $region4: #{rnn1_forward.19} parent=1 // pred_region
      _
    $region5: #{rnn1_forward.19} parent=1 // pred_fallthru
      _
    // Predicated region
    $region6: #{rnn1_forward.19} parent=1 // pred_check
      _
    $region7: #{rnn1_forward.19} parent=1 // pred_check_branch
      %12 = sbr.rel (0) target = $region9
    $region8: #{rnn1_forward.19} parent=1 // pred_region
      %s14 = ssub.s32 2048, 2048
      %15 = vsyncadd [#allocation3], %s14
      %s16 = sshll.u32 [#allocation2], 4
      %s17 = int_to_ptr.vmem [resolvable:$true] %s16
      %22 = dma.hbm_to_vmem [thread:$0]  %s1, 2048, %s17, [#allocation3], 128, 128, 8
    $region9: #{rnn1_forward.19} parent=1 // pred_fallthru
      _
    // Predicated region
    $region10: #{rnn1_forward.19} parent=1 // pred_check
      _
    $region11: #{rnn1_forward.19} parent=1 // pred_check_branch
      %24 = sbr.rel (0) target = $region13
    $region12: #{rnn1_forward.19} parent=1 // pred_region
      _
    $region13: #{rnn1_forward.19} parent=1 // pred_fallthru
      _
    // Predicated region
    $region14: #{rnn1_forward.19} parent=1 // pred_check
      _
    $region15: #{rnn1_forward.19} parent=1 // pred_check_branch
      %26 = sbr.rel (0) target = $region17
    $region16: #{rnn1_forward.19} parent=1 // pred_region
      %27 = dma.done [#allocation3], 2048
    $region17: #{rnn1_forward.19} parent=1 // pred_fallthru
      _
    %p28 = scmp.eq.s32.totalorder 0, 0
    // Predicated region
    $region18: #{rnn1_forward.19} parent=1 // pred_check
      %p29 = pneg %p28
    $region19: #{rnn1_forward.19} parent=1 // pred_check_branch
      %31 = sbr.rel (%p29) target = $region21
    $region20: #{rnn1_forward.19} parent=1 // pred_region
      %v32 = vld [vmem:[%s2] sm:$0x1]
      %v34 = vlaneseq
      %v35 = vshrl.u32 %v34, 7
      %v36 = vsub.s32 0, %v35
      %v37 = vrot.slane %v32, %v36
      %39 = vst [vmem:[%s3] sm:$0xff] %v37
    $region21: #{rnn1_forward.19} parent=1 // pred_fallthru
      _
    %v40 = vld [vmem:[%s3] sm:$0xff]
    %v41 = vld [vmem:[%s0] sm:$0xff]
    %v42 = vld [vmem:[#allocation2] sm:$0xff]
    %v43 = vld [vmem:[#allocation2 + $0x8] sm:$0xff]
    %v44 = vld [vmem:[#allocation2 + $0x10] sm:$0xff]
    %v45 = vld [vmem:[#allocation2 + $0x18] sm:$0xff]
    %v46 = vld [vmem:[#allocation2 + $0x20] sm:$0xff]
    %v47 = vld [vmem:[#allocation2 + $0x28] sm:$0xff]
    %v48 = vld [vmem:[#allocation2 + $0x30] sm:$0xff]
    %v49 = vld [vmem:[#allocation2 + $0x38] sm:$0xff]
    %v50 = vld [vmem:[#allocation2 + $0x40] sm:$0xff]
    %v51 = vld [vmem:[#allocation2 + $0x48] sm:$0xff]
    %v52 = vld [vmem:[#allocation2 + $0x50] sm:$0xff]
    %v53 = vld [vmem:[#allocation2 + $0x58] sm:$0xff]
    %v54 = vld [vmem:[#allocation2 + $0x60] sm:$0xff]
    %v55 = vld [vmem:[#allocation2 + $0x68] sm:$0xff]
    %v56 = vld [vmem:[#allocation2 + $0x70] sm:$0xff]
    %v57 = vld [vmem:[#allocation2 + $0x78] sm:$0xff]
    %58 = vmatprep.subr.mxu0 0.0
    %59 = vmatpush1.msra.mxu0 %v42
    %60 = vmatprep.subr.mxu0 0.0
    %61 = vmatpush1.msra.mxu0 %v43
    %62 = vmatprep.subr.mxu0 0.0
    %63 = vmatpush1.msra.mxu0 %v44
    %64 = vmatprep.subr.mxu0 0.0
    %65 = vmatpush1.msra.mxu0 %v45
    %66 = vmatprep.subr.mxu0 0.0
    %67 = vmatpush1.msra.mxu0 %v46
    %68 = vmatprep.subr.mxu0 0.0
    %69 = vmatpush1.msra.mxu0 %v47
    %70 = vmatprep.subr.mxu0 0.0
    %71 = vmatpush1.msra.mxu0 %v48
    %72 = vmatprep.subr.mxu0 0.0
    %73 = vmatpush1.msra.mxu0 %v49
    %74 = vmatprep.subr.mxu0 0.0
    %75 = vmatpush1.msra.mxu0 %v50
    %76 = vmatprep.subr.mxu0 0.0
    %77 = vmatpush1.msra.mxu0 %v51
    %78 = vmatprep.subr.mxu0 0.0
    %79 = vmatpush1.msra.mxu0 %v52
    %80 = vmatprep.subr.mxu0 0.0
    %81 = vmatpush1.msra.mxu0 %v53
    %82 = vmatprep.subr.mxu0 0.0
    %83 = vmatpush1.msra.mxu0 %v54
    %84 = vmatprep.subr.mxu0 0.0
    %85 = vmatpush1.msra.mxu0 %v55
    %86 = vmatprep.subr.mxu0 0.0
    %87 = vmatpush1.msra.mxu0 %v56
    %88 = vmatprep.subr.mxu0 0.0
    %89 = vmatpush1.msra.mxu0 %v57
    %90 = vmatprep.subr.mxu0 0.0
    %91 = vmatpush1.msra.mxu0 0.0
    %92 = vmatprep.subr.mxu0 0.0
    %93 = vmatpush1.msra.mxu0 0.0
    %94 = vmatprep.subr.mxu0 0.0
    %95 = vmatpush1.msra.mxu0 0.0
    %96 = vmatprep.subr.mxu0 0.0
    %97 = vmatpush1.msra.mxu0 0.0
    %98 = vmatprep.subr.mxu0 0.0
    %99 = vmatpush1.msra.mxu0 0.0
    %100 = vmatprep.subr.mxu0 0.0
    %101 = vmatpush1.msra.mxu0 0.0
    %102 = vmatprep.subr.mxu0 0.0
    %103 = vmatpush1.msra.mxu0 0.0
    %104 = vmatprep.subr.mxu0 0.0
    %105 = vmatpush1.msra.mxu0 0.0
    %106 = vmatprep.subr.mxu0 0.0
    %107 = vmatpush1.msra.mxu0 0.0
    %108 = vmatprep.subr.mxu0 0.0
    %109 = vmatpush1.msra.mxu0 0.0
    %110 = vmatprep.subr.mxu0 0.0
    %111 = vmatpush1.msra.mxu0 0.0
    %112 = vmatprep.subr.mxu0 0.0
    %113 = vmatpush1.msra.mxu0 0.0
    %114 = vmatprep.subr.mxu0 0.0
    %115 = vmatpush1.msra.mxu0 0.0
    %116 = vmatprep.subr.mxu0 0.0
    %117 = vmatpush1.msra.mxu0 0.0
    %118 = vmatprep.subr.mxu0 0.0
    %119 = vmatpush1.msra.mxu0 0.0
    %120 = vmatprep.subr.mxu0 0.0
    %121 = vmatpush1.msra.mxu0 0.0
    %122 = vmatprep.mubr.f32.mxu0 0.0
    %123 = vmatmul.mubr.f32.gmra.mrb[0].mxu0 %v41
    %v124 = vpop.f32.mrb[0].mxu0
    %v125 = vadd.f32 0.0, %v124
    %v126 = vpop.f32.mrb[0].mxu0
    %127 = vdwg.mxu0
    %v128 = vadd.f32 %v40, %v125
    %129 = vst [vmem:[%s3] sm:$0xff] %v128
    // Predicated region
    $region22: #{rnn1_forward.19} parent=1 // pred_check
      %p130 = pneg %p28
    $region23: #{rnn1_forward.19} parent=1 // pred_check_branch
      %132 = sbr.rel (%p130) target = $region25
    $region24: #{rnn1_forward.19} parent=1 // pred_region
      %v133 = vld [vmem:[%s3] sm:$0xff]
      %v134 = vmax.f32 %v133, 0.0
      %135 = vst [vmem:[%s3] sm:$0xff] %v134
    $region25: #{rnn1_forward.19} parent=1 // pred_fallthru
      _
    // Predicated region
    $region26: #{rnn1_forward.19} parent=1 // pred_check
      _
    $region27: #{rnn1_forward.19} parent=1 // pred_check_branch
      %137 = sbr.rel (0) target = $region29
    $region28: #{rnn1_forward.19} parent=1 // pred_region
      _
    $region29: #{rnn1_forward.19} parent=1 // pred_fallthru
      _
    // Predicated region
    $region30: #{rnn1_forward.19} parent=1 // pred_check
      _
    $region31: #{rnn1_forward.19} parent=1 // pred_check_branch
      %139 = sbr.rel (0) target = $region33
    $region32: #{rnn1_forward.19} parent=1 // pred_region
      _
    $region33: #{rnn1_forward.19} parent=1 // pred_fallthru
      _
    %140 = vsyncpa [#allocation3], 1

// kernel: rnn1_forward.20
$region0: #{rnn1_forward.20}
  #allocation0 [shape = 'u32[]', space=smem, size = 0x4, offset = 0x4, fixed_abs, tag = 'smem constant byte address 0x4 - core index']
  #allocation1 [shape = 'u32[144,128]{1,0:T(1,128)}', space=vmem, size = 0x12000, scoped, tag = 'internal scratch']
  %s0 = inlined_call_operand.vmem [shape: f32[8,128], index: 0, kind: input, shape index: {}]
  %s1 = inlined_call_operand.hbm [shape: f32[128,128], index: 1, kind: input, shape index: {}]
  %s2 = inlined_call_operand.vmem [shape: f32[1,128], index: 2, kind: input, shape index: {}]
  %s3 = inlined_call_operand.vmem [shape: f32[8,128], index: 3, kind: output, shape index: {}]
  %s4 = sld [smem:[#allocation0]]
  $region30: #{rnn1_forward.20} parent=0
    _
  %s6 = ssub.s32 1, %s4
  %s7 = scalar_select 0, %s6, %s4
  $region1: #{rnn1_forward.20} parent=0
    #allocation2 [shape = 'u8[65536]{0}', space=vmem, size = 0x10000, scoped, tag = 'input window, operand 1, single buffered']
    #allocation3 [shape = 's32[1]{0}', space=sflag, size = 0x4, scoped, tag = 'scoped memory for rnn1_forward.20']
    %8 = vsyncpa [#allocation3], 0
    // Predicated region
    $region2: #{rnn1_forward.20} parent=1 // pred_check
      _
    $region3: #{rnn1_forward.20} parent=1 // pred_check_branch
      %10 = sbr.rel (0) target = $region5
    $region4: #{rnn1_forward.20} parent=1 // pred_region
      _
    $region5: #{rnn1_forward.20} parent=1 // pred_fallthru
      _
    // Predicated region
    $region6: #{rnn1_forward.20} parent=1 // pred_check
      _
    $region7: #{rnn1_forward.20} parent=1 // pred_check_branch
      %12 = sbr.rel (0) target = $region9
    $region8: #{rnn1_forward.20} parent=1 // pred_region
      %s14 = ssub.s32 2048, 2048
      %15 = vsyncadd [#allocation3], %s14
      %s16 = sshll.u32 [#allocation2], 4
      %s17 = int_to_ptr.vmem [resolvable:$true] %s16
      %22 = dma.hbm_to_vmem [thread:$0]  %s1, 2048, %s17, [#allocation3], 128, 128, 8
    $region9: #{rnn1_forward.20} parent=1 // pred_fallthru
      _
    // Predicated region
    $region10: #{rnn1_forward.20} parent=1 // pred_check
      _
    $region11: #{rnn1_forward.20} parent=1 // pred_check_branch
      %24 = sbr.rel (0) target = $region13
    $region12: #{rnn1_forward.20} parent=1 // pred_region
      _
    $region13: #{rnn1_forward.20} parent=1 // pred_fallthru
      _
    // Predicated region
    $region14: #{rnn1_forward.20} parent=1 // pred_check
      _
    $region15: #{rnn1_forward.20} parent=1 // pred_check_branch
      %26 = sbr.rel (0) target = $region17
    $region16: #{rnn1_forward.20} parent=1 // pred_region
      %27 = dma.done [#allocation3], 2048
    $region17: #{rnn1_forward.20} parent=1 // pred_fallthru
      _
    %p28 = scmp.eq.s32.totalorder 0, 0
    // Predicated region
    $region18: #{rnn1_forward.20} parent=1 // pred_check
      %p29 = pneg %p28
    $region19: #{rnn1_forward.20} parent=1 // pred_check_branch
      %31 = sbr.rel (%p29) target = $region21
    $region20: #{rnn1_forward.20} parent=1 // pred_region
      %v32 = vld [vmem:[%s2] sm:$0x1]
      %v34 = vlaneseq
      %v35 = vshrl.u32 %v34, 7
      %v36 = vsub.s32 0, %v35
      %v37 = vrot.slane %v32, %v36
      %39 = vst [vmem:[%s3] sm:$0xff] %v37
    $region21: #{rnn1_forward.20} parent=1 // pred_fallthru
      _
    %v40 = vld [vmem:[%s3] sm:$0xff]
    %v41 = vld [vmem:[%s0] sm:$0xff]
    %v42 = vld [vmem:[#allocation2] sm:$0xff]
    %v43 = vld [vmem:[#allocation2 + $0x8] sm:$0xff]
    %v44 = vld [vmem:[#allocation2 + $0x10] sm:$0xff]
    %v45 = vld [vmem:[#allocation2 + $0x18] sm:$0xff]
    %v46 = vld [vmem:[#allocation2 + $0x20] sm:$0xff]
    %v47 = vld [vmem:[#allocation2 + $0x28] sm:$0xff]
    %v48 = vld [vmem:[#allocation2 + $0x30] sm:$0xff]
    %v49 = vld [vmem:[#allocation2 + $0x38] sm:$0xff]
    %v50 = vld [vmem:[#allocation2 + $0x40] sm:$0xff]
    %v51 = vld [vmem:[#allocation2 + $0x48] sm:$0xff]
    %v52 = vld [vmem:[#allocation2 + $0x50] sm:$0xff]
    %v53 = vld [vmem:[#allocation2 + $0x58] sm:$0xff]
    %v54 = vld [vmem:[#allocation2 + $0x60] sm:$0xff]
    %v55 = vld [vmem:[#allocation2 + $0x68] sm:$0xff]
    %v56 = vld [vmem:[#allocation2 + $0x70] sm:$0xff]
    %v57 = vld [vmem:[#allocation2 + $0x78] sm:$0xff]
    %58 = vmatprep.subr.mxu0 0.0
    %59 = vmatpush1.msra.mxu0 %v42
    %60 = vmatprep.subr.mxu0 0.0
    %61 = vmatpush1.msra.mxu0 %v43
    %62 = vmatprep.subr.mxu0 0.0
    %63 = vmatpush1.msra.mxu0 %v44
    %64 = vmatprep.subr.mxu0 0.0
    %65 = vmatpush1.msra.mxu0 %v45
    %66 = vmatprep.subr.mxu0 0.0
    %67 = vmatpush1.msra.mxu0 %v46
    %68 = vmatprep.subr.mxu0 0.0
    %69 = vmatpush1.msra.mxu0 %v47
    %70 = vmatprep.subr.mxu0 0.0
    %71 = vmatpush1.msra.mxu0 %v48
    %72 = vmatprep.subr.mxu0 0.0
    %73 = vmatpush1.msra.mxu0 %v49
    %74 = vmatprep.subr.mxu0 0.0
    %75 = vmatpush1.msra.mxu0 %v50
    %76 = vmatprep.subr.mxu0 0.0
    %77 = vmatpush1.msra.mxu0 %v51
    %78 = vmatprep.subr.mxu0 0.0
    %79 = vmatpush1.msra.mxu0 %v52
    %80 = vmatprep.subr.mxu0 0.0
    %81 = vmatpush1.msra.mxu0 %v53
    %82 = vmatprep.subr.mxu0 0.0
    %83 = vmatpush1.msra.mxu0 %v54
    %84 = vmatprep.subr.mxu0 0.0
    %85 = vmatpush1.msra.mxu0 %v55
    %86 = vmatprep.subr.mxu0 0.0
    %87 = vmatpush1.msra.mxu0 %v56
    %88 = vmatprep.subr.mxu0 0.0
    %89 = vmatpush1.msra.mxu0 %v57
    %90 = vmatprep.subr.mxu0 0.0
    %91 = vmatpush1.msra.mxu0 0.0
    %92 = vmatprep.subr.mxu0 0.0
    %93 = vmatpush1.msra.mxu0 0.0
    %94 = vmatprep.subr.mxu0 0.0
    %95 = vmatpush1.msra.mxu0 0.0
    %96 = vmatprep.subr.mxu0 0.0
    %97 = vmatpush1.msra.mxu0 0.0
    %98 = vmatprep.subr.mxu0 0.0
    %99 = vmatpush1.msra.mxu0 0.0
    %100 = vmatprep.subr.mxu0 0.0
    %101 = vmatpush1.msra.mxu0 0.0
    %102 = vmatprep.subr.mxu0 0.0
    %103 = vmatpush1.msra.mxu0 0.0
    %104 = vmatprep.subr.mxu0 0.0
    %105 = vmatpush1.msra.mxu0 0.0
    %106 = vmatprep.subr.mxu0 0.0
    %107 = vmatpush1.msra.mxu0 0.0
    %108 = vmatprep.subr.mxu0 0.0
    %109 = vmatpush1.msra.mxu0 0.0
    %110 = vmatprep.subr.mxu0 0.0
    %111 = vmatpush1.msra.mxu0 0.0
    %112 = vmatprep.subr.mxu0 0.0
    %113 = vmatpush1.msra.mxu0 0.0
    %114 = vmatprep.subr.mxu0 0.0
    %115 = vmatpush1.msra.mxu0 0.0
    %116 = vmatprep.subr.mxu0 0.0
    %117 = vmatpush1.msra.mxu0 0.0
    %118 = vmatprep.subr.mxu0 0.0
    %119 = vmatpush1.msra.mxu0 0.0
    %120 = vmatprep.subr.mxu0 0.0
    %121 = vmatpush1.msra.mxu0 0.0
    %122 = vmatprep.mubr.f32.mxu0 0.0
    %123 = vmatmul.mubr.f32.gmra.mrb[0].mxu0 %v41
    %v124 = vpop.f32.mrb[0].mxu0
    %v125 = vadd.f32 0.0, %v124
    %v126 = vpop.f32.mrb[0].mxu0
    %127 = vdwg.mxu0
    %v128 = vadd.f32 %v40, %v125
    %129 = vst [vmem:[%s3] sm:$0xff] %v128
    // Predicated region
    $region22: #{rnn1_forward.20} parent=1 // pred_check
      _
    $region23: #{rnn1_forward.20} parent=1 // pred_check_branch
      %131 = sbr.rel (0) target = $region25
    $region24: #{rnn1_forward.20} parent=1 // pred_region
      _
    $region25: #{rnn1_forward.20} parent=1 // pred_fallthru
      _
    // Predicated region
    $region26: #{rnn1_forward.20} parent=1 // pred_check
      _
    $region27: #{rnn1_forward.20} parent=1 // pred_check_branch
      %133 = sbr.rel (0) target = $region29
    $region28: #{rnn1_forward.20} parent=1 // pred_region
      _
    $region29: #{rnn1_forward.20} parent=1 // pred_fallthru
      _
    %134 = vsyncpa [#allocation3], 1

// kernel: rnn1_forward.17
$region0: #{rnn1_forward.17}
  #allocation0 [shape = 'u32[]', space=smem, size = 0x4, offset = 0x4, fixed_abs, tag = 'smem constant byte address 0x4 - core index']
  #allocation1 [shape = 'u32[144,128]{1,0:T(1,128)}', space=vmem, size = 0x12000, scoped, tag = 'internal scratch']
  %s0 = inlined_call_operand.vmem [shape: f32[8,7168], index: 0, kind: input, shape index: {}]
  %s1 = inlined_call_operand.hbm [shape: f32[7168,256], index: 1, kind: input, shape index: {}]
  %s2 = inlined_call_operand.hbm [shape: f32[1,256], index: 2, kind: input, shape index: {}]
  %s3 = inlined_call_operand.vmem [shape: f32[8,256], index: 3, kind: output, shape index: {}]
  %s4 = sld [smem:[#allocation0]]
  $region61: #{rnn1_forward.17} parent=0
    _
  %s6 = ssub.s32 1, %s4
  %s7 = scalar_select 0, %s6, %s4
  $region1: #{rnn1_forward.17} parent=0
    #allocation2 [shape = 'u8[2097152]{0}', space=vmem, size = 0x200000, scoped, tag = 'input window, operand 1']
    #allocation3 [shape = 's32[2]{0}', space=sflag, size = 0x8, scoped, tag = 'scoped memory for rnn1_forward.17']
    #allocation4 [shape = 'u8[1024]{0}', space=vmem, size = 0x400, scoped, tag = 'input window, operand 2, single buffered']
    #allocation5 [shape = 's32[1]{0}', space=sflag, size = 0x4, scoped, tag = 'scoped memory for rnn1_forward.17']
    %8 = vsyncpa [#allocation3], 0
    %s9 = scalar_lea.sflag [#allocation3], 1
    %10 = vsyncpa %s9, 0
    %11 = vsyncpa [#allocation5], 0
    loop: start=0, step=1, limit=9
    $region2: #{rnn1_forward.17} parent=1 // loop_pre_header
      _
    $region3: #{rnn1_forward.17} parent=1 // loop_header
      %s13 = sphi 0, %s17
      %p14 = scmp.ge.s32.totalorder %s13, 9
      %s20 = sphi 0, %s39
      %s21 = sphi 0, %s35
      %s22 = sphi 0, %s31
      %s23 = sphi 0, %s20
      %s24 = sphi 0, %s21
      %s25 = sphi 0, %s22
      %s26 = sphi 0, %s23
      %s27 = sphi 0, %s24
      %s28 = sphi 0, %s25
      %s44 = sphi 0, %s46
      %s47 = sphi 0, %s44
      %s48 = sphi 0, %s47
      %s64 = sphi 0, %s48
      %s72 = sphi 0, %s74
      %s75 = sphi 0, %s72
      %s76 = sphi 0, %s75
      %s92 = sphi 0, %s76
      %s98 = sphi 0, %s100
      %s101 = sphi 0, %s98
      %s102 = sphi 0, %s101
      %s118 = sphi 0, %s102
      %s126 = sphi 0, %s128
      %s129 = sphi 0, %s126
      %s130 = sphi 0, %s129
      %s146 = sphi 0, %s130
    $region4: #{rnn1_forward.17} parent=1 // loop_header_branch
      %16 = sbr.rel (%p14) target = $region8
    $region5: #{rnn1_forward.17} parent=1 // loop_body
      %s18 = ssub.s32 %s13, 1
      %s19 = ssub.s32 %s13, 2
      %s29 = sadd.s32 1, %s22
      %p30 = scmp.ge.s32.totalorder %s29, 7
      %s31 = scalar_select %p30, 0, %s29
      %s32 = sadd.s32 1, %s21
      %s33 = scalar_select %p30, %s32, %s21
      %p34 = scmp.ge.s32.totalorder %s33, 1
      %s35 = scalar_select %p34, 0, %s33
      %s36 = sadd.s32 1, %s20
      %s37 = scalar_select %p34, %s36, %s20
      %p38 = scmp.ge.s32.totalorder %s37, 1
      %s39 = scalar_select %p38, 0, %s37
      %s40 = ssub.s32 %s20, %s39
      %s41 = ssub.s32 %s22, %s31
      %s42 = sor.u32 %s40, %s41
      %p43 = scmp.eq.s32.totalorder %s42, 0
      %s45 = sadd.s32 %s44, 1
      %s46 = scalar_select %p43, %s44, %s45
      %p49 = pneg %p43
      %p50 = scmp.eq.s32.totalorder %s13, 6
      %p51 = por %p49, %p50
      %p52 = scmp.ne.s32.totalorder %s44, %s47
      %p53 = scmp.eq.s32.totalorder %s13, 0
      %p54 = por %p52, %p53
      %p55 = scmp.ne.s32.totalorder %s44, %s47
      %p56 = scmp.eq.s32.totalorder %s18, 6
      %p57 = por %p55, %p56
      %p58 = scmp.ne.s32.totalorder %s47, %s48
      %p59 = scmp.eq.s32.totalorder %s18, 0
      %p60 = por %p58, %p59
      %p61 = scmp.ne.s32.totalorder %s47, %s48
      %p62 = scmp.eq.s32.totalorder %s19, 6
      %p63 = por %p61, %p62
      %p65 = scmp.ne.s32.totalorder %s48, %s64
      %p66 = scmp.eq.s32.totalorder %s19, 0
      %p67 = por %p65, %p66
      %s68 = ssub.s32 %s22, %s31
      %s69 = ssub.s32 %s21, %s35
      %s70 = sor.u32 %s68, %s69
      %p71 = scmp.eq.s32.totalorder %s70, 0
      %s73 = sadd.s32 %s72, 1
      %s74 = scalar_select %p71, %s72, %s73
      %p77 = pneg %p71
      %p78 = scmp.eq.s32.totalorder %s13, 6
      %p79 = por %p77, %p78
      %p80 = scmp.ne.s32.totalorder %s72, %s75
      %p81 = scmp.eq.s32.totalorder %s13, 0
      %p82 = por %p80, %p81
      %p83 = scmp.ne.s32.totalorder %s72, %s75
      %p84 = scmp.eq.s32.totalorder %s18, 6
      %p85 = por %p83, %p84
      %p86 = scmp.ne.s32.totalorder %s75, %s76
      %p87 = scmp.eq.s32.totalorder %s18, 0
      %p88 = por %p86, %p87
      %p89 = scmp.ne.s32.totalorder %s75, %s76
      %p90 = scmp.eq.s32.totalorder %s19, 6
      %p91 = por %p89, %p90
      %p93 = scmp.ne.s32.totalorder %s76, %s92
      %p94 = scmp.eq.s32.totalorder %s19, 0
      %p95 = por %p93, %p94
      %s96 = ssub.s32 %s21, %s35
      %p97 = scmp.eq.s32.totalorder %s96, 0
      %s99 = sadd.s32 %s98, 1
      %s100 = scalar_select %p97, %s98, %s99
      %p103 = pneg %p97
      %p104 = scmp.eq.s32.totalorder %s13, 6
      %p105 = por %p103, %p104
      %p106 = scmp.ne.s32.totalorder %s98, %s101
      %p107 = scmp.eq.s32.totalorder %s13, 0
      %p108 = por %p106, %p107
      %p109 = scmp.ne.s32.totalorder %s98, %s101
      %p110 = scmp.eq.s32.totalorder %s18, 6
      %p111 = por %p109, %p110
      %p112 = scmp.ne.s32.totalorder %s101, %s102
      %p113 = scmp.eq.s32.totalorder %s18, 0
      %p114 = por %p112, %p113
      %p115 = scmp.ne.s32.totalorder %s101, %s102
      %p116 = scmp.eq.s32.totalorder %s19, 6
      %p117 = por %p115, %p116
      %p119 = scmp.ne.s32.totalorder %s102, %s118
      %p120 = scmp.eq.s32.totalorder %s19, 0
      %p121 = por %p119, %p120
      %s122 = ssub.s32 %s20, %s39
      %s123 = ssub.s32 %s21, %s35
      %s124 = sor.u32 %s122, %s123
      %p125 = scmp.eq.s32.totalorder %s124, 0
      %s127 = sadd.s32 %s126, 1
      %s128 = scalar_select %p125, %s126, %s127
      %p131 = pneg %p125
      %p132 = scmp.eq.s32.totalorder %s13, 6
      %p133 = por %p131, %p132
      %p134 = scmp.ne.s32.totalorder %s126, %s129
      %p135 = scmp.eq.s32.totalorder %s13, 0
      %p136 = por %p134, %p135
      %p137 = scmp.ne.s32.totalorder %s126, %s129
      %p138 = scmp.eq.s32.totalorder %s18, 6
      %p139 = por %p137, %p138
      %p140 = scmp.ne.s32.totalorder %s129, %s130
      %p141 = scmp.eq.s32.totalorder %s18, 0
      %p142 = por %p140, %p141
      %p143 = scmp.ne.s32.totalorder %s129, %s130
      %p144 = scmp.eq.s32.totalorder %s19, 6
      %p145 = por %p143, %p144
      %p147 = scmp.ne.s32.totalorder %s130, %s146
      %p148 = scmp.eq.s32.totalorder %s19, 0
      %p149 = por %p147, %p148
      %p150 = scmp.le.s32.totalorder 1, %s13
      %p151 = scmp.lt.s32.totalorder %s13, 8
      %p152 = pnand %p150, %p151
      %p153 = pneg %p152
      // Predicated region
      $region9: #{rnn1_forward.17} parent=5 // pred_check
        _
      $region10: #{rnn1_forward.17} parent=5 // pred_check_branch
        %155 = sbr.rel (%p152) target = $region12
      $region11: #{rnn1_forward.17} parent=5 // pred_region
        %s156 = ssub.s32 %s13, 1
        // Predicated region
        $region13: #{rnn1_forward.17} parent=11 // pred_check
          %p157 = pneg %p114
        $region14: #{rnn1_forward.17} parent=11 // pred_check_branch
          %159 = sbr.rel (%p157) target = $region16
        $region15: #{rnn1_forward.17} parent=11 // pred_region
          %s160 = smul.u32 2, %s24
          %s162 = ssub.s32 32, 32
          %163 = vsyncadd [#allocation5], %s162
          %s164 = smul.addr %s160, 16
          %s165 = scalar_lea.hbm %s2, %s164
          %s167 = sshll.u32 [#allocation4], 4
          %s168 = int_to_ptr.vmem [resolvable:$true] %s167
          %170 = dma.hbm_to_vmem [thread:$0]  %s165, 32, %s168, [#allocation5]
        $region16: #{rnn1_forward.17} parent=11 // pred_fallthru
          _
      $region12: #{rnn1_forward.17} parent=5 // pred_fallthru
        _
      %p171 = scmp.lt.s32.totalorder %s13, 7
      // Predicated region
      $region17: #{rnn1_forward.17} parent=5 // pred_check
        %p172 = pneg %p171
      $region18: #{rnn1_forward.17} parent=5 // pred_check_branch
        %174 = sbr.rel (%p172) target = $region20
      $region19: #{rnn1_forward.17} parent=5 // pred_region
        // Predicated region
        $region21: #{rnn1_forward.17} parent=19 // pred_check
          %p175 = pneg %p54
        $region22: #{rnn1_forward.17} parent=19 // pred_check_branch
          %177 = sbr.rel (%p175) target = $region24
        $region23: #{rnn1_forward.17} parent=19 // pred_region
          %s178 = smul.u32 8, %s22
          %p179 = scmp.lt.s32.totalorder %s20, 0
          %s180 = scalar_select %p179, %s20, 0
          %p181 = scmp.lt.s32.totalorder %s178, 55
          %s182 = scalar_select %p181, %s178, 55
          %s183 = smul.addr %s180, 56
          %s184 = sadd.s32 %s182, %s183
          %s185 = smul.addr %s184, 8
          %s186 = scalar_lea.vmem %s0, %s185
          %s187 = smul.u32 8, %s22
        $region24: #{rnn1_forward.17} parent=19 // pred_fallthru
          _
        // Predicated region
        $region25: #{rnn1_forward.17} parent=19 // pred_check
          %p188 = pneg %p82
        $region26: #{rnn1_forward.17} parent=19 // pred_check_branch
          %190 = sbr.rel (%p188) target = $region28
        $region27: #{rnn1_forward.17} parent=19 // pred_region
          %s191 = sand.u32 %s72, 1
          %s192 = scalar_lea.sflag [#allocation3], %s191
          %s193 = sand.u32 %s72, 1
          %s194 = smul.addr %s193, 2048
          %s195 = scalar_lea.vmem [#allocation2], %s194
          %s196 = smul.u32 128, %s22
          %s197 = smul.u32 2, %s21
          %s199 = ssub.s32 32768, 32768
          %200 = vsyncadd %s192, %s199
          %s201 = smul.addr %s196, 2
          %s202 = sadd.s32 %s197, %s201
          %s203 = smul.addr %s202, 128
          %s204 = scalar_lea.hbm %s1, %s203
          %s205 = sshll.u32 %s195, 4
          %s206 = int_to_ptr.vmem [resolvable:$true] %s205
          %211 = dma.hbm_to_vmem [thread:$0]  %s204, 32768, %s206, %s192, 256, 256, 16
        $region28: #{rnn1_forward.17} parent=19 // pred_fallthru
          _
      $region20: #{rnn1_forward.17} parent=5 // pred_fallthru
        _
      %p212 = scmp.le.s32.totalorder 1, %s13
      %p213 = scmp.lt.s32.totalorder %s13, 8
      %p214 = pnand %p212, %p213
      %p215 = pneg %p214
      // Predicated region
      $region29: #{rnn1_forward.17} parent=5 // pred_check
        _
      $region30: #{rnn1_forward.17} parent=5 // pred_check_branch
        %217 = sbr.rel (%p214) target = $region32
      $region31: #{rnn1_forward.17} parent=5 // pred_region
        %s218 = ssub.s32 %s13, 1
        %s219 = sand.u32 %s75, 1
        %s220 = scalar_lea.sflag [#allocation3], %s219
        %s221 = sand.u32 %s75, 1
        %s222 = smul.addr %s221, 2048
        %s223 = scalar_lea.vmem [#allocation2], %s222
        // Predicated region
        $region33: #{rnn1_forward.17} parent=31 // pred_check
          %p224 = pneg %p88
        $region34: #{rnn1_forward.17} parent=31 // pred_check_branch
          %226 = sbr.rel (%p224) target = $region36
        $region35: #{rnn1_forward.17} parent=31 // pred_region
          %227 = dma.done %s220, 32768
        $region36: #{rnn1_forward.17} parent=31 // pred_fallthru
          _
        // Predicated region
        $region37: #{rnn1_forward.17} parent=31 // pred_check
          %p228 = pneg %p114
        $region38: #{rnn1_forward.17} parent=31 // pred_check_branch
          %230 = sbr.rel (%p228) target = $region40
        $region39: #{rnn1_forward.17} parent=31 // pred_region
          %231 = dma.done [#allocation5], 32
        $region40: #{rnn1_forward.17} parent=31 // pred_fallthru
          _
        %s232 = smul.u32 8, %s25
        %p233 = scmp.lt.s32.totalorder %s23, 0
        %s234 = scalar_select %p233, %s23, 0
        %p235 = scmp.lt.s32.totalorder %s232, 55
        %s236 = scalar_select %p235, %s232, 55
        %s237 = smul.addr %s234, 56
        %s238 = sadd.s32 %s236, %s237
        %s239 = smul.addr %s238, 8
        %s240 = scalar_lea.vmem %s0, %s239
        %p241 = pneg %p60
        %p242 = pneg %p57
        %s243 = sand.u32 %s75, 1
        %s244 = scalar_lea.sflag [#allocation3], %s243
        %s245 = sand.u32 %s75, 1
        %s246 = smul.addr %s245, 2048
        %s247 = scalar_lea.vmem [#allocation2], %s246
        %p248 = pneg %p88
        %p249 = pneg %p85
        %p250 = pneg %p114
        %p251 = pneg %p111
        %p252 = pneg %p142
        %p253 = pneg %p139
        %s254 = smul.u32 2, %s24
        %p255 = scmp.lt.s32.totalorder %s23, 0
        %s256 = scalar_select %p255, %s23, 0
        %p257 = scmp.lt.s32.totalorder %s254, 1
        %s258 = scalar_select %p257, %s254, 1
        %s259 = smul.addr %s256, 2
        %s260 = sadd.s32 %s258, %s259
        %s261 = smul.addr %s260, 8
        %s262 = scalar_lea.vmem %s3, %s261
        %s263 = smul.u32 8, %s25
        %p264 = scmp.lt.s32.totalorder %s23, 0
        %s265 = scalar_select %p264, %s23, 0
        %p266 = scmp.lt.s32.totalorder %s263, 55
        %s267 = scalar_select %p266, %s263, 55
        %s268 = smul.addr %s265, 56
        %s269 = sadd.s32 %s267, %s268
        %s270 = smul.addr %s269, 8
        %s271 = scalar_lea.vmem %s0, %s270
        %s272 = smul.u32 8, %s25
        %s273 = smul.u32 128, %s25
        %s274 = smul.u32 2, %s24
        %s275 = smul.u32 2, %s24
        %s276 = smul.u32 2, %s24
        %p277 = scmp.lt.s32.totalorder %s23, 0
        %s278 = scalar_select %p277, %s23, 0
        %p279 = scmp.lt.s32.totalorder %s276, 1
        %s280 = scalar_select %p279, %s276, 1
        %s281 = smul.addr %s278, 2
        %s282 = sadd.s32 %s280, %s281
        %s283 = smul.addr %s282, 8
        %s284 = scalar_lea.vmem %s3, %s283
        %s285 = smul.u32 2, %s24
        %p286 = scmp.eq.s32.totalorder %s25, 0
        // Predicated region
        $region41: #{rnn1_forward.17} parent=31 // pred_check
          %p287 = pneg %p286
        $region42: #{rnn1_forward.17} parent=31 // pred_check_branch
          %289 = sbr.rel (%p287) target = $region44
        $region43: #{rnn1_forward.17} parent=31 // pred_region
          %v290 = vld [vmem:[#allocation4] sm:$0x3]
          %v292 = vlaneseq
          %v293 = vshrl.u32 %v292, 7
          %v294 = vsub.s32 0, %v293
          %v295 = vrot.slane %v290, %v294
          %v296 = vlaneseq
          %v297 = vshrl.u32 %v296, 7
          %v298 = vsub.s32 1, %v297
          %v299 = vrot.slane %v290, %v298
          %302 = vst [vmem:[%s284] sm:$0xff] %v295
          %303 = vst [vmem:[%s284 + $0x8] sm:$0xff] %v299
        $region44: #{rnn1_forward.17} parent=31 // pred_fallthru
          _
        %v304 = vld [vmem:[%s284] sm:$0xff]
        %v305 = vld [vmem:[%s284 + $0x8] sm:$0xff]
        %v306 = vld [vmem:[%s271] sm:$0xff]
        %v307 = vld [vmem:[%s271 + $0x8] sm:$0xff]
        %v308 = vld [vmem:[%s271 + $0x10] sm:$0xff]
        %v309 = vld [vmem:[%s271 + $0x18] sm:$0xff]
        %v310 = vld [vmem:[%s271 + $0x20] sm:$0xff]
        %v311 = vld [vmem:[%s271 + $0x28] sm:$0xff]
        %v312 = vld [vmem:[%s271 + $0x30] sm:$0xff]
        %v313 = vld [vmem:[%s271 + $0x38] sm:$0xff]
        %v314 = vld [vmem:[%s223] sm:$0xff]
        %v315 = vld [vmem:[%s223 + $0x8] sm:$0xff]
        %v316 = vld [vmem:[%s223 + $0x10] sm:$0xff]
        %v317 = vld [vmem:[%s223 + $0x18] sm:$0xff]
        %v318 = vld [vmem:[%s223 + $0x20] sm:$0xff]
        %v319 = vld [vmem:[%s223 + $0x28] sm:$0xff]
        %v320 = vld [vmem:[%s223 + $0x30] sm:$0xff]
        %v321 = vld [vmem:[%s223 + $0x38] sm:$0xff]
        %v322 = vld [vmem:[%s223 + $0x40] sm:$0xff]
        %v323 = vld [vmem:[%s223 + $0x48] sm:$0xff]
        %v324 = vld [vmem:[%s223 + $0x50] sm:$0xff]
        %v325 = vld [vmem:[%s223 + $0x58] sm:$0xff]
        %v326 = vld [vmem:[%s223 + $0x60] sm:$0xff]
        %v327 = vld [vmem:[%s223 + $0x68] sm:$0xff]
        %v328 = vld [vmem:[%s223 + $0x70] sm:$0xff]
        %v329 = vld [vmem:[%s223 + $0x78] sm:$0xff]
        %v330 = vld [vmem:[%s223 + $0x80] sm:$0xff]
        %v331 = vld [vmem:[%s223 + $0x88] sm:$0xff]
        %v332 = vld [vmem:[%s223 + $0x90] sm:$0xff]
        %v333 = vld [vmem:[%s223 + $0x98] sm:$0xff]
        %v334 = vld [vmem:[%s223 + $0xa0] sm:$0xff]
        %v335 = vld [vmem:[%s223 + $0xa8] sm:$0xff]
        %v336 = vld [vmem:[%s223 + $0xb0] sm:$0xff]
        %v337 = vld [vmem:[%s223 + $0xb8] sm:$0xff]
        %v338 = vld [vmem:[%s223 + $0xc0] sm:$0xff]
        %v339 = vld [vmem:[%s223 + $0xc8] sm:$0xff]
        %v340 = vld [vmem:[%s223 + $0xd0] sm:$0xff]
        %v341 = vld [vmem:[%s223 + $0xd8] sm:$0xff]
        %v342 = vld [vmem:[%s223 + $0xe0] sm:$0xff]
        %v343 = vld [vmem:[%s223 + $0xe8] sm:$0xff]
        %v344 = vld [vmem:[%s223 + $0xf0] sm:$0xff]
        %v345 = vld [vmem:[%s223 + $0xf8] sm:$0xff]
        %v346 = vld [vmem:[%s223 + $0x100] sm:$0xff]
        %v347 = vld [vmem:[%s223 + $0x108] sm:$0xff]
        %v348 = vld [vmem:[%s223 + $0x110] sm:$0xff]
        %v349 = vld [vmem:[%s223 + $0x118] sm:$0xff]
        %v350 = vld [vmem:[%s223 + $0x120] sm:$0xff]
        %v351 = vld [vmem:[%s223 + $0x128] sm:$0xff]
        %v352 = vld [vmem:[%s223 + $0x130] sm:$0xff]
        %v353 = vld [vmem:[%s223 + $0x138] sm:$0xff]
        %v354 = vld [vmem:[%s223 + $0x140] sm:$0xff]
        %v355 = vld [vmem:[%s223 + $0x148] sm:$0xff]
        %v356 = vld [vmem:[%s223 + $0x150] sm:$0xff]
        %v357 = vld [vmem:[%s223 + $0x158] sm:$0xff]
        %v358 = vld [vmem:[%s223 + $0x160] sm:$0xff]
        %v359 = vld [vmem:[%s223 + $0x168] sm:$0xff]
        %v360 = vld [vmem:[%s223 + $0x170] sm:$0xff]
        %v361 = vld [vmem:[%s223 + $0x178] sm:$0xff]
        %v362 = vld [vmem:[%s223 + $0x180] sm:$0xff]
        %v363 = vld [vmem:[%s223 + $0x188] sm:$0xff]
        %v364 = vld [vmem:[%s223 + $0x190] sm:$0xff]
        %v365 = vld [vmem:[%s223 + $0x198] sm:$0xff]
        %v366 = vld [vmem:[%s223 + $0x1a0] sm:$0xff]
        %v367 = vld [vmem:[%s223 + $0x1a8] sm:$0xff]
        %v368 = vld [vmem:[%s223 + $0x1b0] sm:$0xff]
        %v369 = vld [vmem:[%s223 + $0x1b8] sm:$0xff]
        %v370 = vld [vmem:[%s223 + $0x1c0] sm:$0xff]
        %v371 = vld [vmem:[%s223 + $0x1c8] sm:$0xff]
        %v372 = vld [vmem:[%s223 + $0x1d0] sm:$0xff]
        %v373 = vld [vmem:[%s223 + $0x1d8] sm:$0xff]
        %v374 = vld [vmem:[%s223 + $0x1e0] sm:$0xff]
        %v375 = vld [vmem:[%s223 + $0x1e8] sm:$0xff]
        %v376 = vld [vmem:[%s223 + $0x1f0] sm:$0xff]
        %v377 = vld [vmem:[%s223 + $0x1f8] sm:$0xff]
        %v378 = vld [vmem:[%s223 + $0x200] sm:$0xff]
        %v379 = vld [vmem:[%s223 + $0x208] sm:$0xff]
        %v380 = vld [vmem:[%s223 + $0x210] sm:$0xff]
        %v381 = vld [vmem:[%s223 + $0x218] sm:$0xff]
        %v382 = vld [vmem:[%s223 + $0x220] sm:$0xff]
        %v383 = vld [vmem:[%s223 + $0x228] sm:$0xff]
        %v384 = vld [vmem:[%s223 + $0x230] sm:$0xff]
        %v385 = vld [vmem:[%s223 + $0x238] sm:$0xff]
        %v386 = vld [vmem:[%s223 + $0x240] sm:$0xff]
        %v387 = vld [vmem:[%s223 + $0x248] sm:$0xff]
        %v388 = vld [vmem:[%s223 + $0x250] sm:$0xff]
        %v389 = vld [vmem:[%s223 + $0x258] sm:$0xff]
        %v390 = vld [vmem:[%s223 + $0x260] sm:$0xff]
        %v391 = vld [vmem:[%s223 + $0x268] sm:$0xff]
        %v392 = vld [vmem:[%s223 + $0x270] sm:$0xff]
        %v393 = vld [vmem:[%s223 + $0x278] sm:$0xff]
        %v394 = vld [vmem:[%s223 + $0x280] sm:$0xff]
        %v395 = vld [vmem:[%s223 + $0x288] sm:$0xff]
        %v396 = vld [vmem:[%s223 + $0x290] sm:$0xff]
        %v397 = vld [vmem:[%s223 + $0x298] sm:$0xff]
        %v398 = vld [vmem:[%s223 + $0x2a0] sm:$0xff]
        %v399 = vld [vmem:[%s223 + $0x2a8] sm:$0xff]
        %v400 = vld [vmem:[%s223 + $0x2b0] sm:$0xff]
        %v401 = vld [vmem:[%s223 + $0x2b8] sm:$0xff]
        %v402 = vld [vmem:[%s223 + $0x2c0] sm:$0xff]
        %v403 = vld [vmem:[%s223 + $0x2c8] sm:$0xff]
        %v404 = vld [vmem:[%s223 + $0x2d0] sm:$0xff]
        %v405 = vld [vmem:[%s223 + $0x2d8] sm:$0xff]
        %v406 = vld [vmem:[%s223 + $0x2e0] sm:$0xff]
        %v407 = vld [vmem:[%s223 + $0x2e8] sm:$0xff]
        %v408 = vld [vmem:[%s223 + $0x2f0] sm:$0xff]
        %v409 = vld [vmem:[%s223 + $0x2f8] sm:$0xff]
        %v410 = vld [vmem:[%s223 + $0x300] sm:$0xff]
        %v411 = vld [vmem:[%s223 + $0x308] sm:$0xff]
        %v412 = vld [vmem:[%s223 + $0x310] sm:$0xff]
        %v413 = vld [vmem:[%s223 + $0x318] sm:$0xff]
        %v414 = vld [vmem:[%s223 + $0x320] sm:$0xff]
        %v415 = vld [vmem:[%s223 + $0x328] sm:$0xff]
        %v416 = vld [vmem:[%s223 + $0x330] sm:$0xff]
        %v417 = vld [vmem:[%s223 + $0x338] sm:$0xff]
        %v418 = vld [vmem:[%s223 + $0x340] sm:$0xff]
        %v419 = vld [vmem:[%s223 + $0x348] sm:$0xff]
        %v420 = vld [vmem:[%s223 + $0x350] sm:$0xff]
        %v421 = vld [vmem:[%s223 + $0x358] sm:$0xff]
        %v422 = vld [vmem:[%s223 + $0x360] sm:$0xff]
        %v423 = vld [vmem:[%s223 + $0x368] sm:$0xff]
        %v424 = vld [vmem:[%s223 + $0x370] sm:$0xff]
        %v425 = vld [vmem:[%s223 + $0x378] sm:$0xff]
        %v426 = vld [vmem:[%s223 + $0x380] sm:$0xff]
        %v427 = vld [vmem:[%s223 + $0x388] sm:$0xff]
        %v428 = vld [vmem:[%s223 + $0x390] sm:$0xff]
        %v429 = vld [vmem:[%s223 + $0x398] sm:$0xff]
        %v430 = vld [vmem:[%s223 + $0x3a0] sm:$0xff]
        %v431 = vld [vmem:[%s223 + $0x3a8] sm:$0xff]
        %v432 = vld [vmem:[%s223 + $0x3b0] sm:$0xff]
        %v433 = vld [vmem:[%s223 + $0x3b8] sm:$0xff]
        %v434 = vld [vmem:[%s223 + $0x3c0] sm:$0xff]
        %v435 = vld [vmem:[%s223 + $0x3c8] sm:$0xff]
        %v436 = vld [vmem:[%s223 + $0x3d0] sm:$0xff]
        %v437 = vld [vmem:[%s223 + $0x3d8] sm:$0xff]
        %v438 = vld [vmem:[%s223 + $0x3e0] sm:$0xff]
        %v439 = vld [vmem:[%s223 + $0x3e8] sm:$0xff]
        %v440 = vld [vmem:[%s223 + $0x3f0] sm:$0xff]
        %v441 = vld [vmem:[%s223 + $0x3f8] sm:$0xff]
        %v442 = vld [vmem:[%s223 + $0x400] sm:$0xff]
        %v443 = vld [vmem:[%s223 + $0x408] sm:$0xff]
        %v444 = vld [vmem:[%s223 + $0x410] sm:$0xff]
        %v445 = vld [vmem:[%s223 + $0x418] sm:$0xff]
        %v446 = vld [vmem:[%s223 + $0x420] sm:$0xff]
        %v447 = vld [vmem:[%s223 + $0x428] sm:$0xff]
        %v448 = vld [vmem:[%s223 + $0x430] sm:$0xff]
        %v449 = vld [vmem:[%s223 + $0x438] sm:$0xff]
        %v450 = vld [vmem:[%s223 + $0x440] sm:$0xff]
        %v451 = vld [vmem:[%s223 + $0x448] sm:$0xff]
        %v452 = vld [vmem:[%s223 + $0x450] sm:$0xff]
        %v453 = vld [vmem:[%s223 + $0x458] sm:$0xff]
        %v454 = vld [vmem:[%s223 + $0x460] sm:$0xff]
        %v455 = vld [vmem:[%s223 + $0x468] sm:$0xff]
        %v456 = vld [vmem:[%s223 + $0x470] sm:$0xff]
        %v457 = vld [vmem:[%s223 + $0x478] sm:$0xff]
        %v458 = vld [vmem:[%s223 + $0x480] sm:$0xff]
        %v459 = vld [vmem:[%s223 + $0x488] sm:$0xff]
        %v460 = vld [vmem:[%s223 + $0x490] sm:$0xff]
        %v461 = vld [vmem:[%s223 + $0x498] sm:$0xff]
        %v462 = vld [vmem:[%s223 + $0x4a0] sm:$0xff]
        %v463 = vld [vmem:[%s223 + $0x4a8] sm:$0xff]
        %v464 = vld [vmem:[%s223 + $0x4b0] sm:$0xff]
        %v465 = vld [vmem:[%s223 + $0x4b8] sm:$0xff]
        %v466 = vld [vmem:[%s223 + $0x4c0] sm:$0xff]
        %v467 = vld [vmem:[%s223 + $0x4c8] sm:$0xff]
        %v468 = vld [vmem:[%s223 + $0x4d0] sm:$0xff]
        %v469 = vld [vmem:[%s223 + $0x4d8] sm:$0xff]
        %v470 = vld [vmem:[%s223 + $0x4e0] sm:$0xff]
        %v471 = vld [vmem:[%s223 + $0x4e8] sm:$0xff]
        %v472 = vld [vmem:[%s223 + $0x4f0] sm:$0xff]
        %v473 = vld [vmem:[%s223 + $0x4f8] sm:$0xff]
        %v474 = vld [vmem:[%s223 + $0x500] sm:$0xff]
        %v475 = vld [vmem:[%s223 + $0x508] sm:$0xff]
        %v476 = vld [vmem:[%s223 + $0x510] sm:$0xff]
        %v477 = vld [vmem:[%s223 + $0x518] sm:$0xff]
        %v478 = vld [vmem:[%s223 + $0x520] sm:$0xff]
        %v479 = vld [vmem:[%s223 + $0x528] sm:$0xff]
        %v480 = vld [vmem:[%s223 + $0x530] sm:$0xff]
        %v481 = vld [vmem:[%s223 + $0x538] sm:$0xff]
        %v482 = vld [vmem:[%s223 + $0x540] sm:$0xff]
        %v483 = vld [vmem:[%s223 + $0x548] sm:$0xff]
        %v484 = vld [vmem:[%s223 + $0x550] sm:$0xff]
        %v485 = vld [vmem:[%s223 + $0x558] sm:$0xff]
        %v486 = vld [vmem:[%s223 + $0x560] sm:$0xff]
        %v487 = vld [vmem:[%s223 + $0x568] sm:$0xff]
        %v488 = vld [vmem:[%s223 + $0x570] sm:$0xff]
        %v489 = vld [vmem:[%s223 + $0x578] sm:$0xff]
        %v490 = vld [vmem:[%s223 + $0x580] sm:$0xff]
        %v491 = vld [vmem:[%s223 + $0x588] sm:$0xff]
        %v492 = vld [vmem:[%s223 + $0x590] sm:$0xff]
        %v493 = vld [vmem:[%s223 + $0x598] sm:$0xff]
        %v494 = vld [vmem:[%s223 + $0x5a0] sm:$0xff]
        %v495 = vld [vmem:[%s223 + $0x5a8] sm:$0xff]
        %v496 = vld [vmem:[%s223 + $0x5b0] sm:$0xff]
        %v497 = vld [vmem:[%s223 + $0x5b8] sm:$0xff]
        %v498 = vld [vmem:[%s223 + $0x5c0] sm:$0xff]
        %v499 = vld [vmem:[%s223 + $0x5c8] sm:$0xff]
        %v500 = vld [vmem:[%s223 + $0x5d0] sm:$0xff]
        %v501 = vld [vmem:[%s223 + $0x5d8] sm:$0xff]
        %v502 = vld [vmem:[%s223 + $0x5e0] sm:$0xff]
        %v503 = vld [vmem:[%s223 + $0x5e8] sm:$0xff]
        %v504 = vld [vmem:[%s223 + $0x5f0] sm:$0xff]
        %v505 = vld [vmem:[%s223 + $0x5f8] sm:$0xff]
        %v506 = vld [vmem:[%s223 + $0x600] sm:$0xff]
        %v507 = vld [vmem:[%s223 + $0x608] sm:$0xff]
        %v508 = vld [vmem:[%s223 + $0x610] sm:$0xff]
        %v509 = vld [vmem:[%s223 + $0x618] sm:$0xff]
        %v510 = vld [vmem:[%s223 + $0x620] sm:$0xff]
        %v511 = vld [vmem:[%s223 + $0x628] sm:$0xff]
        %v512 = vld [vmem:[%s223 + $0x630] sm:$0xff]
        %v513 = vld [vmem:[%s223 + $0x638] sm:$0xff]
        %v514 = vld [vmem:[%s223 + $0x640] sm:$0xff]
        %v515 = vld [vmem:[%s223 + $0x648] sm:$0xff]
        %v516 = vld [vmem:[%s223 + $0x650] sm:$0xff]
        %v517 = vld [vmem:[%s223 + $0x658] sm:$0xff]
        %v518 = vld [vmem:[%s223 + $0x660] sm:$0xff]
        %v519 = vld [vmem:[%s223 + $0x668] sm:$0xff]
        %v520 = vld [vmem:[%s223 + $0x670] sm:$0xff]
        %v521 = vld [vmem:[%s223 + $0x678] sm:$0xff]
        %v522 = vld [vmem:[%s223 + $0x680] sm:$0xff]
        %v523 = vld [vmem:[%s223 + $0x688] sm:$0xff]
        %v524 = vld [vmem:[%s223 + $0x690] sm:$0xff]
        %v525 = vld [vmem:[%s223 + $0x698] sm:$0xff]
        %v526 = vld [vmem:[%s223 + $0x6a0] sm:$0xff]
        %v527 = vld [vmem:[%s223 + $0x6a8] sm:$0xff]
        %v528 = vld [vmem:[%s223 + $0x6b0] sm:$0xff]
        %v529 = vld [vmem:[%s223 + $0x6b8] sm:$0xff]
        %v530 = vld [vmem:[%s223 + $0x6c0] sm:$0xff]
        %v531 = vld [vmem:[%s223 + $0x6c8] sm:$0xff]
        %v532 = vld [vmem:[%s223 + $0x6d0] sm:$0xff]
        %v533 = vld [vmem:[%s223 + $0x6d8] sm:$0xff]
        %v534 = vld [vmem:[%s223 + $0x6e0] sm:$0xff]
        %v535 = vld [vmem:[%s223 + $0x6e8] sm:$0xff]
        %v536 = vld [vmem:[%s223 + $0x6f0] sm:$0xff]
        %v537 = vld [vmem:[%s223 + $0x6f8] sm:$0xff]
        %v538 = vld [vmem:[%s223 + $0x700] sm:$0xff]
        %v539 = vld [vmem:[%s223 + $0x708] sm:$0xff]
        %v540 = vld [vmem:[%s223 + $0x710] sm:$0xff]
        %v541 = vld [vmem:[%s223 + $0x718] sm:$0xff]
        %v542 = vld [vmem:[%s223 + $0x720] sm:$0xff]
        %v543 = vld [vmem:[%s223 + $0x728] sm:$0xff]
        %v544 = vld [vmem:[%s223 + $0x730] sm:$0xff]
        %v545 = vld [vmem:[%s223 + $0x738] sm:$0xff]
        %v546 = vld [vmem:[%s223 + $0x740] sm:$0xff]
        %v547 = vld [vmem:[%s223 + $0x748] sm:$0xff]
        %v548 = vld [vmem:[%s223 + $0x750] sm:$0xff]
        %v549 = vld [vmem:[%s223 + $0x758] sm:$0xff]
        %v550 = vld [vmem:[%s223 + $0x760] sm:$0xff]
        %v551 = vld [vmem:[%s223 + $0x768] sm:$0xff]
        %v552 = vld [vmem:[%s223 + $0x770] sm:$0xff]
        %v553 = vld [vmem:[%s223 + $0x778] sm:$0xff]
        %v554 = vld [vmem:[%s223 + $0x780] sm:$0xff]
        %v555 = vld [vmem:[%s223 + $0x788] sm:$0xff]
        %v556 = vld [vmem:[%s223 + $0x790] sm:$0xff]
        %v557 = vld [vmem:[%s223 + $0x798] sm:$0xff]
        %v558 = vld [vmem:[%s223 + $0x7a0] sm:$0xff]
        %v559 = vld [vmem:[%s223 + $0x7a8] sm:$0xff]
        %v560 = vld [vmem:[%s223 + $0x7b0] sm:$0xff]
        %v561 = vld [vmem:[%s223 + $0x7b8] sm:$0xff]
        %v562 = vld [vmem:[%s223 + $0x7c0] sm:$0xff]
        %v563 = vld [vmem:[%s223 + $0x7c8] sm:$0xff]
        %v564 = vld [vmem:[%s223 + $0x7d0] sm:$0xff]
        %v565 = vld [vmem:[%s223 + $0x7d8] sm:$0xff]
        %v566 = vld [vmem:[%s223 + $0x7e0] sm:$0xff]
        %v567 = vld [vmem:[%s223 + $0x7e8] sm:$0xff]
        %v568 = vld [vmem:[%s223 + $0x7f0] sm:$0xff]
        %v569 = vld [vmem:[%s223 + $0x7f8] sm:$0xff]
        %570 = vmatprep.subr.mxu0 %v315
        %571 = vmatpush1.msra.mxu0 %v314
        %572 = vmatprep.subr.mxu0 %v317
        %573 = vmatpush1.msra.mxu0 %v316
        %574 = vmatprep.subr.mxu0 %v319
        %575 = vmatpush1.msra.mxu0 %v318
        %576 = vmatprep.subr.mxu0 %v321
        %577 = vmatpush1.msra.mxu0 %v320
        %578 = vmatprep.subr.mxu0 %v323
        %579 = vmatpush1.msra.mxu0 %v322
        %580 = vmatprep.subr.mxu0 %v325
        %581 = vmatpush1.msra.mxu0 %v324
        %582 = vmatprep.subr.mxu0 %v327
        %583 = vmatpush1.msra.mxu0 %v326
        %584 = vmatprep.subr.mxu0 %v329
        %585 = vmatpush1.msra.mxu0 %v328
        %586 = vmatprep.subr.mxu0 %v331
        %587 = vmatpush1.msra.mxu0 %v330
        %588 = vmatprep.subr.mxu0 %v333
        %589 = vmatpush1.msra.mxu0 %v332
        %590 = vmatprep.subr.mxu0 %v335
        %591 = vmatpush1.msra.mxu0 %v334
        %592 = vmatprep.subr.mxu0 %v337
        %593 = vmatpush1.msra.mxu0 %v336
        %594 = vmatprep.subr.mxu0 %v339
        %595 = vmatpush1.msra.mxu0 %v338
        %596 = vmatprep.subr.mxu0 %v341
        %597 = vmatpush1.msra.mxu0 %v340
        %598 = vmatprep.subr.mxu0 %v343
        %599 = vmatpush1.msra.mxu0 %v342
        %600 = vmatprep.subr.mxu0 %v345
        %601 = vmatpush1.msra.mxu0 %v344
        %602 = vmatprep.subr.mxu0 %v347
        %603 = vmatpush1.msra.mxu0 %v346
        %604 = vmatprep.subr.mxu0 %v349
        %605 = vmatpush1.msra.mxu0 %v348
        %606 = vmatprep.subr.mxu0 %v351
        %607 = vmatpush1.msra.mxu0 %v350
        %608 = vmatprep.subr.mxu0 %v353
        %609 = vmatpush1.msra.mxu0 %v352
        %610 = vmatprep.subr.mxu0 %v355
        %611 = vmatpush1.msra.mxu0 %v354
        %612 = vmatprep.subr.mxu0 %v357
        %613 = vmatpush1.msra.mxu0 %v356
        %614 = vmatprep.subr.mxu0 %v359
        %615 = vmatpush1.msra.mxu0 %v358
        %616 = vmatprep.subr.mxu0 %v361
        %617 = vmatpush1.msra.mxu0 %v360
        %618 = vmatprep.subr.mxu0 %v363
        %619 = vmatpush1.msra.mxu0 %v362
        %620 = vmatprep.subr.mxu0 %v365
        %621 = vmatpush1.msra.mxu0 %v364
        %622 = vmatprep.subr.mxu0 %v367
        %623 = vmatpush1.msra.mxu0 %v366
        %624 = vmatprep.subr.mxu0 %v369
        %625 = vmatpush1.msra.mxu0 %v368
        %626 = vmatprep.subr.mxu0 %v371
        %627 = vmatpush1.msra.mxu0 %v370
        %628 = vmatprep.subr.mxu0 %v373
        %629 = vmatpush1.msra.mxu0 %v372
        %630 = vmatprep.subr.mxu0 %v375
        %631 = vmatpush1.msra.mxu0 %v374
        %632 = vmatprep.subr.mxu0 %v377
        %633 = vmatpush1.msra.mxu0 %v376
        %634 = vmatprep.mubr.f32.mxu0 %v307
        %635 = vmatmul.mubr.f32.gmra.mrb[0].mxu0 %v306
        %v636 = vpop.f32.mrb[0].mxu0
        %v637 = vadd.f32 0.0, %v636
        %v638 = vpop.f32.mrb[0].mxu0
        %v639 = vadd.f32 0.0, %v638
        %640 = vdwg.mxu0
        %641 = vmatprep.subr.mxu0 %v379
        %642 = vmatpush1.msra.mxu0 %v378
        %643 = vmatprep.subr.mxu0 %v381
        %644 = vmatpush1.msra.mxu0 %v380
        %645 = vmatprep.subr.mxu0 %v383
        %646 = vmatpush1.msra.mxu0 %v382
        %647 = vmatprep.subr.mxu0 %v385
        %648 = vmatpush1.msra.mxu0 %v384
        %649 = vmatprep.subr.mxu0 %v387
        %650 = vmatpush1.msra.mxu0 %v386
        %651 = vmatprep.subr.mxu0 %v389
        %652 = vmatpush1.msra.mxu0 %v388
        %653 = vmatprep.subr.mxu0 %v391
        %654 = vmatpush1.msra.mxu0 %v390
        %655 = vmatprep.subr.mxu0 %v393
        %656 = vmatpush1.msra.mxu0 %v392
        %657 = vmatprep.subr.mxu0 %v395
        %658 = vmatpush1.msra.mxu0 %v394
        %659 = vmatprep.subr.mxu0 %v397
        %660 = vmatpush1.msra.mxu0 %v396
        %661 = vmatprep.subr.mxu0 %v399
        %662 = vmatpush1.msra.mxu0 %v398
        %663 = vmatprep.subr.mxu0 %v401
        %664 = vmatpush1.msra.mxu0 %v400
        %665 = vmatprep.subr.mxu0 %v403
        %666 = vmatpush1.msra.mxu0 %v402
        %667 = vmatprep.subr.mxu0 %v405
        %668 = vmatpush1.msra.mxu0 %v404
        %669 = vmatprep.subr.mxu0 %v407
        %670 = vmatpush1.msra.mxu0 %v406
        %671 = vmatprep.subr.mxu0 %v409
        %672 = vmatpush1.msra.mxu0 %v408
        %673 = vmatprep.subr.mxu0 %v411
        %674 = vmatpush1.msra.mxu0 %v410
        %675 = vmatprep.subr.mxu0 %v413
        %676 = vmatpush1.msra.mxu0 %v412
        %677 = vmatprep.subr.mxu0 %v415
        %678 = vmatpush1.msra.mxu0 %v414
        %679 = vmatprep.subr.mxu0 %v417
        %680 = vmatpush1.msra.mxu0 %v416
        %681 = vmatprep.subr.mxu0 %v419
        %682 = vmatpush1.msra.mxu0 %v418
        %683 = vmatprep.subr.mxu0 %v421
        %684 = vmatpush1.msra.mxu0 %v420
        %685 = vmatprep.subr.mxu0 %v423
        %686 = vmatpush1.msra.mxu0 %v422
        %687 = vmatprep.subr.mxu0 %v425
        %688 = vmatpush1.msra.mxu0 %v424
        %689 = vmatprep.subr.mxu0 %v427
        %690 = vmatpush1.msra.mxu0 %v426
        %691 = vmatprep.subr.mxu0 %v429
        %692 = vmatpush1.msra.mxu0 %v428
        %693 = vmatprep.subr.mxu0 %v431
        %694 = vmatpush1.msra.mxu0 %v430
        %695 = vmatprep.subr.mxu0 %v433
        %696 = vmatpush1.msra.mxu0 %v432
        %697 = vmatprep.subr.mxu0 %v435
        %698 = vmatpush1.msra.mxu0 %v434
        %699 = vmatprep.subr.mxu0 %v437
        %700 = vmatpush1.msra.mxu0 %v436
        %701 = vmatprep.subr.mxu0 %v439
        %702 = vmatpush1.msra.mxu0 %v438
        %703 = vmatprep.subr.mxu0 %v441
        %704 = vmatpush1.msra.mxu0 %v440
        %705 = vmatprep.mubr.f32.mxu0 %v309
        %706 = vmatmul.mubr.f32.gmra.mrb[0].mxu0 %v308
        %v707 = vpop.f32.mrb[0].mxu0
        %v708 = vadd.f32 %v637, %v707
        %v709 = vpop.f32.mrb[0].mxu0
        %v710 = vadd.f32 %v639, %v709
        %711 = vdwg.mxu0
        %712 = vmatprep.subr.mxu0 %v443
        %713 = vmatpush1.msra.mxu0 %v442
        %714 = vmatprep.subr.mxu0 %v445
        %715 = vmatpush1.msra.mxu0 %v444
        %716 = vmatprep.subr.mxu0 %v447
        %717 = vmatpush1.msra.mxu0 %v446
        %718 = vmatprep.subr.mxu0 %v449
        %719 = vmatpush1.msra.mxu0 %v448
        %720 = vmatprep.subr.mxu0 %v451
        %721 = vmatpush1.msra.mxu0 %v450
        %722 = vmatprep.subr.mxu0 %v453
        %723 = vmatpush1.msra.mxu0 %v452
        %724 = vmatprep.subr.mxu0 %v455
        %725 = vmatpush1.msra.mxu0 %v454
        %726 = vmatprep.subr.mxu0 %v457
        %727 = vmatpush1.msra.mxu0 %v456
        %728 = vmatprep.subr.mxu0 %v459
        %729 = vmatpush1.msra.mxu0 %v458
        %730 = vmatprep.subr.mxu0 %v461
        %731 = vmatpush1.msra.mxu0 %v460
        %732 = vmatprep.subr.mxu0 %v463
        %733 = vmatpush1.msra.mxu0 %v462
        %734 = vmatprep.subr.mxu0 %v465
        %735 = vmatpush1.msra.mxu0 %v464
        %736 = vmatprep.subr.mxu0 %v467
        %737 = vmatpush1.msra.mxu0 %v466
        %738 = vmatprep.subr.mxu0 %v469
        %739 = vmatpush1.msra.mxu0 %v468
        %740 = vmatprep.subr.mxu0 %v471
        %741 = vmatpush1.msra.mxu0 %v470
        %742 = vmatprep.subr.mxu0 %v473
        %743 = vmatpush1.msra.mxu0 %v472
        %744 = vmatprep.subr.mxu0 %v475
        %745 = vmatpush1.msra.mxu0 %v474
        %746 = vmatprep.subr.mxu0 %v477
        %747 = vmatpush1.msra.mxu0 %v476
        %748 = vmatprep.subr.mxu0 %v479
        %749 = vmatpush1.msra.mxu0 %v478
        %750 = vmatprep.subr.mxu0 %v481
        %751 = vmatpush1.msra.mxu0 %v480
        %752 = vmatprep.subr.mxu0 %v483
        %753 = vmatpush1.msra.mxu0 %v482
        %754 = vmatprep.subr.mxu0 %v485
        %755 = vmatpush1.msra.mxu0 %v484
        %756 = vmatprep.subr.mxu0 %v487
        %757 = vmatpush1.msra.mxu0 %v486
        %758 = vmatprep.subr.mxu0 %v489
        %759 = vmatpush1.msra.mxu0 %v488
        %760 = vmatprep.subr.mxu0 %v491
        %761 = vmatpush1.msra.mxu0 %v490
        %762 = vmatprep.subr.mxu0 %v493
        %763 = vmatpush1.msra.mxu0 %v492
        %764 = vmatprep.subr.mxu0 %v495
        %765 = vmatpush1.msra.mxu0 %v494
        %766 = vmatprep.subr.mxu0 %v497
        %767 = vmatpush1.msra.mxu0 %v496
        %768 = vmatprep.subr.mxu0 %v499
        %769 = vmatpush1.msra.mxu0 %v498
        %770 = vmatprep.subr.mxu0 %v501
        %771 = vmatpush1.msra.mxu0 %v500
        %772 = vmatprep.subr.mxu0 %v503
        %773 = vmatpush1.msra.mxu0 %v502
        %774 = vmatprep.subr.mxu0 %v505
        %775 = vmatpush1.msra.mxu0 %v504
        %776 = vmatprep.mubr.f32.mxu0 %v311
        %777 = vmatmul.mubr.f32.gmra.mrb[0].mxu0 %v310
        %v778 = vpop.f32.mrb[0].mxu0
        %v779 = vadd.f32 %v708, %v778
        %v780 = vpop.f32.mrb[0].mxu0
        %v781 = vadd.f32 %v710, %v780
        %782 = vdwg.mxu0
        %783 = vmatprep.subr.mxu0 %v507
        %784 = vmatpush1.msra.mxu0 %v506
        %785 = vmatprep.subr.mxu0 %v509
        %786 = vmatpush1.msra.mxu0 %v508
        %787 = vmatprep.subr.mxu0 %v511
        %788 = vmatpush1.msra.mxu0 %v510
        %789 = vmatprep.subr.mxu0 %v513
        %790 = vmatpush1.msra.mxu0 %v512
        %791 = vmatprep.subr.mxu0 %v515
        %792 = vmatpush1.msra.mxu0 %v514
        %793 = vmatprep.subr.mxu0 %v517
        %794 = vmatpush1.msra.mxu0 %v516
        %795 = vmatprep.subr.mxu0 %v519
        %796 = vmatpush1.msra.mxu0 %v518
        %797 = vmatprep.subr.mxu0 %v521
        %798 = vmatpush1.msra.mxu0 %v520
        %799 = vmatprep.subr.mxu0 %v523
        %800 = vmatpush1.msra.mxu0 %v522
        %801 = vmatprep.subr.mxu0 %v525
        %802 = vmatpush1.msra.mxu0 %v524
        %803 = vmatprep.subr.mxu0 %v527
        %804 = vmatpush1.msra.mxu0 %v526
        %805 = vmatprep.subr.mxu0 %v529
        %806 = vmatpush1.msra.mxu0 %v528
        %807 = vmatprep.subr.mxu0 %v531
        %808 = vmatpush1.msra.mxu0 %v530
        %809 = vmatprep.subr.mxu0 %v533
        %810 = vmatpush1.msra.mxu0 %v532
        %811 = vmatprep.subr.mxu0 %v535
        %812 = vmatpush1.msra.mxu0 %v534
        %813 = vmatprep.subr.mxu0 %v537
        %814 = vmatpush1.msra.mxu0 %v536
        %815 = vmatprep.subr.mxu0 %v539
        %816 = vmatpush1.msra.mxu0 %v538
        %817 = vmatprep.subr.mxu0 %v541
        %818 = vmatpush1.msra.mxu0 %v540
        %819 = vmatprep.subr.mxu0 %v543
        %820 = vmatpush1.msra.mxu0 %v542
        %821 = vmatprep.subr.mxu0 %v545
        %822 = vmatpush1.msra.mxu0 %v544
        %823 = vmatprep.subr.mxu0 %v547
        %824 = vmatpush1.msra.mxu0 %v546
        %825 = vmatprep.subr.mxu0 %v549
        %826 = vmatpush1.msra.mxu0 %v548
        %827 = vmatprep.subr.mxu0 %v551
        %828 = vmatpush1.msra.mxu0 %v550
        %829 = vmatprep.subr.mxu0 %v553
        %830 = vmatpush1.msra.mxu0 %v552
        %831 = vmatprep.subr.mxu0 %v555
        %832 = vmatpush1.msra.mxu0 %v554
        %833 = vmatprep.subr.mxu0 %v557
        %834 = vmatpush1.msra.mxu0 %v556
        %835 = vmatprep.subr.mxu0 %v559
        %836 = vmatpush1.msra.mxu0 %v558
        %837 = vmatprep.subr.mxu0 %v561
        %838 = vmatpush1.msra.mxu0 %v560
        %839 = vmatprep.subr.mxu0 %v563
        %840 = vmatpush1.msra.mxu0 %v562
        %841 = vmatprep.subr.mxu0 %v565
        %842 = vmatpush1.msra.mxu0 %v564
        %843 = vmatprep.subr.mxu0 %v567
        %844 = vmatpush1.msra.mxu0 %v566
        %845 = vmatprep.subr.mxu0 %v569
        %846 = vmatpush1.msra.mxu0 %v568
        %847 = vmatprep.mubr.f32.mxu0 %v313
        %848 = vmatmul.mubr.f32.gmra.mrb[0].mxu0 %v312
        %v849 = vpop.f32.mrb[0].mxu0
        %v850 = vadd.f32 %v779, %v849
        %v851 = vpop.f32.mrb[0].mxu0
        %v852 = vadd.f32 %v781, %v851
        %853 = vdwg.mxu0
        %v854 = vadd.f32 %v304, %v850
        %v855 = vadd.f32 %v305, %v852
        %856 = vst [vmem:[%s284] sm:$0xff] %v854
        %857 = vst [vmem:[%s284 + $0x8] sm:$0xff] %v855
        %p858 = scmp.eq.s32.totalorder %s25, 6
        // Predicated region
        $region45: #{rnn1_forward.17} parent=31 // pred_check
          %p859 = pneg %p858
        $region46: #{rnn1_forward.17} parent=31 // pred_check_branch
          %861 = sbr.rel (%p859) target = $region48
        $region47: #{rnn1_forward.17} parent=31 // pred_region
          %v862 = vld [vmem:[%s284] sm:$0xff]
          %v863 = vld [vmem:[%s284 + $0x8] sm:$0xff]
          %v864 = vmax.f32 %v862, 0.0
          %v865 = vmax.f32 %v863, 0.0
          %866 = vst [vmem:[%s284] sm:$0xff] %v864
          %867 = vst [vmem:[%s284 + $0x8] sm:$0xff] %v865
        $region48: #{rnn1_forward.17} parent=31 // pred_fallthru
          _
        %s868 = smul.u32 2, %s24
        %p869 = scmp.lt.s32.totalorder %s23, 0
        %s870 = scalar_select %p869, %s23, 0
        %p871 = scmp.lt.s32.totalorder %s868, 1
        %s872 = scalar_select %p871, %s868, 1
        %s873 = smul.addr %s870, 2
        %s874 = sadd.s32 %s872, %s873
        %s875 = smul.addr %s874, 8
        %s876 = scalar_lea.vmem %s3, %s875
        // Predicated region
        $region49: #{rnn1_forward.17} parent=31 // pred_check
          %p877 = pneg %p139
        $region50: #{rnn1_forward.17} parent=31 // pred_check_branch
          %879 = sbr.rel (%p877) target = $region52
        $region51: #{rnn1_forward.17} parent=31 // pred_region
          %s880 = smul.u32 2, %s24
        $region52: #{rnn1_forward.17} parent=31 // pred_fallthru
          _
        // Predicated region
        $region53: #{rnn1_forward.17} parent=31 // pred_check
          %p881 = pneg %p139
        $region54: #{rnn1_forward.17} parent=31 // pred_check_branch
          %883 = sbr.rel (%p881) target = $region56
        $region55: #{rnn1_forward.17} parent=31 // pred_region
          %s884 = smul.u32 2, %s24
          %p885 = scmp.lt.s32.totalorder %s23, 0
          %s886 = scalar_select %p885, %s23, 0
          %p887 = scmp.lt.s32.totalorder %s884, 1
          %s888 = scalar_select %p887, %s884, 1
          %s889 = smul.addr %s886, 2
          %s890 = sadd.s32 %s888, %s889
          %s891 = smul.addr %s890, 8
          %s892 = scalar_lea.vmem %s3, %s891
        $region56: #{rnn1_forward.17} parent=31 // pred_fallthru
          _
      $region32: #{rnn1_forward.17} parent=5 // pred_fallthru
        _
      %p893 = scmp.le.s32.totalorder 2, %s13
      // Predicated region
      $region57: #{rnn1_forward.17} parent=5 // pred_check
        %p894 = pneg %p893
      $region58: #{rnn1_forward.17} parent=5 // pred_check_branch
        %896 = sbr.rel (%p894) target = $region60
      $region59: #{rnn1_forward.17} parent=5 // pred_region
        %s897 = ssub.s32 %s13, 2
      $region60: #{rnn1_forward.17} parent=5 // pred_fallthru
        _
    $region6: #{rnn1_forward.17} parent=1 // loop_footer
      %s17 = sadd.s32 1, %s13
    $region7: #{rnn1_forward.17} parent=1 // loop_footer_branch
      %12 = sbr.rel target = $region3
    $region8: #{rnn1_forward.17} parent=1 // loop_exit
      _
    %898 = vsyncpa [#allocation3], 1
    %s899 = scalar_lea.sflag [#allocation3], 1
    %900 = vsyncpa %s899, 1
    %901 = vsyncpa [#allocation5], 1

// kernel: rnn1_forward.21
$region0: #{rnn1_forward.21}
  #allocation0 [shape = 'u32[]', space=smem, size = 0x4, offset = 0x4, fixed_abs, tag = 'smem constant byte address 0x4 - core index']
  #allocation1 [shape = 'u32[144,128]{1,0:T(1,128)}', space=vmem, size = 0x12000, scoped, tag = 'internal scratch']
  %s0 = inlined_call_operand.vmem [shape: f32[8,128], index: 0, kind: input, shape index: {}]
  %s1 = inlined_call_operand.vmem [shape: f32[128,128], index: 1, kind: input, shape index: {}]
  %s2 = inlined_call_operand.vmem [shape: f32[1,128], index: 2, kind: input, shape index: {}]
  %s3 = inlined_call_operand.vmem [shape: f32[8,128], index: 3, kind: output, shape index: {}]
  %s4 = sld [smem:[#allocation0]]
  $region30: #{rnn1_forward.21} parent=0
    _
  %s6 = ssub.s32 1, %s4
  %s7 = scalar_select 0, %s6, %s4
  // Predicated region
  $region2: #{rnn1_forward.21} parent=0 // pred_check
    _
  $region3: #{rnn1_forward.21} parent=0 // pred_check_branch
    %9 = sbr.rel (0) target = $region5
  $region4: #{rnn1_forward.21} parent=0 // pred_region
    _
  $region5: #{rnn1_forward.21} parent=0 // pred_fallthru
    _
  // Predicated region
  $region6: #{rnn1_forward.21} parent=0 // pred_check
    _
  $region7: #{rnn1_forward.21} parent=0 // pred_check_branch
    %11 = sbr.rel (0) target = $region9
  $region8: #{rnn1_forward.21} parent=0 // pred_region
    _
  $region9: #{rnn1_forward.21} parent=0 // pred_fallthru
    _
  // Predicated region
  $region10: #{rnn1_forward.21} parent=0 // pred_check
    _
  $region11: #{rnn1_forward.21} parent=0 // pred_check_branch
    %13 = sbr.rel (0) target = $region13
  $region12: #{rnn1_forward.21} parent=0 // pred_region
    _
  $region13: #{rnn1_forward.21} parent=0 // pred_fallthru
    _
  %p14 = scmp.eq.s32.totalorder 0, 0
  // Predicated region
  $region14: #{rnn1_forward.21} parent=0 // pred_check
    %p15 = pneg %p14
  $region15: #{rnn1_forward.21} parent=0 // pred_check_branch
    %17 = sbr.rel (%p15) target = $region17
  $region16: #{rnn1_forward.21} parent=0 // pred_region
    %v18 = vld [vmem:[%s2] sm:$0x1]
    %v20 = vlaneseq
    %v21 = vshrl.u32 %v20, 7
    %v22 = vsub.s32 0, %v21
    %v23 = vrot.slane %v18, %v22
    %25 = vst [vmem:[%s3] sm:$0xff] %v23
  $region17: #{rnn1_forward.21} parent=0 // pred_fallthru
    _
  %v26 = vld [vmem:[%s3] sm:$0xff]
  %v27 = vld [vmem:[%s0] sm:$0xff]
  %v28 = vld [vmem:[%s1] sm:$0xff]
  %v29 = vld [vmem:[%s1 + $0x8] sm:$0xff]
  %v30 = vld [vmem:[%s1 + $0x10] sm:$0xff]
  %v31 = vld [vmem:[%s1 + $0x18] sm:$0xff]
  %v32 = vld [vmem:[%s1 + $0x20] sm:$0xff]
  %v33 = vld [vmem:[%s1 + $0x28] sm:$0xff]
  %v34 = vld [vmem:[%s1 + $0x30] sm:$0xff]
  %v35 = vld [vmem:[%s1 + $0x38] sm:$0xff]
  %v36 = vld [vmem:[%s1 + $0x40] sm:$0xff]
  %v37 = vld [vmem:[%s1 + $0x48] sm:$0xff]
  %v38 = vld [vmem:[%s1 + $0x50] sm:$0xff]
  %v39 = vld [vmem:[%s1 + $0x58] sm:$0xff]
  %v40 = vld [vmem:[%s1 + $0x60] sm:$0xff]
  %v41 = vld [vmem:[%s1 + $0x68] sm:$0xff]
  %v42 = vld [vmem:[%s1 + $0x70] sm:$0xff]
  %v43 = vld [vmem:[%s1 + $0x78] sm:$0xff]
  %44 = vmatprep.subr.mxu0 0.0
  %45 = vmatpush1.msra.mxu0 %v28
  %46 = vmatprep.subr.mxu0 0.0
  %47 = vmatpush1.msra.mxu0 %v29
  %48 = vmatprep.subr.mxu0 0.0
  %49 = vmatpush1.msra.mxu0 %v30
  %50 = vmatprep.subr.mxu0 0.0
  %51 = vmatpush1.msra.mxu0 %v31
  %52 = vmatprep.subr.mxu0 0.0
  %53 = vmatpush1.msra.mxu0 %v32
  %54 = vmatprep.subr.mxu0 0.0
  %55 = vmatpush1.msra.mxu0 %v33
  %56 = vmatprep.subr.mxu0 0.0
  %57 = vmatpush1.msra.mxu0 %v34
  %58 = vmatprep.subr.mxu0 0.0
  %59 = vmatpush1.msra.mxu0 %v35
  %60 = vmatprep.subr.mxu0 0.0
  %61 = vmatpush1.msra.mxu0 %v36
  %62 = vmatprep.subr.mxu0 0.0
  %63 = vmatpush1.msra.mxu0 %v37
  %64 = vmatprep.subr.mxu0 0.0
  %65 = vmatpush1.msra.mxu0 %v38
  %66 = vmatprep.subr.mxu0 0.0
  %67 = vmatpush1.msra.mxu0 %v39
  %68 = vmatprep.subr.mxu0 0.0
  %69 = vmatpush1.msra.mxu0 %v40
  %70 = vmatprep.subr.mxu0 0.0
  %71 = vmatpush1.msra.mxu0 %v41
  %72 = vmatprep.subr.mxu0 0.0
  %73 = vmatpush1.msra.mxu0 %v42
  %74 = vmatprep.subr.mxu0 0.0
  %75 = vmatpush1.msra.mxu0 %v43
  %76 = vmatprep.subr.mxu0 0.0
  %77 = vmatpush1.msra.mxu0 0.0
  %78 = vmatprep.subr.mxu0 0.0
  %79 = vmatpush1.msra.mxu0 0.0
  %80 = vmatprep.subr.mxu0 0.0
  %81 = vmatpush1.msra.mxu0 0.0
  %82 = vmatprep.subr.mxu0 0.0
  %83 = vmatpush1.msra.mxu0 0.0
  %84 = vmatprep.subr.mxu0 0.0
  %85 = vmatpush1.msra.mxu0 0.0
  %86 = vmatprep.subr.mxu0 0.0
  %87 = vmatpush1.msra.mxu0 0.0
  %88 = vmatprep.subr.mxu0 0.0
  %89 = vmatpush1.msra.mxu0 0.0
  %90 = vmatprep.subr.mxu0 0.0
  %91 = vmatpush1.msra.mxu0 0.0
  %92 = vmatprep.subr.mxu0 0.0
  %93 = vmatpush1.msra.mxu0 0.0
  %94 = vmatprep.subr.mxu0 0.0
  %95 = vmatpush1.msra.mxu0 0.0
  %96 = vmatprep.subr.mxu0 0.0
  %97 = vmatpush1.msra.mxu0 0.0
  %98 = vmatprep.subr.mxu0 0.0
  %99 = vmatpush1.msra.mxu0 0.0
  %100 = vmatprep.subr.mxu0 0.0
  %101 = vmatpush1.msra.mxu0 0.0
  %102 = vmatprep.subr.mxu0 0.0
  %103 = vmatpush1.msra.mxu0 0.0
  %104 = vmatprep.subr.mxu0 0.0
  %105 = vmatpush1.msra.mxu0 0.0
  %106 = vmatprep.subr.mxu0 0.0
  %107 = vmatpush1.msra.mxu0 0.0
  %108 = vmatprep.mubr.f32.mxu0 0.0
  %109 = vmatmul.mubr.f32.gmra.mrb[0].mxu0 %v27
  %v110 = vpop.f32.mrb[0].mxu0
  %v111 = vadd.f32 0.0, %v110
  %v112 = vpop.f32.mrb[0].mxu0
  %113 = vdwg.mxu0
  %v114 = vadd.f32 %v26, %v111
  %115 = vst [vmem:[%s3] sm:$0xff] %v114
  // Predicated region
  $region18: #{rnn1_forward.21} parent=0 // pred_check
    %p116 = pneg %p14
  $region19: #{rnn1_forward.21} parent=0 // pred_check_branch
    %118 = sbr.rel (%p116) target = $region21
  $region20: #{rnn1_forward.21} parent=0 // pred_region
    %v119 = vld [vmem:[%s3] sm:$0xff]
    %v120 = vmax.f32 %v119, 0.0
    %121 = vst [vmem:[%s3] sm:$0xff] %v120
  $region21: #{rnn1_forward.21} parent=0 // pred_fallthru
    _
  // Predicated region
  $region22: #{rnn1_forward.21} parent=0 // pred_check
    _
  $region23: #{rnn1_forward.21} parent=0 // pred_check_branch
    %123 = sbr.rel (0) target = $region25
  $region24: #{rnn1_forward.21} parent=0 // pred_region
    _
  $region25: #{rnn1_forward.21} parent=0 // pred_fallthru
    _
  // Predicated region
  $region26: #{rnn1_forward.21} parent=0 // pred_check
    _
  $region27: #{rnn1_forward.21} parent=0 // pred_check_branch
    %125 = sbr.rel (0) target = $region29
  $region28: #{rnn1_forward.21} parent=0 // pred_region
    _
  $region29: #{rnn1_forward.21} parent=0 // pred_fallthru
    _

// kernel: rnn1_forward.23
$region0: #{rnn1_forward.23}
  #allocation0 [shape = 'u32[]', space=smem, size = 0x4, offset = 0x4, fixed_abs, tag = 'smem constant byte address 0x4 - core index']
  #allocation1 [shape = 'u32[144,128]{1,0:T(1,128)}', space=vmem, size = 0x12000, scoped, tag = 'internal scratch']
  %s0 = inlined_call_operand.vmem [shape: f32[8,128], index: 0, kind: input, shape index: {}]
  %s1 = inlined_call_operand.vmem [shape: f32[128,256], index: 1, kind: input, shape index: {}]
  %s2 = inlined_call_operand.vmem [shape: f32[1,256], index: 2, kind: input, shape index: {}]
  %s3 = inlined_call_operand.vmem [shape: f32[8,256], index: 3, kind: output, shape index: {}]
  %s4 = sld [smem:[#allocation0]]
  $region30: #{rnn1_forward.23} parent=0
    _
  %s6 = ssub.s32 1, %s4
  %s7 = scalar_select 0, %s6, %s4
  // Predicated region
  $region2: #{rnn1_forward.23} parent=0 // pred_check
    _
  $region3: #{rnn1_forward.23} parent=0 // pred_check_branch
    %9 = sbr.rel (0) target = $region5
  $region4: #{rnn1_forward.23} parent=0 // pred_region
    _
  $region5: #{rnn1_forward.23} parent=0 // pred_fallthru
    _
  // Predicated region
  $region6: #{rnn1_forward.23} parent=0 // pred_check
    _
  $region7: #{rnn1_forward.23} parent=0 // pred_check_branch
    %11 = sbr.rel (0) target = $region9
  $region8: #{rnn1_forward.23} parent=0 // pred_region
    _
  $region9: #{rnn1_forward.23} parent=0 // pred_fallthru
    _
  // Predicated region
  $region10: #{rnn1_forward.23} parent=0 // pred_check
    _
  $region11: #{rnn1_forward.23} parent=0 // pred_check_branch
    %13 = sbr.rel (0) target = $region13
  $region12: #{rnn1_forward.23} parent=0 // pred_region
    _
  $region13: #{rnn1_forward.23} parent=0 // pred_fallthru
    _
  %p14 = scmp.eq.s32.totalorder 0, 0
  // Predicated region
  $region14: #{rnn1_forward.23} parent=0 // pred_check
    %p15 = pneg %p14
  $region15: #{rnn1_forward.23} parent=0 // pred_check_branch
    %17 = sbr.rel (%p15) target = $region17
  $region16: #{rnn1_forward.23} parent=0 // pred_region
    %v18 = vld [vmem:[%s2] sm:$0x3]
    %v20 = vlaneseq
    %v21 = vshrl.u32 %v20, 7
    %v22 = vsub.s32 0, %v21
    %v23 = vrot.slane %v18, %v22
    %v24 = vlaneseq
    %v25 = vshrl.u32 %v24, 7
    %v26 = vsub.s32 1, %v25
    %v27 = vrot.slane %v18, %v26
    %30 = vst [vmem:[%s3] sm:$0xff] %v23
    %31 = vst [vmem:[%s3 + $0x8] sm:$0xff] %v27
  $region17: #{rnn1_forward.23} parent=0 // pred_fallthru
    _
  %v32 = vld [vmem:[%s3] sm:$0xff]
  %v33 = vld [vmem:[%s3 + $0x8] sm:$0xff]
  %v34 = vld [vmem:[%s0] sm:$0xff]
  %v35 = vld [vmem:[%s1] sm:$0xff]
  %v36 = vld [vmem:[%s1 + $0x8] sm:$0xff]
  %v37 = vld [vmem:[%s1 + $0x10] sm:$0xff]
  %v38 = vld [vmem:[%s1 + $0x18] sm:$0xff]
  %v39 = vld [vmem:[%s1 + $0x20] sm:$0xff]
  %v40 = vld [vmem:[%s1 + $0x28] sm:$0xff]
  %v41 = vld [vmem:[%s1 + $0x30] sm:$0xff]
  %v42 = vld [vmem:[%s1 + $0x38] sm:$0xff]
  %v43 = vld [vmem:[%s1 + $0x40] sm:$0xff]
  %v44 = vld [vmem:[%s1 + $0x48] sm:$0xff]
  %v45 = vld [vmem:[%s1 + $0x50] sm:$0xff]
  %v46 = vld [vmem:[%s1 + $0x58] sm:$0xff]
  %v47 = vld [vmem:[%s1 + $0x60] sm:$0xff]
  %v48 = vld [vmem:[%s1 + $0x68] sm:$0xff]
  %v49 = vld [vmem:[%s1 + $0x70] sm:$0xff]
  %v50 = vld [vmem:[%s1 + $0x78] sm:$0xff]
  %v51 = vld [vmem:[%s1 + $0x80] sm:$0xff]
  %v52 = vld [vmem:[%s1 + $0x88] sm:$0xff]
  %v53 = vld [vmem:[%s1 + $0x90] sm:$0xff]
  %v54 = vld [vmem:[%s1 + $0x98] sm:$0xff]
  %v55 = vld [vmem:[%s1 + $0xa0] sm:$0xff]
  %v56 = vld [vmem:[%s1 + $0xa8] sm:$0xff]
  %v57 = vld [vmem:[%s1 + $0xb0] sm:$0xff]
  %v58 = vld [vmem:[%s1 + $0xb8] sm:$0xff]
  %v59 = vld [vmem:[%s1 + $0xc0] sm:$0xff]
  %v60 = vld [vmem:[%s1 + $0xc8] sm:$0xff]
  %v61 = vld [vmem:[%s1 + $0xd0] sm:$0xff]
  %v62 = vld [vmem:[%s1 + $0xd8] sm:$0xff]
  %v63 = vld [vmem:[%s1 + $0xe0] sm:$0xff]
  %v64 = vld [vmem:[%s1 + $0xe8] sm:$0xff]
  %v65 = vld [vmem:[%s1 + $0xf0] sm:$0xff]
  %v66 = vld [vmem:[%s1 + $0xf8] sm:$0xff]
  %67 = vmatprep.subr.mxu0 %v36
  %68 = vmatpush1.msra.mxu0 %v35
  %69 = vmatprep.subr.mxu0 %v38
  %70 = vmatpush1.msra.mxu0 %v37
  %71 = vmatprep.subr.mxu0 %v40
  %72 = vmatpush1.msra.mxu0 %v39
  %73 = vmatprep.subr.mxu0 %v42
  %74 = vmatpush1.msra.mxu0 %v41
  %75 = vmatprep.subr.mxu0 %v44
  %76 = vmatpush1.msra.mxu0 %v43
  %77 = vmatprep.subr.mxu0 %v46
  %78 = vmatpush1.msra.mxu0 %v45
  %79 = vmatprep.subr.mxu0 %v48
  %80 = vmatpush1.msra.mxu0 %v47
  %81 = vmatprep.subr.mxu0 %v50
  %82 = vmatpush1.msra.mxu0 %v49
  %83 = vmatprep.subr.mxu0 %v52
  %84 = vmatpush1.msra.mxu0 %v51
  %85 = vmatprep.subr.mxu0 %v54
  %86 = vmatpush1.msra.mxu0 %v53
  %87 = vmatprep.subr.mxu0 %v56
  %88 = vmatpush1.msra.mxu0 %v55
  %89 = vmatprep.subr.mxu0 %v58
  %90 = vmatpush1.msra.mxu0 %v57
  %91 = vmatprep.subr.mxu0 %v60
  %92 = vmatpush1.msra.mxu0 %v59
  %93 = vmatprep.subr.mxu0 %v62
  %94 = vmatpush1.msra.mxu0 %v61
  %95 = vmatprep.subr.mxu0 %v64
  %96 = vmatpush1.msra.mxu0 %v63
  %97 = vmatprep.subr.mxu0 %v66
  %98 = vmatpush1.msra.mxu0 %v65
  %99 = vmatprep.subr.mxu0 0.0
  %100 = vmatpush1.msra.mxu0 0.0
  %101 = vmatprep.subr.mxu0 0.0
  %102 = vmatpush1.msra.mxu0 0.0
  %103 = vmatprep.subr.mxu0 0.0
  %104 = vmatpush1.msra.mxu0 0.0
  %105 = vmatprep.subr.mxu0 0.0
  %106 = vmatpush1.msra.mxu0 0.0
  %107 = vmatprep.subr.mxu0 0.0
  %108 = vmatpush1.msra.mxu0 0.0
  %109 = vmatprep.subr.mxu0 0.0
  %110 = vmatpush1.msra.mxu0 0.0
  %111 = vmatprep.subr.mxu0 0.0
  %112 = vmatpush1.msra.mxu0 0.0
  %113 = vmatprep.subr.mxu0 0.0
  %114 = vmatpush1.msra.mxu0 0.0
  %115 = vmatprep.subr.mxu0 0.0
  %116 = vmatpush1.msra.mxu0 0.0
  %117 = vmatprep.subr.mxu0 0.0
  %118 = vmatpush1.msra.mxu0 0.0
  %119 = vmatprep.subr.mxu0 0.0
  %120 = vmatpush1.msra.mxu0 0.0
  %121 = vmatprep.subr.mxu0 0.0
  %122 = vmatpush1.msra.mxu0 0.0
  %123 = vmatprep.subr.mxu0 0.0
  %124 = vmatpush1.msra.mxu0 0.0
  %125 = vmatprep.subr.mxu0 0.0
  %126 = vmatpush1.msra.mxu0 0.0
  %127 = vmatprep.subr.mxu0 0.0
  %128 = vmatpush1.msra.mxu0 0.0
  %129 = vmatprep.subr.mxu0 0.0
  %130 = vmatpush1.msra.mxu0 0.0
  %131 = vmatprep.mubr.f32.mxu0 0.0
  %132 = vmatmul.mubr.f32.gmra.mrb[0].mxu0 %v34
  %v133 = vpop.f32.mrb[0].mxu0
  %v134 = vadd.f32 0.0, %v133
  %v135 = vpop.f32.mrb[0].mxu0
  %v136 = vadd.f32 0.0, %v135
  %137 = vdwg.mxu0
  %v138 = vadd.f32 %v32, %v134
  %v139 = vadd.f32 %v33, %v136
  %140 = vst [vmem:[%s3] sm:$0xff] %v138
  %141 = vst [vmem:[%s3 + $0x8] sm:$0xff] %v139
  // Predicated region
  $region18: #{rnn1_forward.23} parent=0 // pred_check
    %p142 = pneg %p14
  $region19: #{rnn1_forward.23} parent=0 // pred_check_branch
    %144 = sbr.rel (%p142) target = $region21
  $region20: #{rnn1_forward.23} parent=0 // pred_region
    %v145 = vld [vmem:[%s3] sm:$0xff]
    %v146 = vld [vmem:[%s3 + $0x8] sm:$0xff]
    %v147 = vmax.f32 %v145, 0.0
    %v148 = vmax.f32 %v146, 0.0
    %149 = vst [vmem:[%s3] sm:$0xff] %v147
    %150 = vst [vmem:[%s3 + $0x8] sm:$0xff] %v148
  $region21: #{rnn1_forward.23} parent=0 // pred_fallthru
    _
  // Predicated region
  $region22: #{rnn1_forward.23} parent=0 // pred_check
    _
  $region23: #{rnn1_forward.23} parent=0 // pred_check_branch
    %152 = sbr.rel (0) target = $region25
  $region24: #{rnn1_forward.23} parent=0 // pred_region
    _
  $region25: #{rnn1_forward.23} parent=0 // pred_fallthru
    _
  // Predicated region
  $region26: #{rnn1_forward.23} parent=0 // pred_check
    _
  $region27: #{rnn1_forward.23} parent=0 // pred_check_branch
    %154 = sbr.rel (0) target = $region29
  $region28: #{rnn1_forward.23} parent=0 // pred_region
    _
  $region29: #{rnn1_forward.23} parent=0 // pred_fallthru
    _

// kernel: rnn1_forward.25
$region0: #{rnn1_forward.25}
  #allocation0 [shape = 'u32[]', space=smem, size = 0x4, offset = 0x4, fixed_abs, tag = 'smem constant byte address 0x4 - core index']
  #allocation1 [shape = 'u32[144,128]{1,0:T(1,128)}', space=vmem, size = 0x12000, scoped, tag = 'internal scratch']
  %s0 = inlined_call_operand.vmem [shape: f32[3,8,128], index: 0, kind: input, shape index: {}]
  %s1 = inlined_call_operand.vmem [shape: f32[3,128,128], index: 1, kind: input, shape index: {}]
  %s2 = inlined_call_operand.vmem [shape: f32[3,1,128], index: 2, kind: input, shape index: {}]
  %s3 = inlined_call_operand.vmem [shape: f32[3,8,128], index: 3, kind: output, shape index: {}]
  %s4 = sld [smem:[#allocation0]]
  $region53: #{rnn1_forward.25} parent=0
    _
  %s6 = ssub.s32 1, %s4
  %s7 = scalar_select 0, %s6, %s4
  loop: start=0, step=1, limit=5
  $region2: #{rnn1_forward.25} parent=0 // loop_pre_header
    _
  $region3: #{rnn1_forward.25} parent=0 // loop_header
    %s9 = sphi 0, %s13
    %p10 = scmp.ge.s32.totalorder %s9, 5
    %s16 = sphi 0, %s42
    %s17 = sphi 0, %s38
    %s18 = sphi 0, %s34
    %s19 = sphi 0, %s30
    %s20 = sphi 0, %s16
    %s21 = sphi 0, %s17
    %s22 = sphi 0, %s18
    %s23 = sphi 0, %s19
    %s24 = sphi 0, %s20
    %s25 = sphi 0, %s21
    %s26 = sphi 0, %s22
    %s27 = sphi 0, %s23
    %s49 = sphi 0, %s51
    %s52 = sphi 0, %s49
    %s53 = sphi 0, %s52
    %s69 = sphi 0, %s53
    %s79 = sphi 0, %s81
    %s82 = sphi 0, %s79
    %s83 = sphi 0, %s82
    %s99 = sphi 0, %s83
    %s107 = sphi 0, %s109
    %s110 = sphi 0, %s107
    %s111 = sphi 0, %s110
    %s127 = sphi 0, %s111
    %s137 = sphi 0, %s139
    %s140 = sphi 0, %s137
    %s141 = sphi 0, %s140
    %s157 = sphi 0, %s141
  $region4: #{rnn1_forward.25} parent=0 // loop_header_branch
    %12 = sbr.rel (%p10) target = $region8
  $region5: #{rnn1_forward.25} parent=0 // loop_body
    %s14 = ssub.s32 %s9, 1
    %s15 = ssub.s32 %s9, 2
    %s28 = sadd.s32 1, %s19
    %p29 = scmp.ge.s32.totalorder %s28, 1
    %s30 = scalar_select %p29, 0, %s28
    %s31 = sadd.s32 1, %s18
    %s32 = scalar_select %p29, %s31, %s18
    %p33 = scmp.ge.s32.totalorder %s32, 1
    %s34 = scalar_select %p33, 0, %s32
    %s35 = sadd.s32 1, %s17
    %s36 = scalar_select %p33, %s35, %s17
    %p37 = scmp.ge.s32.totalorder %s36, 1
    %s38 = scalar_select %p37, 0, %s36
    %s39 = sadd.s32 1, %s16
    %s40 = scalar_select %p37, %s39, %s16
    %p41 = scmp.ge.s32.totalorder %s40, 3
    %s42 = scalar_select %p41, 0, %s40
    %s43 = ssub.s32 %s16, %s42
    %s44 = ssub.s32 %s17, %s38
    %s45 = sor.u32 %s43, %s44
    %s46 = ssub.s32 %s19, %s30
    %s47 = sor.u32 %s45, %s46
    %p48 = scmp.eq.s32.totalorder %s47, 0
    %s50 = sadd.s32 %s49, 1
    %s51 = scalar_select %p48, %s49, %s50
    %p54 = pneg %p48
    %p55 = scmp.eq.s32.totalorder %s9, 2
    %p56 = por %p54, %p55
    %p57 = scmp.ne.s32.totalorder %s49, %s52
    %p58 = scmp.eq.s32.totalorder %s9, 0
    %p59 = por %p57, %p58
    %p60 = scmp.ne.s32.totalorder %s49, %s52
    %p61 = scmp.eq.s32.totalorder %s14, 2
    %p62 = por %p60, %p61
    %p63 = scmp.ne.s32.totalorder %s52, %s53
    %p64 = scmp.eq.s32.totalorder %s14, 0
    %p65 = por %p63, %p64
    %p66 = scmp.ne.s32.totalorder %s52, %s53
    %p67 = scmp.eq.s32.totalorder %s15, 2
    %p68 = por %p66, %p67
    %p70 = scmp.ne.s32.totalorder %s53, %s69
    %p71 = scmp.eq.s32.totalorder %s15, 0
    %p72 = por %p70, %p71
    %s73 = ssub.s32 %s16, %s42
    %s74 = ssub.s32 %s19, %s30
    %s75 = sor.u32 %s73, %s74
    %s76 = ssub.s32 %s18, %s34
    %s77 = sor.u32 %s75, %s76
    %p78 = scmp.eq.s32.totalorder %s77, 0
    %s80 = sadd.s32 %s79, 1
    %s81 = scalar_select %p78, %s79, %s80
    %p84 = pneg %p78
    %p85 = scmp.eq.s32.totalorder %s9, 2
    %p86 = por %p84, %p85
    %p87 = scmp.ne.s32.totalorder %s79, %s82
    %p88 = scmp.eq.s32.totalorder %s9, 0
    %p89 = por %p87, %p88
    %p90 = scmp.ne.s32.totalorder %s79, %s82
    %p91 = scmp.eq.s32.totalorder %s14, 2
    %p92 = por %p90, %p91
    %p93 = scmp.ne.s32.totalorder %s82, %s83
    %p94 = scmp.eq.s32.totalorder %s14, 0
    %p95 = por %p93, %p94
    %p96 = scmp.ne.s32.totalorder %s82, %s83
    %p97 = scmp.eq.s32.totalorder %s15, 2
    %p98 = por %p96, %p97
    %p100 = scmp.ne.s32.totalorder %s83, %s99
    %p101 = scmp.eq.s32.totalorder %s15, 0
    %p102 = por %p100, %p101
    %s103 = ssub.s32 %s16, %s42
    %s104 = ssub.s32 %s18, %s34
    %s105 = sor.u32 %s103, %s104
    %p106 = scmp.eq.s32.totalorder %s105, 0
    %s108 = sadd.s32 %s107, 1
    %s109 = scalar_select %p106, %s107, %s108
    %p112 = pneg %p106
    %p113 = scmp.eq.s32.totalorder %s9, 2
    %p114 = por %p112, %p113
    %p115 = scmp.ne.s32.totalorder %s107, %s110
    %p116 = scmp.eq.s32.totalorder %s9, 0
    %p117 = por %p115, %p116
    %p118 = scmp.ne.s32.totalorder %s107, %s110
    %p119 = scmp.eq.s32.totalorder %s14, 2
    %p120 = por %p118, %p119
    %p121 = scmp.ne.s32.totalorder %s110, %s111
    %p122 = scmp.eq.s32.totalorder %s14, 0
    %p123 = por %p121, %p122
    %p124 = scmp.ne.s32.totalorder %s110, %s111
    %p125 = scmp.eq.s32.totalorder %s15, 2
    %p126 = por %p124, %p125
    %p128 = scmp.ne.s32.totalorder %s111, %s127
    %p129 = scmp.eq.s32.totalorder %s15, 0
    %p130 = por %p128, %p129
    %s131 = ssub.s32 %s16, %s42
    %s132 = ssub.s32 %s17, %s38
    %s133 = sor.u32 %s131, %s132
    %s134 = ssub.s32 %s18, %s34
    %s135 = sor.u32 %s133, %s134
    %p136 = scmp.eq.s32.totalorder %s135, 0
    %s138 = sadd.s32 %s137, 1
    %s139 = scalar_select %p136, %s137, %s138
    %p142 = pneg %p136
    %p143 = scmp.eq.s32.totalorder %s9, 2
    %p144 = por %p142, %p143
    %p145 = scmp.ne.s32.totalorder %s137, %s140
    %p146 = scmp.eq.s32.totalorder %s9, 0
    %p147 = por %p145, %p146
    %p148 = scmp.ne.s32.totalorder %s137, %s140
    %p149 = scmp.eq.s32.totalorder %s14, 2
    %p150 = por %p148, %p149
    %p151 = scmp.ne.s32.totalorder %s140, %s141
    %p152 = scmp.eq.s32.totalorder %s14, 0
    %p153 = por %p151, %p152
    %p154 = scmp.ne.s32.totalorder %s140, %s141
    %p155 = scmp.eq.s32.totalorder %s15, 2
    %p156 = por %p154, %p155
    %p158 = scmp.ne.s32.totalorder %s141, %s157
    %p159 = scmp.eq.s32.totalorder %s15, 0
    %p160 = por %p158, %p159
    %p161 = scmp.le.s32.totalorder 1, %s9
    %p162 = scmp.lt.s32.totalorder %s9, 4
    %p163 = pnand %p161, %p162
    %p164 = pneg %p163
    // Predicated region
    $region9: #{rnn1_forward.25} parent=5 // pred_check
      _
    $region10: #{rnn1_forward.25} parent=5 // pred_check_branch
      %166 = sbr.rel (%p163) target = $region12
    $region11: #{rnn1_forward.25} parent=5 // pred_region
      %s167 = ssub.s32 %s9, 1
    $region12: #{rnn1_forward.25} parent=5 // pred_fallthru
      _
    %p168 = scmp.lt.s32.totalorder %s9, 3
    // Predicated region
    $region13: #{rnn1_forward.25} parent=5 // pred_check
      %p169 = pneg %p168
    $region14: #{rnn1_forward.25} parent=5 // pred_check_branch
      %171 = sbr.rel (%p169) target = $region16
    $region15: #{rnn1_forward.25} parent=5 // pred_region
      // Predicated region
      $region17: #{rnn1_forward.25} parent=15 // pred_check
        %p172 = pneg %p59
      $region18: #{rnn1_forward.25} parent=15 // pred_check_branch
        %174 = sbr.rel (%p172) target = $region20
      $region19: #{rnn1_forward.25} parent=15 // pred_region
        %p175 = scmp.lt.s32.totalorder %s16, 2
        %s176 = scalar_select %p175, %s16, 2
        %p177 = scmp.lt.s32.totalorder %s17, 0
        %s178 = scalar_select %p177, %s17, 0
        %p179 = scmp.lt.s32.totalorder %s19, 0
        %s180 = scalar_select %p179, %s19, 0
        %s181 = sadd.s32 %s180, %s178
        %s182 = sadd.s32 %s181, %s176
        %s183 = smul.addr %s182, 8
        %s184 = scalar_lea.vmem %s0, %s183
      $region20: #{rnn1_forward.25} parent=15 // pred_fallthru
        _
      // Predicated region
      $region21: #{rnn1_forward.25} parent=15 // pred_check
        %p185 = pneg %p89
      $region22: #{rnn1_forward.25} parent=15 // pred_check_branch
        %187 = sbr.rel (%p185) target = $region24
      $region23: #{rnn1_forward.25} parent=15 // pred_region
        %s188 = smul.u32 16, %s19
        %p189 = scmp.lt.s32.totalorder %s16, 2
        %s190 = scalar_select %p189, %s16, 2
        %p191 = scmp.lt.s32.totalorder %s188, 15
        %s192 = scalar_select %p191, %s188, 15
        %p193 = scmp.lt.s32.totalorder %s18, 0
        %s194 = scalar_select %p193, %s18, 0
        %s195 = sadd.s32 %s194, %s192
        %s196 = smul.addr %s190, 16
        %s197 = sadd.s32 %s195, %s196
        %s198 = smul.addr %s197, 8
        %s199 = scalar_lea.vmem %s1, %s198
        %s200 = smul.u32 16, %s19
      $region24: #{rnn1_forward.25} parent=15 // pred_fallthru
        _
      // Predicated region
      $region25: #{rnn1_forward.25} parent=15 // pred_check
        %p201 = pneg %p117
      $region26: #{rnn1_forward.25} parent=15 // pred_check_branch
        %203 = sbr.rel (%p201) target = $region28
      $region27: #{rnn1_forward.25} parent=15 // pred_region
        %p204 = scmp.lt.s32.totalorder %s16, 2
        %s205 = scalar_select %p204, %s16, 2
        %p206 = scmp.lt.s32.totalorder %s18, 0
        %s207 = scalar_select %p206, %s18, 0
        %s208 = sadd.s32 %s207, %s205
        %s209 = scalar_lea.vmem %s2, %s208
      $region28: #{rnn1_forward.25} parent=15 // pred_fallthru
        _
    $region16: #{rnn1_forward.25} parent=5 // pred_fallthru
      _
    %p210 = scmp.le.s32.totalorder 1, %s9
    %p211 = scmp.lt.s32.totalorder %s9, 4
    %p212 = pnand %p210, %p211
    %p213 = pneg %p212
    // Predicated region
    $region29: #{rnn1_forward.25} parent=5 // pred_check
      _
    $region30: #{rnn1_forward.25} parent=5 // pred_check_branch
      %215 = sbr.rel (%p212) target = $region32
    $region31: #{rnn1_forward.25} parent=5 // pred_region
      %s216 = ssub.s32 %s9, 1
      %p217 = scmp.lt.s32.totalorder %s20, 2
      %s218 = scalar_select %p217, %s20, 2
      %p219 = scmp.lt.s32.totalorder %s21, 0
      %s220 = scalar_select %p219, %s21, 0
      %p221 = scmp.lt.s32.totalorder %s23, 0
      %s222 = scalar_select %p221, %s23, 0
      %s223 = sadd.s32 %s222, %s220
      %s224 = sadd.s32 %s223, %s218
      %s225 = smul.addr %s224, 8
      %s226 = scalar_lea.vmem %s0, %s225
      %p227 = pneg %p65
      %p228 = pneg %p62
      %s229 = smul.u32 16, %s23
      %p230 = scmp.lt.s32.totalorder %s20, 2
      %s231 = scalar_select %p230, %s20, 2
      %p232 = scmp.lt.s32.totalorder %s229, 15
      %s233 = scalar_select %p232, %s229, 15
      %p234 = scmp.lt.s32.totalorder %s22, 0
      %s235 = scalar_select %p234, %s22, 0
      %s236 = sadd.s32 %s235, %s233
      %s237 = smul.addr %s231, 16
      %s238 = sadd.s32 %s236, %s237
      %s239 = smul.addr %s238, 8
      %s240 = scalar_lea.vmem %s1, %s239
      %p241 = pneg %p95
      %p242 = pneg %p92
      %p243 = scmp.lt.s32.totalorder %s20, 2
      %s244 = scalar_select %p243, %s20, 2
      %p245 = scmp.lt.s32.totalorder %s22, 0
      %s246 = scalar_select %p245, %s22, 0
      %s247 = sadd.s32 %s246, %s244
      %s248 = scalar_lea.vmem %s2, %s247
      %p249 = pneg %p123
      %p250 = pneg %p120
      %p251 = pneg %p153
      %p252 = pneg %p150
      %p253 = scmp.lt.s32.totalorder %s20, 2
      %s254 = scalar_select %p253, %s20, 2
      %p255 = scmp.lt.s32.totalorder %s21, 0
      %s256 = scalar_select %p255, %s21, 0
      %p257 = scmp.lt.s32.totalorder %s22, 0
      %s258 = scalar_select %p257, %s22, 0
      %s259 = sadd.s32 %s258, %s256
      %s260 = sadd.s32 %s259, %s254
      %s261 = smul.addr %s260, 8
      %s262 = scalar_lea.vmem %s3, %s261
      %p263 = scmp.lt.s32.totalorder %s20, 2
      %s264 = scalar_select %p263, %s20, 2
      %p265 = scmp.lt.s32.totalorder %s21, 0
      %s266 = scalar_select %p265, %s21, 0
      %p267 = scmp.lt.s32.totalorder %s23, 0
      %s268 = scalar_select %p267, %s23, 0
      %s269 = sadd.s32 %s268, %s266
      %s270 = sadd.s32 %s269, %s264
      %s271 = smul.addr %s270, 8
      %s272 = scalar_lea.vmem %s0, %s271
      %s273 = smul.u32 16, %s23
      %p274 = scmp.lt.s32.totalorder %s20, 2
      %s275 = scalar_select %p274, %s20, 2
      %p276 = scmp.lt.s32.totalorder %s273, 15
      %s277 = scalar_select %p276, %s273, 15
      %p278 = scmp.lt.s32.totalorder %s22, 0
      %s279 = scalar_select %p278, %s22, 0
      %s280 = sadd.s32 %s279, %s277
      %s281 = smul.addr %s275, 16
      %s282 = sadd.s32 %s280, %s281
      %s283 = smul.addr %s282, 8
      %s284 = scalar_lea.vmem %s1, %s283
      %s285 = smul.u32 16, %s23
      %p286 = scmp.lt.s32.totalorder %s20, 2
      %s287 = scalar_select %p286, %s20, 2
      %p288 = scmp.lt.s32.totalorder %s22, 0
      %s289 = scalar_select %p288, %s22, 0
      %s290 = sadd.s32 %s289, %s287
      %s291 = scalar_lea.vmem %s2, %s290
      %p292 = scmp.lt.s32.totalorder %s20, 2
      %s293 = scalar_select %p292, %s20, 2
      %p294 = scmp.lt.s32.totalorder %s21, 0
      %s295 = scalar_select %p294, %s21, 0
      %p296 = scmp.lt.s32.totalorder %s22, 0
      %s297 = scalar_select %p296, %s22, 0
      %s298 = sadd.s32 %s297, %s295
      %s299 = sadd.s32 %s298, %s293
      %s300 = smul.addr %s299, 8
      %s301 = scalar_lea.vmem %s3, %s300
      %p302 = scmp.eq.s32.totalorder %s23, 0
      // Predicated region
      $region33: #{rnn1_forward.25} parent=31 // pred_check
        %p303 = pneg %p302
      $region34: #{rnn1_forward.25} parent=31 // pred_check_branch
        %305 = sbr.rel (%p303) target = $region36
      $region35: #{rnn1_forward.25} parent=31 // pred_region
        %v306 = vld [vmem:[%s291] sm:$0x1]
        %v308 = vlaneseq
        %v309 = vshrl.u32 %v308, 7
        %v310 = vsub.s32 0, %v309
        %v311 = vrot.slane %v306, %v310
        %313 = vst [vmem:[%s301] sm:$0xff] %v311
      $region36: #{rnn1_forward.25} parent=31 // pred_fallthru
        _
      %v314 = vld [vmem:[%s301] sm:$0xff]
      %v315 = vld [vmem:[%s272] sm:$0xff]
      %v316 = vld [vmem:[%s284] sm:$0xff]
      %v317 = vld [vmem:[%s284 + $0x8] sm:$0xff]
      %v318 = vld [vmem:[%s284 + $0x10] sm:$0xff]
      %v319 = vld [vmem:[%s284 + $0x18] sm:$0xff]
      %v320 = vld [vmem:[%s284 + $0x20] sm:$0xff]
      %v321 = vld [vmem:[%s284 + $0x28] sm:$0xff]
      %v322 = vld [vmem:[%s284 + $0x30] sm:$0xff]
      %v323 = vld [vmem:[%s284 + $0x38] sm:$0xff]
      %v324 = vld [vmem:[%s284 + $0x40] sm:$0xff]
      %v325 = vld [vmem:[%s284 + $0x48] sm:$0xff]
      %v326 = vld [vmem:[%s284 + $0x50] sm:$0xff]
      %v327 = vld [vmem:[%s284 + $0x58] sm:$0xff]
      %v328 = vld [vmem:[%s284 + $0x60] sm:$0xff]
      %v329 = vld [vmem:[%s284 + $0x68] sm:$0xff]
      %v330 = vld [vmem:[%s284 + $0x70] sm:$0xff]
      %v331 = vld [vmem:[%s284 + $0x78] sm:$0xff]
      %332 = vmatprep.subr.mxu0 0.0
      %333 = vmatpush1.msra.mxu0 %v316
      %334 = vmatprep.subr.mxu0 0.0
      %335 = vmatpush1.msra.mxu0 %v317
      %336 = vmatprep.subr.mxu0 0.0
      %337 = vmatpush1.msra.mxu0 %v318
      %338 = vmatprep.subr.mxu0 0.0
      %339 = vmatpush1.msra.mxu0 %v319
      %340 = vmatprep.subr.mxu0 0.0
      %341 = vmatpush1.msra.mxu0 %v320
      %342 = vmatprep.subr.mxu0 0.0
      %343 = vmatpush1.msra.mxu0 %v321
      %344 = vmatprep.subr.mxu0 0.0
      %345 = vmatpush1.msra.mxu0 %v322
      %346 = vmatprep.subr.mxu0 0.0
      %347 = vmatpush1.msra.mxu0 %v323
      %348 = vmatprep.subr.mxu0 0.0
      %349 = vmatpush1.msra.mxu0 %v324
      %350 = vmatprep.subr.mxu0 0.0
      %351 = vmatpush1.msra.mxu0 %v325
      %352 = vmatprep.subr.mxu0 0.0
      %353 = vmatpush1.msra.mxu0 %v326
      %354 = vmatprep.subr.mxu0 0.0
      %355 = vmatpush1.msra.mxu0 %v327
      %356 = vmatprep.subr.mxu0 0.0
      %357 = vmatpush1.msra.mxu0 %v328
      %358 = vmatprep.subr.mxu0 0.0
      %359 = vmatpush1.msra.mxu0 %v329
      %360 = vmatprep.subr.mxu0 0.0
      %361 = vmatpush1.msra.mxu0 %v330
      %362 = vmatprep.subr.mxu0 0.0
      %363 = vmatpush1.msra.mxu0 %v331
      %364 = vmatprep.subr.mxu0 0.0
      %365 = vmatpush1.msra.mxu0 0.0
      %366 = vmatprep.subr.mxu0 0.0
      %367 = vmatpush1.msra.mxu0 0.0
      %368 = vmatprep.subr.mxu0 0.0
      %369 = vmatpush1.msra.mxu0 0.0
      %370 = vmatprep.subr.mxu0 0.0
      %371 = vmatpush1.msra.mxu0 0.0
      %372 = vmatprep.subr.mxu0 0.0
      %373 = vmatpush1.msra.mxu0 0.0
      %374 = vmatprep.subr.mxu0 0.0
      %375 = vmatpush1.msra.mxu0 0.0
      %376 = vmatprep.subr.mxu0 0.0
      %377 = vmatpush1.msra.mxu0 0.0
      %378 = vmatprep.subr.mxu0 0.0
      %379 = vmatpush1.msra.mxu0 0.0
      %380 = vmatprep.subr.mxu0 0.0
      %381 = vmatpush1.msra.mxu0 0.0
      %382 = vmatprep.subr.mxu0 0.0
      %383 = vmatpush1.msra.mxu0 0.0
      %384 = vmatprep.subr.mxu0 0.0
      %385 = vmatpush1.msra.mxu0 0.0
      %386 = vmatprep.subr.mxu0 0.0
      %387 = vmatpush1.msra.mxu0 0.0
      %388 = vmatprep.subr.mxu0 0.0
      %389 = vmatpush1.msra.mxu0 0.0
      %390 = vmatprep.subr.mxu0 0.0
      %391 = vmatpush1.msra.mxu0 0.0
      %392 = vmatprep.subr.mxu0 0.0
      %393 = vmatpush1.msra.mxu0 0.0
      %394 = vmatprep.subr.mxu0 0.0
      %395 = vmatpush1.msra.mxu0 0.0
      %396 = vmatprep.mubr.f32.mxu0 0.0
      %397 = vmatmul.mubr.f32.gmra.mrb[0].mxu0 %v315
      %v398 = vpop.f32.mrb[0].mxu0
      %v399 = vadd.f32 0.0, %v398
      %v400 = vpop.f32.mrb[0].mxu0
      %401 = vdwg.mxu0
      %v402 = vadd.f32 %v314, %v399
      %403 = vst [vmem:[%s301] sm:$0xff] %v402
      // Predicated region
      $region37: #{rnn1_forward.25} parent=31 // pred_check
        %p404 = pneg %p302
      $region38: #{rnn1_forward.25} parent=31 // pred_check_branch
        %406 = sbr.rel (%p404) target = $region40
      $region39: #{rnn1_forward.25} parent=31 // pred_region
        %v407 = vld [vmem:[%s301] sm:$0xff]
        %v408 = vmax.f32 %v407, 0.0
        %409 = vst [vmem:[%s301] sm:$0xff] %v408
      $region40: #{rnn1_forward.25} parent=31 // pred_fallthru
        _
      %p410 = scmp.lt.s32.totalorder %s20, 2
      %s411 = scalar_select %p410, %s20, 2
      %p412 = scmp.lt.s32.totalorder %s21, 0
      %s413 = scalar_select %p412, %s21, 0
      %p414 = scmp.lt.s32.totalorder %s22, 0
      %s415 = scalar_select %p414, %s22, 0
      %s416 = sadd.s32 %s415, %s413
      %s417 = sadd.s32 %s416, %s411
      %s418 = smul.addr %s417, 8
      %s419 = scalar_lea.vmem %s3, %s418
      // Predicated region
      $region41: #{rnn1_forward.25} parent=31 // pred_check
        %p420 = pneg %p150
      $region42: #{rnn1_forward.25} parent=31 // pred_check_branch
        %422 = sbr.rel (%p420) target = $region44
      $region43: #{rnn1_forward.25} parent=31 // pred_region
        _
      $region44: #{rnn1_forward.25} parent=31 // pred_fallthru
        _
    $region32: #{rnn1_forward.25} parent=5 // pred_fallthru
      _
    %p423 = scmp.le.s32.totalorder 2, %s9
    // Predicated region
    $region45: #{rnn1_forward.25} parent=5 // pred_check
      %p424 = pneg %p423
    $region46: #{rnn1_forward.25} parent=5 // pred_check_branch
      %426 = sbr.rel (%p424) target = $region48
    $region47: #{rnn1_forward.25} parent=5 // pred_region
      %s427 = ssub.s32 %s9, 2
      // Predicated region
      $region49: #{rnn1_forward.25} parent=47 // pred_check
        %p428 = pneg %p156
      $region50: #{rnn1_forward.25} parent=47 // pred_check_branch
        %430 = sbr.rel (%p428) target = $region52
      $region51: #{rnn1_forward.25} parent=47 // pred_region
        %p431 = scmp.lt.s32.totalorder %s24, 2
        %s432 = scalar_select %p431, %s24, 2
        %p433 = scmp.lt.s32.totalorder %s25, 0
        %s434 = scalar_select %p433, %s25, 0
        %p435 = scmp.lt.s32.totalorder %s26, 0
        %s436 = scalar_select %p435, %s26, 0
        %s437 = sadd.s32 %s436, %s434
        %s438 = sadd.s32 %s437, %s432
        %s439 = smul.addr %s438, 8
        %s440 = scalar_lea.vmem %s3, %s439
      $region52: #{rnn1_forward.25} parent=47 // pred_fallthru
        _
    $region48: #{rnn1_forward.25} parent=5 // pred_fallthru
      _
  $region6: #{rnn1_forward.25} parent=0 // loop_footer
    %s13 = sadd.s32 1, %s9
  $region7: #{rnn1_forward.25} parent=0 // loop_footer_branch
    %8 = sbr.rel target = $region3
  $region8: #{rnn1_forward.25} parent=0 // loop_exit
    _

// kernel: rnn1_forward.24
$region0: #{rnn1_forward.24}
  #allocation0 [shape = 'u32[]', space=smem, size = 0x4, offset = 0x4, fixed_abs, tag = 'smem constant byte address 0x4 - core index']
  #allocation1 [shape = 'u32[144,128]{1,0:T(1,128)}', space=vmem, size = 0x12000, scoped, tag = 'internal scratch']
  %s0 = inlined_call_operand.vmem [shape: f32[8,256], index: 0, kind: input, shape index: {}]
  %s1 = inlined_call_operand.vmem [shape: f32[256,8192], index: 1, kind: input, shape index: {}]
  %s2 = inlined_call_operand.vmem [shape: f32[1,8192], index: 2, kind: input, shape index: {}]
  %s3 = inlined_call_operand.vmem [shape: f32[8,8192], index: 3, kind: output, shape index: {}]
  %s4 = sld [smem:[#allocation0]]
  $region72: #{rnn1_forward.24} parent=0
    _
  %s6 = ssub.s32 1, %s4
  %s7 = scalar_select 0, %s6, %s4
  $region1: #{rnn1_forward.24} parent=0
    #allocation2 [shape = 'u8[4194304]{0}', space=vmem, size = 0x400000, scoped, tag = 'input window, operand 1']
    loop: start=0, step=1, limit=6
    $region2: #{rnn1_forward.24} parent=1 // loop_pre_header
      _
    $region3: #{rnn1_forward.24} parent=1 // loop_header
      %s9 = sphi 0, %s13
      %p10 = scmp.ge.s32.totalorder %s9, 6
      %s16 = sphi 0, %s35
      %s17 = sphi 0, %s31
      %s18 = sphi 0, %s27
      %s19 = sphi 0, %s16
      %s20 = sphi 0, %s17
      %s21 = sphi 0, %s18
      %s22 = sphi 0, %s19
      %s23 = sphi 0, %s20
      %s24 = sphi 0, %s21
      %s40 = sphi 0, %s42
      %s43 = sphi 0, %s40
      %s44 = sphi 0, %s43
      %s60 = sphi 0, %s44
      %s68 = sphi 0, %s70
      %s71 = sphi 0, %s68
      %s72 = sphi 0, %s71
      %s88 = sphi 0, %s72
      %s94 = sphi 0, %s96
      %s97 = sphi 0, %s94
      %s98 = sphi 0, %s97
      %s114 = sphi 0, %s98
      %s122 = sphi 0, %s124
      %s125 = sphi 0, %s122
      %s126 = sphi 0, %s125
      %s142 = sphi 0, %s126
    $region4: #{rnn1_forward.24} parent=1 // loop_header_branch
      %12 = sbr.rel (%p10) target = $region8
    $region5: #{rnn1_forward.24} parent=1 // loop_body
      %s14 = ssub.s32 %s9, 1
      %s15 = ssub.s32 %s9, 2
      %s25 = sadd.s32 1, %s18
      %p26 = scmp.ge.s32.totalorder %s25, 1
      %s27 = scalar_select %p26, 0, %s25
      %s28 = sadd.s32 1, %s17
      %s29 = scalar_select %p26, %s28, %s17
      %p30 = scmp.ge.s32.totalorder %s29, 4
      %s31 = scalar_select %p30, 0, %s29
      %s32 = sadd.s32 1, %s16
      %s33 = scalar_select %p30, %s32, %s16
      %p34 = scmp.ge.s32.totalorder %s33, 1
      %s35 = scalar_select %p34, 0, %s33
      %s36 = ssub.s32 %s16, %s35
      %s37 = ssub.s32 %s18, %s27
      %s38 = sor.u32 %s36, %s37
      %p39 = scmp.eq.s32.totalorder %s38, 0
      %s41 = sadd.s32 %s40, 1
      %s42 = scalar_select %p39, %s40, %s41
      %p45 = pneg %p39
      %p46 = scmp.eq.s32.totalorder %s9, 3
      %p47 = por %p45, %p46
      %p48 = scmp.ne.s32.totalorder %s40, %s43
      %p49 = scmp.eq.s32.totalorder %s9, 0
      %p50 = por %p48, %p49
      %p51 = scmp.ne.s32.totalorder %s40, %s43
      %p52 = scmp.eq.s32.totalorder %s14, 3
      %p53 = por %p51, %p52
      %p54 = scmp.ne.s32.totalorder %s43, %s44
      %p55 = scmp.eq.s32.totalorder %s14, 0
      %p56 = por %p54, %p55
      %p57 = scmp.ne.s32.totalorder %s43, %s44
      %p58 = scmp.eq.s32.totalorder %s15, 3
      %p59 = por %p57, %p58
      %p61 = scmp.ne.s32.totalorder %s44, %s60
      %p62 = scmp.eq.s32.totalorder %s15, 0
      %p63 = por %p61, %p62
      %s64 = ssub.s32 %s18, %s27
      %s65 = ssub.s32 %s17, %s31
      %s66 = sor.u32 %s64, %s65
      %p67 = scmp.eq.s32.totalorder %s66, 0
      %s69 = sadd.s32 %s68, 1
      %s70 = scalar_select %p67, %s68, %s69
      %p73 = pneg %p67
      %p74 = scmp.eq.s32.totalorder %s9, 3
      %p75 = por %p73, %p74
      %p76 = scmp.ne.s32.totalorder %s68, %s71
      %p77 = scmp.eq.s32.totalorder %s9, 0
      %p78 = por %p76, %p77
      %p79 = scmp.ne.s32.totalorder %s68, %s71
      %p80 = scmp.eq.s32.totalorder %s14, 3
      %p81 = por %p79, %p80
      %p82 = scmp.ne.s32.totalorder %s71, %s72
      %p83 = scmp.eq.s32.totalorder %s14, 0
      %p84 = por %p82, %p83
      %p85 = scmp.ne.s32.totalorder %s71, %s72
      %p86 = scmp.eq.s32.totalorder %s15, 3
      %p87 = por %p85, %p86
      %p89 = scmp.ne.s32.totalorder %s72, %s88
      %p90 = scmp.eq.s32.totalorder %s15, 0
      %p91 = por %p89, %p90
      %s92 = ssub.s32 %s17, %s31
      %p93 = scmp.eq.s32.totalorder %s92, 0
      %s95 = sadd.s32 %s94, 1
      %s96 = scalar_select %p93, %s94, %s95
      %p99 = pneg %p93
      %p100 = scmp.eq.s32.totalorder %s9, 3
      %p101 = por %p99, %p100
      %p102 = scmp.ne.s32.totalorder %s94, %s97
      %p103 = scmp.eq.s32.totalorder %s9, 0
      %p104 = por %p102, %p103
      %p105 = scmp.ne.s32.totalorder %s94, %s97
      %p106 = scmp.eq.s32.totalorder %s14, 3
      %p107 = por %p105, %p106
      %p108 = scmp.ne.s32.totalorder %s97, %s98
      %p109 = scmp.eq.s32.totalorder %s14, 0
      %p110 = por %p108, %p109
      %p111 = scmp.ne.s32.totalorder %s97, %s98
      %p112 = scmp.eq.s32.totalorder %s15, 3
      %p113 = por %p111, %p112
      %p115 = scmp.ne.s32.totalorder %s98, %s114
      %p116 = scmp.eq.s32.totalorder %s15, 0
      %p117 = por %p115, %p116
      %s118 = ssub.s32 %s16, %s35
      %s119 = ssub.s32 %s17, %s31
      %s120 = sor.u32 %s118, %s119
      %p121 = scmp.eq.s32.totalorder %s120, 0
      %s123 = sadd.s32 %s122, 1
      %s124 = scalar_select %p121, %s122, %s123
      %p127 = pneg %p121
      %p128 = scmp.eq.s32.totalorder %s9, 3
      %p129 = por %p127, %p128
      %p130 = scmp.ne.s32.totalorder %s122, %s125
      %p131 = scmp.eq.s32.totalorder %s9, 0
      %p132 = por %p130, %p131
      %p133 = scmp.ne.s32.totalorder %s122, %s125
      %p134 = scmp.eq.s32.totalorder %s14, 3
      %p135 = por %p133, %p134
      %p136 = scmp.ne.s32.totalorder %s125, %s126
      %p137 = scmp.eq.s32.totalorder %s14, 0
      %p138 = por %p136, %p137
      %p139 = scmp.ne.s32.totalorder %s125, %s126
      %p140 = scmp.eq.s32.totalorder %s15, 3
      %p141 = por %p139, %p140
      %p143 = scmp.ne.s32.totalorder %s126, %s142
      %p144 = scmp.eq.s32.totalorder %s15, 0
      %p145 = por %p143, %p144
      %p146 = scmp.le.s32.totalorder 1, %s9
      %p147 = scmp.lt.s32.totalorder %s9, 5
      %p148 = pnand %p146, %p147
      %p149 = pneg %p148
      // Predicated region
      $region9: #{rnn1_forward.24} parent=5 // pred_check
        _
      $region10: #{rnn1_forward.24} parent=5 // pred_check_branch
        %151 = sbr.rel (%p148) target = $region12
      $region11: #{rnn1_forward.24} parent=5 // pred_region
        %s152 = ssub.s32 %s9, 1
        // Predicated region
        $region13: #{rnn1_forward.24} parent=11 // pred_check
          %p153 = pneg %p56
        $region14: #{rnn1_forward.24} parent=11 // pred_check_branch
          %155 = sbr.rel (%p153) target = $region16
        $region15: #{rnn1_forward.24} parent=11 // pred_region
          %s156 = smul.u32 2, %s21
          %p157 = scmp.lt.s32.totalorder %s19, 0
          %s158 = scalar_select %p157, %s19, 0
          %p159 = scmp.lt.s32.totalorder %s156, 1
          %s160 = scalar_select %p159, %s156, 1
          %s161 = smul.addr %s158, 2
          %s162 = sadd.s32 %s160, %s161
          %s163 = smul.addr %s162, 8
          %s164 = scalar_lea.vmem %s0, %s163
          %s165 = smul.u32 2, %s21
        $region16: #{rnn1_forward.24} parent=11 // pred_fallthru
          _
      $region12: #{rnn1_forward.24} parent=5 // pred_fallthru
        _
      %p166 = scmp.lt.s32.totalorder %s9, 4
      // Predicated region
      $region17: #{rnn1_forward.24} parent=5 // pred_check
        %p167 = pneg %p166
      $region18: #{rnn1_forward.24} parent=5 // pred_check_branch
        %169 = sbr.rel (%p167) target = $region20
      $region19: #{rnn1_forward.24} parent=5 // pred_region
        // Predicated region
        $region21: #{rnn1_forward.24} parent=19 // pred_check
          %p170 = pneg %p78
        $region22: #{rnn1_forward.24} parent=19 // pred_check_branch
          %172 = sbr.rel (%p170) target = $region24
        $region23: #{rnn1_forward.24} parent=19 // pred_region
          %s173 = sand.u32 %s68, 1
          %s174 = sand.u32 %s68, 1
          %s175 = smul.addr %s174, 4096
          %s176 = scalar_lea.vmem [#allocation2], %s175
          %s177 = smul.u32 32, %s18
          %s178 = smul.u32 16, %s17
          %s179 = smul.addr %s177, 64
          %s180 = sadd.s32 %s178, %s179
          %s181 = smul.addr %s180, 8
          %s182 = scalar_lea.vmem %s1, %s181
          // Predicated region
          $region25: #{rnn1_forward.24} parent=23 // pred_check
            _
          $region26: #{rnn1_forward.24} parent=23 // pred_check_branch
            %184 = sbr.rel (0) target = $region28
          $region27: #{rnn1_forward.24} parent=23 // pred_region
            // Predicated region
            $region29: #{rnn1_forward.24} parent=27 // pred_check
              _
            $region30: #{rnn1_forward.24} parent=27 // pred_check_branch
              %186 = sbr.rel (0) target = $region32
            $region31: #{rnn1_forward.24} parent=27 // pred_region
              loop: start=0, step=1, limit=1
              $region33: #{rnn1_forward.24} parent=31 // loop_pre_header
                _
              $region34: #{rnn1_forward.24} parent=31 // loop_header
                %s188 = sphi 0, %s192
                %p189 = scmp.ge.s32.totalorder %s188, 1
                %s193 = sphi %s182, %s182
                %s194 = sphi %s176, %s176
              $region35: #{rnn1_forward.24} parent=31 // loop_header_branch
                %191 = sbr.rel (%p189) target = $region39
              $region36: #{rnn1_forward.24} parent=31 // loop_body
                %v195 = vld [vmem:[%s193] sm:$0xff]
                %196 = vst [vmem:[%s194] sm:$0xff] %v195
                %v197 = vld [vmem:[%s193 + $0x8] sm:$0xff]
                %198 = vst [vmem:[%s194 + $0x8] sm:$0xff] %v197
                %v199 = vld [vmem:[%s193 + $0x10] sm:$0xff]
                %200 = vst [vmem:[%s194 + $0x10] sm:$0xff] %v199
                %v201 = vld [vmem:[%s193 + $0x18] sm:$0xff]
                %202 = vst [vmem:[%s194 + $0x18] sm:$0xff] %v201
                %v203 = vld [vmem:[%s193 + $0x20] sm:$0xff]
                %204 = vst [vmem:[%s194 + $0x20] sm:$0xff] %v203
                %v205 = vld [vmem:[%s193 + $0x28] sm:$0xff]
                %206 = vst [vmem:[%s194 + $0x28] sm:$0xff] %v205
                %v207 = vld [vmem:[%s193 + $0x30] sm:$0xff]
                %208 = vst [vmem:[%s194 + $0x30] sm:$0xff] %v207
                %v209 = vld [vmem:[%s193 + $0x38] sm:$0xff]
                %210 = vst [vmem:[%s194 + $0x38] sm:$0xff] %v209
                %v211 = vld [vmem:[%s193 + $0x40] sm:$0xff]
                %212 = vst [vmem:[%s194 + $0x40] sm:$0xff] %v211
                %v213 = vld [vmem:[%s193 + $0x48] sm:$0xff]
                %214 = vst [vmem:[%s194 + $0x48] sm:$0xff] %v213
                %v215 = vld [vmem:[%s193 + $0x50] sm:$0xff]
                %216 = vst [vmem:[%s194 + $0x50] sm:$0xff] %v215
                %v217 = vld [vmem:[%s193 + $0x58] sm:$0xff]
                %218 = vst [vmem:[%s194 + $0x58] sm:$0xff] %v217
                %v219 = vld [vmem:[%s193 + $0x60] sm:$0xff]
                %220 = vst [vmem:[%s194 + $0x60] sm:$0xff] %v219
                %v221 = vld [vmem:[%s193 + $0x68] sm:$0xff]
                %222 = vst [vmem:[%s194 + $0x68] sm:$0xff] %v221
                %v223 = vld [vmem:[%s193 + $0x70] sm:$0xff]
                %224 = vst [vmem:[%s194 + $0x70] sm:$0xff] %v223
                %v225 = vld [vmem:[%s193 + $0x78] sm:$0xff]
                %226 = vst [vmem:[%s194 + $0x78] sm:$0xff] %v225
                %v227 = vld [vmem:[%s193 + $0x200] sm:$0xff]
                %228 = vst [vmem:[%s194 + $0x80] sm:$0xff] %v227
                %v229 = vld [vmem:[%s193 + $0x208] sm:$0xff]
                %230 = vst [vmem:[%s194 + $0x88] sm:$0xff] %v229
                %v231 = vld [vmem:[%s193 + $0x210] sm:$0xff]
                %232 = vst [vmem:[%s194 + $0x90] sm:$0xff] %v231
                %v233 = vld [vmem:[%s193 + $0x218] sm:$0xff]
                %234 = vst [vmem:[%s194 + $0x98] sm:$0xff] %v233
                %v235 = vld [vmem:[%s193 + $0x220] sm:$0xff]
                %236 = vst [vmem:[%s194 + $0xa0] sm:$0xff] %v235
                %v237 = vld [vmem:[%s193 + $0x228] sm:$0xff]
                %238 = vst [vmem:[%s194 + $0xa8] sm:$0xff] %v237
                %v239 = vld [vmem:[%s193 + $0x230] sm:$0xff]
                %240 = vst [vmem:[%s194 + $0xb0] sm:$0xff] %v239
                %v241 = vld [vmem:[%s193 + $0x238] sm:$0xff]
                %242 = vst [vmem:[%s194 + $0xb8] sm:$0xff] %v241
                %v243 = vld [vmem:[%s193 + $0x240] sm:$0xff]
                %244 = vst [vmem:[%s194 + $0xc0] sm:$0xff] %v243
                %v245 = vld [vmem:[%s193 + $0x248] sm:$0xff]
                %246 = vst [vmem:[%s194 + $0xc8] sm:$0xff] %v245
                %v247 = vld [vmem:[%s193 + $0x250] sm:$0xff]
                %248 = vst [vmem:[%s194 + $0xd0] sm:$0xff] %v247
                %v249 = vld [vmem:[%s193 + $0x258] sm:$0xff]
                %250 = vst [vmem:[%s194 + $0xd8] sm:$0xff] %v249
                %v251 = vld [vmem:[%s193 + $0x260] sm:$0xff]
                %252 = vst [vmem:[%s194 + $0xe0] sm:$0xff] %v251
                %v253 = vld [vmem:[%s193 + $0x268] sm:$0xff]
                %254 = vst [vmem:[%s194 + $0xe8] sm:$0xff] %v253
                %v255 = vld [vmem:[%s193 + $0x270] sm:$0xff]
                %256 = vst [vmem:[%s194 + $0xf0] sm:$0xff] %v255
                %v257 = vld [vmem:[%s193 + $0x278] sm:$0xff]
                %258 = vst [vmem:[%s194 + $0xf8] sm:$0xff] %v257
                %v259 = vld [vmem:[%s193 + $0x400] sm:$0xff]
                %260 = vst [vmem:[%s194 + $0x100] sm:$0xff] %v259
                %v261 = vld [vmem:[%s193 + $0x408] sm:$0xff]
                %262 = vst [vmem:[%s194 + $0x108] sm:$0xff] %v261
                %v263 = vld [vmem:[%s193 + $0x410] sm:$0xff]
                %264 = vst [vmem:[%s194 + $0x110] sm:$0xff] %v263
                %v265 = vld [vmem:[%s193 + $0x418] sm:$0xff]
                %266 = vst [vmem:[%s194 + $0x118] sm:$0xff] %v265
                %v267 = vld [vmem:[%s193 + $0x420] sm:$0xff]
                %268 = vst [vmem:[%s194 + $0x120] sm:$0xff] %v267
                %v269 = vld [vmem:[%s193 + $0x428] sm:$0xff]
                %270 = vst [vmem:[%s194 + $0x128] sm:$0xff] %v269
                %v271 = vld [vmem:[%s193 + $0x430] sm:$0xff]
                %272 = vst [vmem:[%s194 + $0x130] sm:$0xff] %v271
                %v273 = vld [vmem:[%s193 + $0x438] sm:$0xff]
                %274 = vst [vmem:[%s194 + $0x138] sm:$0xff] %v273
                %v275 = vld [vmem:[%s193 + $0x440] sm:$0xff]
                %276 = vst [vmem:[%s194 + $0x140] sm:$0xff] %v275
                %v277 = vld [vmem:[%s193 + $0x448] sm:$0xff]
                %278 = vst [vmem:[%s194 + $0x148] sm:$0xff] %v277
                %v279 = vld [vmem:[%s193 + $0x450] sm:$0xff]
                %280 = vst [vmem:[%s194 + $0x150] sm:$0xff] %v279
                %v281 = vld [vmem:[%s193 + $0x458] sm:$0xff]
                %282 = vst [vmem:[%s194 + $0x158] sm:$0xff] %v281
                %v283 = vld [vmem:[%s193 + $0x460] sm:$0xff]
                %284 = vst [vmem:[%s194 + $0x160] sm:$0xff] %v283
                %v285 = vld [vmem:[%s193 + $0x468] sm:$0xff]
                %286 = vst [vmem:[%s194 + $0x168] sm:$0xff] %v285
                %v287 = vld [vmem:[%s193 + $0x470] sm:$0xff]
                %288 = vst [vmem:[%s194 + $0x170] sm:$0xff] %v287
                %v289 = vld [vmem:[%s193 + $0x478] sm:$0xff]
                %290 = vst [vmem:[%s194 + $0x178] sm:$0xff] %v289
                %v291 = vld [vmem:[%s193 + $0x600] sm:$0xff]
                %292 = vst [vmem:[%s194 + $0x180] sm:$0xff] %v291
                %v293 = vld [vmem:[%s193 + $0x608] sm:$0xff]
                %294 = vst [vmem:[%s194 + $0x188] sm:$0xff] %v293
                %v295 = vld [vmem:[%s193 + $0x610] sm:$0xff]
                %296 = vst [vmem:[%s194 + $0x190] sm:$0xff] %v295
                %v297 = vld [vmem:[%s193 + $0x618] sm:$0xff]
                %298 = vst [vmem:[%s194 + $0x198] sm:$0xff] %v297
                %v299 = vld [vmem:[%s193 + $0x620] sm:$0xff]
                %300 = vst [vmem:[%s194 + $0x1a0] sm:$0xff] %v299
                %v301 = vld [vmem:[%s193 + $0x628] sm:$0xff]
                %302 = vst [vmem:[%s194 + $0x1a8] sm:$0xff] %v301
                %v303 = vld [vmem:[%s193 + $0x630] sm:$0xff]
                %304 = vst [vmem:[%s194 + $0x1b0] sm:$0xff] %v303
                %v305 = vld [vmem:[%s193 + $0x638] sm:$0xff]
                %306 = vst [vmem:[%s194 + $0x1b8] sm:$0xff] %v305
                %v307 = vld [vmem:[%s193 + $0x640] sm:$0xff]
                %308 = vst [vmem:[%s194 + $0x1c0] sm:$0xff] %v307
                %v309 = vld [vmem:[%s193 + $0x648] sm:$0xff]
                %310 = vst [vmem:[%s194 + $0x1c8] sm:$0xff] %v309
                %v311 = vld [vmem:[%s193 + $0x650] sm:$0xff]
                %312 = vst [vmem:[%s194 + $0x1d0] sm:$0xff] %v311
                %v313 = vld [vmem:[%s193 + $0x658] sm:$0xff]
                %314 = vst [vmem:[%s194 + $0x1d8] sm:$0xff] %v313
                %v315 = vld [vmem:[%s193 + $0x660] sm:$0xff]
                %316 = vst [vmem:[%s194 + $0x1e0] sm:$0xff] %v315
                %v317 = vld [vmem:[%s193 + $0x668] sm:$0xff]
                %318 = vst [vmem:[%s194 + $0x1e8] sm:$0xff] %v317
                %v319 = vld [vmem:[%s193 + $0x670] sm:$0xff]
                %320 = vst [vmem:[%s194 + $0x1f0] sm:$0xff] %v319
                %v321 = vld [vmem:[%s193 + $0x678] sm:$0xff]
                %322 = vst [vmem:[%s194 + $0x1f8] sm:$0xff] %v321
                %v323 = vld [vmem:[%s193 + $0x800] sm:$0xff]
                %324 = vst [vmem:[%s194 + $0x200] sm:$0xff] %v323
                %v325 = vld [vmem:[%s193 + $0x808] sm:$0xff]
                %326 = vst [vmem:[%s194 + $0x208] sm:$0xff] %v325
                %v327 = vld [vmem:[%s193 + $0x810] sm:$0xff]
                %328 = vst [vmem:[%s194 + $0x210] sm:$0xff] %v327
                %v329 = vld [vmem:[%s193 + $0x818] sm:$0xff]
                %330 = vst [vmem:[%s194 + $0x218] sm:$0xff] %v329
                %v331 = vld [vmem:[%s193 + $0x820] sm:$0xff]
                %332 = vst [vmem:[%s194 + $0x220] sm:$0xff] %v331
                %v333 = vld [vmem:[%s193 + $0x828] sm:$0xff]
                %334 = vst [vmem:[%s194 + $0x228] sm:$0xff] %v333
                %v335 = vld [vmem:[%s193 + $0x830] sm:$0xff]
                %336 = vst [vmem:[%s194 + $0x230] sm:$0xff] %v335
                %v337 = vld [vmem:[%s193 + $0x838] sm:$0xff]
                %338 = vst [vmem:[%s194 + $0x238] sm:$0xff] %v337
                %v339 = vld [vmem:[%s193 + $0x840] sm:$0xff]
                %340 = vst [vmem:[%s194 + $0x240] sm:$0xff] %v339
                %v341 = vld [vmem:[%s193 + $0x848] sm:$0xff]
                %342 = vst [vmem:[%s194 + $0x248] sm:$0xff] %v341
                %v343 = vld [vmem:[%s193 + $0x850] sm:$0xff]
                %344 = vst [vmem:[%s194 + $0x250] sm:$0xff] %v343
                %v345 = vld [vmem:[%s193 + $0x858] sm:$0xff]
                %346 = vst [vmem:[%s194 + $0x258] sm:$0xff] %v345
                %v347 = vld [vmem:[%s193 + $0x860] sm:$0xff]
                %348 = vst [vmem:[%s194 + $0x260] sm:$0xff] %v347
                %v349 = vld [vmem:[%s193 + $0x868] sm:$0xff]
                %350 = vst [vmem:[%s194 + $0x268] sm:$0xff] %v349
                %v351 = vld [vmem:[%s193 + $0x870] sm:$0xff]
                %352 = vst [vmem:[%s194 + $0x270] sm:$0xff] %v351
                %v353 = vld [vmem:[%s193 + $0x878] sm:$0xff]
                %354 = vst [vmem:[%s194 + $0x278] sm:$0xff] %v353
                %v355 = vld [vmem:[%s193 + $0xa00] sm:$0xff]
                %356 = vst [vmem:[%s194 + $0x280] sm:$0xff] %v355
                %v357 = vld [vmem:[%s193 + $0xa08] sm:$0xff]
                %358 = vst [vmem:[%s194 + $0x288] sm:$0xff] %v357
                %v359 = vld [vmem:[%s193 + $0xa10] sm:$0xff]
                %360 = vst [vmem:[%s194 + $0x290] sm:$0xff] %v359
                %v361 = vld [vmem:[%s193 + $0xa18] sm:$0xff]
                %362 = vst [vmem:[%s194 + $0x298] sm:$0xff] %v361
                %v363 = vld [vmem:[%s193 + $0xa20] sm:$0xff]
                %364 = vst [vmem:[%s194 + $0x2a0] sm:$0xff] %v363
                %v365 = vld [vmem:[%s193 + $0xa28] sm:$0xff]
                %366 = vst [vmem:[%s194 + $0x2a8] sm:$0xff] %v365
                %v367 = vld [vmem:[%s193 + $0xa30] sm:$0xff]
                %368 = vst [vmem:[%s194 + $0x2b0] sm:$0xff] %v367
                %v369 = vld [vmem:[%s193 + $0xa38] sm:$0xff]
                %370 = vst [vmem:[%s194 + $0x2b8] sm:$0xff] %v369
                %v371 = vld [vmem:[%s193 + $0xa40] sm:$0xff]
                %372 = vst [vmem:[%s194 + $0x2c0] sm:$0xff] %v371
                %v373 = vld [vmem:[%s193 + $0xa48] sm:$0xff]
                %374 = vst [vmem:[%s194 + $0x2c8] sm:$0xff] %v373
                %v375 = vld [vmem:[%s193 + $0xa50] sm:$0xff]
                %376 = vst [vmem:[%s194 + $0x2d0] sm:$0xff] %v375
                %v377 = vld [vmem:[%s193 + $0xa58] sm:$0xff]
                %378 = vst [vmem:[%s194 + $0x2d8] sm:$0xff] %v377
                %v379 = vld [vmem:[%s193 + $0xa60] sm:$0xff]
                %380 = vst [vmem:[%s194 + $0x2e0] sm:$0xff] %v379
                %v381 = vld [vmem:[%s193 + $0xa68] sm:$0xff]
                %382 = vst [vmem:[%s194 + $0x2e8] sm:$0xff] %v381
                %v383 = vld [vmem:[%s193 + $0xa70] sm:$0xff]
                %384 = vst [vmem:[%s194 + $0x2f0] sm:$0xff] %v383
                %v385 = vld [vmem:[%s193 + $0xa78] sm:$0xff]
                %386 = vst [vmem:[%s194 + $0x2f8] sm:$0xff] %v385
                %v387 = vld [vmem:[%s193 + $0xc00] sm:$0xff]
                %388 = vst [vmem:[%s194 + $0x300] sm:$0xff] %v387
                %v389 = vld [vmem:[%s193 + $0xc08] sm:$0xff]
                %390 = vst [vmem:[%s194 + $0x308] sm:$0xff] %v389
                %v391 = vld [vmem:[%s193 + $0xc10] sm:$0xff]
                %392 = vst [vmem:[%s194 + $0x310] sm:$0xff] %v391
                %v393 = vld [vmem:[%s193 + $0xc18] sm:$0xff]
                %394 = vst [vmem:[%s194 + $0x318] sm:$0xff] %v393
                %v395 = vld [vmem:[%s193 + $0xc20] sm:$0xff]
                %396 = vst [vmem:[%s194 + $0x320] sm:$0xff] %v395
                %v397 = vld [vmem:[%s193 + $0xc28] sm:$0xff]
                %398 = vst [vmem:[%s194 + $0x328] sm:$0xff] %v397
                %v399 = vld [vmem:[%s193 + $0xc30] sm:$0xff]
                %400 = vst [vmem:[%s194 + $0x330] sm:$0xff] %v399
                %v401 = vld [vmem:[%s193 + $0xc38] sm:$0xff]
                %402 = vst [vmem:[%s194 + $0x338] sm:$0xff] %v401
                %v403 = vld [vmem:[%s193 + $0xc40] sm:$0xff]
                %404 = vst [vmem:[%s194 + $0x340] sm:$0xff] %v403
                %v405 = vld [vmem:[%s193 + $0xc48] sm:$0xff]
                %406 = vst [vmem:[%s194 + $0x348] sm:$0xff] %v405
                %v407 = vld [vmem:[%s193 + $0xc50] sm:$0xff]
                %408 = vst [vmem:[%s194 + $0x350] sm:$0xff] %v407
                %v409 = vld [vmem:[%s193 + $0xc58] sm:$0xff]
                %410 = vst [vmem:[%s194 + $0x358] sm:$0xff] %v409
                %v411 = vld [vmem:[%s193 + $0xc60] sm:$0xff]
                %412 = vst [vmem:[%s194 + $0x360] sm:$0xff] %v411
                %v413 = vld [vmem:[%s193 + $0xc68] sm:$0xff]
                %414 = vst [vmem:[%s194 + $0x368] sm:$0xff] %v413
                %v415 = vld [vmem:[%s193 + $0xc70] sm:$0xff]
                %416 = vst [vmem:[%s194 + $0x370] sm:$0xff] %v415
                %v417 = vld [vmem:[%s193 + $0xc78] sm:$0xff]
                %418 = vst [vmem:[%s194 + $0x378] sm:$0xff] %v417
                %v419 = vld [vmem:[%s193 + $0xe00] sm:$0xff]
                %420 = vst [vmem:[%s194 + $0x380] sm:$0xff] %v419
                %v421 = vld [vmem:[%s193 + $0xe08] sm:$0xff]
                %422 = vst [vmem:[%s194 + $0x388] sm:$0xff] %v421
                %v423 = vld [vmem:[%s193 + $0xe10] sm:$0xff]
                %424 = vst [vmem:[%s194 + $0x390] sm:$0xff] %v423
                %v425 = vld [vmem:[%s193 + $0xe18] sm:$0xff]
                %426 = vst [vmem:[%s194 + $0x398] sm:$0xff] %v425
                %v427 = vld [vmem:[%s193 + $0xe20] sm:$0xff]
                %428 = vst [vmem:[%s194 + $0x3a0] sm:$0xff] %v427
                %v429 = vld [vmem:[%s193 + $0xe28] sm:$0xff]
                %430 = vst [vmem:[%s194 + $0x3a8] sm:$0xff] %v429
                %v431 = vld [vmem:[%s193 + $0xe30] sm:$0xff]
                %432 = vst [vmem:[%s194 + $0x3b0] sm:$0xff] %v431
                %v433 = vld [vmem:[%s193 + $0xe38] sm:$0xff]
                %434 = vst [vmem:[%s194 + $0x3b8] sm:$0xff] %v433
                %v435 = vld [vmem:[%s193 + $0xe40] sm:$0xff]
                %436 = vst [vmem:[%s194 + $0x3c0] sm:$0xff] %v435
                %v437 = vld [vmem:[%s193 + $0xe48] sm:$0xff]
                %438 = vst [vmem:[%s194 + $0x3c8] sm:$0xff] %v437
                %v439 = vld [vmem:[%s193 + $0xe50] sm:$0xff]
                %440 = vst [vmem:[%s194 + $0x3d0] sm:$0xff] %v439
                %v441 = vld [vmem:[%s193 + $0xe58] sm:$0xff]
                %442 = vst [vmem:[%s194 + $0x3d8] sm:$0xff] %v441
                %v443 = vld [vmem:[%s193 + $0xe60] sm:$0xff]
                %444 = vst [vmem:[%s194 + $0x3e0] sm:$0xff] %v443
                %v445 = vld [vmem:[%s193 + $0xe68] sm:$0xff]
                %446 = vst [vmem:[%s194 + $0x3e8] sm:$0xff] %v445
                %v447 = vld [vmem:[%s193 + $0xe70] sm:$0xff]
                %448 = vst [vmem:[%s194 + $0x3f0] sm:$0xff] %v447
                %v449 = vld [vmem:[%s193 + $0xe78] sm:$0xff]
                %450 = vst [vmem:[%s194 + $0x3f8] sm:$0xff] %v449
                %v451 = vld [vmem:[%s193 + $0x1000] sm:$0xff]
                %452 = vst [vmem:[%s194 + $0x400] sm:$0xff] %v451
                %v453 = vld [vmem:[%s193 + $0x1008] sm:$0xff]
                %454 = vst [vmem:[%s194 + $0x408] sm:$0xff] %v453
                %v455 = vld [vmem:[%s193 + $0x1010] sm:$0xff]
                %456 = vst [vmem:[%s194 + $0x410] sm:$0xff] %v455
                %v457 = vld [vmem:[%s193 + $0x1018] sm:$0xff]
                %458 = vst [vmem:[%s194 + $0x418] sm:$0xff] %v457
                %v459 = vld [vmem:[%s193 + $0x1020] sm:$0xff]
                %460 = vst [vmem:[%s194 + $0x420] sm:$0xff] %v459
                %v461 = vld [vmem:[%s193 + $0x1028] sm:$0xff]
                %462 = vst [vmem:[%s194 + $0x428] sm:$0xff] %v461
                %v463 = vld [vmem:[%s193 + $0x1030] sm:$0xff]
                %464 = vst [vmem:[%s194 + $0x430] sm:$0xff] %v463
                %v465 = vld [vmem:[%s193 + $0x1038] sm:$0xff]
                %466 = vst [vmem:[%s194 + $0x438] sm:$0xff] %v465
                %v467 = vld [vmem:[%s193 + $0x1040] sm:$0xff]
                %468 = vst [vmem:[%s194 + $0x440] sm:$0xff] %v467
                %v469 = vld [vmem:[%s193 + $0x1048] sm:$0xff]
                %470 = vst [vmem:[%s194 + $0x448] sm:$0xff] %v469
                %v471 = vld [vmem:[%s193 + $0x1050] sm:$0xff]
                %472 = vst [vmem:[%s194 + $0x450] sm:$0xff] %v471
                %v473 = vld [vmem:[%s193 + $0x1058] sm:$0xff]
                %474 = vst [vmem:[%s194 + $0x458] sm:$0xff] %v473
                %v475 = vld [vmem:[%s193 + $0x1060] sm:$0xff]
                %476 = vst [vmem:[%s194 + $0x460] sm:$0xff] %v475
                %v477 = vld [vmem:[%s193 + $0x1068] sm:$0xff]
                %478 = vst [vmem:[%s194 + $0x468] sm:$0xff] %v477
                %v479 = vld [vmem:[%s193 + $0x1070] sm:$0xff]
                %480 = vst [vmem:[%s194 + $0x470] sm:$0xff] %v479
                %v481 = vld [vmem:[%s193 + $0x1078] sm:$0xff]
                %482 = vst [vmem:[%s194 + $0x478] sm:$0xff] %v481
                %v483 = vld [vmem:[%s193 + $0x1200] sm:$0xff]
                %484 = vst [vmem:[%s194 + $0x480] sm:$0xff] %v483
                %v485 = vld [vmem:[%s193 + $0x1208] sm:$0xff]
                %486 = vst [vmem:[%s194 + $0x488] sm:$0xff] %v485
                %v487 = vld [vmem:[%s193 + $0x1210] sm:$0xff]
                %488 = vst [vmem:[%s194 + $0x490] sm:$0xff] %v487
                %v489 = vld [vmem:[%s193 + $0x1218] sm:$0xff]
                %490 = vst [vmem:[%s194 + $0x498] sm:$0xff] %v489
                %v491 = vld [vmem:[%s193 + $0x1220] sm:$0xff]
                %492 = vst [vmem:[%s194 + $0x4a0] sm:$0xff] %v491
                %v493 = vld [vmem:[%s193 + $0x1228] sm:$0xff]
                %494 = vst [vmem:[%s194 + $0x4a8] sm:$0xff] %v493
                %v495 = vld [vmem:[%s193 + $0x1230] sm:$0xff]
                %496 = vst [vmem:[%s194 + $0x4b0] sm:$0xff] %v495
                %v497 = vld [vmem:[%s193 + $0x1238] sm:$0xff]
                %498 = vst [vmem:[%s194 + $0x4b8] sm:$0xff] %v497
                %v499 = vld [vmem:[%s193 + $0x1240] sm:$0xff]
                %500 = vst [vmem:[%s194 + $0x4c0] sm:$0xff] %v499
                %v501 = vld [vmem:[%s193 + $0x1248] sm:$0xff]
                %502 = vst [vmem:[%s194 + $0x4c8] sm:$0xff] %v501
                %v503 = vld [vmem:[%s193 + $0x1250] sm:$0xff]
                %504 = vst [vmem:[%s194 + $0x4d0] sm:$0xff] %v503
                %v505 = vld [vmem:[%s193 + $0x1258] sm:$0xff]
                %506 = vst [vmem:[%s194 + $0x4d8] sm:$0xff] %v505
                %v507 = vld [vmem:[%s193 + $0x1260] sm:$0xff]
                %508 = vst [vmem:[%s194 + $0x4e0] sm:$0xff] %v507
                %v509 = vld [vmem:[%s193 + $0x1268] sm:$0xff]
                %510 = vst [vmem:[%s194 + $0x4e8] sm:$0xff] %v509
                %v511 = vld [vmem:[%s193 + $0x1270] sm:$0xff]
                %512 = vst [vmem:[%s194 + $0x4f0] sm:$0xff] %v511
                %v513 = vld [vmem:[%s193 + $0x1278] sm:$0xff]
                %514 = vst [vmem:[%s194 + $0x4f8] sm:$0xff] %v513
                %v515 = vld [vmem:[%s193 + $0x1400] sm:$0xff]
                %516 = vst [vmem:[%s194 + $0x500] sm:$0xff] %v515
                %v517 = vld [vmem:[%s193 + $0x1408] sm:$0xff]
                %518 = vst [vmem:[%s194 + $0x508] sm:$0xff] %v517
                %v519 = vld [vmem:[%s193 + $0x1410] sm:$0xff]
                %520 = vst [vmem:[%s194 + $0x510] sm:$0xff] %v519
                %v521 = vld [vmem:[%s193 + $0x1418] sm:$0xff]
                %522 = vst [vmem:[%s194 + $0x518] sm:$0xff] %v521
                %v523 = vld [vmem:[%s193 + $0x1420] sm:$0xff]
                %524 = vst [vmem:[%s194 + $0x520] sm:$0xff] %v523
                %v525 = vld [vmem:[%s193 + $0x1428] sm:$0xff]
                %526 = vst [vmem:[%s194 + $0x528] sm:$0xff] %v525
                %v527 = vld [vmem:[%s193 + $0x1430] sm:$0xff]
                %528 = vst [vmem:[%s194 + $0x530] sm:$0xff] %v527
                %v529 = vld [vmem:[%s193 + $0x1438] sm:$0xff]
                %530 = vst [vmem:[%s194 + $0x538] sm:$0xff] %v529
                %v531 = vld [vmem:[%s193 + $0x1440] sm:$0xff]
                %532 = vst [vmem:[%s194 + $0x540] sm:$0xff] %v531
                %v533 = vld [vmem:[%s193 + $0x1448] sm:$0xff]
                %534 = vst [vmem:[%s194 + $0x548] sm:$0xff] %v533
                %v535 = vld [vmem:[%s193 + $0x1450] sm:$0xff]
                %536 = vst [vmem:[%s194 + $0x550] sm:$0xff] %v535
                %v537 = vld [vmem:[%s193 + $0x1458] sm:$0xff]
                %538 = vst [vmem:[%s194 + $0x558] sm:$0xff] %v537
                %v539 = vld [vmem:[%s193 + $0x1460] sm:$0xff]
                %540 = vst [vmem:[%s194 + $0x560] sm:$0xff] %v539
                %v541 = vld [vmem:[%s193 + $0x1468] sm:$0xff]
                %542 = vst [vmem:[%s194 + $0x568] sm:$0xff] %v541
                %v543 = vld [vmem:[%s193 + $0x1470] sm:$0xff]
                %544 = vst [vmem:[%s194 + $0x570] sm:$0xff] %v543
                %v545 = vld [vmem:[%s193 + $0x1478] sm:$0xff]
                %546 = vst [vmem:[%s194 + $0x578] sm:$0xff] %v545
                %v547 = vld [vmem:[%s193 + $0x1600] sm:$0xff]
                %548 = vst [vmem:[%s194 + $0x580] sm:$0xff] %v547
                %v549 = vld [vmem:[%s193 + $0x1608] sm:$0xff]
                %550 = vst [vmem:[%s194 + $0x588] sm:$0xff] %v549
                %v551 = vld [vmem:[%s193 + $0x1610] sm:$0xff]
                %552 = vst [vmem:[%s194 + $0x590] sm:$0xff] %v551
                %v553 = vld [vmem:[%s193 + $0x1618] sm:$0xff]
                %554 = vst [vmem:[%s194 + $0x598] sm:$0xff] %v553
                %v555 = vld [vmem:[%s193 + $0x1620] sm:$0xff]
                %556 = vst [vmem:[%s194 + $0x5a0] sm:$0xff] %v555
                %v557 = vld [vmem:[%s193 + $0x1628] sm:$0xff]
                %558 = vst [vmem:[%s194 + $0x5a8] sm:$0xff] %v557
                %v559 = vld [vmem:[%s193 + $0x1630] sm:$0xff]
                %560 = vst [vmem:[%s194 + $0x5b0] sm:$0xff] %v559
                %v561 = vld [vmem:[%s193 + $0x1638] sm:$0xff]
                %562 = vst [vmem:[%s194 + $0x5b8] sm:$0xff] %v561
                %v563 = vld [vmem:[%s193 + $0x1640] sm:$0xff]
                %564 = vst [vmem:[%s194 + $0x5c0] sm:$0xff] %v563
                %v565 = vld [vmem:[%s193 + $0x1648] sm:$0xff]
                %566 = vst [vmem:[%s194 + $0x5c8] sm:$0xff] %v565
                %v567 = vld [vmem:[%s193 + $0x1650] sm:$0xff]
                %568 = vst [vmem:[%s194 + $0x5d0] sm:$0xff] %v567
                %v569 = vld [vmem:[%s193 + $0x1658] sm:$0xff]
                %570 = vst [vmem:[%s194 + $0x5d8] sm:$0xff] %v569
                %v571 = vld [vmem:[%s193 + $0x1660] sm:$0xff]
                %572 = vst [vmem:[%s194 + $0x5e0] sm:$0xff] %v571
                %v573 = vld [vmem:[%s193 + $0x1668] sm:$0xff]
                %574 = vst [vmem:[%s194 + $0x5e8] sm:$0xff] %v573
                %v575 = vld [vmem:[%s193 + $0x1670] sm:$0xff]
                %576 = vst [vmem:[%s194 + $0x5f0] sm:$0xff] %v575
                %v577 = vld [vmem:[%s193 + $0x1678] sm:$0xff]
                %578 = vst [vmem:[%s194 + $0x5f8] sm:$0xff] %v577
                %v579 = vld [vmem:[%s193 + $0x1800] sm:$0xff]
                %580 = vst [vmem:[%s194 + $0x600] sm:$0xff] %v579
                %v581 = vld [vmem:[%s193 + $0x1808] sm:$0xff]
                %582 = vst [vmem:[%s194 + $0x608] sm:$0xff] %v581
                %v583 = vld [vmem:[%s193 + $0x1810] sm:$0xff]
                %584 = vst [vmem:[%s194 + $0x610] sm:$0xff] %v583
                %v585 = vld [vmem:[%s193 + $0x1818] sm:$0xff]
                %586 = vst [vmem:[%s194 + $0x618] sm:$0xff] %v585
                %v587 = vld [vmem:[%s193 + $0x1820] sm:$0xff]
                %588 = vst [vmem:[%s194 + $0x620] sm:$0xff] %v587
                %v589 = vld [vmem:[%s193 + $0x1828] sm:$0xff]
                %590 = vst [vmem:[%s194 + $0x628] sm:$0xff] %v589
                %v591 = vld [vmem:[%s193 + $0x1830] sm:$0xff]
                %592 = vst [vmem:[%s194 + $0x630] sm:$0xff] %v591
                %v593 = vld [vmem:[%s193 + $0x1838] sm:$0xff]
                %594 = vst [vmem:[%s194 + $0x638] sm:$0xff] %v593
                %v595 = vld [vmem:[%s193 + $0x1840] sm:$0xff]
                %596 = vst [vmem:[%s194 + $0x640] sm:$0xff] %v595
                %v597 = vld [vmem:[%s193 + $0x1848] sm:$0xff]
                %598 = vst [vmem:[%s194 + $0x648] sm:$0xff] %v597
                %v599 = vld [vmem:[%s193 + $0x1850] sm:$0xff]
                %600 = vst [vmem:[%s194 + $0x650] sm:$0xff] %v599
                %v601 = vld [vmem:[%s193 + $0x1858] sm:$0xff]
                %602 = vst [vmem:[%s194 + $0x658] sm:$0xff] %v601
                %v603 = vld [vmem:[%s193 + $0x1860] sm:$0xff]
                %604 = vst [vmem:[%s194 + $0x660] sm:$0xff] %v603
                %v605 = vld [vmem:[%s193 + $0x1868] sm:$0xff]
                %606 = vst [vmem:[%s194 + $0x668] sm:$0xff] %v605
                %v607 = vld [vmem:[%s193 + $0x1870] sm:$0xff]
                %608 = vst [vmem:[%s194 + $0x670] sm:$0xff] %v607
                %v609 = vld [vmem:[%s193 + $0x1878] sm:$0xff]
                %610 = vst [vmem:[%s194 + $0x678] sm:$0xff] %v609
                %v611 = vld [vmem:[%s193 + $0x1a00] sm:$0xff]
                %612 = vst [vmem:[%s194 + $0x680] sm:$0xff] %v611
                %v613 = vld [vmem:[%s193 + $0x1a08] sm:$0xff]
                %614 = vst [vmem:[%s194 + $0x688] sm:$0xff] %v613
                %v615 = vld [vmem:[%s193 + $0x1a10] sm:$0xff]
                %616 = vst [vmem:[%s194 + $0x690] sm:$0xff] %v615
                %v617 = vld [vmem:[%s193 + $0x1a18] sm:$0xff]
                %618 = vst [vmem:[%s194 + $0x698] sm:$0xff] %v617
                %v619 = vld [vmem:[%s193 + $0x1a20] sm:$0xff]
                %620 = vst [vmem:[%s194 + $0x6a0] sm:$0xff] %v619
                %v621 = vld [vmem:[%s193 + $0x1a28] sm:$0xff]
                %622 = vst [vmem:[%s194 + $0x6a8] sm:$0xff] %v621
                %v623 = vld [vmem:[%s193 + $0x1a30] sm:$0xff]
                %624 = vst [vmem:[%s194 + $0x6b0] sm:$0xff] %v623
                %v625 = vld [vmem:[%s193 + $0x1a38] sm:$0xff]
                %626 = vst [vmem:[%s194 + $0x6b8] sm:$0xff] %v625
                %v627 = vld [vmem:[%s193 + $0x1a40] sm:$0xff]
                %628 = vst [vmem:[%s194 + $0x6c0] sm:$0xff] %v627
                %v629 = vld [vmem:[%s193 + $0x1a48] sm:$0xff]
                %630 = vst [vmem:[%s194 + $0x6c8] sm:$0xff] %v629
                %v631 = vld [vmem:[%s193 + $0x1a50] sm:$0xff]
                %632 = vst [vmem:[%s194 + $0x6d0] sm:$0xff] %v631
                %v633 = vld [vmem:[%s193 + $0x1a58] sm:$0xff]
                %634 = vst [vmem:[%s194 + $0x6d8] sm:$0xff] %v633
                %v635 = vld [vmem:[%s193 + $0x1a60] sm:$0xff]
                %636 = vst [vmem:[%s194 + $0x6e0] sm:$0xff] %v635
                %v637 = vld [vmem:[%s193 + $0x1a68] sm:$0xff]
                %638 = vst [vmem:[%s194 + $0x6e8] sm:$0xff] %v637
                %v639 = vld [vmem:[%s193 + $0x1a70] sm:$0xff]
                %640 = vst [vmem:[%s194 + $0x6f0] sm:$0xff] %v639
                %v641 = vld [vmem:[%s193 + $0x1a78] sm:$0xff]
                %642 = vst [vmem:[%s194 + $0x6f8] sm:$0xff] %v641
                %v643 = vld [vmem:[%s193 + $0x1c00] sm:$0xff]
                %644 = vst [vmem:[%s194 + $0x700] sm:$0xff] %v643
                %v645 = vld [vmem:[%s193 + $0x1c08] sm:$0xff]
                %646 = vst [vmem:[%s194 + $0x708] sm:$0xff] %v645
                %v647 = vld [vmem:[%s193 + $0x1c10] sm:$0xff]
                %648 = vst [vmem:[%s194 + $0x710] sm:$0xff] %v647
                %v649 = vld [vmem:[%s193 + $0x1c18] sm:$0xff]
                %650 = vst [vmem:[%s194 + $0x718] sm:$0xff] %v649
                %v651 = vld [vmem:[%s193 + $0x1c20] sm:$0xff]
                %652 = vst [vmem:[%s194 + $0x720] sm:$0xff] %v651
                %v653 = vld [vmem:[%s193 + $0x1c28] sm:$0xff]
                %654 = vst [vmem:[%s194 + $0x728] sm:$0xff] %v653
                %v655 = vld [vmem:[%s193 + $0x1c30] sm:$0xff]
                %656 = vst [vmem:[%s194 + $0x730] sm:$0xff] %v655
                %v657 = vld [vmem:[%s193 + $0x1c38] sm:$0xff]
                %658 = vst [vmem:[%s194 + $0x738] sm:$0xff] %v657
                %v659 = vld [vmem:[%s193 + $0x1c40] sm:$0xff]
                %660 = vst [vmem:[%s194 + $0x740] sm:$0xff] %v659
                %v661 = vld [vmem:[%s193 + $0x1c48] sm:$0xff]
                %662 = vst [vmem:[%s194 + $0x748] sm:$0xff] %v661
                %v663 = vld [vmem:[%s193 + $0x1c50] sm:$0xff]
                %664 = vst [vmem:[%s194 + $0x750] sm:$0xff] %v663
                %v665 = vld [vmem:[%s193 + $0x1c58] sm:$0xff]
                %666 = vst [vmem:[%s194 + $0x758] sm:$0xff] %v665
                %v667 = vld [vmem:[%s193 + $0x1c60] sm:$0xff]
                %668 = vst [vmem:[%s194 + $0x760] sm:$0xff] %v667
                %v669 = vld [vmem:[%s193 + $0x1c68] sm:$0xff]
                %670 = vst [vmem:[%s194 + $0x768] sm:$0xff] %v669
                %v671 = vld [vmem:[%s193 + $0x1c70] sm:$0xff]
                %672 = vst [vmem:[%s194 + $0x770] sm:$0xff] %v671
                %v673 = vld [vmem:[%s193 + $0x1c78] sm:$0xff]
                %674 = vst [vmem:[%s194 + $0x778] sm:$0xff] %v673
                %v675 = vld [vmem:[%s193 + $0x1e00] sm:$0xff]
                %676 = vst [vmem:[%s194 + $0x780] sm:$0xff] %v675
                %v677 = vld [vmem:[%s193 + $0x1e08] sm:$0xff]
                %678 = vst [vmem:[%s194 + $0x788] sm:$0xff] %v677
                %v679 = vld [vmem:[%s193 + $0x1e10] sm:$0xff]
                %680 = vst [vmem:[%s194 + $0x790] sm:$0xff] %v679
                %v681 = vld [vmem:[%s193 + $0x1e18] sm:$0xff]
                %682 = vst [vmem:[%s194 + $0x798] sm:$0xff] %v681
                %v683 = vld [vmem:[%s193 + $0x1e20] sm:$0xff]
                %684 = vst [vmem:[%s194 + $0x7a0] sm:$0xff] %v683
                %v685 = vld [vmem:[%s193 + $0x1e28] sm:$0xff]
                %686 = vst [vmem:[%s194 + $0x7a8] sm:$0xff] %v685
                %v687 = vld [vmem:[%s193 + $0x1e30] sm:$0xff]
                %688 = vst [vmem:[%s194 + $0x7b0] sm:$0xff] %v687
                %v689 = vld [vmem:[%s193 + $0x1e38] sm:$0xff]
                %690 = vst [vmem:[%s194 + $0x7b8] sm:$0xff] %v689
                %v691 = vld [vmem:[%s193 + $0x1e40] sm:$0xff]
                %692 = vst [vmem:[%s194 + $0x7c0] sm:$0xff] %v691
                %v693 = vld [vmem:[%s193 + $0x1e48] sm:$0xff]
                %694 = vst [vmem:[%s194 + $0x7c8] sm:$0xff] %v693
                %v695 = vld [vmem:[%s193 + $0x1e50] sm:$0xff]
                %696 = vst [vmem:[%s194 + $0x7d0] sm:$0xff] %v695
                %v697 = vld [vmem:[%s193 + $0x1e58] sm:$0xff]
                %698 = vst [vmem:[%s194 + $0x7d8] sm:$0xff] %v697
                %v699 = vld [vmem:[%s193 + $0x1e60] sm:$0xff]
                %700 = vst [vmem:[%s194 + $0x7e0] sm:$0xff] %v699
                %v701 = vld [vmem:[%s193 + $0x1e68] sm:$0xff]
                %702 = vst [vmem:[%s194 + $0x7e8] sm:$0xff] %v701
                %v703 = vld [vmem:[%s193 + $0x1e70] sm:$0xff]
                %704 = vst [vmem:[%s194 + $0x7f0] sm:$0xff] %v703
                %v705 = vld [vmem:[%s193 + $0x1e78] sm:$0xff]
                %706 = vst [vmem:[%s194 + $0x7f8] sm:$0xff] %v705
                %v707 = vld [vmem:[%s193 + $0x2000] sm:$0xff]
                %708 = vst [vmem:[%s194 + $0x800] sm:$0xff] %v707
                %v709 = vld [vmem:[%s193 + $0x2008] sm:$0xff]
                %710 = vst [vmem:[%s194 + $0x808] sm:$0xff] %v709
                %v711 = vld [vmem:[%s193 + $0x2010] sm:$0xff]
                %712 = vst [vmem:[%s194 + $0x810] sm:$0xff] %v711
                %v713 = vld [vmem:[%s193 + $0x2018] sm:$0xff]
                %714 = vst [vmem:[%s194 + $0x818] sm:$0xff] %v713
                %v715 = vld [vmem:[%s193 + $0x2020] sm:$0xff]
                %716 = vst [vmem:[%s194 + $0x820] sm:$0xff] %v715
                %v717 = vld [vmem:[%s193 + $0x2028] sm:$0xff]
                %718 = vst [vmem:[%s194 + $0x828] sm:$0xff] %v717
                %v719 = vld [vmem:[%s193 + $0x2030] sm:$0xff]
                %720 = vst [vmem:[%s194 + $0x830] sm:$0xff] %v719
                %v721 = vld [vmem:[%s193 + $0x2038] sm:$0xff]
                %722 = vst [vmem:[%s194 + $0x838] sm:$0xff] %v721
                %v723 = vld [vmem:[%s193 + $0x2040] sm:$0xff]
                %724 = vst [vmem:[%s194 + $0x840] sm:$0xff] %v723
                %v725 = vld [vmem:[%s193 + $0x2048] sm:$0xff]
                %726 = vst [vmem:[%s194 + $0x848] sm:$0xff] %v725
                %v727 = vld [vmem:[%s193 + $0x2050] sm:$0xff]
                %728 = vst [vmem:[%s194 + $0x850] sm:$0xff] %v727
                %v729 = vld [vmem:[%s193 + $0x2058] sm:$0xff]
                %730 = vst [vmem:[%s194 + $0x858] sm:$0xff] %v729
                %v731 = vld [vmem:[%s193 + $0x2060] sm:$0xff]
                %732 = vst [vmem:[%s194 + $0x860] sm:$0xff] %v731
                %v733 = vld [vmem:[%s193 + $0x2068] sm:$0xff]
                %734 = vst [vmem:[%s194 + $0x868] sm:$0xff] %v733
                %v735 = vld [vmem:[%s193 + $0x2070] sm:$0xff]
                %736 = vst [vmem:[%s194 + $0x870] sm:$0xff] %v735
                %v737 = vld [vmem:[%s193 + $0x2078] sm:$0xff]
                %738 = vst [vmem:[%s194 + $0x878] sm:$0xff] %v737
                %v739 = vld [vmem:[%s193 + $0x2200] sm:$0xff]
                %740 = vst [vmem:[%s194 + $0x880] sm:$0xff] %v739
                %v741 = vld [vmem:[%s193 + $0x2208] sm:$0xff]
                %742 = vst [vmem:[%s194 + $0x888] sm:$0xff] %v741
                %v743 = vld [vmem:[%s193 + $0x2210] sm:$0xff]
                %744 = vst [vmem:[%s194 + $0x890] sm:$0xff] %v743
                %v745 = vld [vmem:[%s193 + $0x2218] sm:$0xff]
                %746 = vst [vmem:[%s194 + $0x898] sm:$0xff] %v745
                %v747 = vld [vmem:[%s193 + $0x2220] sm:$0xff]
                %748 = vst [vmem:[%s194 + $0x8a0] sm:$0xff] %v747
                %v749 = vld [vmem:[%s193 + $0x2228] sm:$0xff]
                %750 = vst [vmem:[%s194 + $0x8a8] sm:$0xff] %v749
                %v751 = vld [vmem:[%s193 + $0x2230] sm:$0xff]
                %752 = vst [vmem:[%s194 + $0x8b0] sm:$0xff] %v751
                %v753 = vld [vmem:[%s193 + $0x2238] sm:$0xff]
                %754 = vst [vmem:[%s194 + $0x8b8] sm:$0xff] %v753
                %v755 = vld [vmem:[%s193 + $0x2240] sm:$0xff]
                %756 = vst [vmem:[%s194 + $0x8c0] sm:$0xff] %v755
                %v757 = vld [vmem:[%s193 + $0x2248] sm:$0xff]
                %758 = vst [vmem:[%s194 + $0x8c8] sm:$0xff] %v757
                %v759 = vld [vmem:[%s193 + $0x2250] sm:$0xff]
                %760 = vst [vmem:[%s194 + $0x8d0] sm:$0xff] %v759
                %v761 = vld [vmem:[%s193 + $0x2258] sm:$0xff]
                %762 = vst [vmem:[%s194 + $0x8d8] sm:$0xff] %v761
                %v763 = vld [vmem:[%s193 + $0x2260] sm:$0xff]
                %764 = vst [vmem:[%s194 + $0x8e0] sm:$0xff] %v763
                %v765 = vld [vmem:[%s193 + $0x2268] sm:$0xff]
                %766 = vst [vmem:[%s194 + $0x8e8] sm:$0xff] %v765
                %v767 = vld [vmem:[%s193 + $0x2270] sm:$0xff]
                %768 = vst [vmem:[%s194 + $0x8f0] sm:$0xff] %v767
                %v769 = vld [vmem:[%s193 + $0x2278] sm:$0xff]
                %770 = vst [vmem:[%s194 + $0x8f8] sm:$0xff] %v769
                %v771 = vld [vmem:[%s193 + $0x2400] sm:$0xff]
                %772 = vst [vmem:[%s194 + $0x900] sm:$0xff] %v771
                %v773 = vld [vmem:[%s193 + $0x2408] sm:$0xff]
                %774 = vst [vmem:[%s194 + $0x908] sm:$0xff] %v773
                %v775 = vld [vmem:[%s193 + $0x2410] sm:$0xff]
                %776 = vst [vmem:[%s194 + $0x910] sm:$0xff] %v775
                %v777 = vld [vmem:[%s193 + $0x2418] sm:$0xff]
                %778 = vst [vmem:[%s194 + $0x918] sm:$0xff] %v777
                %v779 = vld [vmem:[%s193 + $0x2420] sm:$0xff]
                %780 = vst [vmem:[%s194 + $0x920] sm:$0xff] %v779
                %v781 = vld [vmem:[%s193 + $0x2428] sm:$0xff]
                %782 = vst [vmem:[%s194 + $0x928] sm:$0xff] %v781
                %v783 = vld [vmem:[%s193 + $0x2430] sm:$0xff]
                %784 = vst [vmem:[%s194 + $0x930] sm:$0xff] %v783
                %v785 = vld [vmem:[%s193 + $0x2438] sm:$0xff]
                %786 = vst [vmem:[%s194 + $0x938] sm:$0xff] %v785
                %v787 = vld [vmem:[%s193 + $0x2440] sm:$0xff]
                %788 = vst [vmem:[%s194 + $0x940] sm:$0xff] %v787
                %v789 = vld [vmem:[%s193 + $0x2448] sm:$0xff]
                %790 = vst [vmem:[%s194 + $0x948] sm:$0xff] %v789
                %v791 = vld [vmem:[%s193 + $0x2450] sm:$0xff]
                %792 = vst [vmem:[%s194 + $0x950] sm:$0xff] %v791
                %v793 = vld [vmem:[%s193 + $0x2458] sm:$0xff]
                %794 = vst [vmem:[%s194 + $0x958] sm:$0xff] %v793
                %v795 = vld [vmem:[%s193 + $0x2460] sm:$0xff]
                %796 = vst [vmem:[%s194 + $0x960] sm:$0xff] %v795
                %v797 = vld [vmem:[%s193 + $0x2468] sm:$0xff]
                %798 = vst [vmem:[%s194 + $0x968] sm:$0xff] %v797
                %v799 = vld [vmem:[%s193 + $0x2470] sm:$0xff]
                %800 = vst [vmem:[%s194 + $0x970] sm:$0xff] %v799
                %v801 = vld [vmem:[%s193 + $0x2478] sm:$0xff]
                %802 = vst [vmem:[%s194 + $0x978] sm:$0xff] %v801
                %v803 = vld [vmem:[%s193 + $0x2600] sm:$0xff]
                %804 = vst [vmem:[%s194 + $0x980] sm:$0xff] %v803
                %v805 = vld [vmem:[%s193 + $0x2608] sm:$0xff]
                %806 = vst [vmem:[%s194 + $0x988] sm:$0xff] %v805
                %v807 = vld [vmem:[%s193 + $0x2610] sm:$0xff]
                %808 = vst [vmem:[%s194 + $0x990] sm:$0xff] %v807
                %v809 = vld [vmem:[%s193 + $0x2618] sm:$0xff]
                %810 = vst [vmem:[%s194 + $0x998] sm:$0xff] %v809
                %v811 = vld [vmem:[%s193 + $0x2620] sm:$0xff]
                %812 = vst [vmem:[%s194 + $0x9a0] sm:$0xff] %v811
                %v813 = vld [vmem:[%s193 + $0x2628] sm:$0xff]
                %814 = vst [vmem:[%s194 + $0x9a8] sm:$0xff] %v813
                %v815 = vld [vmem:[%s193 + $0x2630] sm:$0xff]
                %816 = vst [vmem:[%s194 + $0x9b0] sm:$0xff] %v815
                %v817 = vld [vmem:[%s193 + $0x2638] sm:$0xff]
                %818 = vst [vmem:[%s194 + $0x9b8] sm:$0xff] %v817
                %v819 = vld [vmem:[%s193 + $0x2640] sm:$0xff]
                %820 = vst [vmem:[%s194 + $0x9c0] sm:$0xff] %v819
                %v821 = vld [vmem:[%s193 + $0x2648] sm:$0xff]
                %822 = vst [vmem:[%s194 + $0x9c8] sm:$0xff] %v821
                %v823 = vld [vmem:[%s193 + $0x2650] sm:$0xff]
                %824 = vst [vmem:[%s194 + $0x9d0] sm:$0xff] %v823
                %v825 = vld [vmem:[%s193 + $0x2658] sm:$0xff]
                %826 = vst [vmem:[%s194 + $0x9d8] sm:$0xff] %v825
                %v827 = vld [vmem:[%s193 + $0x2660] sm:$0xff]
                %828 = vst [vmem:[%s194 + $0x9e0] sm:$0xff] %v827
                %v829 = vld [vmem:[%s193 + $0x2668] sm:$0xff]
                %830 = vst [vmem:[%s194 + $0x9e8] sm:$0xff] %v829
                %v831 = vld [vmem:[%s193 + $0x2670] sm:$0xff]
                %832 = vst [vmem:[%s194 + $0x9f0] sm:$0xff] %v831
                %v833 = vld [vmem:[%s193 + $0x2678] sm:$0xff]
                %834 = vst [vmem:[%s194 + $0x9f8] sm:$0xff] %v833
                %v835 = vld [vmem:[%s193 + $0x2800] sm:$0xff]
                %836 = vst [vmem:[%s194 + $0xa00] sm:$0xff] %v835
                %v837 = vld [vmem:[%s193 + $0x2808] sm:$0xff]
                %838 = vst [vmem:[%s194 + $0xa08] sm:$0xff] %v837
                %v839 = vld [vmem:[%s193 + $0x2810] sm:$0xff]
                %840 = vst [vmem:[%s194 + $0xa10] sm:$0xff] %v839
                %v841 = vld [vmem:[%s193 + $0x2818] sm:$0xff]
                %842 = vst [vmem:[%s194 + $0xa18] sm:$0xff] %v841
                %v843 = vld [vmem:[%s193 + $0x2820] sm:$0xff]
                %844 = vst [vmem:[%s194 + $0xa20] sm:$0xff] %v843
                %v845 = vld [vmem:[%s193 + $0x2828] sm:$0xff]
                %846 = vst [vmem:[%s194 + $0xa28] sm:$0xff] %v845
                %v847 = vld [vmem:[%s193 + $0x2830] sm:$0xff]
                %848 = vst [vmem:[%s194 + $0xa30] sm:$0xff] %v847
                %v849 = vld [vmem:[%s193 + $0x2838] sm:$0xff]
                %850 = vst [vmem:[%s194 + $0xa38] sm:$0xff] %v849
                %v851 = vld [vmem:[%s193 + $0x2840] sm:$0xff]
                %852 = vst [vmem:[%s194 + $0xa40] sm:$0xff] %v851
                %v853 = vld [vmem:[%s193 + $0x2848] sm:$0xff]
                %854 = vst [vmem:[%s194 + $0xa48] sm:$0xff] %v853
                %v855 = vld [vmem:[%s193 + $0x2850] sm:$0xff]
                %856 = vst [vmem:[%s194 + $0xa50] sm:$0xff] %v855
                %v857 = vld [vmem:[%s193 + $0x2858] sm:$0xff]
                %858 = vst [vmem:[%s194 + $0xa58] sm:$0xff] %v857
                %v859 = vld [vmem:[%s193 + $0x2860] sm:$0xff]
                %860 = vst [vmem:[%s194 + $0xa60] sm:$0xff] %v859
                %v861 = vld [vmem:[%s193 + $0x2868] sm:$0xff]
                %862 = vst [vmem:[%s194 + $0xa68] sm:$0xff] %v861
                %v863 = vld [vmem:[%s193 + $0x2870] sm:$0xff]
                %864 = vst [vmem:[%s194 + $0xa70] sm:$0xff] %v863
                %v865 = vld [vmem:[%s193 + $0x2878] sm:$0xff]
                %866 = vst [vmem:[%s194 + $0xa78] sm:$0xff] %v865
                %v867 = vld [vmem:[%s193 + $0x2a00] sm:$0xff]
                %868 = vst [vmem:[%s194 + $0xa80] sm:$0xff] %v867
                %v869 = vld [vmem:[%s193 + $0x2a08] sm:$0xff]
                %870 = vst [vmem:[%s194 + $0xa88] sm:$0xff] %v869
                %v871 = vld [vmem:[%s193 + $0x2a10] sm:$0xff]
                %872 = vst [vmem:[%s194 + $0xa90] sm:$0xff] %v871
                %v873 = vld [vmem:[%s193 + $0x2a18] sm:$0xff]
                %874 = vst [vmem:[%s194 + $0xa98] sm:$0xff] %v873
                %v875 = vld [vmem:[%s193 + $0x2a20] sm:$0xff]
                %876 = vst [vmem:[%s194 + $0xaa0] sm:$0xff] %v875
                %v877 = vld [vmem:[%s193 + $0x2a28] sm:$0xff]
                %878 = vst [vmem:[%s194 + $0xaa8] sm:$0xff] %v877
                %v879 = vld [vmem:[%s193 + $0x2a30] sm:$0xff]
                %880 = vst [vmem:[%s194 + $0xab0] sm:$0xff] %v879
                %v881 = vld [vmem:[%s193 + $0x2a38] sm:$0xff]
                %882 = vst [vmem:[%s194 + $0xab8] sm:$0xff] %v881
                %v883 = vld [vmem:[%s193 + $0x2a40] sm:$0xff]
                %884 = vst [vmem:[%s194 + $0xac0] sm:$0xff] %v883
                %v885 = vld [vmem:[%s193 + $0x2a48] sm:$0xff]
                %886 = vst [vmem:[%s194 + $0xac8] sm:$0xff] %v885
                %v887 = vld [vmem:[%s193 + $0x2a50] sm:$0xff]
                %888 = vst [vmem:[%s194 + $0xad0] sm:$0xff] %v887
                %v889 = vld [vmem:[%s193 + $0x2a58] sm:$0xff]
                %890 = vst [vmem:[%s194 + $0xad8] sm:$0xff] %v889
                %v891 = vld [vmem:[%s193 + $0x2a60] sm:$0xff]
                %892 = vst [vmem:[%s194 + $0xae0] sm:$0xff] %v891
                %v893 = vld [vmem:[%s193 + $0x2a68] sm:$0xff]
                %894 = vst [vmem:[%s194 + $0xae8] sm:$0xff] %v893
                %v895 = vld [vmem:[%s193 + $0x2a70] sm:$0xff]
                %896 = vst [vmem:[%s194 + $0xaf0] sm:$0xff] %v895
                %v897 = vld [vmem:[%s193 + $0x2a78] sm:$0xff]
                %898 = vst [vmem:[%s194 + $0xaf8] sm:$0xff] %v897
                %v899 = vld [vmem:[%s193 + $0x2c00] sm:$0xff]
                %900 = vst [vmem:[%s194 + $0xb00] sm:$0xff] %v899
                %v901 = vld [vmem:[%s193 + $0x2c08] sm:$0xff]
                %902 = vst [vmem:[%s194 + $0xb08] sm:$0xff] %v901
                %v903 = vld [vmem:[%s193 + $0x2c10] sm:$0xff]
                %904 = vst [vmem:[%s194 + $0xb10] sm:$0xff] %v903
                %v905 = vld [vmem:[%s193 + $0x2c18] sm:$0xff]
                %906 = vst [vmem:[%s194 + $0xb18] sm:$0xff] %v905
                %v907 = vld [vmem:[%s193 + $0x2c20] sm:$0xff]
                %908 = vst [vmem:[%s194 + $0xb20] sm:$0xff] %v907
                %v909 = vld [vmem:[%s193 + $0x2c28] sm:$0xff]
                %910 = vst [vmem:[%s194 + $0xb28] sm:$0xff] %v909
                %v911 = vld [vmem:[%s193 + $0x2c30] sm:$0xff]
                %912 = vst [vmem:[%s194 + $0xb30] sm:$0xff] %v911
                %v913 = vld [vmem:[%s193 + $0x2c38] sm:$0xff]
                %914 = vst [vmem:[%s194 + $0xb38] sm:$0xff] %v913
                %v915 = vld [vmem:[%s193 + $0x2c40] sm:$0xff]
                %916 = vst [vmem:[%s194 + $0xb40] sm:$0xff] %v915
                %v917 = vld [vmem:[%s193 + $0x2c48] sm:$0xff]
                %918 = vst [vmem:[%s194 + $0xb48] sm:$0xff] %v917
                %v919 = vld [vmem:[%s193 + $0x2c50] sm:$0xff]
                %920 = vst [vmem:[%s194 + $0xb50] sm:$0xff] %v919
                %v921 = vld [vmem:[%s193 + $0x2c58] sm:$0xff]
                %922 = vst [vmem:[%s194 + $0xb58] sm:$0xff] %v921
                %v923 = vld [vmem:[%s193 + $0x2c60] sm:$0xff]
                %924 = vst [vmem:[%s194 + $0xb60] sm:$0xff] %v923
                %v925 = vld [vmem:[%s193 + $0x2c68] sm:$0xff]
                %926 = vst [vmem:[%s194 + $0xb68] sm:$0xff] %v925
                %v927 = vld [vmem:[%s193 + $0x2c70] sm:$0xff]
                %928 = vst [vmem:[%s194 + $0xb70] sm:$0xff] %v927
                %v929 = vld [vmem:[%s193 + $0x2c78] sm:$0xff]
                %930 = vst [vmem:[%s194 + $0xb78] sm:$0xff] %v929
                %v931 = vld [vmem:[%s193 + $0x2e00] sm:$0xff]
                %932 = vst [vmem:[%s194 + $0xb80] sm:$0xff] %v931
                %v933 = vld [vmem:[%s193 + $0x2e08] sm:$0xff]
                %934 = vst [vmem:[%s194 + $0xb88] sm:$0xff] %v933
                %v935 = vld [vmem:[%s193 + $0x2e10] sm:$0xff]
                %936 = vst [vmem:[%s194 + $0xb90] sm:$0xff] %v935
                %v937 = vld [vmem:[%s193 + $0x2e18] sm:$0xff]
                %938 = vst [vmem:[%s194 + $0xb98] sm:$0xff] %v937
                %v939 = vld [vmem:[%s193 + $0x2e20] sm:$0xff]
                %940 = vst [vmem:[%s194 + $0xba0] sm:$0xff] %v939
                %v941 = vld [vmem:[%s193 + $0x2e28] sm:$0xff]
                %942 = vst [vmem:[%s194 + $0xba8] sm:$0xff] %v941
                %v943 = vld [vmem:[%s193 + $0x2e30] sm:$0xff]
                %944 = vst [vmem:[%s194 + $0xbb0] sm:$0xff] %v943
                %v945 = vld [vmem:[%s193 + $0x2e38] sm:$0xff]
                %946 = vst [vmem:[%s194 + $0xbb8] sm:$0xff] %v945
                %v947 = vld [vmem:[%s193 + $0x2e40] sm:$0xff]
                %948 = vst [vmem:[%s194 + $0xbc0] sm:$0xff] %v947
                %v949 = vld [vmem:[%s193 + $0x2e48] sm:$0xff]
                %950 = vst [vmem:[%s194 + $0xbc8] sm:$0xff] %v949
                %v951 = vld [vmem:[%s193 + $0x2e50] sm:$0xff]
                %952 = vst [vmem:[%s194 + $0xbd0] sm:$0xff] %v951
                %v953 = vld [vmem:[%s193 + $0x2e58] sm:$0xff]
                %954 = vst [vmem:[%s194 + $0xbd8] sm:$0xff] %v953
                %v955 = vld [vmem:[%s193 + $0x2e60] sm:$0xff]
                %956 = vst [vmem:[%s194 + $0xbe0] sm:$0xff] %v955
                %v957 = vld [vmem:[%s193 + $0x2e68] sm:$0xff]
                %958 = vst [vmem:[%s194 + $0xbe8] sm:$0xff] %v957
                %v959 = vld [vmem:[%s193 + $0x2e70] sm:$0xff]
                %960 = vst [vmem:[%s194 + $0xbf0] sm:$0xff] %v959
                %v961 = vld [vmem:[%s193 + $0x2e78] sm:$0xff]
                %962 = vst [vmem:[%s194 + $0xbf8] sm:$0xff] %v961
                %v963 = vld [vmem:[%s193 + $0x3000] sm:$0xff]
                %964 = vst [vmem:[%s194 + $0xc00] sm:$0xff] %v963
                %v965 = vld [vmem:[%s193 + $0x3008] sm:$0xff]
                %966 = vst [vmem:[%s194 + $0xc08] sm:$0xff] %v965
                %v967 = vld [vmem:[%s193 + $0x3010] sm:$0xff]
                %968 = vst [vmem:[%s194 + $0xc10] sm:$0xff] %v967
                %v969 = vld [vmem:[%s193 + $0x3018] sm:$0xff]
                %970 = vst [vmem:[%s194 + $0xc18] sm:$0xff] %v969
                %v971 = vld [vmem:[%s193 + $0x3020] sm:$0xff]
                %972 = vst [vmem:[%s194 + $0xc20] sm:$0xff] %v971
                %v973 = vld [vmem:[%s193 + $0x3028] sm:$0xff]
                %974 = vst [vmem:[%s194 + $0xc28] sm:$0xff] %v973
                %v975 = vld [vmem:[%s193 + $0x3030] sm:$0xff]
                %976 = vst [vmem:[%s194 + $0xc30] sm:$0xff] %v975
                %v977 = vld [vmem:[%s193 + $0x3038] sm:$0xff]
                %978 = vst [vmem:[%s194 + $0xc38] sm:$0xff] %v977
                %v979 = vld [vmem:[%s193 + $0x3040] sm:$0xff]
                %980 = vst [vmem:[%s194 + $0xc40] sm:$0xff] %v979
                %v981 = vld [vmem:[%s193 + $0x3048] sm:$0xff]
                %982 = vst [vmem:[%s194 + $0xc48] sm:$0xff] %v981
                %v983 = vld [vmem:[%s193 + $0x3050] sm:$0xff]
                %984 = vst [vmem:[%s194 + $0xc50] sm:$0xff] %v983
                %v985 = vld [vmem:[%s193 + $0x3058] sm:$0xff]
                %986 = vst [vmem:[%s194 + $0xc58] sm:$0xff] %v985
                %v987 = vld [vmem:[%s193 + $0x3060] sm:$0xff]
                %988 = vst [vmem:[%s194 + $0xc60] sm:$0xff] %v987
                %v989 = vld [vmem:[%s193 + $0x3068] sm:$0xff]
                %990 = vst [vmem:[%s194 + $0xc68] sm:$0xff] %v989
                %v991 = vld [vmem:[%s193 + $0x3070] sm:$0xff]
                %992 = vst [vmem:[%s194 + $0xc70] sm:$0xff] %v991
                %v993 = vld [vmem:[%s193 + $0x3078] sm:$0xff]
                %994 = vst [vmem:[%s194 + $0xc78] sm:$0xff] %v993
                %v995 = vld [vmem:[%s193 + $0x3200] sm:$0xff]
                %996 = vst [vmem:[%s194 + $0xc80] sm:$0xff] %v995
                %v997 = vld [vmem:[%s193 + $0x3208] sm:$0xff]
                %998 = vst [vmem:[%s194 + $0xc88] sm:$0xff] %v997
                %v999 = vld [vmem:[%s193 + $0x3210] sm:$0xff]
                %1000 = vst [vmem:[%s194 + $0xc90] sm:$0xff] %v999
                %v1001 = vld [vmem:[%s193 + $0x3218] sm:$0xff]
                %1002 = vst [vmem:[%s194 + $0xc98] sm:$0xff] %v1001
                %v1003 = vld [vmem:[%s193 + $0x3220] sm:$0xff]
                %1004 = vst [vmem:[%s194 + $0xca0] sm:$0xff] %v1003
                %v1005 = vld [vmem:[%s193 + $0x3228] sm:$0xff]
                %1006 = vst [vmem:[%s194 + $0xca8] sm:$0xff] %v1005
                %v1007 = vld [vmem:[%s193 + $0x3230] sm:$0xff]
                %1008 = vst [vmem:[%s194 + $0xcb0] sm:$0xff] %v1007
                %v1009 = vld [vmem:[%s193 + $0x3238] sm:$0xff]
                %1010 = vst [vmem:[%s194 + $0xcb8] sm:$0xff] %v1009
                %v1011 = vld [vmem:[%s193 + $0x3240] sm:$0xff]
                %1012 = vst [vmem:[%s194 + $0xcc0] sm:$0xff] %v1011
                %v1013 = vld [vmem:[%s193 + $0x3248] sm:$0xff]
                %1014 = vst [vmem:[%s194 + $0xcc8] sm:$0xff] %v1013
                %v1015 = vld [vmem:[%s193 + $0x3250] sm:$0xff]
                %1016 = vst [vmem:[%s194 + $0xcd0] sm:$0xff] %v1015
                %v1017 = vld [vmem:[%s193 + $0x3258] sm:$0xff]
                %1018 = vst [vmem:[%s194 + $0xcd8] sm:$0xff] %v1017
                %v1019 = vld [vmem:[%s193 + $0x3260] sm:$0xff]
                %1020 = vst [vmem:[%s194 + $0xce0] sm:$0xff] %v1019
                %v1021 = vld [vmem:[%s193 + $0x3268] sm:$0xff]
                %1022 = vst [vmem:[%s194 + $0xce8] sm:$0xff] %v1021
                %v1023 = vld [vmem:[%s193 + $0x3270] sm:$0xff]
                %1024 = vst [vmem:[%s194 + $0xcf0] sm:$0xff] %v1023
                %v1025 = vld [vmem:[%s193 + $0x3278] sm:$0xff]
                %1026 = vst [vmem:[%s194 + $0xcf8] sm:$0xff] %v1025
                %v1027 = vld [vmem:[%s193 + $0x3400] sm:$0xff]
                %1028 = vst [vmem:[%s194 + $0xd00] sm:$0xff] %v1027
                %v1029 = vld [vmem:[%s193 + $0x3408] sm:$0xff]
                %1030 = vst [vmem:[%s194 + $0xd08] sm:$0xff] %v1029
                %v1031 = vld [vmem:[%s193 + $0x3410] sm:$0xff]
                %1032 = vst [vmem:[%s194 + $0xd10] sm:$0xff] %v1031
                %v1033 = vld [vmem:[%s193 + $0x3418] sm:$0xff]
                %1034 = vst [vmem:[%s194 + $0xd18] sm:$0xff] %v1033
                %v1035 = vld [vmem:[%s193 + $0x3420] sm:$0xff]
                %1036 = vst [vmem:[%s194 + $0xd20] sm:$0xff] %v1035
                %v1037 = vld [vmem:[%s193 + $0x3428] sm:$0xff]
                %1038 = vst [vmem:[%s194 + $0xd28] sm:$0xff] %v1037
                %v1039 = vld [vmem:[%s193 + $0x3430] sm:$0xff]
                %1040 = vst [vmem:[%s194 + $0xd30] sm:$0xff] %v1039
                %v1041 = vld [vmem:[%s193 + $0x3438] sm:$0xff]
                %1042 = vst [vmem:[%s194 + $0xd38] sm:$0xff] %v1041
                %v1043 = vld [vmem:[%s193 + $0x3440] sm:$0xff]
                %1044 = vst [vmem:[%s194 + $0xd40] sm:$0xff] %v1043
                %v1045 = vld [vmem:[%s193 + $0x3448] sm:$0xff]
                %1046 = vst [vmem:[%s194 + $0xd48] sm:$0xff] %v1045
                %v1047 = vld [vmem:[%s193 + $0x3450] sm:$0xff]
                %1048 = vst [vmem:[%s194 + $0xd50] sm:$0xff] %v1047
                %v1049 = vld [vmem:[%s193 + $0x3458] sm:$0xff]
                %1050 = vst [vmem:[%s194 + $0xd58] sm:$0xff] %v1049
                %v1051 = vld [vmem:[%s193 + $0x3460] sm:$0xff]
                %1052 = vst [vmem:[%s194 + $0xd60] sm:$0xff] %v1051
                %v1053 = vld [vmem:[%s193 + $0x3468] sm:$0xff]
                %1054 = vst [vmem:[%s194 + $0xd68] sm:$0xff] %v1053
                %v1055 = vld [vmem:[%s193 + $0x3470] sm:$0xff]
                %1056 = vst [vmem:[%s194 + $0xd70] sm:$0xff] %v1055
                %v1057 = vld [vmem:[%s193 + $0x3478] sm:$0xff]
                %1058 = vst [vmem:[%s194 + $0xd78] sm:$0xff] %v1057
                %v1059 = vld [vmem:[%s193 + $0x3600] sm:$0xff]
                %1060 = vst [vmem:[%s194 + $0xd80] sm:$0xff] %v1059
                %v1061 = vld [vmem:[%s193 + $0x3608] sm:$0xff]
                %1062 = vst [vmem:[%s194 + $0xd88] sm:$0xff] %v1061
                %v1063 = vld [vmem:[%s193 + $0x3610] sm:$0xff]
                %1064 = vst [vmem:[%s194 + $0xd90] sm:$0xff] %v1063
                %v1065 = vld [vmem:[%s193 + $0x3618] sm:$0xff]
                %1066 = vst [vmem:[%s194 + $0xd98] sm:$0xff] %v1065
                %v1067 = vld [vmem:[%s193 + $0x3620] sm:$0xff]
                %1068 = vst [vmem:[%s194 + $0xda0] sm:$0xff] %v1067
                %v1069 = vld [vmem:[%s193 + $0x3628] sm:$0xff]
                %1070 = vst [vmem:[%s194 + $0xda8] sm:$0xff] %v1069
                %v1071 = vld [vmem:[%s193 + $0x3630] sm:$0xff]
                %1072 = vst [vmem:[%s194 + $0xdb0] sm:$0xff] %v1071
                %v1073 = vld [vmem:[%s193 + $0x3638] sm:$0xff]
                %1074 = vst [vmem:[%s194 + $0xdb8] sm:$0xff] %v1073
                %v1075 = vld [vmem:[%s193 + $0x3640] sm:$0xff]
                %1076 = vst [vmem:[%s194 + $0xdc0] sm:$0xff] %v1075
                %v1077 = vld [vmem:[%s193 + $0x3648] sm:$0xff]
                %1078 = vst [vmem:[%s194 + $0xdc8] sm:$0xff] %v1077
                %v1079 = vld [vmem:[%s193 + $0x3650] sm:$0xff]
                %1080 = vst [vmem:[%s194 + $0xdd0] sm:$0xff] %v1079
                %v1081 = vld [vmem:[%s193 + $0x3658] sm:$0xff]
                %1082 = vst [vmem:[%s194 + $0xdd8] sm:$0xff] %v1081
                %v1083 = vld [vmem:[%s193 + $0x3660] sm:$0xff]
                %1084 = vst [vmem:[%s194 + $0xde0] sm:$0xff] %v1083
                %v1085 = vld [vmem:[%s193 + $0x3668] sm:$0xff]
                %1086 = vst [vmem:[%s194 + $0xde8] sm:$0xff] %v1085
                %v1087 = vld [vmem:[%s193 + $0x3670] sm:$0xff]
                %1088 = vst [vmem:[%s194 + $0xdf0] sm:$0xff] %v1087
                %v1089 = vld [vmem:[%s193 + $0x3678] sm:$0xff]
                %1090 = vst [vmem:[%s194 + $0xdf8] sm:$0xff] %v1089
                %v1091 = vld [vmem:[%s193 + $0x3800] sm:$0xff]
                %1092 = vst [vmem:[%s194 + $0xe00] sm:$0xff] %v1091
                %v1093 = vld [vmem:[%s193 + $0x3808] sm:$0xff]
                %1094 = vst [vmem:[%s194 + $0xe08] sm:$0xff] %v1093
                %v1095 = vld [vmem:[%s193 + $0x3810] sm:$0xff]
                %1096 = vst [vmem:[%s194 + $0xe10] sm:$0xff] %v1095
                %v1097 = vld [vmem:[%s193 + $0x3818] sm:$0xff]
                %1098 = vst [vmem:[%s194 + $0xe18] sm:$0xff] %v1097
                %v1099 = vld [vmem:[%s193 + $0x3820] sm:$0xff]
                %1100 = vst [vmem:[%s194 + $0xe20] sm:$0xff] %v1099
                %v1101 = vld [vmem:[%s193 + $0x3828] sm:$0xff]
                %1102 = vst [vmem:[%s194 + $0xe28] sm:$0xff] %v1101
                %v1103 = vld [vmem:[%s193 + $0x3830] sm:$0xff]
                %1104 = vst [vmem:[%s194 + $0xe30] sm:$0xff] %v1103
                %v1105 = vld [vmem:[%s193 + $0x3838] sm:$0xff]
                %1106 = vst [vmem:[%s194 + $0xe38] sm:$0xff] %v1105
                %v1107 = vld [vmem:[%s193 + $0x3840] sm:$0xff]
                %1108 = vst [vmem:[%s194 + $0xe40] sm:$0xff] %v1107
                %v1109 = vld [vmem:[%s193 + $0x3848] sm:$0xff]
                %1110 = vst [vmem:[%s194 + $0xe48] sm:$0xff] %v1109
                %v1111 = vld [vmem:[%s193 + $0x3850] sm:$0xff]
                %1112 = vst [vmem:[%s194 + $0xe50] sm:$0xff] %v1111
                %v1113 = vld [vmem:[%s193 + $0x3858] sm:$0xff]
                %1114 = vst [vmem:[%s194 + $0xe58] sm:$0xff] %v1113
                %v1115 = vld [vmem:[%s193 + $0x3860] sm:$0xff]
                %1116 = vst [vmem:[%s194 + $0xe60] sm:$0xff] %v1115
                %v1117 = vld [vmem:[%s193 + $0x3868] sm:$0xff]
                %1118 = vst [vmem:[%s194 + $0xe68] sm:$0xff] %v1117
                %v1119 = vld [vmem:[%s193 + $0x3870] sm:$0xff]
                %1120 = vst [vmem:[%s194 + $0xe70] sm:$0xff] %v1119
                %v1121 = vld [vmem:[%s193 + $0x3878] sm:$0xff]
                %1122 = vst [vmem:[%s194 + $0xe78] sm:$0xff] %v1121
                %v1123 = vld [vmem:[%s193 + $0x3a00] sm:$0xff]
                %1124 = vst [vmem:[%s194 + $0xe80] sm:$0xff] %v1123
                %v1125 = vld [vmem:[%s193 + $0x3a08] sm:$0xff]
                %1126 = vst [vmem:[%s194 + $0xe88] sm:$0xff] %v1125
                %v1127 = vld [vmem:[%s193 + $0x3a10] sm:$0xff]
                %1128 = vst [vmem:[%s194 + $0xe90] sm:$0xff] %v1127
                %v1129 = vld [vmem:[%s193 + $0x3a18] sm:$0xff]
                %1130 = vst [vmem:[%s194 + $0xe98] sm:$0xff] %v1129
                %v1131 = vld [vmem:[%s193 + $0x3a20] sm:$0xff]
                %1132 = vst [vmem:[%s194 + $0xea0] sm:$0xff] %v1131
                %v1133 = vld [vmem:[%s193 + $0x3a28] sm:$0xff]
                %1134 = vst [vmem:[%s194 + $0xea8] sm:$0xff] %v1133
                %v1135 = vld [vmem:[%s193 + $0x3a30] sm:$0xff]
                %1136 = vst [vmem:[%s194 + $0xeb0] sm:$0xff] %v1135
                %v1137 = vld [vmem:[%s193 + $0x3a38] sm:$0xff]
                %1138 = vst [vmem:[%s194 + $0xeb8] sm:$0xff] %v1137
                %v1139 = vld [vmem:[%s193 + $0x3a40] sm:$0xff]
                %1140 = vst [vmem:[%s194 + $0xec0] sm:$0xff] %v1139
                %v1141 = vld [vmem:[%s193 + $0x3a48] sm:$0xff]
                %1142 = vst [vmem:[%s194 + $0xec8] sm:$0xff] %v1141
                %v1143 = vld [vmem:[%s193 + $0x3a50] sm:$0xff]
                %1144 = vst [vmem:[%s194 + $0xed0] sm:$0xff] %v1143
                %v1145 = vld [vmem:[%s193 + $0x3a58] sm:$0xff]
                %1146 = vst [vmem:[%s194 + $0xed8] sm:$0xff] %v1145
                %v1147 = vld [vmem:[%s193 + $0x3a60] sm:$0xff]
                %1148 = vst [vmem:[%s194 + $0xee0] sm:$0xff] %v1147
                %v1149 = vld [vmem:[%s193 + $0x3a68] sm:$0xff]
                %1150 = vst [vmem:[%s194 + $0xee8] sm:$0xff] %v1149
                %v1151 = vld [vmem:[%s193 + $0x3a70] sm:$0xff]
                %1152 = vst [vmem:[%s194 + $0xef0] sm:$0xff] %v1151
                %v1153 = vld [vmem:[%s193 + $0x3a78] sm:$0xff]
                %1154 = vst [vmem:[%s194 + $0xef8] sm:$0xff] %v1153
                %v1155 = vld [vmem:[%s193 + $0x3c00] sm:$0xff]
                %1156 = vst [vmem:[%s194 + $0xf00] sm:$0xff] %v1155
                %v1157 = vld [vmem:[%s193 + $0x3c08] sm:$0xff]
                %1158 = vst [vmem:[%s194 + $0xf08] sm:$0xff] %v1157
                %v1159 = vld [vmem:[%s193 + $0x3c10] sm:$0xff]
                %1160 = vst [vmem:[%s194 + $0xf10] sm:$0xff] %v1159
                %v1161 = vld [vmem:[%s193 + $0x3c18] sm:$0xff]
                %1162 = vst [vmem:[%s194 + $0xf18] sm:$0xff] %v1161
                %v1163 = vld [vmem:[%s193 + $0x3c20] sm:$0xff]
                %1164 = vst [vmem:[%s194 + $0xf20] sm:$0xff] %v1163
                %v1165 = vld [vmem:[%s193 + $0x3c28] sm:$0xff]
                %1166 = vst [vmem:[%s194 + $0xf28] sm:$0xff] %v1165
                %v1167 = vld [vmem:[%s193 + $0x3c30] sm:$0xff]
                %1168 = vst [vmem:[%s194 + $0xf30] sm:$0xff] %v1167
                %v1169 = vld [vmem:[%s193 + $0x3c38] sm:$0xff]
                %1170 = vst [vmem:[%s194 + $0xf38] sm:$0xff] %v1169
                %v1171 = vld [vmem:[%s193 + $0x3c40] sm:$0xff]
                %1172 = vst [vmem:[%s194 + $0xf40] sm:$0xff] %v1171
                %v1173 = vld [vmem:[%s193 + $0x3c48] sm:$0xff]
                %1174 = vst [vmem:[%s194 + $0xf48] sm:$0xff] %v1173
                %v1175 = vld [vmem:[%s193 + $0x3c50] sm:$0xff]
                %1176 = vst [vmem:[%s194 + $0xf50] sm:$0xff] %v1175
                %v1177 = vld [vmem:[%s193 + $0x3c58] sm:$0xff]
                %1178 = vst [vmem:[%s194 + $0xf58] sm:$0xff] %v1177
                %v1179 = vld [vmem:[%s193 + $0x3c60] sm:$0xff]
                %1180 = vst [vmem:[%s194 + $0xf60] sm:$0xff] %v1179
                %v1181 = vld [vmem:[%s193 + $0x3c68] sm:$0xff]
                %1182 = vst [vmem:[%s194 + $0xf68] sm:$0xff] %v1181
                %v1183 = vld [vmem:[%s193 + $0x3c70] sm:$0xff]
                %1184 = vst [vmem:[%s194 + $0xf70] sm:$0xff] %v1183
                %v1185 = vld [vmem:[%s193 + $0x3c78] sm:$0xff]
                %1186 = vst [vmem:[%s194 + $0xf78] sm:$0xff] %v1185
                %v1187 = vld [vmem:[%s193 + $0x3e00] sm:$0xff]
                %1188 = vst [vmem:[%s194 + $0xf80] sm:$0xff] %v1187
                %v1189 = vld [vmem:[%s193 + $0x3e08] sm:$0xff]
                %1190 = vst [vmem:[%s194 + $0xf88] sm:$0xff] %v1189
                %v1191 = vld [vmem:[%s193 + $0x3e10] sm:$0xff]
                %1192 = vst [vmem:[%s194 + $0xf90] sm:$0xff] %v1191
                %v1193 = vld [vmem:[%s193 + $0x3e18] sm:$0xff]
                %1194 = vst [vmem:[%s194 + $0xf98] sm:$0xff] %v1193
                %v1195 = vld [vmem:[%s193 + $0x3e20] sm:$0xff]
                %1196 = vst [vmem:[%s194 + $0xfa0] sm:$0xff] %v1195
                %v1197 = vld [vmem:[%s193 + $0x3e28] sm:$0xff]
                %1198 = vst [vmem:[%s194 + $0xfa8] sm:$0xff] %v1197
                %v1199 = vld [vmem:[%s193 + $0x3e30] sm:$0xff]
                %1200 = vst [vmem:[%s194 + $0xfb0] sm:$0xff] %v1199
                %v1201 = vld [vmem:[%s193 + $0x3e38] sm:$0xff]
                %1202 = vst [vmem:[%s194 + $0xfb8] sm:$0xff] %v1201
                %v1203 = vld [vmem:[%s193 + $0x3e40] sm:$0xff]
                %1204 = vst [vmem:[%s194 + $0xfc0] sm:$0xff] %v1203
                %v1205 = vld [vmem:[%s193 + $0x3e48] sm:$0xff]
                %1206 = vst [vmem:[%s194 + $0xfc8] sm:$0xff] %v1205
                %v1207 = vld [vmem:[%s193 + $0x3e50] sm:$0xff]
                %1208 = vst [vmem:[%s194 + $0xfd0] sm:$0xff] %v1207
                %v1209 = vld [vmem:[%s193 + $0x3e58] sm:$0xff]
                %1210 = vst [vmem:[%s194 + $0xfd8] sm:$0xff] %v1209
                %v1211 = vld [vmem:[%s193 + $0x3e60] sm:$0xff]
                %1212 = vst [vmem:[%s194 + $0xfe0] sm:$0xff] %v1211
                %v1213 = vld [vmem:[%s193 + $0x3e68] sm:$0xff]
                %1214 = vst [vmem:[%s194 + $0xfe8] sm:$0xff] %v1213
                %v1215 = vld [vmem:[%s193 + $0x3e70] sm:$0xff]
                %1216 = vst [vmem:[%s194 + $0xff0] sm:$0xff] %v1215
                %v1217 = vld [vmem:[%s193 + $0x3e78] sm:$0xff]
                %1218 = vst [vmem:[%s194 + $0xff8] sm:$0xff] %v1217
              $region37: #{rnn1_forward.24} parent=31 // loop_footer
                %s192 = sadd.s32 1, %s188
              $region38: #{rnn1_forward.24} parent=31 // loop_footer_branch
                %187 = sbr.rel target = $region34
              $region39: #{rnn1_forward.24} parent=31 // loop_exit
                _
            $region32: #{rnn1_forward.24} parent=27 // pred_fallthru
              _
            // Predicated region
            $region40: #{rnn1_forward.24} parent=27 // pred_check
              _
            $region41: #{rnn1_forward.24} parent=27 // pred_check_branch
              %1220 = sbr.rel target = $region43
            $region42: #{rnn1_forward.24} parent=27 // pred_region
              _
            $region43: #{rnn1_forward.24} parent=27 // pred_fallthru
              _
          $region28: #{rnn1_forward.24} parent=23 // pred_fallthru
            _
          %1221 = vnop
        $region24: #{rnn1_forward.24} parent=19 // pred_fallthru
          _
        // Predicated region
        $region44: #{rnn1_forward.24} parent=19 // pred_check
          %p1222 = pneg %p104
        $region45: #{rnn1_forward.24} parent=19 // pred_check_branch
          %1224 = sbr.rel (%p1222) target = $region47
        $region46: #{rnn1_forward.24} parent=19 // pred_region
          %s1225 = smul.u32 16, %s17
          %p1226 = scmp.lt.s32.totalorder %s1225, 63
          %s1227 = scalar_select %p1226, %s1225, 63
          %s1228 = scalar_lea.vmem %s2, %s1227
          %s1229 = smul.u32 16, %s17
        $region47: #{rnn1_forward.24} parent=19 // pred_fallthru
          _
      $region20: #{rnn1_forward.24} parent=5 // pred_fallthru
        _
      %p1230 = scmp.le.s32.totalorder 1, %s9
      %p1231 = scmp.lt.s32.totalorder %s9, 5
      %p1232 = pnand %p1230, %p1231
      %p1233 = pneg %p1232
      // Predicated region
      $region48: #{rnn1_forward.24} parent=5 // pred_check
        _
      $region49: #{rnn1_forward.24} parent=5 // pred_check_branch
        %1235 = sbr.rel (%p1232) target = $region51
      $region50: #{rnn1_forward.24} parent=5 // pred_region
        %s1236 = ssub.s32 %s9, 1
        %s1237 = sand.u32 %s71, 1
        %s1238 = sand.u32 %s71, 1
        %s1239 = smul.addr %s1238, 4096
        %s1240 = scalar_lea.vmem [#allocation2], %s1239
        // Predicated region
        $region52: #{rnn1_forward.24} parent=50 // pred_check
          %p1241 = pneg %p84
        $region53: #{rnn1_forward.24} parent=50 // pred_check_branch
          %1243 = sbr.rel (%p1241) target = $region55
        $region54: #{rnn1_forward.24} parent=50 // pred_region
          _
        $region55: #{rnn1_forward.24} parent=50 // pred_fallthru
          _
        %s1244 = smul.u32 2, %s21
        %p1245 = scmp.lt.s32.totalorder %s19, 0
        %s1246 = scalar_select %p1245, %s19, 0
        %p1247 = scmp.lt.s32.totalorder %s1244, 1
        %s1248 = scalar_select %p1247, %s1244, 1
        %s1249 = smul.addr %s1246, 2
        %s1250 = sadd.s32 %s1248, %s1249
        %s1251 = smul.addr %s1250, 8
        %s1252 = scalar_lea.vmem %s0, %s1251
        %p1253 = pneg %p56
        %p1254 = pneg %p53
        %s1255 = sand.u32 %s71, 1
        %s1256 = sand.u32 %s71, 1
        %s1257 = smul.addr %s1256, 4096
        %s1258 = scalar_lea.vmem [#allocation2], %s1257
        %p1259 = pneg %p84
        %p1260 = pneg %p81
        %s1261 = smul.u32 16, %s20
        %p1262 = scmp.lt.s32.totalorder %s1261, 63
        %s1263 = scalar_select %p1262, %s1261, 63
        %s1264 = scalar_lea.vmem %s2, %s1263
        %p1265 = pneg %p110
        %p1266 = pneg %p107
        %p1267 = pneg %p138
        %p1268 = pneg %p135
        %s1269 = smul.u32 16, %s20
        %p1270 = scmp.lt.s32.totalorder %s19, 0
        %s1271 = scalar_select %p1270, %s19, 0
        %p1272 = scmp.lt.s32.totalorder %s1269, 63
        %s1273 = scalar_select %p1272, %s1269, 63
        %s1274 = smul.addr %s1271, 64
        %s1275 = sadd.s32 %s1273, %s1274
        %s1276 = smul.addr %s1275, 8
        %s1277 = scalar_lea.vmem %s3, %s1276
        %s1278 = smul.u32 2, %s21
        %p1279 = scmp.lt.s32.totalorder %s19, 0
        %s1280 = scalar_select %p1279, %s19, 0
        %p1281 = scmp.lt.s32.totalorder %s1278, 1
        %s1282 = scalar_select %p1281, %s1278, 1
        %s1283 = smul.addr %s1280, 2
        %s1284 = sadd.s32 %s1282, %s1283
        %s1285 = smul.addr %s1284, 8
        %s1286 = scalar_lea.vmem %s0, %s1285
        %s1287 = smul.u32 2, %s21
        %s1288 = smul.u32 32, %s21
        %s1289 = smul.u32 16, %s20
        %s1290 = smul.u32 16, %s20
        %p1291 = scmp.lt.s32.totalorder %s1290, 63
        %s1292 = scalar_select %p1291, %s1290, 63
        %s1293 = scalar_lea.vmem %s2, %s1292
        %s1294 = smul.u32 16, %s20
        %s1295 = smul.u32 16, %s20
        %p1296 = scmp.lt.s32.totalorder %s19, 0
        %s1297 = scalar_select %p1296, %s19, 0
        %p1298 = scmp.lt.s32.totalorder %s1295, 63
        %s1299 = scalar_select %p1298, %s1295, 63
        %s1300 = smul.addr %s1297, 64
        %s1301 = sadd.s32 %s1299, %s1300
        %s1302 = smul.addr %s1301, 8
        %s1303 = scalar_lea.vmem %s3, %s1302
        %s1304 = smul.u32 16, %s20
        %p1305 = scmp.eq.s32.totalorder %s21, 0
        // Predicated region
        $region56: #{rnn1_forward.24} parent=50 // pred_check
          %p1306 = pneg %p1305
        $region57: #{rnn1_forward.24} parent=50 // pred_check_branch
          %1308 = sbr.rel (%p1306) target = $region59
        $region58: #{rnn1_forward.24} parent=50 // pred_region
          %v1309 = vld [vmem:[%s1293] sm:$0xff]
          %v1310 = vld [vmem:[%s1293 + $0x8] sm:$0xff]
          %v1313 = vlaneseq
          %v1314 = vshrl.u32 %v1313, 7
          %v1315 = vsub.s32 0, %v1314
          %v1316 = vrot.slane %v1309, %v1315
          %v1317 = vlaneseq
          %v1318 = vshrl.u32 %v1317, 7
          %v1319 = vsub.s32 1, %v1318
          %v1320 = vrot.slane %v1309, %v1319
          %v1321 = vlaneseq
          %v1322 = vshrl.u32 %v1321, 7
          %v1323 = vsub.s32 2, %v1322
          %v1324 = vrot.slane %v1309, %v1323
          %v1325 = vlaneseq
          %v1326 = vshrl.u32 %v1325, 7
          %v1327 = vsub.s32 3, %v1326
          %v1328 = vrot.slane %v1309, %v1327
          %v1329 = vlaneseq
          %v1330 = vshrl.u32 %v1329, 7
          %v1331 = vsub.s32 4, %v1330
          %v1332 = vrot.slane %v1309, %v1331
          %v1333 = vlaneseq
          %v1334 = vshrl.u32 %v1333, 7
          %v1335 = vsub.s32 5, %v1334
          %v1336 = vrot.slane %v1309, %v1335
          %v1337 = vlaneseq
          %v1338 = vshrl.u32 %v1337, 7
          %v1339 = vsub.s32 6, %v1338
          %v1340 = vrot.slane %v1309, %v1339
          %v1341 = vlaneseq
          %v1342 = vshrl.u32 %v1341, 7
          %v1343 = vsub.s32 7, %v1342
          %v1344 = vrot.slane %v1309, %v1343
          %v1345 = vlaneseq
          %v1346 = vshrl.u32 %v1345, 7
          %v1347 = vsub.s32 0, %v1346
          %v1348 = vrot.slane %v1310, %v1347
          %v1349 = vlaneseq
          %v1350 = vshrl.u32 %v1349, 7
          %v1351 = vsub.s32 1, %v1350
          %v1352 = vrot.slane %v1310, %v1351
          %v1353 = vlaneseq
          %v1354 = vshrl.u32 %v1353, 7
          %v1355 = vsub.s32 2, %v1354
          %v1356 = vrot.slane %v1310, %v1355
          %v1357 = vlaneseq
          %v1358 = vshrl.u32 %v1357, 7
          %v1359 = vsub.s32 3, %v1358
          %v1360 = vrot.slane %v1310, %v1359
          %v1361 = vlaneseq
          %v1362 = vshrl.u32 %v1361, 7
          %v1363 = vsub.s32 4, %v1362
          %v1364 = vrot.slane %v1310, %v1363
          %v1365 = vlaneseq
          %v1366 = vshrl.u32 %v1365, 7
          %v1367 = vsub.s32 5, %v1366
          %v1368 = vrot.slane %v1310, %v1367
          %v1369 = vlaneseq
          %v1370 = vshrl.u32 %v1369, 7
          %v1371 = vsub.s32 6, %v1370
          %v1372 = vrot.slane %v1310, %v1371
          %v1373 = vlaneseq
          %v1374 = vshrl.u32 %v1373, 7
          %v1375 = vsub.s32 7, %v1374
          %v1376 = vrot.slane %v1310, %v1375
          %1393 = vst [vmem:[%s1303] sm:$0xff] %v1316
          %1394 = vst [vmem:[%s1303 + $0x8] sm:$0xff] %v1320
          %1395 = vst [vmem:[%s1303 + $0x10] sm:$0xff] %v1324
          %1396 = vst [vmem:[%s1303 + $0x18] sm:$0xff] %v1328
          %1397 = vst [vmem:[%s1303 + $0x20] sm:$0xff] %v1332
          %1398 = vst [vmem:[%s1303 + $0x28] sm:$0xff] %v1336
          %1399 = vst [vmem:[%s1303 + $0x30] sm:$0xff] %v1340
          %1400 = vst [vmem:[%s1303 + $0x38] sm:$0xff] %v1344
          %1401 = vst [vmem:[%s1303 + $0x40] sm:$0xff] %v1348
          %1402 = vst [vmem:[%s1303 + $0x48] sm:$0xff] %v1352
          %1403 = vst [vmem:[%s1303 + $0x50] sm:$0xff] %v1356
          %1404 = vst [vmem:[%s1303 + $0x58] sm:$0xff] %v1360
          %1405 = vst [vmem:[%s1303 + $0x60] sm:$0xff] %v1364
          %1406 = vst [vmem:[%s1303 + $0x68] sm:$0xff] %v1368
          %1407 = vst [vmem:[%s1303 + $0x70] sm:$0xff] %v1372
          %1408 = vst [vmem:[%s1303 + $0x78] sm:$0xff] %v1376
        $region59: #{rnn1_forward.24} parent=50 // pred_fallthru
          _
        %v1409 = vld [vmem:[%s1303] sm:$0xff]
        %v1410 = vld [vmem:[%s1303 + $0x8] sm:$0xff]
        %v1411 = vld [vmem:[%s1303 + $0x10] sm:$0xff]
        %v1412 = vld [vmem:[%s1303 + $0x18] sm:$0xff]
        %v1413 = vld [vmem:[%s1303 + $0x20] sm:$0xff]
        %v1414 = vld [vmem:[%s1303 + $0x28] sm:$0xff]
        %v1415 = vld [vmem:[%s1303 + $0x30] sm:$0xff]
        %v1416 = vld [vmem:[%s1303 + $0x38] sm:$0xff]
        %v1417 = vld [vmem:[%s1303 + $0x40] sm:$0xff]
        %v1418 = vld [vmem:[%s1303 + $0x48] sm:$0xff]
        %v1419 = vld [vmem:[%s1303 + $0x50] sm:$0xff]
        %v1420 = vld [vmem:[%s1303 + $0x58] sm:$0xff]
        %v1421 = vld [vmem:[%s1303 + $0x60] sm:$0xff]
        %v1422 = vld [vmem:[%s1303 + $0x68] sm:$0xff]
        %v1423 = vld [vmem:[%s1303 + $0x70] sm:$0xff]
        %v1424 = vld [vmem:[%s1303 + $0x78] sm:$0xff]
        %v1425 = vld [vmem:[%s1286] sm:$0xff]
        %v1426 = vld [vmem:[%s1286 + $0x8] sm:$0xff]
        %v1427 = vld [vmem:[%s1240] sm:$0xff]
        %v1428 = vld [vmem:[%s1240 + $0x8] sm:$0xff]
        %v1429 = vld [vmem:[%s1240 + $0x10] sm:$0xff]
        %v1430 = vld [vmem:[%s1240 + $0x18] sm:$0xff]
        %v1431 = vld [vmem:[%s1240 + $0x20] sm:$0xff]
        %v1432 = vld [vmem:[%s1240 + $0x28] sm:$0xff]
        %v1433 = vld [vmem:[%s1240 + $0x30] sm:$0xff]
        %v1434 = vld [vmem:[%s1240 + $0x38] sm:$0xff]
        %v1435 = vld [vmem:[%s1240 + $0x40] sm:$0xff]
        %v1436 = vld [vmem:[%s1240 + $0x48] sm:$0xff]
        %v1437 = vld [vmem:[%s1240 + $0x50] sm:$0xff]
        %v1438 = vld [vmem:[%s1240 + $0x58] sm:$0xff]
        %v1439 = vld [vmem:[%s1240 + $0x60] sm:$0xff]
        %v1440 = vld [vmem:[%s1240 + $0x68] sm:$0xff]
        %v1441 = vld [vmem:[%s1240 + $0x70] sm:$0xff]
        %v1442 = vld [vmem:[%s1240 + $0x78] sm:$0xff]
        %v1443 = vld [vmem:[%s1240 + $0x80] sm:$0xff]
        %v1444 = vld [vmem:[%s1240 + $0x88] sm:$0xff]
        %v1445 = vld [vmem:[%s1240 + $0x90] sm:$0xff]
        %v1446 = vld [vmem:[%s1240 + $0x98] sm:$0xff]
        %v1447 = vld [vmem:[%s1240 + $0xa0] sm:$0xff]
        %v1448 = vld [vmem:[%s1240 + $0xa8] sm:$0xff]
        %v1449 = vld [vmem:[%s1240 + $0xb0] sm:$0xff]
        %v1450 = vld [vmem:[%s1240 + $0xb8] sm:$0xff]
        %v1451 = vld [vmem:[%s1240 + $0xc0] sm:$0xff]
        %v1452 = vld [vmem:[%s1240 + $0xc8] sm:$0xff]
        %v1453 = vld [vmem:[%s1240 + $0xd0] sm:$0xff]
        %v1454 = vld [vmem:[%s1240 + $0xd8] sm:$0xff]
        %v1455 = vld [vmem:[%s1240 + $0xe0] sm:$0xff]
        %v1456 = vld [vmem:[%s1240 + $0xe8] sm:$0xff]
        %v1457 = vld [vmem:[%s1240 + $0xf0] sm:$0xff]
        %v1458 = vld [vmem:[%s1240 + $0xf8] sm:$0xff]
        %v1459 = vld [vmem:[%s1240 + $0x100] sm:$0xff]
        %v1460 = vld [vmem:[%s1240 + $0x108] sm:$0xff]
        %v1461 = vld [vmem:[%s1240 + $0x110] sm:$0xff]
        %v1462 = vld [vmem:[%s1240 + $0x118] sm:$0xff]
        %v1463 = vld [vmem:[%s1240 + $0x120] sm:$0xff]
        %v1464 = vld [vmem:[%s1240 + $0x128] sm:$0xff]
        %v1465 = vld [vmem:[%s1240 + $0x130] sm:$0xff]
        %v1466 = vld [vmem:[%s1240 + $0x138] sm:$0xff]
        %v1467 = vld [vmem:[%s1240 + $0x140] sm:$0xff]
        %v1468 = vld [vmem:[%s1240 + $0x148] sm:$0xff]
        %v1469 = vld [vmem:[%s1240 + $0x150] sm:$0xff]
        %v1470 = vld [vmem:[%s1240 + $0x158] sm:$0xff]
        %v1471 = vld [vmem:[%s1240 + $0x160] sm:$0xff]
        %v1472 = vld [vmem:[%s1240 + $0x168] sm:$0xff]
        %v1473 = vld [vmem:[%s1240 + $0x170] sm:$0xff]
        %v1474 = vld [vmem:[%s1240 + $0x178] sm:$0xff]
        %v1475 = vld [vmem:[%s1240 + $0x180] sm:$0xff]
        %v1476 = vld [vmem:[%s1240 + $0x188] sm:$0xff]
        %v1477 = vld [vmem:[%s1240 + $0x190] sm:$0xff]
        %v1478 = vld [vmem:[%s1240 + $0x198] sm:$0xff]
        %v1479 = vld [vmem:[%s1240 + $0x1a0] sm:$0xff]
        %v1480 = vld [vmem:[%s1240 + $0x1a8] sm:$0xff]
        %v1481 = vld [vmem:[%s1240 + $0x1b0] sm:$0xff]
        %v1482 = vld [vmem:[%s1240 + $0x1b8] sm:$0xff]
        %v1483 = vld [vmem:[%s1240 + $0x1c0] sm:$0xff]
        %v1484 = vld [vmem:[%s1240 + $0x1c8] sm:$0xff]
        %v1485 = vld [vmem:[%s1240 + $0x1d0] sm:$0xff]
        %v1486 = vld [vmem:[%s1240 + $0x1d8] sm:$0xff]
        %v1487 = vld [vmem:[%s1240 + $0x1e0] sm:$0xff]
        %v1488 = vld [vmem:[%s1240 + $0x1e8] sm:$0xff]
        %v1489 = vld [vmem:[%s1240 + $0x1f0] sm:$0xff]
        %v1490 = vld [vmem:[%s1240 + $0x1f8] sm:$0xff]
        %v1491 = vld [vmem:[%s1240 + $0x200] sm:$0xff]
        %v1492 = vld [vmem:[%s1240 + $0x208] sm:$0xff]
        %v1493 = vld [vmem:[%s1240 + $0x210] sm:$0xff]
        %v1494 = vld [vmem:[%s1240 + $0x218] sm:$0xff]
        %v1495 = vld [vmem:[%s1240 + $0x220] sm:$0xff]
        %v1496 = vld [vmem:[%s1240 + $0x228] sm:$0xff]
        %v1497 = vld [vmem:[%s1240 + $0x230] sm:$0xff]
        %v1498 = vld [vmem:[%s1240 + $0x238] sm:$0xff]
        %v1499 = vld [vmem:[%s1240 + $0x240] sm:$0xff]
        %v1500 = vld [vmem:[%s1240 + $0x248] sm:$0xff]
        %v1501 = vld [vmem:[%s1240 + $0x250] sm:$0xff]
        %v1502 = vld [vmem:[%s1240 + $0x258] sm:$0xff]
        %v1503 = vld [vmem:[%s1240 + $0x260] sm:$0xff]
        %v1504 = vld [vmem:[%s1240 + $0x268] sm:$0xff]
        %v1505 = vld [vmem:[%s1240 + $0x270] sm:$0xff]
        %v1506 = vld [vmem:[%s1240 + $0x278] sm:$0xff]
        %v1507 = vld [vmem:[%s1240 + $0x280] sm:$0xff]
        %v1508 = vld [vmem:[%s1240 + $0x288] sm:$0xff]
        %v1509 = vld [vmem:[%s1240 + $0x290] sm:$0xff]
        %v1510 = vld [vmem:[%s1240 + $0x298] sm:$0xff]
        %v1511 = vld [vmem:[%s1240 + $0x2a0] sm:$0xff]
        %v1512 = vld [vmem:[%s1240 + $0x2a8] sm:$0xff]
        %v1513 = vld [vmem:[%s1240 + $0x2b0] sm:$0xff]
        %v1514 = vld [vmem:[%s1240 + $0x2b8] sm:$0xff]
        %v1515 = vld [vmem:[%s1240 + $0x2c0] sm:$0xff]
        %v1516 = vld [vmem:[%s1240 + $0x2c8] sm:$0xff]
        %v1517 = vld [vmem:[%s1240 + $0x2d0] sm:$0xff]
        %v1518 = vld [vmem:[%s1240 + $0x2d8] sm:$0xff]
        %v1519 = vld [vmem:[%s1240 + $0x2e0] sm:$0xff]
        %v1520 = vld [vmem:[%s1240 + $0x2e8] sm:$0xff]
        %v1521 = vld [vmem:[%s1240 + $0x2f0] sm:$0xff]
        %v1522 = vld [vmem:[%s1240 + $0x2f8] sm:$0xff]
        %v1523 = vld [vmem:[%s1240 + $0x300] sm:$0xff]
        %v1524 = vld [vmem:[%s1240 + $0x308] sm:$0xff]
        %v1525 = vld [vmem:[%s1240 + $0x310] sm:$0xff]
        %v1526 = vld [vmem:[%s1240 + $0x318] sm:$0xff]
        %v1527 = vld [vmem:[%s1240 + $0x320] sm:$0xff]
        %v1528 = vld [vmem:[%s1240 + $0x328] sm:$0xff]
        %v1529 = vld [vmem:[%s1240 + $0x330] sm:$0xff]
        %v1530 = vld [vmem:[%s1240 + $0x338] sm:$0xff]
        %v1531 = vld [vmem:[%s1240 + $0x340] sm:$0xff]
        %v1532 = vld [vmem:[%s1240 + $0x348] sm:$0xff]
        %v1533 = vld [vmem:[%s1240 + $0x350] sm:$0xff]
        %v1534 = vld [vmem:[%s1240 + $0x358] sm:$0xff]
        %v1535 = vld [vmem:[%s1240 + $0x360] sm:$0xff]
        %v1536 = vld [vmem:[%s1240 + $0x368] sm:$0xff]
        %v1537 = vld [vmem:[%s1240 + $0x370] sm:$0xff]
        %v1538 = vld [vmem:[%s1240 + $0x378] sm:$0xff]
        %v1539 = vld [vmem:[%s1240 + $0x380] sm:$0xff]
        %v1540 = vld [vmem:[%s1240 + $0x388] sm:$0xff]
        %v1541 = vld [vmem:[%s1240 + $0x390] sm:$0xff]
        %v1542 = vld [vmem:[%s1240 + $0x398] sm:$0xff]
        %v1543 = vld [vmem:[%s1240 + $0x3a0] sm:$0xff]
        %v1544 = vld [vmem:[%s1240 + $0x3a8] sm:$0xff]
        %v1545 = vld [vmem:[%s1240 + $0x3b0] sm:$0xff]
        %v1546 = vld [vmem:[%s1240 + $0x3b8] sm:$0xff]
        %v1547 = vld [vmem:[%s1240 + $0x3c0] sm:$0xff]
        %v1548 = vld [vmem:[%s1240 + $0x3c8] sm:$0xff]
        %v1549 = vld [vmem:[%s1240 + $0x3d0] sm:$0xff]
        %v1550 = vld [vmem:[%s1240 + $0x3d8] sm:$0xff]
        %v1551 = vld [vmem:[%s1240 + $0x3e0] sm:$0xff]
        %v1552 = vld [vmem:[%s1240 + $0x3e8] sm:$0xff]
        %v1553 = vld [vmem:[%s1240 + $0x3f0] sm:$0xff]
        %v1554 = vld [vmem:[%s1240 + $0x3f8] sm:$0xff]
        %v1555 = vld [vmem:[%s1240 + $0x400] sm:$0xff]
        %v1556 = vld [vmem:[%s1240 + $0x408] sm:$0xff]
        %v1557 = vld [vmem:[%s1240 + $0x410] sm:$0xff]
        %v1558 = vld [vmem:[%s1240 + $0x418] sm:$0xff]
        %v1559 = vld [vmem:[%s1240 + $0x420] sm:$0xff]
        %v1560 = vld [vmem:[%s1240 + $0x428] sm:$0xff]
        %v1561 = vld [vmem:[%s1240 + $0x430] sm:$0xff]
        %v1562 = vld [vmem:[%s1240 + $0x438] sm:$0xff]
        %v1563 = vld [vmem:[%s1240 + $0x440] sm:$0xff]
        %v1564 = vld [vmem:[%s1240 + $0x448] sm:$0xff]
        %v1565 = vld [vmem:[%s1240 + $0x450] sm:$0xff]
        %v1566 = vld [vmem:[%s1240 + $0x458] sm:$0xff]
        %v1567 = vld [vmem:[%s1240 + $0x460] sm:$0xff]
        %v1568 = vld [vmem:[%s1240 + $0x468] sm:$0xff]
        %v1569 = vld [vmem:[%s1240 + $0x470] sm:$0xff]
        %v1570 = vld [vmem:[%s1240 + $0x478] sm:$0xff]
        %v1571 = vld [vmem:[%s1240 + $0x480] sm:$0xff]
        %v1572 = vld [vmem:[%s1240 + $0x488] sm:$0xff]
        %v1573 = vld [vmem:[%s1240 + $0x490] sm:$0xff]
        %v1574 = vld [vmem:[%s1240 + $0x498] sm:$0xff]
        %v1575 = vld [vmem:[%s1240 + $0x4a0] sm:$0xff]
        %v1576 = vld [vmem:[%s1240 + $0x4a8] sm:$0xff]
        %v1577 = vld [vmem:[%s1240 + $0x4b0] sm:$0xff]
        %v1578 = vld [vmem:[%s1240 + $0x4b8] sm:$0xff]
        %v1579 = vld [vmem:[%s1240 + $0x4c0] sm:$0xff]
        %v1580 = vld [vmem:[%s1240 + $0x4c8] sm:$0xff]
        %v1581 = vld [vmem:[%s1240 + $0x4d0] sm:$0xff]
        %v1582 = vld [vmem:[%s1240 + $0x4d8] sm:$0xff]
        %v1583 = vld [vmem:[%s1240 + $0x4e0] sm:$0xff]
        %v1584 = vld [vmem:[%s1240 + $0x4e8] sm:$0xff]
        %v1585 = vld [vmem:[%s1240 + $0x4f0] sm:$0xff]
        %v1586 = vld [vmem:[%s1240 + $0x4f8] sm:$0xff]
        %v1587 = vld [vmem:[%s1240 + $0x500] sm:$0xff]
        %v1588 = vld [vmem:[%s1240 + $0x508] sm:$0xff]
        %v1589 = vld [vmem:[%s1240 + $0x510] sm:$0xff]
        %v1590 = vld [vmem:[%s1240 + $0x518] sm:$0xff]
        %v1591 = vld [vmem:[%s1240 + $0x520] sm:$0xff]
        %v1592 = vld [vmem:[%s1240 + $0x528] sm:$0xff]
        %v1593 = vld [vmem:[%s1240 + $0x530] sm:$0xff]
        %v1594 = vld [vmem:[%s1240 + $0x538] sm:$0xff]
        %v1595 = vld [vmem:[%s1240 + $0x540] sm:$0xff]
        %v1596 = vld [vmem:[%s1240 + $0x548] sm:$0xff]
        %v1597 = vld [vmem:[%s1240 + $0x550] sm:$0xff]
        %v1598 = vld [vmem:[%s1240 + $0x558] sm:$0xff]
        %v1599 = vld [vmem:[%s1240 + $0x560] sm:$0xff]
        %v1600 = vld [vmem:[%s1240 + $0x568] sm:$0xff]
        %v1601 = vld [vmem:[%s1240 + $0x570] sm:$0xff]
        %v1602 = vld [vmem:[%s1240 + $0x578] sm:$0xff]
        %v1603 = vld [vmem:[%s1240 + $0x580] sm:$0xff]
        %v1604 = vld [vmem:[%s1240 + $0x588] sm:$0xff]
        %v1605 = vld [vmem:[%s1240 + $0x590] sm:$0xff]
        %v1606 = vld [vmem:[%s1240 + $0x598] sm:$0xff]
        %v1607 = vld [vmem:[%s1240 + $0x5a0] sm:$0xff]
        %v1608 = vld [vmem:[%s1240 + $0x5a8] sm:$0xff]
        %v1609 = vld [vmem:[%s1240 + $0x5b0] sm:$0xff]
        %v1610 = vld [vmem:[%s1240 + $0x5b8] sm:$0xff]
        %v1611 = vld [vmem:[%s1240 + $0x5c0] sm:$0xff]
        %v1612 = vld [vmem:[%s1240 + $0x5c8] sm:$0xff]
        %v1613 = vld [vmem:[%s1240 + $0x5d0] sm:$0xff]
        %v1614 = vld [vmem:[%s1240 + $0x5d8] sm:$0xff]
        %v1615 = vld [vmem:[%s1240 + $0x5e0] sm:$0xff]
        %v1616 = vld [vmem:[%s1240 + $0x5e8] sm:$0xff]
        %v1617 = vld [vmem:[%s1240 + $0x5f0] sm:$0xff]
        %v1618 = vld [vmem:[%s1240 + $0x5f8] sm:$0xff]
        %v1619 = vld [vmem:[%s1240 + $0x600] sm:$0xff]
        %v1620 = vld [vmem:[%s1240 + $0x608] sm:$0xff]
        %v1621 = vld [vmem:[%s1240 + $0x610] sm:$0xff]
        %v1622 = vld [vmem:[%s1240 + $0x618] sm:$0xff]
        %v1623 = vld [vmem:[%s1240 + $0x620] sm:$0xff]
        %v1624 = vld [vmem:[%s1240 + $0x628] sm:$0xff]
        %v1625 = vld [vmem:[%s1240 + $0x630] sm:$0xff]
        %v1626 = vld [vmem:[%s1240 + $0x638] sm:$0xff]
        %v1627 = vld [vmem:[%s1240 + $0x640] sm:$0xff]
        %v1628 = vld [vmem:[%s1240 + $0x648] sm:$0xff]
        %v1629 = vld [vmem:[%s1240 + $0x650] sm:$0xff]
        %v1630 = vld [vmem:[%s1240 + $0x658] sm:$0xff]
        %v1631 = vld [vmem:[%s1240 + $0x660] sm:$0xff]
        %v1632 = vld [vmem:[%s1240 + $0x668] sm:$0xff]
        %v1633 = vld [vmem:[%s1240 + $0x670] sm:$0xff]
        %v1634 = vld [vmem:[%s1240 + $0x678] sm:$0xff]
        %v1635 = vld [vmem:[%s1240 + $0x680] sm:$0xff]
        %v1636 = vld [vmem:[%s1240 + $0x688] sm:$0xff]
        %v1637 = vld [vmem:[%s1240 + $0x690] sm:$0xff]
        %v1638 = vld [vmem:[%s1240 + $0x698] sm:$0xff]
        %v1639 = vld [vmem:[%s1240 + $0x6a0] sm:$0xff]
        %v1640 = vld [vmem:[%s1240 + $0x6a8] sm:$0xff]
        %v1641 = vld [vmem:[%s1240 + $0x6b0] sm:$0xff]
        %v1642 = vld [vmem:[%s1240 + $0x6b8] sm:$0xff]
        %v1643 = vld [vmem:[%s1240 + $0x6c0] sm:$0xff]
        %v1644 = vld [vmem:[%s1240 + $0x6c8] sm:$0xff]
        %v1645 = vld [vmem:[%s1240 + $0x6d0] sm:$0xff]
        %v1646 = vld [vmem:[%s1240 + $0x6d8] sm:$0xff]
        %v1647 = vld [vmem:[%s1240 + $0x6e0] sm:$0xff]
        %v1648 = vld [vmem:[%s1240 + $0x6e8] sm:$0xff]
        %v1649 = vld [vmem:[%s1240 + $0x6f0] sm:$0xff]
        %v1650 = vld [vmem:[%s1240 + $0x6f8] sm:$0xff]
        %v1651 = vld [vmem:[%s1240 + $0x700] sm:$0xff]
        %v1652 = vld [vmem:[%s1240 + $0x708] sm:$0xff]
        %v1653 = vld [vmem:[%s1240 + $0x710] sm:$0xff]
        %v1654 = vld [vmem:[%s1240 + $0x718] sm:$0xff]
        %v1655 = vld [vmem:[%s1240 + $0x720] sm:$0xff]
        %v1656 = vld [vmem:[%s1240 + $0x728] sm:$0xff]
        %v1657 = vld [vmem:[%s1240 + $0x730] sm:$0xff]
        %v1658 = vld [vmem:[%s1240 + $0x738] sm:$0xff]
        %v1659 = vld [vmem:[%s1240 + $0x740] sm:$0xff]
        %v1660 = vld [vmem:[%s1240 + $0x748] sm:$0xff]
        %v1661 = vld [vmem:[%s1240 + $0x750] sm:$0xff]
        %v1662 = vld [vmem:[%s1240 + $0x758] sm:$0xff]
        %v1663 = vld [vmem:[%s1240 + $0x760] sm:$0xff]
        %v1664 = vld [vmem:[%s1240 + $0x768] sm:$0xff]
        %v1665 = vld [vmem:[%s1240 + $0x770] sm:$0xff]
        %v1666 = vld [vmem:[%s1240 + $0x778] sm:$0xff]
        %v1667 = vld [vmem:[%s1240 + $0x780] sm:$0xff]
        %v1668 = vld [vmem:[%s1240 + $0x788] sm:$0xff]
        %v1669 = vld [vmem:[%s1240 + $0x790] sm:$0xff]
        %v1670 = vld [vmem:[%s1240 + $0x798] sm:$0xff]
        %v1671 = vld [vmem:[%s1240 + $0x7a0] sm:$0xff]
        %v1672 = vld [vmem:[%s1240 + $0x7a8] sm:$0xff]
        %v1673 = vld [vmem:[%s1240 + $0x7b0] sm:$0xff]
        %v1674 = vld [vmem:[%s1240 + $0x7b8] sm:$0xff]
        %v1675 = vld [vmem:[%s1240 + $0x7c0] sm:$0xff]
        %v1676 = vld [vmem:[%s1240 + $0x7c8] sm:$0xff]
        %v1677 = vld [vmem:[%s1240 + $0x7d0] sm:$0xff]
        %v1678 = vld [vmem:[%s1240 + $0x7d8] sm:$0xff]
        %v1679 = vld [vmem:[%s1240 + $0x7e0] sm:$0xff]
        %v1680 = vld [vmem:[%s1240 + $0x7e8] sm:$0xff]
        %v1681 = vld [vmem:[%s1240 + $0x7f0] sm:$0xff]
        %v1682 = vld [vmem:[%s1240 + $0x7f8] sm:$0xff]
        %v1683 = vld [vmem:[%s1240 + $0x800] sm:$0xff]
        %v1684 = vld [vmem:[%s1240 + $0x808] sm:$0xff]
        %v1685 = vld [vmem:[%s1240 + $0x810] sm:$0xff]
        %v1686 = vld [vmem:[%s1240 + $0x818] sm:$0xff]
        %v1687 = vld [vmem:[%s1240 + $0x820] sm:$0xff]
        %v1688 = vld [vmem:[%s1240 + $0x828] sm:$0xff]
        %v1689 = vld [vmem:[%s1240 + $0x830] sm:$0xff]
        %v1690 = vld [vmem:[%s1240 + $0x838] sm:$0xff]
        %v1691 = vld [vmem:[%s1240 + $0x840] sm:$0xff]
        %v1692 = vld [vmem:[%s1240 + $0x848] sm:$0xff]
        %v1693 = vld [vmem:[%s1240 + $0x850] sm:$0xff]
        %v1694 = vld [vmem:[%s1240 + $0x858] sm:$0xff]
        %v1695 = vld [vmem:[%s1240 + $0x860] sm:$0xff]
        %v1696 = vld [vmem:[%s1240 + $0x868] sm:$0xff]
        %v1697 = vld [vmem:[%s1240 + $0x870] sm:$0xff]
        %v1698 = vld [vmem:[%s1240 + $0x878] sm:$0xff]
        %v1699 = vld [vmem:[%s1240 + $0x880] sm:$0xff]
        %v1700 = vld [vmem:[%s1240 + $0x888] sm:$0xff]
        %v1701 = vld [vmem:[%s1240 + $0x890] sm:$0xff]
        %v1702 = vld [vmem:[%s1240 + $0x898] sm:$0xff]
        %v1703 = vld [vmem:[%s1240 + $0x8a0] sm:$0xff]
        %v1704 = vld [vmem:[%s1240 + $0x8a8] sm:$0xff]
        %v1705 = vld [vmem:[%s1240 + $0x8b0] sm:$0xff]
        %v1706 = vld [vmem:[%s1240 + $0x8b8] sm:$0xff]
        %v1707 = vld [vmem:[%s1240 + $0x8c0] sm:$0xff]
        %v1708 = vld [vmem:[%s1240 + $0x8c8] sm:$0xff]
        %v1709 = vld [vmem:[%s1240 + $0x8d0] sm:$0xff]
        %v1710 = vld [vmem:[%s1240 + $0x8d8] sm:$0xff]
        %v1711 = vld [vmem:[%s1240 + $0x8e0] sm:$0xff]
        %v1712 = vld [vmem:[%s1240 + $0x8e8] sm:$0xff]
        %v1713 = vld [vmem:[%s1240 + $0x8f0] sm:$0xff]
        %v1714 = vld [vmem:[%s1240 + $0x8f8] sm:$0xff]
        %v1715 = vld [vmem:[%s1240 + $0x900] sm:$0xff]
        %v1716 = vld [vmem:[%s1240 + $0x908] sm:$0xff]
        %v1717 = vld [vmem:[%s1240 + $0x910] sm:$0xff]
        %v1718 = vld [vmem:[%s1240 + $0x918] sm:$0xff]
        %v1719 = vld [vmem:[%s1240 + $0x920] sm:$0xff]
        %v1720 = vld [vmem:[%s1240 + $0x928] sm:$0xff]
        %v1721 = vld [vmem:[%s1240 + $0x930] sm:$0xff]
        %v1722 = vld [vmem:[%s1240 + $0x938] sm:$0xff]
        %v1723 = vld [vmem:[%s1240 + $0x940] sm:$0xff]
        %v1724 = vld [vmem:[%s1240 + $0x948] sm:$0xff]
        %v1725 = vld [vmem:[%s1240 + $0x950] sm:$0xff]
        %v1726 = vld [vmem:[%s1240 + $0x958] sm:$0xff]
        %v1727 = vld [vmem:[%s1240 + $0x960] sm:$0xff]
        %v1728 = vld [vmem:[%s1240 + $0x968] sm:$0xff]
        %v1729 = vld [vmem:[%s1240 + $0x970] sm:$0xff]
        %v1730 = vld [vmem:[%s1240 + $0x978] sm:$0xff]
        %v1731 = vld [vmem:[%s1240 + $0x980] sm:$0xff]
        %v1732 = vld [vmem:[%s1240 + $0x988] sm:$0xff]
        %v1733 = vld [vmem:[%s1240 + $0x990] sm:$0xff]
        %v1734 = vld [vmem:[%s1240 + $0x998] sm:$0xff]
        %v1735 = vld [vmem:[%s1240 + $0x9a0] sm:$0xff]
        %v1736 = vld [vmem:[%s1240 + $0x9a8] sm:$0xff]
        %v1737 = vld [vmem:[%s1240 + $0x9b0] sm:$0xff]
        %v1738 = vld [vmem:[%s1240 + $0x9b8] sm:$0xff]
        %v1739 = vld [vmem:[%s1240 + $0x9c0] sm:$0xff]
        %v1740 = vld [vmem:[%s1240 + $0x9c8] sm:$0xff]
        %v1741 = vld [vmem:[%s1240 + $0x9d0] sm:$0xff]
        %v1742 = vld [vmem:[%s1240 + $0x9d8] sm:$0xff]
        %v1743 = vld [vmem:[%s1240 + $0x9e0] sm:$0xff]
        %v1744 = vld [vmem:[%s1240 + $0x9e8] sm:$0xff]
        %v1745 = vld [vmem:[%s1240 + $0x9f0] sm:$0xff]
        %v1746 = vld [vmem:[%s1240 + $0x9f8] sm:$0xff]
        %v1747 = vld [vmem:[%s1240 + $0xa00] sm:$0xff]
        %v1748 = vld [vmem:[%s1240 + $0xa08] sm:$0xff]
        %v1749 = vld [vmem:[%s1240 + $0xa10] sm:$0xff]
        %v1750 = vld [vmem:[%s1240 + $0xa18] sm:$0xff]
        %v1751 = vld [vmem:[%s1240 + $0xa20] sm:$0xff]
        %v1752 = vld [vmem:[%s1240 + $0xa28] sm:$0xff]
        %v1753 = vld [vmem:[%s1240 + $0xa30] sm:$0xff]
        %v1754 = vld [vmem:[%s1240 + $0xa38] sm:$0xff]
        %v1755 = vld [vmem:[%s1240 + $0xa40] sm:$0xff]
        %v1756 = vld [vmem:[%s1240 + $0xa48] sm:$0xff]
        %v1757 = vld [vmem:[%s1240 + $0xa50] sm:$0xff]
        %v1758 = vld [vmem:[%s1240 + $0xa58] sm:$0xff]
        %v1759 = vld [vmem:[%s1240 + $0xa60] sm:$0xff]
        %v1760 = vld [vmem:[%s1240 + $0xa68] sm:$0xff]
        %v1761 = vld [vmem:[%s1240 + $0xa70] sm:$0xff]
        %v1762 = vld [vmem:[%s1240 + $0xa78] sm:$0xff]
        %v1763 = vld [vmem:[%s1240 + $0xa80] sm:$0xff]
        %v1764 = vld [vmem:[%s1240 + $0xa88] sm:$0xff]
        %v1765 = vld [vmem:[%s1240 + $0xa90] sm:$0xff]
        %v1766 = vld [vmem:[%s1240 + $0xa98] sm:$0xff]
        %v1767 = vld [vmem:[%s1240 + $0xaa0] sm:$0xff]
        %v1768 = vld [vmem:[%s1240 + $0xaa8] sm:$0xff]
        %v1769 = vld [vmem:[%s1240 + $0xab0] sm:$0xff]
        %v1770 = vld [vmem:[%s1240 + $0xab8] sm:$0xff]
        %v1771 = vld [vmem:[%s1240 + $0xac0] sm:$0xff]
        %v1772 = vld [vmem:[%s1240 + $0xac8] sm:$0xff]
        %v1773 = vld [vmem:[%s1240 + $0xad0] sm:$0xff]
        %v1774 = vld [vmem:[%s1240 + $0xad8] sm:$0xff]
        %v1775 = vld [vmem:[%s1240 + $0xae0] sm:$0xff]
        %v1776 = vld [vmem:[%s1240 + $0xae8] sm:$0xff]
        %v1777 = vld [vmem:[%s1240 + $0xaf0] sm:$0xff]
        %v1778 = vld [vmem:[%s1240 + $0xaf8] sm:$0xff]
        %v1779 = vld [vmem:[%s1240 + $0xb00] sm:$0xff]
        %v1780 = vld [vmem:[%s1240 + $0xb08] sm:$0xff]
        %v1781 = vld [vmem:[%s1240 + $0xb10] sm:$0xff]
        %v1782 = vld [vmem:[%s1240 + $0xb18] sm:$0xff]
        %v1783 = vld [vmem:[%s1240 + $0xb20] sm:$0xff]
        %v1784 = vld [vmem:[%s1240 + $0xb28] sm:$0xff]
        %v1785 = vld [vmem:[%s1240 + $0xb30] sm:$0xff]
        %v1786 = vld [vmem:[%s1240 + $0xb38] sm:$0xff]
        %v1787 = vld [vmem:[%s1240 + $0xb40] sm:$0xff]
        %v1788 = vld [vmem:[%s1240 + $0xb48] sm:$0xff]
        %v1789 = vld [vmem:[%s1240 + $0xb50] sm:$0xff]
        %v1790 = vld [vmem:[%s1240 + $0xb58] sm:$0xff]
        %v1791 = vld [vmem:[%s1240 + $0xb60] sm:$0xff]
        %v1792 = vld [vmem:[%s1240 + $0xb68] sm:$0xff]
        %v1793 = vld [vmem:[%s1240 + $0xb70] sm:$0xff]
        %v1794 = vld [vmem:[%s1240 + $0xb78] sm:$0xff]
        %v1795 = vld [vmem:[%s1240 + $0xb80] sm:$0xff]
        %v1796 = vld [vmem:[%s1240 + $0xb88] sm:$0xff]
        %v1797 = vld [vmem:[%s1240 + $0xb90] sm:$0xff]
        %v1798 = vld [vmem:[%s1240 + $0xb98] sm:$0xff]
        %v1799 = vld [vmem:[%s1240 + $0xba0] sm:$0xff]
        %v1800 = vld [vmem:[%s1240 + $0xba8] sm:$0xff]
        %v1801 = vld [vmem:[%s1240 + $0xbb0] sm:$0xff]
        %v1802 = vld [vmem:[%s1240 + $0xbb8] sm:$0xff]
        %v1803 = vld [vmem:[%s1240 + $0xbc0] sm:$0xff]
        %v1804 = vld [vmem:[%s1240 + $0xbc8] sm:$0xff]
        %v1805 = vld [vmem:[%s1240 + $0xbd0] sm:$0xff]
        %v1806 = vld [vmem:[%s1240 + $0xbd8] sm:$0xff]
        %v1807 = vld [vmem:[%s1240 + $0xbe0] sm:$0xff]
        %v1808 = vld [vmem:[%s1240 + $0xbe8] sm:$0xff]
        %v1809 = vld [vmem:[%s1240 + $0xbf0] sm:$0xff]
        %v1810 = vld [vmem:[%s1240 + $0xbf8] sm:$0xff]
        %v1811 = vld [vmem:[%s1240 + $0xc00] sm:$0xff]
        %v1812 = vld [vmem:[%s1240 + $0xc08] sm:$0xff]
        %v1813 = vld [vmem:[%s1240 + $0xc10] sm:$0xff]
        %v1814 = vld [vmem:[%s1240 + $0xc18] sm:$0xff]
        %v1815 = vld [vmem:[%s1240 + $0xc20] sm:$0xff]
        %v1816 = vld [vmem:[%s1240 + $0xc28] sm:$0xff]
        %v1817 = vld [vmem:[%s1240 + $0xc30] sm:$0xff]
        %v1818 = vld [vmem:[%s1240 + $0xc38] sm:$0xff]
        %v1819 = vld [vmem:[%s1240 + $0xc40] sm:$0xff]
        %v1820 = vld [vmem:[%s1240 + $0xc48] sm:$0xff]
        %v1821 = vld [vmem:[%s1240 + $0xc50] sm:$0xff]
        %v1822 = vld [vmem:[%s1240 + $0xc58] sm:$0xff]
        %v1823 = vld [vmem:[%s1240 + $0xc60] sm:$0xff]
        %v1824 = vld [vmem:[%s1240 + $0xc68] sm:$0xff]
        %v1825 = vld [vmem:[%s1240 + $0xc70] sm:$0xff]
        %v1826 = vld [vmem:[%s1240 + $0xc78] sm:$0xff]
        %v1827 = vld [vmem:[%s1240 + $0xc80] sm:$0xff]
        %v1828 = vld [vmem:[%s1240 + $0xc88] sm:$0xff]
        %v1829 = vld [vmem:[%s1240 + $0xc90] sm:$0xff]
        %v1830 = vld [vmem:[%s1240 + $0xc98] sm:$0xff]
        %v1831 = vld [vmem:[%s1240 + $0xca0] sm:$0xff]
        %v1832 = vld [vmem:[%s1240 + $0xca8] sm:$0xff]
        %v1833 = vld [vmem:[%s1240 + $0xcb0] sm:$0xff]
        %v1834 = vld [vmem:[%s1240 + $0xcb8] sm:$0xff]
        %v1835 = vld [vmem:[%s1240 + $0xcc0] sm:$0xff]
        %v1836 = vld [vmem:[%s1240 + $0xcc8] sm:$0xff]
        %v1837 = vld [vmem:[%s1240 + $0xcd0] sm:$0xff]
        %v1838 = vld [vmem:[%s1240 + $0xcd8] sm:$0xff]
        %v1839 = vld [vmem:[%s1240 + $0xce0] sm:$0xff]
        %v1840 = vld [vmem:[%s1240 + $0xce8] sm:$0xff]
        %v1841 = vld [vmem:[%s1240 + $0xcf0] sm:$0xff]
        %v1842 = vld [vmem:[%s1240 + $0xcf8] sm:$0xff]
        %v1843 = vld [vmem:[%s1240 + $0xd00] sm:$0xff]
        %v1844 = vld [vmem:[%s1240 + $0xd08] sm:$0xff]
        %v1845 = vld [vmem:[%s1240 + $0xd10] sm:$0xff]
        %v1846 = vld [vmem:[%s1240 + $0xd18] sm:$0xff]
        %v1847 = vld [vmem:[%s1240 + $0xd20] sm:$0xff]
        %v1848 = vld [vmem:[%s1240 + $0xd28] sm:$0xff]
        %v1849 = vld [vmem:[%s1240 + $0xd30] sm:$0xff]
        %v1850 = vld [vmem:[%s1240 + $0xd38] sm:$0xff]
        %v1851 = vld [vmem:[%s1240 + $0xd40] sm:$0xff]
        %v1852 = vld [vmem:[%s1240 + $0xd48] sm:$0xff]
        %v1853 = vld [vmem:[%s1240 + $0xd50] sm:$0xff]
        %v1854 = vld [vmem:[%s1240 + $0xd58] sm:$0xff]
        %v1855 = vld [vmem:[%s1240 + $0xd60] sm:$0xff]
        %v1856 = vld [vmem:[%s1240 + $0xd68] sm:$0xff]
        %v1857 = vld [vmem:[%s1240 + $0xd70] sm:$0xff]
        %v1858 = vld [vmem:[%s1240 + $0xd78] sm:$0xff]
        %v1859 = vld [vmem:[%s1240 + $0xd80] sm:$0xff]
        %v1860 = vld [vmem:[%s1240 + $0xd88] sm:$0xff]
        %v1861 = vld [vmem:[%s1240 + $0xd90] sm:$0xff]
        %v1862 = vld [vmem:[%s1240 + $0xd98] sm:$0xff]
        %v1863 = vld [vmem:[%s1240 + $0xda0] sm:$0xff]
        %v1864 = vld [vmem:[%s1240 + $0xda8] sm:$0xff]
        %v1865 = vld [vmem:[%s1240 + $0xdb0] sm:$0xff]
        %v1866 = vld [vmem:[%s1240 + $0xdb8] sm:$0xff]
        %v1867 = vld [vmem:[%s1240 + $0xdc0] sm:$0xff]
        %v1868 = vld [vmem:[%s1240 + $0xdc8] sm:$0xff]
        %v1869 = vld [vmem:[%s1240 + $0xdd0] sm:$0xff]
        %v1870 = vld [vmem:[%s1240 + $0xdd8] sm:$0xff]
        %v1871 = vld [vmem:[%s1240 + $0xde0] sm:$0xff]
        %v1872 = vld [vmem:[%s1240 + $0xde8] sm:$0xff]
        %v1873 = vld [vmem:[%s1240 + $0xdf0] sm:$0xff]
        %v1874 = vld [vmem:[%s1240 + $0xdf8] sm:$0xff]
        %v1875 = vld [vmem:[%s1240 + $0xe00] sm:$0xff]
        %v1876 = vld [vmem:[%s1240 + $0xe08] sm:$0xff]
        %v1877 = vld [vmem:[%s1240 + $0xe10] sm:$0xff]
        %v1878 = vld [vmem:[%s1240 + $0xe18] sm:$0xff]
        %v1879 = vld [vmem:[%s1240 + $0xe20] sm:$0xff]
        %v1880 = vld [vmem:[%s1240 + $0xe28] sm:$0xff]
        %v1881 = vld [vmem:[%s1240 + $0xe30] sm:$0xff]
        %v1882 = vld [vmem:[%s1240 + $0xe38] sm:$0xff]
        %v1883 = vld [vmem:[%s1240 + $0xe40] sm:$0xff]
        %v1884 = vld [vmem:[%s1240 + $0xe48] sm:$0xff]
        %v1885 = vld [vmem:[%s1240 + $0xe50] sm:$0xff]
        %v1886 = vld [vmem:[%s1240 + $0xe58] sm:$0xff]
        %v1887 = vld [vmem:[%s1240 + $0xe60] sm:$0xff]
        %v1888 = vld [vmem:[%s1240 + $0xe68] sm:$0xff]
        %v1889 = vld [vmem:[%s1240 + $0xe70] sm:$0xff]
        %v1890 = vld [vmem:[%s1240 + $0xe78] sm:$0xff]
        %v1891 = vld [vmem:[%s1240 + $0xe80] sm:$0xff]
        %v1892 = vld [vmem:[%s1240 + $0xe88] sm:$0xff]
        %v1893 = vld [vmem:[%s1240 + $0xe90] sm:$0xff]
        %v1894 = vld [vmem:[%s1240 + $0xe98] sm:$0xff]
        %v1895 = vld [vmem:[%s1240 + $0xea0] sm:$0xff]
        %v1896 = vld [vmem:[%s1240 + $0xea8] sm:$0xff]
        %v1897 = vld [vmem:[%s1240 + $0xeb0] sm:$0xff]
        %v1898 = vld [vmem:[%s1240 + $0xeb8] sm:$0xff]
        %v1899 = vld [vmem:[%s1240 + $0xec0] sm:$0xff]
        %v1900 = vld [vmem:[%s1240 + $0xec8] sm:$0xff]
        %v1901 = vld [vmem:[%s1240 + $0xed0] sm:$0xff]
        %v1902 = vld [vmem:[%s1240 + $0xed8] sm:$0xff]
        %v1903 = vld [vmem:[%s1240 + $0xee0] sm:$0xff]
        %v1904 = vld [vmem:[%s1240 + $0xee8] sm:$0xff]
        %v1905 = vld [vmem:[%s1240 + $0xef0] sm:$0xff]
        %v1906 = vld [vmem:[%s1240 + $0xef8] sm:$0xff]
        %v1907 = vld [vmem:[%s1240 + $0xf00] sm:$0xff]
        %v1908 = vld [vmem:[%s1240 + $0xf08] sm:$0xff]
        %v1909 = vld [vmem:[%s1240 + $0xf10] sm:$0xff]
        %v1910 = vld [vmem:[%s1240 + $0xf18] sm:$0xff]
        %v1911 = vld [vmem:[%s1240 + $0xf20] sm:$0xff]
        %v1912 = vld [vmem:[%s1240 + $0xf28] sm:$0xff]
        %v1913 = vld [vmem:[%s1240 + $0xf30] sm:$0xff]
        %v1914 = vld [vmem:[%s1240 + $0xf38] sm:$0xff]
        %v1915 = vld [vmem:[%s1240 + $0xf40] sm:$0xff]
        %v1916 = vld [vmem:[%s1240 + $0xf48] sm:$0xff]
        %v1917 = vld [vmem:[%s1240 + $0xf50] sm:$0xff]
        %v1918 = vld [vmem:[%s1240 + $0xf58] sm:$0xff]
        %v1919 = vld [vmem:[%s1240 + $0xf60] sm:$0xff]
        %v1920 = vld [vmem:[%s1240 + $0xf68] sm:$0xff]
        %v1921 = vld [vmem:[%s1240 + $0xf70] sm:$0xff]
        %v1922 = vld [vmem:[%s1240 + $0xf78] sm:$0xff]
        %v1923 = vld [vmem:[%s1240 + $0xf80] sm:$0xff]
        %v1924 = vld [vmem:[%s1240 + $0xf88] sm:$0xff]
        %v1925 = vld [vmem:[%s1240 + $0xf90] sm:$0xff]
        %v1926 = vld [vmem:[%s1240 + $0xf98] sm:$0xff]
        %v1927 = vld [vmem:[%s1240 + $0xfa0] sm:$0xff]
        %v1928 = vld [vmem:[%s1240 + $0xfa8] sm:$0xff]
        %v1929 = vld [vmem:[%s1240 + $0xfb0] sm:$0xff]
        %v1930 = vld [vmem:[%s1240 + $0xfb8] sm:$0xff]
        %v1931 = vld [vmem:[%s1240 + $0xfc0] sm:$0xff]
        %v1932 = vld [vmem:[%s1240 + $0xfc8] sm:$0xff]
        %v1933 = vld [vmem:[%s1240 + $0xfd0] sm:$0xff]
        %v1934 = vld [vmem:[%s1240 + $0xfd8] sm:$0xff]
        %v1935 = vld [vmem:[%s1240 + $0xfe0] sm:$0xff]
        %v1936 = vld [vmem:[%s1240 + $0xfe8] sm:$0xff]
        %v1937 = vld [vmem:[%s1240 + $0xff0] sm:$0xff]
        %v1938 = vld [vmem:[%s1240 + $0xff8] sm:$0xff]
        %1939 = vmatprep.subr.mxu0 %v1428
        %1940 = vmatpush1.msra.mxu0 %v1427
        %1941 = vmatprep.subr.mxu0 %v1444
        %1942 = vmatpush1.msra.mxu0 %v1443
        %1943 = vmatprep.subr.mxu0 %v1460
        %1944 = vmatpush1.msra.mxu0 %v1459
        %1945 = vmatprep.subr.mxu0 %v1476
        %1946 = vmatpush1.msra.mxu0 %v1475
        %1947 = vmatprep.subr.mxu0 %v1492
        %1948 = vmatpush1.msra.mxu0 %v1491
        %1949 = vmatprep.subr.mxu0 %v1508
        %1950 = vmatpush1.msra.mxu0 %v1507
        %1951 = vmatprep.subr.mxu0 %v1524
        %1952 = vmatpush1.msra.mxu0 %v1523
        %1953 = vmatprep.subr.mxu0 %v1540
        %1954 = vmatpush1.msra.mxu0 %v1539
        %1955 = vmatprep.subr.mxu0 %v1556
        %1956 = vmatpush1.msra.mxu0 %v1555
        %1957 = vmatprep.subr.mxu0 %v1572
        %1958 = vmatpush1.msra.mxu0 %v1571
        %1959 = vmatprep.subr.mxu0 %v1588
        %1960 = vmatpush1.msra.mxu0 %v1587
        %1961 = vmatprep.subr.mxu0 %v1604
        %1962 = vmatpush1.msra.mxu0 %v1603
        %1963 = vmatprep.subr.mxu0 %v1620
        %1964 = vmatpush1.msra.mxu0 %v1619
        %1965 = vmatprep.subr.mxu0 %v1636
        %1966 = vmatpush1.msra.mxu0 %v1635
        %1967 = vmatprep.subr.mxu0 %v1652
        %1968 = vmatpush1.msra.mxu0 %v1651
        %1969 = vmatprep.subr.mxu0 %v1668
        %1970 = vmatpush1.msra.mxu0 %v1667
        %1971 = vmatprep.subr.mxu0 %v1684
        %1972 = vmatpush1.msra.mxu0 %v1683
        %1973 = vmatprep.subr.mxu0 %v1700
        %1974 = vmatpush1.msra.mxu0 %v1699
        %1975 = vmatprep.subr.mxu0 %v1716
        %1976 = vmatpush1.msra.mxu0 %v1715
        %1977 = vmatprep.subr.mxu0 %v1732
        %1978 = vmatpush1.msra.mxu0 %v1731
        %1979 = vmatprep.subr.mxu0 %v1748
        %1980 = vmatpush1.msra.mxu0 %v1747
        %1981 = vmatprep.subr.mxu0 %v1764
        %1982 = vmatpush1.msra.mxu0 %v1763
        %1983 = vmatprep.subr.mxu0 %v1780
        %1984 = vmatpush1.msra.mxu0 %v1779
        %1985 = vmatprep.subr.mxu0 %v1796
        %1986 = vmatpush1.msra.mxu0 %v1795
        %1987 = vmatprep.subr.mxu0 %v1812
        %1988 = vmatpush1.msra.mxu0 %v1811
        %1989 = vmatprep.subr.mxu0 %v1828
        %1990 = vmatpush1.msra.mxu0 %v1827
        %1991 = vmatprep.subr.mxu0 %v1844
        %1992 = vmatpush1.msra.mxu0 %v1843
        %1993 = vmatprep.subr.mxu0 %v1860
        %1994 = vmatpush1.msra.mxu0 %v1859
        %1995 = vmatprep.subr.mxu0 %v1876
        %1996 = vmatpush1.msra.mxu0 %v1875
        %1997 = vmatprep.subr.mxu0 %v1892
        %1998 = vmatpush1.msra.mxu0 %v1891
        %1999 = vmatprep.subr.mxu0 %v1908
        %2000 = vmatpush1.msra.mxu0 %v1907
        %2001 = vmatprep.subr.mxu0 %v1924
        %2002 = vmatpush1.msra.mxu0 %v1923
        %2003 = vmatprep.mubr.f32.mxu0 %v1426
        %2004 = vmatmul.mubr.f32.gmra.mrb[0].mxu0 %v1425
        %v2005 = vpop.f32.mrb[0].mxu0
        %v2006 = vadd.f32 0.0, %v2005
        %v2007 = vpop.f32.mrb[0].mxu0
        %v2008 = vadd.f32 0.0, %v2007
        %2009 = vdwg.mxu0
        %2010 = vmatprep.subr.mxu0 %v1430
        %2011 = vmatpush1.msra.mxu0 %v1429
        %2012 = vmatprep.subr.mxu0 %v1446
        %2013 = vmatpush1.msra.mxu0 %v1445
        %2014 = vmatprep.subr.mxu0 %v1462
        %2015 = vmatpush1.msra.mxu0 %v1461
        %2016 = vmatprep.subr.mxu0 %v1478
        %2017 = vmatpush1.msra.mxu0 %v1477
        %2018 = vmatprep.subr.mxu0 %v1494
        %2019 = vmatpush1.msra.mxu0 %v1493
        %2020 = vmatprep.subr.mxu0 %v1510
        %2021 = vmatpush1.msra.mxu0 %v1509
        %2022 = vmatprep.subr.mxu0 %v1526
        %2023 = vmatpush1.msra.mxu0 %v1525
        %2024 = vmatprep.subr.mxu0 %v1542
        %2025 = vmatpush1.msra.mxu0 %v1541
        %2026 = vmatprep.subr.mxu0 %v1558
        %2027 = vmatpush1.msra.mxu0 %v1557
        %2028 = vmatprep.subr.mxu0 %v1574
        %2029 = vmatpush1.msra.mxu0 %v1573
        %2030 = vmatprep.subr.mxu0 %v1590
        %2031 = vmatpush1.msra.mxu0 %v1589
        %2032 = vmatprep.subr.mxu0 %v1606
        %2033 = vmatpush1.msra.mxu0 %v1605
        %2034 = vmatprep.subr.mxu0 %v1622
        %2035 = vmatpush1.msra.mxu0 %v1621
        %2036 = vmatprep.subr.mxu0 %v1638
        %2037 = vmatpush1.msra.mxu0 %v1637
        %2038 = vmatprep.subr.mxu0 %v1654
        %2039 = vmatpush1.msra.mxu0 %v1653
        %2040 = vmatprep.subr.mxu0 %v1670
        %2041 = vmatpush1.msra.mxu0 %v1669
        %2042 = vmatprep.subr.mxu0 %v1686
        %2043 = vmatpush1.msra.mxu0 %v1685
        %2044 = vmatprep.subr.mxu0 %v1702
        %2045 = vmatpush1.msra.mxu0 %v1701
        %2046 = vmatprep.subr.mxu0 %v1718
        %2047 = vmatpush1.msra.mxu0 %v1717
        %2048 = vmatprep.subr.mxu0 %v1734
        %2049 = vmatpush1.msra.mxu0 %v1733
        %2050 = vmatprep.subr.mxu0 %v1750
        %2051 = vmatpush1.msra.mxu0 %v1749
        %2052 = vmatprep.subr.mxu0 %v1766
        %2053 = vmatpush1.msra.mxu0 %v1765
        %2054 = vmatprep.subr.mxu0 %v1782
        %2055 = vmatpush1.msra.mxu0 %v1781
        %2056 = vmatprep.subr.mxu0 %v1798
        %2057 = vmatpush1.msra.mxu0 %v1797
        %2058 = vmatprep.subr.mxu0 %v1814
        %2059 = vmatpush1.msra.mxu0 %v1813
        %2060 = vmatprep.subr.mxu0 %v1830
        %2061 = vmatpush1.msra.mxu0 %v1829
        %2062 = vmatprep.subr.mxu0 %v1846
        %2063 = vmatpush1.msra.mxu0 %v1845
        %2064 = vmatprep.subr.mxu0 %v1862
        %2065 = vmatpush1.msra.mxu0 %v1861
        %2066 = vmatprep.subr.mxu0 %v1878
        %2067 = vmatpush1.msra.mxu0 %v1877
        %2068 = vmatprep.subr.mxu0 %v1894
        %2069 = vmatpush1.msra.mxu0 %v1893
        %2070 = vmatprep.subr.mxu0 %v1910
        %2071 = vmatpush1.msra.mxu0 %v1909
        %2072 = vmatprep.subr.mxu0 %v1926
        %2073 = vmatpush1.msra.mxu0 %v1925
        %2074 = vmatprep.mubr.f32.mxu0 %v1426
        %2075 = vmatmul.mubr.f32.gmra.mrb[0].mxu0 %v1425
        %v2076 = vpop.f32.mrb[0].mxu0
        %v2077 = vadd.f32 0.0, %v2076
        %v2078 = vpop.f32.mrb[0].mxu0
        %v2079 = vadd.f32 0.0, %v2078
        %2080 = vdwg.mxu0
        %2081 = vmatprep.subr.mxu0 %v1432
        %2082 = vmatpush1.msra.mxu0 %v1431
        %2083 = vmatprep.subr.mxu0 %v1448
        %2084 = vmatpush1.msra.mxu0 %v1447
        %2085 = vmatprep.subr.mxu0 %v1464
        %2086 = vmatpush1.msra.mxu0 %v1463
        %2087 = vmatprep.subr.mxu0 %v1480
        %2088 = vmatpush1.msra.mxu0 %v1479
        %2089 = vmatprep.subr.mxu0 %v1496
        %2090 = vmatpush1.msra.mxu0 %v1495
        %2091 = vmatprep.subr.mxu0 %v1512
        %2092 = vmatpush1.msra.mxu0 %v1511
        %2093 = vmatprep.subr.mxu0 %v1528
        %2094 = vmatpush1.msra.mxu0 %v1527
        %2095 = vmatprep.subr.mxu0 %v1544
        %2096 = vmatpush1.msra.mxu0 %v1543
        %2097 = vmatprep.subr.mxu0 %v1560
        %2098 = vmatpush1.msra.mxu0 %v1559
        %2099 = vmatprep.subr.mxu0 %v1576
        %2100 = vmatpush1.msra.mxu0 %v1575
        %2101 = vmatprep.subr.mxu0 %v1592
        %2102 = vmatpush1.msra.mxu0 %v1591
        %2103 = vmatprep.subr.mxu0 %v1608
        %2104 = vmatpush1.msra.mxu0 %v1607
        %2105 = vmatprep.subr.mxu0 %v1624
        %2106 = vmatpush1.msra.mxu0 %v1623
        %2107 = vmatprep.subr.mxu0 %v1640
        %2108 = vmatpush1.msra.mxu0 %v1639
        %2109 = vmatprep.subr.mxu0 %v1656
        %2110 = vmatpush1.msra.mxu0 %v1655
        %2111 = vmatprep.subr.mxu0 %v1672
        %2112 = vmatpush1.msra.mxu0 %v1671
        %2113 = vmatprep.subr.mxu0 %v1688
        %2114 = vmatpush1.msra.mxu0 %v1687
        %2115 = vmatprep.subr.mxu0 %v1704
        %2116 = vmatpush1.msra.mxu0 %v1703
        %2117 = vmatprep.subr.mxu0 %v1720
        %2118 = vmatpush1.msra.mxu0 %v1719
        %2119 = vmatprep.subr.mxu0 %v1736
        %2120 = vmatpush1.msra.mxu0 %v1735
        %2121 = vmatprep.subr.mxu0 %v1752
        %2122 = vmatpush1.msra.mxu0 %v1751
        %2123 = vmatprep.subr.mxu0 %v1768
        %2124 = vmatpush1.msra.mxu0 %v1767
        %2125 = vmatprep.subr.mxu0 %v1784
        %2126 = vmatpush1.msra.mxu0 %v1783
        %2127 = vmatprep.subr.mxu0 %v1800
        %2128 = vmatpush1.msra.mxu0 %v1799
        %2129 = vmatprep.subr.mxu0 %v1816
        %2130 = vmatpush1.msra.mxu0 %v1815
        %2131 = vmatprep.subr.mxu0 %v1832
        %2132 = vmatpush1.msra.mxu0 %v1831
        %2133 = vmatprep.subr.mxu0 %v1848
        %2134 = vmatpush1.msra.mxu0 %v1847
        %2135 = vmatprep.subr.mxu0 %v1864
        %2136 = vmatpush1.msra.mxu0 %v1863
        %2137 = vmatprep.subr.mxu0 %v1880
        %2138 = vmatpush1.msra.mxu0 %v1879
        %2139 = vmatprep.subr.mxu0 %v1896
        %2140 = vmatpush1.msra.mxu0 %v1895
        %2141 = vmatprep.subr.mxu0 %v1912
        %2142 = vmatpush1.msra.mxu0 %v1911
        %2143 = vmatprep.subr.mxu0 %v1928
        %2144 = vmatpush1.msra.mxu0 %v1927
        %2145 = vmatprep.mubr.f32.mxu0 %v1426
        %2146 = vmatmul.mubr.f32.gmra.mrb[0].mxu0 %v1425
        %v2147 = vpop.f32.mrb[0].mxu0
        %v2148 = vadd.f32 0.0, %v2147
        %v2149 = vpop.f32.mrb[0].mxu0
        %v2150 = vadd.f32 0.0, %v2149
        %2151 = vdwg.mxu0
        %2152 = vmatprep.subr.mxu0 %v1434
        %2153 = vmatpush1.msra.mxu0 %v1433
        %2154 = vmatprep.subr.mxu0 %v1450
        %2155 = vmatpush1.msra.mxu0 %v1449
        %2156 = vmatprep.subr.mxu0 %v1466
        %2157 = vmatpush1.msra.mxu0 %v1465
        %2158 = vmatprep.subr.mxu0 %v1482
        %2159 = vmatpush1.msra.mxu0 %v1481
        %2160 = vmatprep.subr.mxu0 %v1498
        %2161 = vmatpush1.msra.mxu0 %v1497
        %2162 = vmatprep.subr.mxu0 %v1514
        %2163 = vmatpush1.msra.mxu0 %v1513
        %2164 = vmatprep.subr.mxu0 %v1530
        %2165 = vmatpush1.msra.mxu0 %v1529
        %2166 = vmatprep.subr.mxu0 %v1546
        %2167 = vmatpush1.msra.mxu0 %v1545
        %2168 = vmatprep.subr.mxu0 %v1562
        %2169 = vmatpush1.msra.mxu0 %v1561
        %2170 = vmatprep.subr.mxu0 %v1578
        %2171 = vmatpush1.msra.mxu0 %v1577
        %2172 = vmatprep.subr.mxu0 %v1594
        %2173 = vmatpush1.msra.mxu0 %v1593
        %2174 = vmatprep.subr.mxu0 %v1610
        %2175 = vmatpush1.msra.mxu0 %v1609
        %2176 = vmatprep.subr.mxu0 %v1626
        %2177 = vmatpush1.msra.mxu0 %v1625
        %2178 = vmatprep.subr.mxu0 %v1642
        %2179 = vmatpush1.msra.mxu0 %v1641
        %2180 = vmatprep.subr.mxu0 %v1658
        %2181 = vmatpush1.msra.mxu0 %v1657
        %2182 = vmatprep.subr.mxu0 %v1674
        %2183 = vmatpush1.msra.mxu0 %v1673
        %2184 = vmatprep.subr.mxu0 %v1690
        %2185 = vmatpush1.msra.mxu0 %v1689
        %2186 = vmatprep.subr.mxu0 %v1706
        %2187 = vmatpush1.msra.mxu0 %v1705
        %2188 = vmatprep.subr.mxu0 %v1722
        %2189 = vmatpush1.msra.mxu0 %v1721
        %2190 = vmatprep.subr.mxu0 %v1738
        %2191 = vmatpush1.msra.mxu0 %v1737
        %2192 = vmatprep.subr.mxu0 %v1754
        %2193 = vmatpush1.msra.mxu0 %v1753
        %2194 = vmatprep.subr.mxu0 %v1770
        %2195 = vmatpush1.msra.mxu0 %v1769
        %2196 = vmatprep.subr.mxu0 %v1786
        %2197 = vmatpush1.msra.mxu0 %v1785
        %2198 = vmatprep.subr.mxu0 %v1802
        %2199 = vmatpush1.msra.mxu0 %v1801
        %2200 = vmatprep.subr.mxu0 %v1818
        %2201 = vmatpush1.msra.mxu0 %v1817
        %2202 = vmatprep.subr.mxu0 %v1834
        %2203 = vmatpush1.msra.mxu0 %v1833
        %2204 = vmatprep.subr.mxu0 %v1850
        %2205 = vmatpush1.msra.mxu0 %v1849
        %2206 = vmatprep.subr.mxu0 %v1866
        %2207 = vmatpush1.msra.mxu0 %v1865
        %2208 = vmatprep.subr.mxu0 %v1882
        %2209 = vmatpush1.msra.mxu0 %v1881
        %2210 = vmatprep.subr.mxu0 %v1898
        %2211 = vmatpush1.msra.mxu0 %v1897
        %2212 = vmatprep.subr.mxu0 %v1914
        %2213 = vmatpush1.msra.mxu0 %v1913
        %2214 = vmatprep.subr.mxu0 %v1930
        %2215 = vmatpush1.msra.mxu0 %v1929
        %2216 = vmatprep.mubr.f32.mxu0 %v1426
        %2217 = vmatmul.mubr.f32.gmra.mrb[0].mxu0 %v1425
        %v2218 = vpop.f32.mrb[0].mxu0
        %v2219 = vadd.f32 0.0, %v2218
        %v2220 = vpop.f32.mrb[0].mxu0
        %v2221 = vadd.f32 0.0, %v2220
        %2222 = vdwg.mxu0
        %2223 = vmatprep.subr.mxu0 %v1436
        %2224 = vmatpush1.msra.mxu0 %v1435
        %2225 = vmatprep.subr.mxu0 %v1452
        %2226 = vmatpush1.msra.mxu0 %v1451
        %2227 = vmatprep.subr.mxu0 %v1468
        %2228 = vmatpush1.msra.mxu0 %v1467
        %2229 = vmatprep.subr.mxu0 %v1484
        %2230 = vmatpush1.msra.mxu0 %v1483
        %2231 = vmatprep.subr.mxu0 %v1500
        %2232 = vmatpush1.msra.mxu0 %v1499
        %2233 = vmatprep.subr.mxu0 %v1516
        %2234 = vmatpush1.msra.mxu0 %v1515
        %2235 = vmatprep.subr.mxu0 %v1532
        %2236 = vmatpush1.msra.mxu0 %v1531
        %2237 = vmatprep.subr.mxu0 %v1548
        %2238 = vmatpush1.msra.mxu0 %v1547
        %2239 = vmatprep.subr.mxu0 %v1564
        %2240 = vmatpush1.msra.mxu0 %v1563
        %2241 = vmatprep.subr.mxu0 %v1580
        %2242 = vmatpush1.msra.mxu0 %v1579
        %2243 = vmatprep.subr.mxu0 %v1596
        %2244 = vmatpush1.msra.mxu0 %v1595
        %2245 = vmatprep.subr.mxu0 %v1612
        %2246 = vmatpush1.msra.mxu0 %v1611
        %2247 = vmatprep.subr.mxu0 %v1628
        %2248 = vmatpush1.msra.mxu0 %v1627
        %2249 = vmatprep.subr.mxu0 %v1644
        %2250 = vmatpush1.msra.mxu0 %v1643
        %2251 = vmatprep.subr.mxu0 %v1660
        %2252 = vmatpush1.msra.mxu0 %v1659
        %2253 = vmatprep.subr.mxu0 %v1676
        %2254 = vmatpush1.msra.mxu0 %v1675
        %2255 = vmatprep.subr.mxu0 %v1692
        %2256 = vmatpush1.msra.mxu0 %v1691
        %2257 = vmatprep.subr.mxu0 %v1708
        %2258 = vmatpush1.msra.mxu0 %v1707
        %2259 = vmatprep.subr.mxu0 %v1724
        %2260 = vmatpush1.msra.mxu0 %v1723
        %2261 = vmatprep.subr.mxu0 %v1740
        %2262 = vmatpush1.msra.mxu0 %v1739
        %2263 = vmatprep.subr.mxu0 %v1756
        %2264 = vmatpush1.msra.mxu0 %v1755
        %2265 = vmatprep.subr.mxu0 %v1772
        %2266 = vmatpush1.msra.mxu0 %v1771
        %2267 = vmatprep.subr.mxu0 %v1788
        %2268 = vmatpush1.msra.mxu0 %v1787
        %2269 = vmatprep.subr.mxu0 %v1804
        %2270 = vmatpush1.msra.mxu0 %v1803
        %2271 = vmatprep.subr.mxu0 %v1820
        %2272 = vmatpush1.msra.mxu0 %v1819
        %2273 = vmatprep.subr.mxu0 %v1836
        %2274 = vmatpush1.msra.mxu0 %v1835
        %2275 = vmatprep.subr.mxu0 %v1852
        %2276 = vmatpush1.msra.mxu0 %v1851
        %2277 = vmatprep.subr.mxu0 %v1868
        %2278 = vmatpush1.msra.mxu0 %v1867
        %2279 = vmatprep.subr.mxu0 %v1884
        %2280 = vmatpush1.msra.mxu0 %v1883
        %2281 = vmatprep.subr.mxu0 %v1900
        %2282 = vmatpush1.msra.mxu0 %v1899
        %2283 = vmatprep.subr.mxu0 %v1916
        %2284 = vmatpush1.msra.mxu0 %v1915
        %2285 = vmatprep.subr.mxu0 %v1932
        %2286 = vmatpush1.msra.mxu0 %v1931
        %2287 = vmatprep.mubr.f32.mxu0 %v1426
        %2288 = vmatmul.mubr.f32.gmra.mrb[0].mxu0 %v1425
        %v2289 = vpop.f32.mrb[0].mxu0
        %v2290 = vadd.f32 0.0, %v2289
        %v2291 = vpop.f32.mrb[0].mxu0
        %v2292 = vadd.f32 0.0, %v2291
        %2293 = vdwg.mxu0
        %2294 = vmatprep.subr.mxu0 %v1438
        %2295 = vmatpush1.msra.mxu0 %v1437
        %2296 = vmatprep.subr.mxu0 %v1454
        %2297 = vmatpush1.msra.mxu0 %v1453
        %2298 = vmatprep.subr.mxu0 %v1470
        %2299 = vmatpush1.msra.mxu0 %v1469
        %2300 = vmatprep.subr.mxu0 %v1486
        %2301 = vmatpush1.msra.mxu0 %v1485
        %2302 = vmatprep.subr.mxu0 %v1502
        %2303 = vmatpush1.msra.mxu0 %v1501
        %2304 = vmatprep.subr.mxu0 %v1518
        %2305 = vmatpush1.msra.mxu0 %v1517
        %2306 = vmatprep.subr.mxu0 %v1534
        %2307 = vmatpush1.msra.mxu0 %v1533
        %2308 = vmatprep.subr.mxu0 %v1550
        %2309 = vmatpush1.msra.mxu0 %v1549
        %2310 = vmatprep.subr.mxu0 %v1566
        %2311 = vmatpush1.msra.mxu0 %v1565
        %2312 = vmatprep.subr.mxu0 %v1582
        %2313 = vmatpush1.msra.mxu0 %v1581
        %2314 = vmatprep.subr.mxu0 %v1598
        %2315 = vmatpush1.msra.mxu0 %v1597
        %2316 = vmatprep.subr.mxu0 %v1614
        %2317 = vmatpush1.msra.mxu0 %v1613
        %2318 = vmatprep.subr.mxu0 %v1630
        %2319 = vmatpush1.msra.mxu0 %v1629
        %2320 = vmatprep.subr.mxu0 %v1646
        %2321 = vmatpush1.msra.mxu0 %v1645
        %2322 = vmatprep.subr.mxu0 %v1662
        %2323 = vmatpush1.msra.mxu0 %v1661
        %2324 = vmatprep.subr.mxu0 %v1678
        %2325 = vmatpush1.msra.mxu0 %v1677
        %2326 = vmatprep.subr.mxu0 %v1694
        %2327 = vmatpush1.msra.mxu0 %v1693
        %2328 = vmatprep.subr.mxu0 %v1710
        %2329 = vmatpush1.msra.mxu0 %v1709
        %2330 = vmatprep.subr.mxu0 %v1726
        %2331 = vmatpush1.msra.mxu0 %v1725
        %2332 = vmatprep.subr.mxu0 %v1742
        %2333 = vmatpush1.msra.mxu0 %v1741
        %2334 = vmatprep.subr.mxu0 %v1758
        %2335 = vmatpush1.msra.mxu0 %v1757
        %2336 = vmatprep.subr.mxu0 %v1774
        %2337 = vmatpush1.msra.mxu0 %v1773
        %2338 = vmatprep.subr.mxu0 %v1790
        %2339 = vmatpush1.msra.mxu0 %v1789
        %2340 = vmatprep.subr.mxu0 %v1806
        %2341 = vmatpush1.msra.mxu0 %v1805
        %2342 = vmatprep.subr.mxu0 %v1822
        %2343 = vmatpush1.msra.mxu0 %v1821
        %2344 = vmatprep.subr.mxu0 %v1838
        %2345 = vmatpush1.msra.mxu0 %v1837
        %2346 = vmatprep.subr.mxu0 %v1854
        %2347 = vmatpush1.msra.mxu0 %v1853
        %2348 = vmatprep.subr.mxu0 %v1870
        %2349 = vmatpush1.msra.mxu0 %v1869
        %2350 = vmatprep.subr.mxu0 %v1886
        %2351 = vmatpush1.msra.mxu0 %v1885
        %2352 = vmatprep.subr.mxu0 %v1902
        %2353 = vmatpush1.msra.mxu0 %v1901
        %2354 = vmatprep.subr.mxu0 %v1918
        %2355 = vmatpush1.msra.mxu0 %v1917
        %2356 = vmatprep.subr.mxu0 %v1934
        %2357 = vmatpush1.msra.mxu0 %v1933
        %2358 = vmatprep.mubr.f32.mxu0 %v1426
        %2359 = vmatmul.mubr.f32.gmra.mrb[0].mxu0 %v1425
        %v2360 = vpop.f32.mrb[0].mxu0
        %v2361 = vadd.f32 0.0, %v2360
        %v2362 = vpop.f32.mrb[0].mxu0
        %v2363 = vadd.f32 0.0, %v2362
        %2364 = vdwg.mxu0
        %2365 = vmatprep.subr.mxu0 %v1440
        %2366 = vmatpush1.msra.mxu0 %v1439
        %2367 = vmatprep.subr.mxu0 %v1456
        %2368 = vmatpush1.msra.mxu0 %v1455
        %2369 = vmatprep.subr.mxu0 %v1472
        %2370 = vmatpush1.msra.mxu0 %v1471
        %2371 = vmatprep.subr.mxu0 %v1488
        %2372 = vmatpush1.msra.mxu0 %v1487
        %2373 = vmatprep.subr.mxu0 %v1504
        %2374 = vmatpush1.msra.mxu0 %v1503
        %2375 = vmatprep.subr.mxu0 %v1520
        %2376 = vmatpush1.msra.mxu0 %v1519
        %2377 = vmatprep.subr.mxu0 %v1536
        %2378 = vmatpush1.msra.mxu0 %v1535
        %2379 = vmatprep.subr.mxu0 %v1552
        %2380 = vmatpush1.msra.mxu0 %v1551
        %2381 = vmatprep.subr.mxu0 %v1568
        %2382 = vmatpush1.msra.mxu0 %v1567
        %2383 = vmatprep.subr.mxu0 %v1584
        %2384 = vmatpush1.msra.mxu0 %v1583
        %2385 = vmatprep.subr.mxu0 %v1600
        %2386 = vmatpush1.msra.mxu0 %v1599
        %2387 = vmatprep.subr.mxu0 %v1616
        %2388 = vmatpush1.msra.mxu0 %v1615
        %2389 = vmatprep.subr.mxu0 %v1632
        %2390 = vmatpush1.msra.mxu0 %v1631
        %2391 = vmatprep.subr.mxu0 %v1648
        %2392 = vmatpush1.msra.mxu0 %v1647
        %2393 = vmatprep.subr.mxu0 %v1664
        %2394 = vmatpush1.msra.mxu0 %v1663
        %2395 = vmatprep.subr.mxu0 %v1680
        %2396 = vmatpush1.msra.mxu0 %v1679
        %2397 = vmatprep.subr.mxu0 %v1696
        %2398 = vmatpush1.msra.mxu0 %v1695
        %2399 = vmatprep.subr.mxu0 %v1712
        %2400 = vmatpush1.msra.mxu0 %v1711
        %2401 = vmatprep.subr.mxu0 %v1728
        %2402 = vmatpush1.msra.mxu0 %v1727
        %2403 = vmatprep.subr.mxu0 %v1744
        %2404 = vmatpush1.msra.mxu0 %v1743
        %2405 = vmatprep.subr.mxu0 %v1760
        %2406 = vmatpush1.msra.mxu0 %v1759
        %2407 = vmatprep.subr.mxu0 %v1776
        %2408 = vmatpush1.msra.mxu0 %v1775
        %2409 = vmatprep.subr.mxu0 %v1792
        %2410 = vmatpush1.msra.mxu0 %v1791
        %2411 = vmatprep.subr.mxu0 %v1808
        %2412 = vmatpush1.msra.mxu0 %v1807
        %2413 = vmatprep.subr.mxu0 %v1824
        %2414 = vmatpush1.msra.mxu0 %v1823
        %2415 = vmatprep.subr.mxu0 %v1840
        %2416 = vmatpush1.msra.mxu0 %v1839
        %2417 = vmatprep.subr.mxu0 %v1856
        %2418 = vmatpush1.msra.mxu0 %v1855
        %2419 = vmatprep.subr.mxu0 %v1872
        %2420 = vmatpush1.msra.mxu0 %v1871
        %2421 = vmatprep.subr.mxu0 %v1888
        %2422 = vmatpush1.msra.mxu0 %v1887
        %2423 = vmatprep.subr.mxu0 %v1904
        %2424 = vmatpush1.msra.mxu0 %v1903
        %2425 = vmatprep.subr.mxu0 %v1920
        %2426 = vmatpush1.msra.mxu0 %v1919
        %2427 = vmatprep.subr.mxu0 %v1936
        %2428 = vmatpush1.msra.mxu0 %v1935
        %2429 = vmatprep.mubr.f32.mxu0 %v1426
        %2430 = vmatmul.mubr.f32.gmra.mrb[0].mxu0 %v1425
        %v2431 = vpop.f32.mrb[0].mxu0
        %v2432 = vadd.f32 0.0, %v2431
        %v2433 = vpop.f32.mrb[0].mxu0
        %v2434 = vadd.f32 0.0, %v2433
        %2435 = vdwg.mxu0
        %2436 = vmatprep.subr.mxu0 %v1442
        %2437 = vmatpush1.msra.mxu0 %v1441
        %2438 = vmatprep.subr.mxu0 %v1458
        %2439 = vmatpush1.msra.mxu0 %v1457
        %2440 = vmatprep.subr.mxu0 %v1474
        %2441 = vmatpush1.msra.mxu0 %v1473
        %2442 = vmatprep.subr.mxu0 %v1490
        %2443 = vmatpush1.msra.mxu0 %v1489
        %2444 = vmatprep.subr.mxu0 %v1506
        %2445 = vmatpush1.msra.mxu0 %v1505
        %2446 = vmatprep.subr.mxu0 %v1522
        %2447 = vmatpush1.msra.mxu0 %v1521
        %2448 = vmatprep.subr.mxu0 %v1538
        %2449 = vmatpush1.msra.mxu0 %v1537
        %2450 = vmatprep.subr.mxu0 %v1554
        %2451 = vmatpush1.msra.mxu0 %v1553
        %2452 = vmatprep.subr.mxu0 %v1570
        %2453 = vmatpush1.msra.mxu0 %v1569
        %2454 = vmatprep.subr.mxu0 %v1586
        %2455 = vmatpush1.msra.mxu0 %v1585
        %2456 = vmatprep.subr.mxu0 %v1602
        %2457 = vmatpush1.msra.mxu0 %v1601
        %2458 = vmatprep.subr.mxu0 %v1618
        %2459 = vmatpush1.msra.mxu0 %v1617
        %2460 = vmatprep.subr.mxu0 %v1634
        %2461 = vmatpush1.msra.mxu0 %v1633
        %2462 = vmatprep.subr.mxu0 %v1650
        %2463 = vmatpush1.msra.mxu0 %v1649
        %2464 = vmatprep.subr.mxu0 %v1666
        %2465 = vmatpush1.msra.mxu0 %v1665
        %2466 = vmatprep.subr.mxu0 %v1682
        %2467 = vmatpush1.msra.mxu0 %v1681
        %2468 = vmatprep.subr.mxu0 %v1698
        %2469 = vmatpush1.msra.mxu0 %v1697
        %2470 = vmatprep.subr.mxu0 %v1714
        %2471 = vmatpush1.msra.mxu0 %v1713
        %2472 = vmatprep.subr.mxu0 %v1730
        %2473 = vmatpush1.msra.mxu0 %v1729
        %2474 = vmatprep.subr.mxu0 %v1746
        %2475 = vmatpush1.msra.mxu0 %v1745
        %2476 = vmatprep.subr.mxu0 %v1762
        %2477 = vmatpush1.msra.mxu0 %v1761
        %2478 = vmatprep.subr.mxu0 %v1778
        %2479 = vmatpush1.msra.mxu0 %v1777
        %2480 = vmatprep.subr.mxu0 %v1794
        %2481 = vmatpush1.msra.mxu0 %v1793
        %2482 = vmatprep.subr.mxu0 %v1810
        %2483 = vmatpush1.msra.mxu0 %v1809
        %2484 = vmatprep.subr.mxu0 %v1826
        %2485 = vmatpush1.msra.mxu0 %v1825
        %2486 = vmatprep.subr.mxu0 %v1842
        %2487 = vmatpush1.msra.mxu0 %v1841
        %2488 = vmatprep.subr.mxu0 %v1858
        %2489 = vmatpush1.msra.mxu0 %v1857
        %2490 = vmatprep.subr.mxu0 %v1874
        %2491 = vmatpush1.msra.mxu0 %v1873
        %2492 = vmatprep.subr.mxu0 %v1890
        %2493 = vmatpush1.msra.mxu0 %v1889
        %2494 = vmatprep.subr.mxu0 %v1906
        %2495 = vmatpush1.msra.mxu0 %v1905
        %2496 = vmatprep.subr.mxu0 %v1922
        %2497 = vmatpush1.msra.mxu0 %v1921
        %2498 = vmatprep.subr.mxu0 %v1938
        %2499 = vmatpush1.msra.mxu0 %v1937
        %2500 = vmatprep.mubr.f32.mxu0 %v1426
        %2501 = vmatmul.mubr.f32.gmra.mrb[0].mxu0 %v1425
        %v2502 = vpop.f32.mrb[0].mxu0
        %v2503 = vadd.f32 0.0, %v2502
        %v2504 = vpop.f32.mrb[0].mxu0
        %v2505 = vadd.f32 0.0, %v2504
        %2506 = vdwg.mxu0
        %v2507 = vadd.f32 %v1409, %v2006
        %v2508 = vadd.f32 %v1410, %v2008
        %v2509 = vadd.f32 %v1411, %v2077
        %v2510 = vadd.f32 %v1412, %v2079
        %v2511 = vadd.f32 %v1413, %v2148
        %v2512 = vadd.f32 %v1414, %v2150
        %v2513 = vadd.f32 %v1415, %v2219
        %v2514 = vadd.f32 %v1416, %v2221
        %v2515 = vadd.f32 %v1417, %v2290
        %v2516 = vadd.f32 %v1418, %v2292
        %v2517 = vadd.f32 %v1419, %v2361
        %v2518 = vadd.f32 %v1420, %v2363
        %v2519 = vadd.f32 %v1421, %v2432
        %v2520 = vadd.f32 %v1422, %v2434
        %v2521 = vadd.f32 %v1423, %v2503
        %v2522 = vadd.f32 %v1424, %v2505
        %2523 = vst [vmem:[%s1303] sm:$0xff] %v2507
        %2524 = vst [vmem:[%s1303 + $0x8] sm:$0xff] %v2508
        %2525 = vst [vmem:[%s1303 + $0x10] sm:$0xff] %v2509
        %2526 = vst [vmem:[%s1303 + $0x18] sm:$0xff] %v2510
        %2527 = vst [vmem:[%s1303 + $0x20] sm:$0xff] %v2511
        %2528 = vst [vmem:[%s1303 + $0x28] sm:$0xff] %v2512
        %2529 = vst [vmem:[%s1303 + $0x30] sm:$0xff] %v2513
        %2530 = vst [vmem:[%s1303 + $0x38] sm:$0xff] %v2514
        %2531 = vst [vmem:[%s1303 + $0x40] sm:$0xff] %v2515
        %2532 = vst [vmem:[%s1303 + $0x48] sm:$0xff] %v2516
        %2533 = vst [vmem:[%s1303 + $0x50] sm:$0xff] %v2517
        %2534 = vst [vmem:[%s1303 + $0x58] sm:$0xff] %v2518
        %2535 = vst [vmem:[%s1303 + $0x60] sm:$0xff] %v2519
        %2536 = vst [vmem:[%s1303 + $0x68] sm:$0xff] %v2520
        %2537 = vst [vmem:[%s1303 + $0x70] sm:$0xff] %v2521
        %2538 = vst [vmem:[%s1303 + $0x78] sm:$0xff] %v2522
        %s2539 = smul.u32 16, %s20
        %p2540 = scmp.lt.s32.totalorder %s19, 0
        %s2541 = scalar_select %p2540, %s19, 0
        %p2542 = scmp.lt.s32.totalorder %s2539, 63
        %s2543 = scalar_select %p2542, %s2539, 63
        %s2544 = smul.addr %s2541, 64
        %s2545 = sadd.s32 %s2543, %s2544
        %s2546 = smul.addr %s2545, 8
        %s2547 = scalar_lea.vmem %s3, %s2546
        // Predicated region
        $region60: #{rnn1_forward.24} parent=50 // pred_check
          %p2548 = pneg %p135
        $region61: #{rnn1_forward.24} parent=50 // pred_check_branch
          %2550 = sbr.rel (%p2548) target = $region63
        $region62: #{rnn1_forward.24} parent=50 // pred_region
          %s2551 = smul.u32 16, %s20
        $region63: #{rnn1_forward.24} parent=50 // pred_fallthru
          _
      $region51: #{rnn1_forward.24} parent=5 // pred_fallthru
        _
      %p2552 = scmp.le.s32.totalorder 2, %s9
      // Predicated region
      $region64: #{rnn1_forward.24} parent=5 // pred_check
        %p2553 = pneg %p2552
      $region65: #{rnn1_forward.24} parent=5 // pred_check_branch
        %2555 = sbr.rel (%p2553) target = $region67
      $region66: #{rnn1_forward.24} parent=5 // pred_region
        %s2556 = ssub.s32 %s9, 2
        // Predicated region
        $region68: #{rnn1_forward.24} parent=66 // pred_check
          %p2557 = pneg %p141
        $region69: #{rnn1_forward.24} parent=66 // pred_check_branch
          %2559 = sbr.rel (%p2557) target = $region71
        $region70: #{rnn1_forward.24} parent=66 // pred_region
          %s2560 = smul.u32 16, %s23
          %p2561 = scmp.lt.s32.totalorder %s22, 0
          %s2562 = scalar_select %p2561, %s22, 0
          %p2563 = scmp.lt.s32.totalorder %s2560, 63
          %s2564 = scalar_select %p2563, %s2560, 63
          %s2565 = smul.addr %s2562, 64
          %s2566 = sadd.s32 %s2564, %s2565
          %s2567 = smul.addr %s2566, 8
          %s2568 = scalar_lea.vmem %s3, %s2567
        $region71: #{rnn1_forward.24} parent=66 // pred_fallthru
          _
      $region67: #{rnn1_forward.24} parent=5 // pred_fallthru
        _
    $region6: #{rnn1_forward.24} parent=1 // loop_footer
      %s13 = sadd.s32 1, %s9
    $region7: #{rnn1_forward.24} parent=1 // loop_footer_branch
      %8 = sbr.rel target = $region3
    $region8: #{rnn1_forward.24} parent=1 // loop_exit
      _

// kernel: rnn1_forward.27
$region0: #{rnn1_forward.27}
  #allocation0 [shape = 'u32[]', space=smem, size = 0x4, offset = 0x4, fixed_abs, tag = 'smem constant byte address 0x4 - core index']
  #allocation1 [shape = 'u32[144,128]{1,0:T(1,128)}', space=vmem, size = 0x12000, scoped, tag = 'internal scratch']
  %s0 = inlined_call_operand.vmem [shape: f32[3,8,128], index: 0, kind: input, shape index: {}]
  %s1 = inlined_call_operand.vmem [shape: f32[3,128,128], index: 1, kind: input, shape index: {}]
  %s2 = inlined_call_operand.vmem [shape: f32[3,1,128], index: 2, kind: input, shape index: {}]
  %s3 = inlined_call_operand.vmem [shape: f32[3,8,128], index: 3, kind: output, shape index: {}]
  %s4 = sld [smem:[#allocation0]]
  $region49: #{rnn1_forward.27} parent=0
    _
  %s6 = ssub.s32 1, %s4
  %s7 = scalar_select 0, %s6, %s4
  loop: start=0, step=1, limit=5
  $region2: #{rnn1_forward.27} parent=0 // loop_pre_header
    _
  $region3: #{rnn1_forward.27} parent=0 // loop_header
    %s9 = sphi 0, %s13
    %p10 = scmp.ge.s32.totalorder %s9, 5
    %s16 = sphi 0, %s42
    %s17 = sphi 0, %s38
    %s18 = sphi 0, %s34
    %s19 = sphi 0, %s30
    %s20 = sphi 0, %s16
    %s21 = sphi 0, %s17
    %s22 = sphi 0, %s18
    %s23 = sphi 0, %s19
    %s24 = sphi 0, %s20
    %s25 = sphi 0, %s21
    %s26 = sphi 0, %s22
    %s27 = sphi 0, %s23
    %s49 = sphi 0, %s51
    %s52 = sphi 0, %s49
    %s53 = sphi 0, %s52
    %s69 = sphi 0, %s53
    %s79 = sphi 0, %s81
    %s82 = sphi 0, %s79
    %s83 = sphi 0, %s82
    %s99 = sphi 0, %s83
    %s107 = sphi 0, %s109
    %s110 = sphi 0, %s107
    %s111 = sphi 0, %s110
    %s127 = sphi 0, %s111
    %s137 = sphi 0, %s139
    %s140 = sphi 0, %s137
    %s141 = sphi 0, %s140
    %s157 = sphi 0, %s141
  $region4: #{rnn1_forward.27} parent=0 // loop_header_branch
    %12 = sbr.rel (%p10) target = $region8
  $region5: #{rnn1_forward.27} parent=0 // loop_body
    %s14 = ssub.s32 %s9, 1
    %s15 = ssub.s32 %s9, 2
    %s28 = sadd.s32 1, %s19
    %p29 = scmp.ge.s32.totalorder %s28, 1
    %s30 = scalar_select %p29, 0, %s28
    %s31 = sadd.s32 1, %s18
    %s32 = scalar_select %p29, %s31, %s18
    %p33 = scmp.ge.s32.totalorder %s32, 1
    %s34 = scalar_select %p33, 0, %s32
    %s35 = sadd.s32 1, %s17
    %s36 = scalar_select %p33, %s35, %s17
    %p37 = scmp.ge.s32.totalorder %s36, 1
    %s38 = scalar_select %p37, 0, %s36
    %s39 = sadd.s32 1, %s16
    %s40 = scalar_select %p37, %s39, %s16
    %p41 = scmp.ge.s32.totalorder %s40, 3
    %s42 = scalar_select %p41, 0, %s40
    %s43 = ssub.s32 %s16, %s42
    %s44 = ssub.s32 %s17, %s38
    %s45 = sor.u32 %s43, %s44
    %s46 = ssub.s32 %s19, %s30
    %s47 = sor.u32 %s45, %s46
    %p48 = scmp.eq.s32.totalorder %s47, 0
    %s50 = sadd.s32 %s49, 1
    %s51 = scalar_select %p48, %s49, %s50
    %p54 = pneg %p48
    %p55 = scmp.eq.s32.totalorder %s9, 2
    %p56 = por %p54, %p55
    %p57 = scmp.ne.s32.totalorder %s49, %s52
    %p58 = scmp.eq.s32.totalorder %s9, 0
    %p59 = por %p57, %p58
    %p60 = scmp.ne.s32.totalorder %s49, %s52
    %p61 = scmp.eq.s32.totalorder %s14, 2
    %p62 = por %p60, %p61
    %p63 = scmp.ne.s32.totalorder %s52, %s53
    %p64 = scmp.eq.s32.totalorder %s14, 0
    %p65 = por %p63, %p64
    %p66 = scmp.ne.s32.totalorder %s52, %s53
    %p67 = scmp.eq.s32.totalorder %s15, 2
    %p68 = por %p66, %p67
    %p70 = scmp.ne.s32.totalorder %s53, %s69
    %p71 = scmp.eq.s32.totalorder %s15, 0
    %p72 = por %p70, %p71
    %s73 = ssub.s32 %s16, %s42
    %s74 = ssub.s32 %s19, %s30
    %s75 = sor.u32 %s73, %s74
    %s76 = ssub.s32 %s18, %s34
    %s77 = sor.u32 %s75, %s76
    %p78 = scmp.eq.s32.totalorder %s77, 0
    %s80 = sadd.s32 %s79, 1
    %s81 = scalar_select %p78, %s79, %s80
    %p84 = pneg %p78
    %p85 = scmp.eq.s32.totalorder %s9, 2
    %p86 = por %p84, %p85
    %p87 = scmp.ne.s32.totalorder %s79, %s82
    %p88 = scmp.eq.s32.totalorder %s9, 0
    %p89 = por %p87, %p88
    %p90 = scmp.ne.s32.totalorder %s79, %s82
    %p91 = scmp.eq.s32.totalorder %s14, 2
    %p92 = por %p90, %p91
    %p93 = scmp.ne.s32.totalorder %s82, %s83
    %p94 = scmp.eq.s32.totalorder %s14, 0
    %p95 = por %p93, %p94
    %p96 = scmp.ne.s32.totalorder %s82, %s83
    %p97 = scmp.eq.s32.totalorder %s15, 2
    %p98 = por %p96, %p97
    %p100 = scmp.ne.s32.totalorder %s83, %s99
    %p101 = scmp.eq.s32.totalorder %s15, 0
    %p102 = por %p100, %p101
    %s103 = ssub.s32 %s16, %s42
    %s104 = ssub.s32 %s18, %s34
    %s105 = sor.u32 %s103, %s104
    %p106 = scmp.eq.s32.totalorder %s105, 0
    %s108 = sadd.s32 %s107, 1
    %s109 = scalar_select %p106, %s107, %s108
    %p112 = pneg %p106
    %p113 = scmp.eq.s32.totalorder %s9, 2
    %p114 = por %p112, %p113
    %p115 = scmp.ne.s32.totalorder %s107, %s110
    %p116 = scmp.eq.s32.totalorder %s9, 0
    %p117 = por %p115, %p116
    %p118 = scmp.ne.s32.totalorder %s107, %s110
    %p119 = scmp.eq.s32.totalorder %s14, 2
    %p120 = por %p118, %p119
    %p121 = scmp.ne.s32.totalorder %s110, %s111
    %p122 = scmp.eq.s32.totalorder %s14, 0
    %p123 = por %p121, %p122
    %p124 = scmp.ne.s32.totalorder %s110, %s111
    %p125 = scmp.eq.s32.totalorder %s15, 2
    %p126 = por %p124, %p125
    %p128 = scmp.ne.s32.totalorder %s111, %s127
    %p129 = scmp.eq.s32.totalorder %s15, 0
    %p130 = por %p128, %p129
    %s131 = ssub.s32 %s16, %s42
    %s132 = ssub.s32 %s17, %s38
    %s133 = sor.u32 %s131, %s132
    %s134 = ssub.s32 %s18, %s34
    %s135 = sor.u32 %s133, %s134
    %p136 = scmp.eq.s32.totalorder %s135, 0
    %s138 = sadd.s32 %s137, 1
    %s139 = scalar_select %p136, %s137, %s138
    %p142 = pneg %p136
    %p143 = scmp.eq.s32.totalorder %s9, 2
    %p144 = por %p142, %p143
    %p145 = scmp.ne.s32.totalorder %s137, %s140
    %p146 = scmp.eq.s32.totalorder %s9, 0
    %p147 = por %p145, %p146
    %p148 = scmp.ne.s32.totalorder %s137, %s140
    %p149 = scmp.eq.s32.totalorder %s14, 2
    %p150 = por %p148, %p149
    %p151 = scmp.ne.s32.totalorder %s140, %s141
    %p152 = scmp.eq.s32.totalorder %s14, 0
    %p153 = por %p151, %p152
    %p154 = scmp.ne.s32.totalorder %s140, %s141
    %p155 = scmp.eq.s32.totalorder %s15, 2
    %p156 = por %p154, %p155
    %p158 = scmp.ne.s32.totalorder %s141, %s157
    %p159 = scmp.eq.s32.totalorder %s15, 0
    %p160 = por %p158, %p159
    %p161 = scmp.le.s32.totalorder 1, %s9
    %p162 = scmp.lt.s32.totalorder %s9, 4
    %p163 = pnand %p161, %p162
    %p164 = pneg %p163
    // Predicated region
    $region9: #{rnn1_forward.27} parent=5 // pred_check
      _
    $region10: #{rnn1_forward.27} parent=5 // pred_check_branch
      %166 = sbr.rel (%p163) target = $region12
    $region11: #{rnn1_forward.27} parent=5 // pred_region
      %s167 = ssub.s32 %s9, 1
    $region12: #{rnn1_forward.27} parent=5 // pred_fallthru
      _
    %p168 = scmp.lt.s32.totalorder %s9, 3
    // Predicated region
    $region13: #{rnn1_forward.27} parent=5 // pred_check
      %p169 = pneg %p168
    $region14: #{rnn1_forward.27} parent=5 // pred_check_branch
      %171 = sbr.rel (%p169) target = $region16
    $region15: #{rnn1_forward.27} parent=5 // pred_region
      // Predicated region
      $region17: #{rnn1_forward.27} parent=15 // pred_check
        %p172 = pneg %p59
      $region18: #{rnn1_forward.27} parent=15 // pred_check_branch
        %174 = sbr.rel (%p172) target = $region20
      $region19: #{rnn1_forward.27} parent=15 // pred_region
        %p175 = scmp.lt.s32.totalorder %s16, 2
        %s176 = scalar_select %p175, %s16, 2
        %p177 = scmp.lt.s32.totalorder %s17, 0
        %s178 = scalar_select %p177, %s17, 0
        %p179 = scmp.lt.s32.totalorder %s19, 0
        %s180 = scalar_select %p179, %s19, 0
        %s181 = sadd.s32 %s180, %s178
        %s182 = sadd.s32 %s181, %s176
        %s183 = smul.addr %s182, 8
        %s184 = scalar_lea.vmem %s0, %s183
      $region20: #{rnn1_forward.27} parent=15 // pred_fallthru
        _
      // Predicated region
      $region21: #{rnn1_forward.27} parent=15 // pred_check
        %p185 = pneg %p89
      $region22: #{rnn1_forward.27} parent=15 // pred_check_branch
        %187 = sbr.rel (%p185) target = $region24
      $region23: #{rnn1_forward.27} parent=15 // pred_region
        %s188 = smul.u32 16, %s19
        %p189 = scmp.lt.s32.totalorder %s16, 2
        %s190 = scalar_select %p189, %s16, 2
        %p191 = scmp.lt.s32.totalorder %s188, 15
        %s192 = scalar_select %p191, %s188, 15
        %p193 = scmp.lt.s32.totalorder %s18, 0
        %s194 = scalar_select %p193, %s18, 0
        %s195 = sadd.s32 %s194, %s192
        %s196 = smul.addr %s190, 16
        %s197 = sadd.s32 %s195, %s196
        %s198 = smul.addr %s197, 8
        %s199 = scalar_lea.vmem %s1, %s198
        %s200 = smul.u32 16, %s19
      $region24: #{rnn1_forward.27} parent=15 // pred_fallthru
        _
      // Predicated region
      $region25: #{rnn1_forward.27} parent=15 // pred_check
        %p201 = pneg %p117
      $region26: #{rnn1_forward.27} parent=15 // pred_check_branch
        %203 = sbr.rel (%p201) target = $region28
      $region27: #{rnn1_forward.27} parent=15 // pred_region
        %p204 = scmp.lt.s32.totalorder %s16, 2
        %s205 = scalar_select %p204, %s16, 2
        %p206 = scmp.lt.s32.totalorder %s18, 0
        %s207 = scalar_select %p206, %s18, 0
        %s208 = sadd.s32 %s207, %s205
        %s209 = scalar_lea.vmem %s2, %s208
      $region28: #{rnn1_forward.27} parent=15 // pred_fallthru
        _
    $region16: #{rnn1_forward.27} parent=5 // pred_fallthru
      _
    %p210 = scmp.le.s32.totalorder 1, %s9
    %p211 = scmp.lt.s32.totalorder %s9, 4
    %p212 = pnand %p210, %p211
    %p213 = pneg %p212
    // Predicated region
    $region29: #{rnn1_forward.27} parent=5 // pred_check
      _
    $region30: #{rnn1_forward.27} parent=5 // pred_check_branch
      %215 = sbr.rel (%p212) target = $region32
    $region31: #{rnn1_forward.27} parent=5 // pred_region
      %s216 = ssub.s32 %s9, 1
      %p217 = scmp.lt.s32.totalorder %s20, 2
      %s218 = scalar_select %p217, %s20, 2
      %p219 = scmp.lt.s32.totalorder %s21, 0
      %s220 = scalar_select %p219, %s21, 0
      %p221 = scmp.lt.s32.totalorder %s23, 0
      %s222 = scalar_select %p221, %s23, 0
      %s223 = sadd.s32 %s222, %s220
      %s224 = sadd.s32 %s223, %s218
      %s225 = smul.addr %s224, 8
      %s226 = scalar_lea.vmem %s0, %s225
      %p227 = pneg %p65
      %p228 = pneg %p62
      %s229 = smul.u32 16, %s23
      %p230 = scmp.lt.s32.totalorder %s20, 2
      %s231 = scalar_select %p230, %s20, 2
      %p232 = scmp.lt.s32.totalorder %s229, 15
      %s233 = scalar_select %p232, %s229, 15
      %p234 = scmp.lt.s32.totalorder %s22, 0
      %s235 = scalar_select %p234, %s22, 0
      %s236 = sadd.s32 %s235, %s233
      %s237 = smul.addr %s231, 16
      %s238 = sadd.s32 %s236, %s237
      %s239 = smul.addr %s238, 8
      %s240 = scalar_lea.vmem %s1, %s239
      %p241 = pneg %p95
      %p242 = pneg %p92
      %p243 = scmp.lt.s32.totalorder %s20, 2
      %s244 = scalar_select %p243, %s20, 2
      %p245 = scmp.lt.s32.totalorder %s22, 0
      %s246 = scalar_select %p245, %s22, 0
      %s247 = sadd.s32 %s246, %s244
      %s248 = scalar_lea.vmem %s2, %s247
      %p249 = pneg %p123
      %p250 = pneg %p120
      %p251 = pneg %p153
      %p252 = pneg %p150
      %p253 = scmp.lt.s32.totalorder %s20, 2
      %s254 = scalar_select %p253, %s20, 2
      %p255 = scmp.lt.s32.totalorder %s21, 0
      %s256 = scalar_select %p255, %s21, 0
      %p257 = scmp.lt.s32.totalorder %s22, 0
      %s258 = scalar_select %p257, %s22, 0
      %s259 = sadd.s32 %s258, %s256
      %s260 = sadd.s32 %s259, %s254
      %s261 = smul.addr %s260, 8
      %s262 = scalar_lea.vmem %s3, %s261
      %p263 = scmp.lt.s32.totalorder %s20, 2
      %s264 = scalar_select %p263, %s20, 2
      %p265 = scmp.lt.s32.totalorder %s21, 0
      %s266 = scalar_select %p265, %s21, 0
      %p267 = scmp.lt.s32.totalorder %s23, 0
      %s268 = scalar_select %p267, %s23, 0
      %s269 = sadd.s32 %s268, %s266
      %s270 = sadd.s32 %s269, %s264
      %s271 = smul.addr %s270, 8
      %s272 = scalar_lea.vmem %s0, %s271
      %s273 = smul.u32 16, %s23
      %p274 = scmp.lt.s32.totalorder %s20, 2
      %s275 = scalar_select %p274, %s20, 2
      %p276 = scmp.lt.s32.totalorder %s273, 15
      %s277 = scalar_select %p276, %s273, 15
      %p278 = scmp.lt.s32.totalorder %s22, 0
      %s279 = scalar_select %p278, %s22, 0
      %s280 = sadd.s32 %s279, %s277
      %s281 = smul.addr %s275, 16
      %s282 = sadd.s32 %s280, %s281
      %s283 = smul.addr %s282, 8
      %s284 = scalar_lea.vmem %s1, %s283
      %s285 = smul.u32 16, %s23
      %p286 = scmp.lt.s32.totalorder %s20, 2
      %s287 = scalar_select %p286, %s20, 2
      %p288 = scmp.lt.s32.totalorder %s22, 0
      %s289 = scalar_select %p288, %s22, 0
      %s290 = sadd.s32 %s289, %s287
      %s291 = scalar_lea.vmem %s2, %s290
      %p292 = scmp.lt.s32.totalorder %s20, 2
      %s293 = scalar_select %p292, %s20, 2
      %p294 = scmp.lt.s32.totalorder %s21, 0
      %s295 = scalar_select %p294, %s21, 0
      %p296 = scmp.lt.s32.totalorder %s22, 0
      %s297 = scalar_select %p296, %s22, 0
      %s298 = sadd.s32 %s297, %s295
      %s299 = sadd.s32 %s298, %s293
      %s300 = smul.addr %s299, 8
      %s301 = scalar_lea.vmem %s3, %s300
      %p302 = scmp.eq.s32.totalorder %s23, 0
      // Predicated region
      $region33: #{rnn1_forward.27} parent=31 // pred_check
        %p303 = pneg %p302
      $region34: #{rnn1_forward.27} parent=31 // pred_check_branch
        %305 = sbr.rel (%p303) target = $region36
      $region35: #{rnn1_forward.27} parent=31 // pred_region
        %v306 = vld [vmem:[%s291] sm:$0x1]
        %v308 = vlaneseq
        %v309 = vshrl.u32 %v308, 7
        %v310 = vsub.s32 0, %v309
        %v311 = vrot.slane %v306, %v310
        %313 = vst [vmem:[%s301] sm:$0xff] %v311
      $region36: #{rnn1_forward.27} parent=31 // pred_fallthru
        _
      %v314 = vld [vmem:[%s301] sm:$0xff]
      %v315 = vld [vmem:[%s272] sm:$0xff]
      %v316 = vld [vmem:[%s284] sm:$0xff]
      %v317 = vld [vmem:[%s284 + $0x8] sm:$0xff]
      %v318 = vld [vmem:[%s284 + $0x10] sm:$0xff]
      %v319 = vld [vmem:[%s284 + $0x18] sm:$0xff]
      %v320 = vld [vmem:[%s284 + $0x20] sm:$0xff]
      %v321 = vld [vmem:[%s284 + $0x28] sm:$0xff]
      %v322 = vld [vmem:[%s284 + $0x30] sm:$0xff]
      %v323 = vld [vmem:[%s284 + $0x38] sm:$0xff]
      %v324 = vld [vmem:[%s284 + $0x40] sm:$0xff]
      %v325 = vld [vmem:[%s284 + $0x48] sm:$0xff]
      %v326 = vld [vmem:[%s284 + $0x50] sm:$0xff]
      %v327 = vld [vmem:[%s284 + $0x58] sm:$0xff]
      %v328 = vld [vmem:[%s284 + $0x60] sm:$0xff]
      %v329 = vld [vmem:[%s284 + $0x68] sm:$0xff]
      %v330 = vld [vmem:[%s284 + $0x70] sm:$0xff]
      %v331 = vld [vmem:[%s284 + $0x78] sm:$0xff]
      %332 = vmatprep.subr.mxu0 0.0
      %333 = vmatpush1.msra.mxu0 %v316
      %334 = vmatprep.subr.mxu0 0.0
      %335 = vmatpush1.msra.mxu0 %v317
      %336 = vmatprep.subr.mxu0 0.0
      %337 = vmatpush1.msra.mxu0 %v318
      %338 = vmatprep.subr.mxu0 0.0
      %339 = vmatpush1.msra.mxu0 %v319
      %340 = vmatprep.subr.mxu0 0.0
      %341 = vmatpush1.msra.mxu0 %v320
      %342 = vmatprep.subr.mxu0 0.0
      %343 = vmatpush1.msra.mxu0 %v321
      %344 = vmatprep.subr.mxu0 0.0
      %345 = vmatpush1.msra.mxu0 %v322
      %346 = vmatprep.subr.mxu0 0.0
      %347 = vmatpush1.msra.mxu0 %v323
      %348 = vmatprep.subr.mxu0 0.0
      %349 = vmatpush1.msra.mxu0 %v324
      %350 = vmatprep.subr.mxu0 0.0
      %351 = vmatpush1.msra.mxu0 %v325
      %352 = vmatprep.subr.mxu0 0.0
      %353 = vmatpush1.msra.mxu0 %v326
      %354 = vmatprep.subr.mxu0 0.0
      %355 = vmatpush1.msra.mxu0 %v327
      %356 = vmatprep.subr.mxu0 0.0
      %357 = vmatpush1.msra.mxu0 %v328
      %358 = vmatprep.subr.mxu0 0.0
      %359 = vmatpush1.msra.mxu0 %v329
      %360 = vmatprep.subr.mxu0 0.0
      %361 = vmatpush1.msra.mxu0 %v330
      %362 = vmatprep.subr.mxu0 0.0
      %363 = vmatpush1.msra.mxu0 %v331
      %364 = vmatprep.subr.mxu0 0.0
      %365 = vmatpush1.msra.mxu0 0.0
      %366 = vmatprep.subr.mxu0 0.0
      %367 = vmatpush1.msra.mxu0 0.0
      %368 = vmatprep.subr.mxu0 0.0
      %369 = vmatpush1.msra.mxu0 0.0
      %370 = vmatprep.subr.mxu0 0.0
      %371 = vmatpush1.msra.mxu0 0.0
      %372 = vmatprep.subr.mxu0 0.0
      %373 = vmatpush1.msra.mxu0 0.0
      %374 = vmatprep.subr.mxu0 0.0
      %375 = vmatpush1.msra.mxu0 0.0
      %376 = vmatprep.subr.mxu0 0.0
      %377 = vmatpush1.msra.mxu0 0.0
      %378 = vmatprep.subr.mxu0 0.0
      %379 = vmatpush1.msra.mxu0 0.0
      %380 = vmatprep.subr.mxu0 0.0
      %381 = vmatpush1.msra.mxu0 0.0
      %382 = vmatprep.subr.mxu0 0.0
      %383 = vmatpush1.msra.mxu0 0.0
      %384 = vmatprep.subr.mxu0 0.0
      %385 = vmatpush1.msra.mxu0 0.0
      %386 = vmatprep.subr.mxu0 0.0
      %387 = vmatpush1.msra.mxu0 0.0
      %388 = vmatprep.subr.mxu0 0.0
      %389 = vmatpush1.msra.mxu0 0.0
      %390 = vmatprep.subr.mxu0 0.0
      %391 = vmatpush1.msra.mxu0 0.0
      %392 = vmatprep.subr.mxu0 0.0
      %393 = vmatpush1.msra.mxu0 0.0
      %394 = vmatprep.subr.mxu0 0.0
      %395 = vmatpush1.msra.mxu0 0.0
      %396 = vmatprep.mubr.f32.mxu0 0.0
      %397 = vmatmul.mubr.f32.gmra.mrb[0].mxu0 %v315
      %v398 = vpop.f32.mrb[0].mxu0
      %v399 = vadd.f32 0.0, %v398
      %v400 = vpop.f32.mrb[0].mxu0
      %401 = vdwg.mxu0
      %v402 = vadd.f32 %v314, %v399
      %403 = vst [vmem:[%s301] sm:$0xff] %v402
      %p404 = scmp.lt.s32.totalorder %s20, 2
      %s405 = scalar_select %p404, %s20, 2
      %p406 = scmp.lt.s32.totalorder %s21, 0
      %s407 = scalar_select %p406, %s21, 0
      %p408 = scmp.lt.s32.totalorder %s22, 0
      %s409 = scalar_select %p408, %s22, 0
      %s410 = sadd.s32 %s409, %s407
      %s411 = sadd.s32 %s410, %s405
      %s412 = smul.addr %s411, 8
      %s413 = scalar_lea.vmem %s3, %s412
      // Predicated region
      $region37: #{rnn1_forward.27} parent=31 // pred_check
        %p414 = pneg %p150
      $region38: #{rnn1_forward.27} parent=31 // pred_check_branch
        %416 = sbr.rel (%p414) target = $region40
      $region39: #{rnn1_forward.27} parent=31 // pred_region
        _
      $region40: #{rnn1_forward.27} parent=31 // pred_fallthru
        _
    $region32: #{rnn1_forward.27} parent=5 // pred_fallthru
      _
    %p417 = scmp.le.s32.totalorder 2, %s9
    // Predicated region
    $region41: #{rnn1_forward.27} parent=5 // pred_check
      %p418 = pneg %p417
    $region42: #{rnn1_forward.27} parent=5 // pred_check_branch
      %420 = sbr.rel (%p418) target = $region44
    $region43: #{rnn1_forward.27} parent=5 // pred_region
      %s421 = ssub.s32 %s9, 2
      // Predicated region
      $region45: #{rnn1_forward.27} parent=43 // pred_check
        %p422 = pneg %p156
      $region46: #{rnn1_forward.27} parent=43 // pred_check_branch
        %424 = sbr.rel (%p422) target = $region48
      $region47: #{rnn1_forward.27} parent=43 // pred_region
        %p425 = scmp.lt.s32.totalorder %s24, 2
        %s426 = scalar_select %p425, %s24, 2
        %p427 = scmp.lt.s32.totalorder %s25, 0
        %s428 = scalar_select %p427, %s25, 0
        %p429 = scmp.lt.s32.totalorder %s26, 0
        %s430 = scalar_select %p429, %s26, 0
        %s431 = sadd.s32 %s430, %s428
        %s432 = sadd.s32 %s431, %s426
        %s433 = smul.addr %s432, 8
        %s434 = scalar_lea.vmem %s3, %s433
      $region48: #{rnn1_forward.27} parent=43 // pred_fallthru
        _
    $region44: #{rnn1_forward.27} parent=5 // pred_fallthru
      _
  $region6: #{rnn1_forward.27} parent=0 // loop_footer
    %s13 = sadd.s32 1, %s9
  $region7: #{rnn1_forward.27} parent=0 // loop_footer_branch
    %8 = sbr.rel target = $region3
  $region8: #{rnn1_forward.27} parent=0 // loop_exit
    _

</llo_original>
